<compile_context>
chip_gen: v7x
topology: tpu7x:2x2x1
jax: 0.10.0
libtpu: 0.0.40
codegen_flags: <defaults>
</compile_context>

<pallas_src>
import functools

import numpy as np
import jax
import jax.numpy as jnp
from jax.experimental import pallas as pl
from jax.experimental.pallas import tpu as pltpu


NB = 8  # samples processed per grid step


# --------------------------- param preparation -----------------------------

def prepare_catnet_params(params, spatial_hw):
    """One-time (outside jit) re-layout of torch-style parameters.

    conv_w (Cout, C, K, K)  -> w2   (Cout, K*K*C)  im2col order (tap-major)
    conv_b (Cout,)          -> (Cout, 1)
    fc_w   (ncls, Cout*H*W) -> fcw  (Cout, ncls, HW)  lane axis = HW (dense)
    fc_b   (ncls,)          -> (1, ncls)
    Also precomputes the (C*K*K, HW) 'same'-padding validity mask.
    """
    conv_w = params["conv_w"]
    conv_b = params["conv_b"]
    fc_w = params["fc_w"]
    fc_b = params["fc_b"]
    Cout, C, K, _ = conv_w.shape
    ncls = fc_w.shape[0]
    H, W = spatial_hw
    HW = H * W
    P = K // 2

    # conv weight: w2[co, (kh*K + kw)*C + c] = conv_w[co, c, kh, kw]
    w2 = jnp.transpose(conv_w, (0, 2, 3, 1)).reshape(Cout, K * K * C)
    # FC weight: fcw[co, cls, hw] = fc_w[cls, co*HW + hw]
    fcw = fc_w.reshape(ncls, Cout, HW).transpose(1, 0, 2)

    # Per-tap validity mask, replicated per input channel so the whole im2col
    # stack is masked with one elementwise multiply inside the kernel.
    hw = np.arange(HW)
    h, w = hw // W, hw % W
    rows = []
    for kh in range(K):
        for kw in range(K):
            dh, dw = kh - P, kw - P
            m = ((h + dh >= 0) & (h + dh < H) &
                 (w + dw >= 0) & (w + dw < W)).astype(np.float32)
            rows.append(np.broadcast_to(m, (C, HW)))
    mask = jnp.asarray(np.concatenate(rows, axis=0))  # (C*K*K, HW)

    return {
        "w2": w2,
        "conv_b": conv_b.reshape(Cout, 1),
        "fcw": fcw,
        "fc_b": fc_b.reshape(1, ncls),
        "mask": mask,
    }


# ------------------------------ fused kernel -------------------------------

def _catnet_kernel(x_ref, w2_ref, cb_ref, fcw_ref, fcb_ref, mask_ref, o_ref,
                   *, K, P, W, HW, nb):
    # x_ref:    (NB, C, HW)       NB samples; channels on sublanes, HW on lanes
    # w2_ref:   (Cout, C*K*K)     conv weight, im2col (tap-major) layout
    # cb_ref:   (Cout, 1)         conv bias
    # fcw_ref:  (Cout, ncls, HW)  FC weight, lane axis = HW (dense)
    # fcb_ref:  (1, ncls)         FC bias
    # mask_ref: (C*K*K, HW)       'same'-padding validity mask per tap
    # o_ref:    (NB, ncls)        logits block for this grid step
    w2 = w2_ref[...]
    cb = cb_ref[...]
    fcb = fcb_ref[...]
    mask = mask_ref[...]

    rows = []
    for s in range(nb):
        xs = x_ref[s]                                    # (C, HW)

        # --- im2col: K*K lane-rotated copies stacked on sublanes, one mask ---
        taps = []
        for kh in range(K):
            for kw in range(K):
                d = (kh - P) * W + (kw - P)              # flat tap offset
                taps.append(xs if d == 0 else
                            pltpu.roll(xs, shift=(-d) % HW, axis=1))
        patches = jnp.concatenate(taps, axis=0) * mask   # (C*K*K, HW)

        # --- module: Conv2d(pad=same) + bias + ReLU as ONE MXU matmul -------
        act = jnp.dot(w2, patches, preferred_element_type=jnp.float32)
        act = jnp.maximum(act + cb, 0.0)                 # (Cout, HW)

        # --- classifier: Linear over channel-major flatten ------------------
        # logits[cls] = fc_b[cls] + sum_co sum_hw act[co,hw] * fcw[co,cls,hw]
        part = jnp.einsum("kqh,kch->kqc", act[:, None, :], fcw_ref[...],
                          preferred_element_type=jnp.float32)[:, 0, :]
        rows.append(jnp.sum(part, axis=0, keepdims=True) + fcb)   # (1, ncls)

    # One dense (NB, ncls) store per step.
    o_ref[...] = jnp.concatenate(rows, axis=0)


def catnet_forward(x, prep):
    """CatNet.forward: classifier(module(x)) as one fused Pallas kernel.

    x: (N, C, H, W) float32; prep: output of prepare_catnet_params.
    Returns logits (N, ncls) float32.
    """
    N, C, H, W = x.shape
    HW = H * W
    w2, conv_b, fcw, fc_b, mask = (prep["w2"], prep["conv_b"], prep["fcw"],
                                   prep["fc_b"], prep["mask"])
    Cout, CKK = w2.shape
    K = int(round((CKK // C) ** 0.5))
    P = K // 2
    ncls = fc_b.shape[1]
    assert fcw.shape == (Cout, ncls, HW)
    assert mask.shape == (CKK, HW)

    n_steps = pl.cdiv(N, NB)
    n_pad = n_steps * NB
    x3 = x.reshape(N, C, HW)
    if n_pad != N:
        x3 = jnp.pad(x3, ((0, n_pad - N), (0, 0), (0, 0)))

    kernel = functools.partial(_catnet_kernel, K=K, P=P, W=W, HW=HW, nb=NB)

    out = pl.pallas_call(
        kernel,
        out_shape=jax.ShapeDtypeStruct((n_pad, ncls), jnp.float32),
        grid=(n_steps,),
        in_specs=[
            pl.BlockSpec((NB, C, HW), lambda g: (g, 0, 0)),
            pl.BlockSpec((Cout, CKK), lambda g: (0, 0)),
            pl.BlockSpec((Cout, 1), lambda g: (0, 0)),
            pl.BlockSpec((Cout, ncls, HW), lambda g: (0, 0, 0)),
            pl.BlockSpec((1, ncls), lambda g: (0, 0)),
            pl.BlockSpec((CKK, HW), lambda g: (0, 0)),
        ],
        out_specs=pl.BlockSpec((NB, ncls), lambda g: (g, 0)),
        compiler_params=pltpu.CompilerParams(
            dimension_semantics=("parallel",)),
    )(x3, w2, conv_b, fcw, fc_b, mask)
    return out[:N]


# ------------------------------- reference ---------------------------------

def catnet_reference(x, params):
    conv_w, conv_b, fc_w, fc_b = (params["conv_w"], params["conv_b"],
                                  params["fc_w"], params["fc_b"])
    pad = conv_w.shape[2] // 2
    y = jax.lax.conv_general_dilated(
        x, conv_w, window_strides=(1, 1), padding=((pad, pad), (pad, pad)),
        dimension_numbers=("NCHW", "OIHW", "NCHW"))
    y = jnp.maximum(y + conv_b[None, :, None, None], 0.0)
    y = y.reshape(x.shape[0], -1)
    return y @ fc_w.T + fc_b


# ---------------------------------- main ------------------------------------

if __name__ == "__main__":
    N, C, H, W = 2, 4, 16, 16
    Cout, K, NUM_CLASSES = 8, 3, 10

    key = jax.random.PRNGKey(0)
    k1, k2, k3, k4, k5 = jax.random.split(key, 5)

    x = jax.random.normal(k1, (N, C, H, W), dtype=jnp.float32)
    params = {
        "conv_w": 0.1 * jax.random.normal(k2, (Cout, C, K, K), dtype=jnp.float32),
        "conv_b": 0.1 * jax.random.normal(k3, (Cout,), dtype=jnp.float32),
        "fc_w":   0.05 * jax.random.normal(k4, (NUM_CLASSES, Cout * H * W), dtype=jnp.float32),
        "fc_b":   0.05 * jax.random.normal(k5, (NUM_CLASSES,), dtype=jnp.float32),
    }

    prep = prepare_catnet_params(params, (H, W))   # one-time host re-layout
    out = jax.jit(catnet_forward)(x, prep)
    out = jax.block_until_ready(out)

    ref = catnet_reference(x, params)
    assert out.shape == (N, NUM_CLASSES)
    assert jnp.allclose(out, ref, atol=1e-3, rtol=1e-3), "mismatch vs reference"

    print("KERNEL_OK")
</pallas_src>

<mosaic_0001>
module attributes {stable_mosaic.version = 11 : i64} {
  func.func @_catnet_kernel(%arg0: i32, %arg1: memref<8x4x256xf32, #tpu.memory_space<vmem>>, %arg2: memref<8x36xf32, #tpu.memory_space<vmem>>, %arg3: memref<8x1xf32, #tpu.memory_space<vmem>>, %arg4: memref<8x10x256xf32, #tpu.memory_space<vmem>>, %arg5: memref<1x10xf32, #tpu.memory_space<vmem>>, %arg6: memref<36x256xf32, #tpu.memory_space<vmem>>, %arg7: memref<8x10xf32, #tpu.memory_space<vmem>>) attributes {dimension_semantics = [#tpu.dimension_semantics<parallel>], iteration_bounds = array<i64: 1>, scalar_prefetch = 0 : i64, scratch_operands = 0 : i64, tpu.core_type = #tpu.core_type<tc>, window_params = [{transform_indices = @transform_0, window_bounds = array<i64: 8, 4, 256>}, {pipeline_mode = #tpu.pipeline_mode<synchronous>, transform_indices = @transform_1, window_bounds = array<i64: 8, 36>}, {pipeline_mode = #tpu.pipeline_mode<synchronous>, transform_indices = @transform_2, window_bounds = array<i64: 8, 1>}, {pipeline_mode = #tpu.pipeline_mode<synchronous>, transform_indices = @transform_3, window_bounds = array<i64: 8, 10, 256>}, {pipeline_mode = #tpu.pipeline_mode<synchronous>, transform_indices = @transform_4, window_bounds = array<i64: 1, 10>}, {pipeline_mode = #tpu.pipeline_mode<synchronous>, transform_indices = @transform_5, window_bounds = array<i64: 36, 256>}, {transform_indices = @transform_6, window_bounds = array<i64: 8, 10>}]} {
    %c0 = arith.constant 0 : index
    %c0_0 = arith.constant 0 : index
    %0 = vector.load %arg2[%c0, %c0_0] : memref<8x36xf32, #tpu.memory_space<vmem>>, vector<8x36xf32>
    %c0_1 = arith.constant 0 : index
    %c0_2 = arith.constant 0 : index
    %1 = vector.load %arg3[%c0_1, %c0_2] : memref<8x1xf32, #tpu.memory_space<vmem>>, vector<8x1xf32>
    %c0_3 = arith.constant 0 : index
    %c0_4 = arith.constant 0 : index
    %2 = vector.load %arg5[%c0_3, %c0_4] : memref<1x10xf32, #tpu.memory_space<vmem>>, vector<1x10xf32>
    %c0_5 = arith.constant 0 : index
    %c0_6 = arith.constant 0 : index
    %3 = vector.load %arg6[%c0_5, %c0_6] : memref<36x256xf32, #tpu.memory_space<vmem>>, vector<36x256xf32>
    %c0_7 = arith.constant 0 : index
    %c0_8 = arith.constant 0 : index
    %c0_9 = arith.constant 0 : index
    %4 = vector.load %arg1[%c0_7, %c0_8, %c0_9] : memref<8x4x256xf32, #tpu.memory_space<vmem>>, vector<1x4x256xf32>
    %5 = vector.shape_cast %4 : vector<1x4x256xf32> to vector<4x256xf32>
    %c17_i32 = arith.constant 17 : i32
    %6 = tpu.dynamic_rotate %5 by %c17_i32 dim 1 : vector<4x256xf32>, i32 -> vector<4x256xf32>
    %c16_i32 = arith.constant 16 : i32
    %7 = tpu.dynamic_rotate %5 by %c16_i32 dim 1 : vector<4x256xf32>, i32 -> vector<4x256xf32>
    %c15_i32 = arith.constant 15 : i32
    %8 = tpu.dynamic_rotate %5 by %c15_i32 dim 1 : vector<4x256xf32>, i32 -> vector<4x256xf32>
    %c1_i32 = arith.constant 1 : i32
    %9 = tpu.dynamic_rotate %5 by %c1_i32 dim 1 : vector<4x256xf32>, i32 -> vector<4x256xf32>
    %c255_i32 = arith.constant 255 : i32
    %10 = tpu.dynamic_rotate %5 by %c255_i32 dim 1 : vector<4x256xf32>, i32 -> vector<4x256xf32>
    %c241_i32 = arith.constant 241 : i32
    %11 = tpu.dynamic_rotate %5 by %c241_i32 dim 1 : vector<4x256xf32>, i32 -> vector<4x256xf32>
    %c240_i32 = arith.constant 240 : i32
    %12 = tpu.dynamic_rotate %5 by %c240_i32 dim 1 : vector<4x256xf32>, i32 -> vector<4x256xf32>
    %c239_i32 = arith.constant 239 : i32
    %13 = tpu.dynamic_rotate %5 by %c239_i32 dim 1 : vector<4x256xf32>, i32 -> vector<4x256xf32>
    %14 = tpu.concatenate %6, %7, %8, %9, %5, %10, %11, %12, %13 in 0 : vector<4x256xf32>, vector<4x256xf32>, vector<4x256xf32>, vector<4x256xf32>, vector<4x256xf32>, vector<4x256xf32>, vector<4x256xf32>, vector<4x256xf32>, vector<4x256xf32> -> vector<36x256xf32>
    %15 = arith.mulf %14, %3 : vector<36x256xf32>
    %cst = arith.constant dense<0.000000e+00> : vector<8x256xf32>
    %16 = tpu.matmul %0, %15, %cst {dimension_numbers = #tpu.dot_dimension_numbers<[1], [0], [0], [1], [0, 0, 1, 1], [], []>} : vector<8x36xf32>, vector<36x256xf32>, vector<8x256xf32> -> vector<8x256xf32>
    %17 = vector.broadcast %1 : vector<8x1xf32> to vector<8x256xf32>
    %18 = arith.addf %16, %17 : vector<8x256xf32>
    %cst_10 = arith.constant 0.000000e+00 : f32
    %19 = vector.broadcast %cst_10 : f32 to vector<8x256xf32>
    %20 = arith.maximumf %18, %19 : vector<8x256xf32>
    %21 = vector.shape_cast %20 : vector<8x256xf32> to vector<8x1x256xf32>
    %c0_11 = arith.constant 0 : index
    %c0_12 = arith.constant 0 : index
    %c0_13 = arith.constant 0 : index
    %22 = vector.load %arg4[%c0_11, %c0_12, %c0_13] : memref<8x10x256xf32, #tpu.memory_space<vmem>>, vector<8x10x256xf32>
    "tpu.trace_start"() <{level = 10 : i32, message = "kqh,kch->kqc"}> : () -> ()
    %cst_14 = arith.constant dense<0.000000e+00> : vector<8x1x10xf32>
    %23 = tpu.matmul %21, %22, %cst_14 {dimension_numbers = #tpu.dot_dimension_numbers<[2], [2], [1], [1], [0, 0, 0, 1, 1, 1], [0], [0]>} : vector<8x1x256xf32>, vector<8x10x256xf32>, vector<8x1x10xf32> -> vector<8x1x10xf32>
    "tpu.trace_stop"() : () -> ()
    %24 = vector.shape_cast %23 : vector<8x1x10xf32> to vector<8x10xf32>
    %cst_15 = arith.constant dense<0.000000e+00> : vector<10xf32>
    %25 = vector.multi_reduction <add>, %24, %cst_15 [0] : vector<8x10xf32> to vector<10xf32>
    %26 = vector.shape_cast %25 : vector<10xf32> to vector<1x10xf32>
    %27 = arith.addf %26, %2 : vector<1x10xf32>
    %c1 = arith.constant 1 : index
    %c0_16 = arith.constant 0 : index
    %c0_17 = arith.constant 0 : index
    %28 = vector.load %arg1[%c1, %c0_16, %c0_17] : memref<8x4x256xf32, #tpu.memory_space<vmem>>, vector<1x4x256xf32>
    %29 = vector.shape_cast %28 : vector<1x4x256xf32> to vector<4x256xf32>
    %c17_i32_18 = arith.constant 17 : i32
    %30 = tpu.dynamic_rotate %29 by %c17_i32_18 dim 1 : vector<4x256xf32>, i32 -> vector<4x256xf32>
    %c16_i32_19 = arith.constant 16 : i32
    %31 = tpu.dynamic_rotate %29 by %c16_i32_19 dim 1 : vector<4x256xf32>, i32 -> vector<4x256xf32>
    %c15_i32_20 = arith.constant 15 : i32
    %32 = tpu.dynamic_rotate %29 by %c15_i32_20 dim 1 : vector<4x256xf32>, i32 -> vector<4x256xf32>
    %c1_i32_21 = arith.constant 1 : i32
    %33 = tpu.dynamic_rotate %29 by %c1_i32_21 dim 1 : vector<4x256xf32>, i32 -> vector<4x256xf32>
    %c255_i32_22 = arith.constant 255 : i32
    %34 = tpu.dynamic_rotate %29 by %c255_i32_22 dim 1 : vector<4x256xf32>, i32 -> vector<4x256xf32>
    %c241_i32_23 = arith.constant 241 : i32
    %35 = tpu.dynamic_rotate %29 by %c241_i32_23 dim 1 : vector<4x256xf32>, i32 -> vector<4x256xf32>
    %c240_i32_24 = arith.constant 240 : i32
    %36 = tpu.dynamic_rotate %29 by %c240_i32_24 dim 1 : vector<4x256xf32>, i32 -> vector<4x256xf32>
    %c239_i32_25 = arith.constant 239 : i32
    %37 = tpu.dynamic_rotate %29 by %c239_i32_25 dim 1 : vector<4x256xf32>, i32 -> vector<4x256xf32>
    %38 = tpu.concatenate %30, %31, %32, %33, %29, %34, %35, %36, %37 in 0 : vector<4x256xf32>, vector<4x256xf32>, vector<4x256xf32>, vector<4x256xf32>, vector<4x256xf32>, vector<4x256xf32>, vector<4x256xf32>, vector<4x256xf32>, vector<4x256xf32> -> vector<36x256xf32>
    %39 = arith.mulf %38, %3 : vector<36x256xf32>
    %cst_26 = arith.constant dense<0.000000e+00> : vector<8x256xf32>
    %40 = tpu.matmul %0, %39, %cst_26 {dimension_numbers = #tpu.dot_dimension_numbers<[1], [0], [0], [1], [0, 0, 1, 1], [], []>} : vector<8x36xf32>, vector<36x256xf32>, vector<8x256xf32> -> vector<8x256xf32>
    %41 = vector.broadcast %1 : vector<8x1xf32> to vector<8x256xf32>
    %42 = arith.addf %40, %41 : vector<8x256xf32>
    %cst_27 = arith.constant 0.000000e+00 : f32
    %43 = vector.broadcast %cst_27 : f32 to vector<8x256xf32>
    %44 = arith.maximumf %42, %43 : vector<8x256xf32>
    %45 = vector.shape_cast %44 : vector<8x256xf32> to vector<8x1x256xf32>
    %c0_28 = arith.constant 0 : index
    %c0_29 = arith.constant 0 : index
    %c0_30 = arith.constant 0 : index
    %46 = vector.load %arg4[%c0_28, %c0_29, %c0_30] : memref<8x10x256xf32, #tpu.memory_space<vmem>>, vector<8x10x256xf32>
    "tpu.trace_start"() <{level = 10 : i32, message = "kqh,kch->kqc"}> : () -> ()
    %cst_31 = arith.constant dense<0.000000e+00> : vector<8x1x10xf32>
    %47 = tpu.matmul %45, %46, %cst_31 {dimension_numbers = #tpu.dot_dimension_numbers<[2], [2], [1], [1], [0, 0, 0, 1, 1, 1], [0], [0]>} : vector<8x1x256xf32>, vector<8x10x256xf32>, vector<8x1x10xf32> -> vector<8x1x10xf32>
    "tpu.trace_stop"() : () -> ()
    %48 = vector.shape_cast %47 : vector<8x1x10xf32> to vector<8x10xf32>
    %cst_32 = arith.constant dense<0.000000e+00> : vector<10xf32>
    %49 = vector.multi_reduction <add>, %48, %cst_32 [0] : vector<8x10xf32> to vector<10xf32>
    %50 = vector.shape_cast %49 : vector<10xf32> to vector<1x10xf32>
    %51 = arith.addf %50, %2 : vector<1x10xf32>
    %c2 = arith.constant 2 : index
    %c0_33 = arith.constant 0 : index
    %c0_34 = arith.constant 0 : index
    %52 = vector.load %arg1[%c2, %c0_33, %c0_34] : memref<8x4x256xf32, #tpu.memory_space<vmem>>, vector<1x4x256xf32>
    %53 = vector.shape_cast %52 : vector<1x4x256xf32> to vector<4x256xf32>
    %c17_i32_35 = arith.constant 17 : i32
    %54 = tpu.dynamic_rotate %53 by %c17_i32_35 dim 1 : vector<4x256xf32>, i32 -> vector<4x256xf32>
    %c16_i32_36 = arith.constant 16 : i32
    %55 = tpu.dynamic_rotate %53 by %c16_i32_36 dim 1 : vector<4x256xf32>, i32 -> vector<4x256xf32>
    %c15_i32_37 = arith.constant 15 : i32
    %56 = tpu.dynamic_rotate %53 by %c15_i32_37 dim 1 : vector<4x256xf32>, i32 -> vector<4x256xf32>
    %c1_i32_38 = arith.constant 1 : i32
    %57 = tpu.dynamic_rotate %53 by %c1_i32_38 dim 1 : vector<4x256xf32>, i32 -> vector<4x256xf32>
    %c255_i32_39 = arith.constant 255 : i32
    %58 = tpu.dynamic_rotate %53 by %c255_i32_39 dim 1 : vector<4x256xf32>, i32 -> vector<4x256xf32>
    %c241_i32_40 = arith.constant 241 : i32
    %59 = tpu.dynamic_rotate %53 by %c241_i32_40 dim 1 : vector<4x256xf32>, i32 -> vector<4x256xf32>
    %c240_i32_41 = arith.constant 240 : i32
    %60 = tpu.dynamic_rotate %53 by %c240_i32_41 dim 1 : vector<4x256xf32>, i32 -> vector<4x256xf32>
    %c239_i32_42 = arith.constant 239 : i32
    %61 = tpu.dynamic_rotate %53 by %c239_i32_42 dim 1 : vector<4x256xf32>, i32 -> vector<4x256xf32>
    %62 = tpu.concatenate %54, %55, %56, %57, %53, %58, %59, %60, %61 in 0 : vector<4x256xf32>, vector<4x256xf32>, vector<4x256xf32>, vector<4x256xf32>, vector<4x256xf32>, vector<4x256xf32>, vector<4x256xf32>, vector<4x256xf32>, vector<4x256xf32> -> vector<36x256xf32>
    %63 = arith.mulf %62, %3 : vector<36x256xf32>
    %cst_43 = arith.constant dense<0.000000e+00> : vector<8x256xf32>
    %64 = tpu.matmul %0, %63, %cst_43 {dimension_numbers = #tpu.dot_dimension_numbers<[1], [0], [0], [1], [0, 0, 1, 1], [], []>} : vector<8x36xf32>, vector<36x256xf32>, vector<8x256xf32> -> vector<8x256xf32>
    %65 = vector.broadcast %1 : vector<8x1xf32> to vector<8x256xf32>
    %66 = arith.addf %64, %65 : vector<8x256xf32>
    %cst_44 = arith.constant 0.000000e+00 : f32
    %67 = vector.broadcast %cst_44 : f32 to vector<8x256xf32>
    %68 = arith.maximumf %66, %67 : vector<8x256xf32>
    %69 = vector.shape_cast %68 : vector<8x256xf32> to vector<8x1x256xf32>
    %c0_45 = arith.constant 0 : index
    %c0_46 = arith.constant 0 : index
    %c0_47 = arith.constant 0 : index
    %70 = vector.load %arg4[%c0_45, %c0_46, %c0_47] : memref<8x10x256xf32, #tpu.memory_space<vmem>>, vector<8x10x256xf32>
    "tpu.trace_start"() <{level = 10 : i32, message = "kqh,kch->kqc"}> : () -> ()
    %cst_48 = arith.constant dense<0.000000e+00> : vector<8x1x10xf32>
    %71 = tpu.matmul %69, %70, %cst_48 {dimension_numbers = #tpu.dot_dimension_numbers<[2], [2], [1], [1], [0, 0, 0, 1, 1, 1], [0], [0]>} : vector<8x1x256xf32>, vector<8x10x256xf32>, vector<8x1x10xf32> -> vector<8x1x10xf32>
    "tpu.trace_stop"() : () -> ()
    %72 = vector.shape_cast %71 : vector<8x1x10xf32> to vector<8x10xf32>
    %cst_49 = arith.constant dense<0.000000e+00> : vector<10xf32>
    %73 = vector.multi_reduction <add>, %72, %cst_49 [0] : vector<8x10xf32> to vector<10xf32>
    %74 = vector.shape_cast %73 : vector<10xf32> to vector<1x10xf32>
    %75 = arith.addf %74, %2 : vector<1x10xf32>
    %c3 = arith.constant 3 : index
    %c0_50 = arith.constant 0 : index
    %c0_51 = arith.constant 0 : index
    %76 = vector.load %arg1[%c3, %c0_50, %c0_51] : memref<8x4x256xf32, #tpu.memory_space<vmem>>, vector<1x4x256xf32>
    %77 = vector.shape_cast %76 : vector<1x4x256xf32> to vector<4x256xf32>
    %c17_i32_52 = arith.constant 17 : i32
    %78 = tpu.dynamic_rotate %77 by %c17_i32_52 dim 1 : vector<4x256xf32>, i32 -> vector<4x256xf32>
    %c16_i32_53 = arith.constant 16 : i32
    %79 = tpu.dynamic_rotate %77 by %c16_i32_53 dim 1 : vector<4x256xf32>, i32 -> vector<4x256xf32>
    %c15_i32_54 = arith.constant 15 : i32
    %80 = tpu.dynamic_rotate %77 by %c15_i32_54 dim 1 : vector<4x256xf32>, i32 -> vector<4x256xf32>
    %c1_i32_55 = arith.constant 1 : i32
    %81 = tpu.dynamic_rotate %77 by %c1_i32_55 dim 1 : vector<4x256xf32>, i32 -> vector<4x256xf32>
    %c255_i32_56 = arith.constant 255 : i32
    %82 = tpu.dynamic_rotate %77 by %c255_i32_56 dim 1 : vector<4x256xf32>, i32 -> vector<4x256xf32>
    %c241_i32_57 = arith.constant 241 : i32
    %83 = tpu.dynamic_rotate %77 by %c241_i32_57 dim 1 : vector<4x256xf32>, i32 -> vector<4x256xf32>
    %c240_i32_58 = arith.constant 240 : i32
    %84 = tpu.dynamic_rotate %77 by %c240_i32_58 dim 1 : vector<4x256xf32>, i32 -> vector<4x256xf32>
    %c239_i32_59 = arith.constant 239 : i32
    %85 = tpu.dynamic_rotate %77 by %c239_i32_59 dim 1 : vector<4x256xf32>, i32 -> vector<4x256xf32>
    %86 = tpu.concatenate %78, %79, %80, %81, %77, %82, %83, %84, %85 in 0 : vector<4x256xf32>, vector<4x256xf32>, vector<4x256xf32>, vector<4x256xf32>, vector<4x256xf32>, vector<4x256xf32>, vector<4x256xf32>, vector<4x256xf32>, vector<4x256xf32> -> vector<36x256xf32>
    %87 = arith.mulf %86, %3 : vector<36x256xf32>
    %cst_60 = arith.constant dense<0.000000e+00> : vector<8x256xf32>
    %88 = tpu.matmul %0, %87, %cst_60 {dimension_numbers = #tpu.dot_dimension_numbers<[1], [0], [0], [1], [0, 0, 1, 1], [], []>} : vector<8x36xf32>, vector<36x256xf32>, vector<8x256xf32> -> vector<8x256xf32>
    %89 = vector.broadcast %1 : vector<8x1xf32> to vector<8x256xf32>
    %90 = arith.addf %88, %89 : vector<8x256xf32>
    %cst_61 = arith.constant 0.000000e+00 : f32
    %91 = vector.broadcast %cst_61 : f32 to vector<8x256xf32>
    %92 = arith.maximumf %90, %91 : vector<8x256xf32>
    %93 = vector.shape_cast %92 : vector<8x256xf32> to vector<8x1x256xf32>
    %c0_62 = arith.constant 0 : index
    %c0_63 = arith.constant 0 : index
    %c0_64 = arith.constant 0 : index
    %94 = vector.load %arg4[%c0_62, %c0_63, %c0_64] : memref<8x10x256xf32, #tpu.memory_space<vmem>>, vector<8x10x256xf32>
    "tpu.trace_start"() <{level = 10 : i32, message = "kqh,kch->kqc"}> : () -> ()
    %cst_65 = arith.constant dense<0.000000e+00> : vector<8x1x10xf32>
    %95 = tpu.matmul %93, %94, %cst_65 {dimension_numbers = #tpu.dot_dimension_numbers<[2], [2], [1], [1], [0, 0, 0, 1, 1, 1], [0], [0]>} : vector<8x1x256xf32>, vector<8x10x256xf32>, vector<8x1x10xf32> -> vector<8x1x10xf32>
    "tpu.trace_stop"() : () -> ()
    %96 = vector.shape_cast %95 : vector<8x1x10xf32> to vector<8x10xf32>
    %cst_66 = arith.constant dense<0.000000e+00> : vector<10xf32>
    %97 = vector.multi_reduction <add>, %96, %cst_66 [0] : vector<8x10xf32> to vector<10xf32>
    %98 = vector.shape_cast %97 : vector<10xf32> to vector<1x10xf32>
    %99 = arith.addf %98, %2 : vector<1x10xf32>
    %c4 = arith.constant 4 : index
    %c0_67 = arith.constant 0 : index
    %c0_68 = arith.constant 0 : index
    %100 = vector.load %arg1[%c4, %c0_67, %c0_68] : memref<8x4x256xf32, #tpu.memory_space<vmem>>, vector<1x4x256xf32>
    %101 = vector.shape_cast %100 : vector<1x4x256xf32> to vector<4x256xf32>
    %c17_i32_69 = arith.constant 17 : i32
    %102 = tpu.dynamic_rotate %101 by %c17_i32_69 dim 1 : vector<4x256xf32>, i32 -> vector<4x256xf32>
    %c16_i32_70 = arith.constant 16 : i32
    %103 = tpu.dynamic_rotate %101 by %c16_i32_70 dim 1 : vector<4x256xf32>, i32 -> vector<4x256xf32>
    %c15_i32_71 = arith.constant 15 : i32
    %104 = tpu.dynamic_rotate %101 by %c15_i32_71 dim 1 : vector<4x256xf32>, i32 -> vector<4x256xf32>
    %c1_i32_72 = arith.constant 1 : i32
    %105 = tpu.dynamic_rotate %101 by %c1_i32_72 dim 1 : vector<4x256xf32>, i32 -> vector<4x256xf32>
    %c255_i32_73 = arith.constant 255 : i32
    %106 = tpu.dynamic_rotate %101 by %c255_i32_73 dim 1 : vector<4x256xf32>, i32 -> vector<4x256xf32>
    %c241_i32_74 = arith.constant 241 : i32
    %107 = tpu.dynamic_rotate %101 by %c241_i32_74 dim 1 : vector<4x256xf32>, i32 -> vector<4x256xf32>
    %c240_i32_75 = arith.constant 240 : i32
    %108 = tpu.dynamic_rotate %101 by %c240_i32_75 dim 1 : vector<4x256xf32>, i32 -> vector<4x256xf32>
    %c239_i32_76 = arith.constant 239 : i32
    %109 = tpu.dynamic_rotate %101 by %c239_i32_76 dim 1 : vector<4x256xf32>, i32 -> vector<4x256xf32>
    %110 = tpu.concatenate %102, %103, %104, %105, %101, %106, %107, %108, %109 in 0 : vector<4x256xf32>, vector<4x256xf32>, vector<4x256xf32>, vector<4x256xf32>, vector<4x256xf32>, vector<4x256xf32>, vector<4x256xf32>, vector<4x256xf32>, vector<4x256xf32> -> vector<36x256xf32>
    %111 = arith.mulf %110, %3 : vector<36x256xf32>
    %cst_77 = arith.constant dense<0.000000e+00> : vector<8x256xf32>
    %112 = tpu.matmul %0, %111, %cst_77 {dimension_numbers = #tpu.dot_dimension_numbers<[1], [0], [0], [1], [0, 0, 1, 1], [], []>} : vector<8x36xf32>, vector<36x256xf32>, vector<8x256xf32> -> vector<8x256xf32>
    %113 = vector.broadcast %1 : vector<8x1xf32> to vector<8x256xf32>
    %114 = arith.addf %112, %113 : vector<8x256xf32>
    %cst_78 = arith.constant 0.000000e+00 : f32
    %115 = vector.broadcast %cst_78 : f32 to vector<8x256xf32>
    %116 = arith.maximumf %114, %115 : vector<8x256xf32>
    %117 = vector.shape_cast %116 : vector<8x256xf32> to vector<8x1x256xf32>
    %c0_79 = arith.constant 0 : index
    %c0_80 = arith.constant 0 : index
    %c0_81 = arith.constant 0 : index
    %118 = vector.load %arg4[%c0_79, %c0_80, %c0_81] : memref<8x10x256xf32, #tpu.memory_space<vmem>>, vector<8x10x256xf32>
    "tpu.trace_start"() <{level = 10 : i32, message = "kqh,kch->kqc"}> : () -> ()
    %cst_82 = arith.constant dense<0.000000e+00> : vector<8x1x10xf32>
    %119 = tpu.matmul %117, %118, %cst_82 {dimension_numbers = #tpu.dot_dimension_numbers<[2], [2], [1], [1], [0, 0, 0, 1, 1, 1], [0], [0]>} : vector<8x1x256xf32>, vector<8x10x256xf32>, vector<8x1x10xf32> -> vector<8x1x10xf32>
    "tpu.trace_stop"() : () -> ()
    %120 = vector.shape_cast %119 : vector<8x1x10xf32> to vector<8x10xf32>
    %cst_83 = arith.constant dense<0.000000e+00> : vector<10xf32>
    %121 = vector.multi_reduction <add>, %120, %cst_83 [0] : vector<8x10xf32> to vector<10xf32>
    %122 = vector.shape_cast %121 : vector<10xf32> to vector<1x10xf32>
    %123 = arith.addf %122, %2 : vector<1x10xf32>
    %c5 = arith.constant 5 : index
    %c0_84 = arith.constant 0 : index
    %c0_85 = arith.constant 0 : index
    %124 = vector.load %arg1[%c5, %c0_84, %c0_85] : memref<8x4x256xf32, #tpu.memory_space<vmem>>, vector<1x4x256xf32>
    %125 = vector.shape_cast %124 : vector<1x4x256xf32> to vector<4x256xf32>
    %c17_i32_86 = arith.constant 17 : i32
    %126 = tpu.dynamic_rotate %125 by %c17_i32_86 dim 1 : vector<4x256xf32>, i32 -> vector<4x256xf32>
    %c16_i32_87 = arith.constant 16 : i32
    %127 = tpu.dynamic_rotate %125 by %c16_i32_87 dim 1 : vector<4x256xf32>, i32 -> vector<4x256xf32>
    %c15_i32_88 = arith.constant 15 : i32
    %128 = tpu.dynamic_rotate %125 by %c15_i32_88 dim 1 : vector<4x256xf32>, i32 -> vector<4x256xf32>
    %c1_i32_89 = arith.constant 1 : i32
    %129 = tpu.dynamic_rotate %125 by %c1_i32_89 dim 1 : vector<4x256xf32>, i32 -> vector<4x256xf32>
    %c255_i32_90 = arith.constant 255 : i32
    %130 = tpu.dynamic_rotate %125 by %c255_i32_90 dim 1 : vector<4x256xf32>, i32 -> vector<4x256xf32>
    %c241_i32_91 = arith.constant 241 : i32
    %131 = tpu.dynamic_rotate %125 by %c241_i32_91 dim 1 : vector<4x256xf32>, i32 -> vector<4x256xf32>
    %c240_i32_92 = arith.constant 240 : i32
    %132 = tpu.dynamic_rotate %125 by %c240_i32_92 dim 1 : vector<4x256xf32>, i32 -> vector<4x256xf32>
    %c239_i32_93 = arith.constant 239 : i32
    %133 = tpu.dynamic_rotate %125 by %c239_i32_93 dim 1 : vector<4x256xf32>, i32 -> vector<4x256xf32>
    %134 = tpu.concatenate %126, %127, %128, %129, %125, %130, %131, %132, %133 in 0 : vector<4x256xf32>, vector<4x256xf32>, vector<4x256xf32>, vector<4x256xf32>, vector<4x256xf32>, vector<4x256xf32>, vector<4x256xf32>, vector<4x256xf32>, vector<4x256xf32> -> vector<36x256xf32>
    %135 = arith.mulf %134, %3 : vector<36x256xf32>
    %cst_94 = arith.constant dense<0.000000e+00> : vector<8x256xf32>
    %136 = tpu.matmul %0, %135, %cst_94 {dimension_numbers = #tpu.dot_dimension_numbers<[1], [0], [0], [1], [0, 0, 1, 1], [], []>} : vector<8x36xf32>, vector<36x256xf32>, vector<8x256xf32> -> vector<8x256xf32>
    %137 = vector.broadcast %1 : vector<8x1xf32> to vector<8x256xf32>
    %138 = arith.addf %136, %137 : vector<8x256xf32>
    %cst_95 = arith.constant 0.000000e+00 : f32
    %139 = vector.broadcast %cst_95 : f32 to vector<8x256xf32>
    %140 = arith.maximumf %138, %139 : vector<8x256xf32>
    %141 = vector.shape_cast %140 : vector<8x256xf32> to vector<8x1x256xf32>
    %c0_96 = arith.constant 0 : index
    %c0_97 = arith.constant 0 : index
    %c0_98 = arith.constant 0 : index
    %142 = vector.load %arg4[%c0_96, %c0_97, %c0_98] : memref<8x10x256xf32, #tpu.memory_space<vmem>>, vector<8x10x256xf32>
    "tpu.trace_start"() <{level = 10 : i32, message = "kqh,kch->kqc"}> : () -> ()
    %cst_99 = arith.constant dense<0.000000e+00> : vector<8x1x10xf32>
    %143 = tpu.matmul %141, %142, %cst_99 {dimension_numbers = #tpu.dot_dimension_numbers<[2], [2], [1], [1], [0, 0, 0, 1, 1, 1], [0], [0]>} : vector<8x1x256xf32>, vector<8x10x256xf32>, vector<8x1x10xf32> -> vector<8x1x10xf32>
    "tpu.trace_stop"() : () -> ()
    %144 = vector.shape_cast %143 : vector<8x1x10xf32> to vector<8x10xf32>
    %cst_100 = arith.constant dense<0.000000e+00> : vector<10xf32>
    %145 = vector.multi_reduction <add>, %144, %cst_100 [0] : vector<8x10xf32> to vector<10xf32>
    %146 = vector.shape_cast %145 : vector<10xf32> to vector<1x10xf32>
    %147 = arith.addf %146, %2 : vector<1x10xf32>
    %c6 = arith.constant 6 : index
    %c0_101 = arith.constant 0 : index
    %c0_102 = arith.constant 0 : index
    %148 = vector.load %arg1[%c6, %c0_101, %c0_102] : memref<8x4x256xf32, #tpu.memory_space<vmem>>, vector<1x4x256xf32>
    %149 = vector.shape_cast %148 : vector<1x4x256xf32> to vector<4x256xf32>
    %c17_i32_103 = arith.constant 17 : i32
    %150 = tpu.dynamic_rotate %149 by %c17_i32_103 dim 1 : vector<4x256xf32>, i32 -> vector<4x256xf32>
    %c16_i32_104 = arith.constant 16 : i32
    %151 = tpu.dynamic_rotate %149 by %c16_i32_104 dim 1 : vector<4x256xf32>, i32 -> vector<4x256xf32>
    %c15_i32_105 = arith.constant 15 : i32
    %152 = tpu.dynamic_rotate %149 by %c15_i32_105 dim 1 : vector<4x256xf32>, i32 -> vector<4x256xf32>
    %c1_i32_106 = arith.constant 1 : i32
    %153 = tpu.dynamic_rotate %149 by %c1_i32_106 dim 1 : vector<4x256xf32>, i32 -> vector<4x256xf32>
    %c255_i32_107 = arith.constant 255 : i32
    %154 = tpu.dynamic_rotate %149 by %c255_i32_107 dim 1 : vector<4x256xf32>, i32 -> vector<4x256xf32>
    %c241_i32_108 = arith.constant 241 : i32
    %155 = tpu.dynamic_rotate %149 by %c241_i32_108 dim 1 : vector<4x256xf32>, i32 -> vector<4x256xf32>
    %c240_i32_109 = arith.constant 240 : i32
    %156 = tpu.dynamic_rotate %149 by %c240_i32_109 dim 1 : vector<4x256xf32>, i32 -> vector<4x256xf32>
    %c239_i32_110 = arith.constant 239 : i32
    %157 = tpu.dynamic_rotate %149 by %c239_i32_110 dim 1 : vector<4x256xf32>, i32 -> vector<4x256xf32>
    %158 = tpu.concatenate %150, %151, %152, %153, %149, %154, %155, %156, %157 in 0 : vector<4x256xf32>, vector<4x256xf32>, vector<4x256xf32>, vector<4x256xf32>, vector<4x256xf32>, vector<4x256xf32>, vector<4x256xf32>, vector<4x256xf32>, vector<4x256xf32> -> vector<36x256xf32>
    %159 = arith.mulf %158, %3 : vector<36x256xf32>
    %cst_111 = arith.constant dense<0.000000e+00> : vector<8x256xf32>
    %160 = tpu.matmul %0, %159, %cst_111 {dimension_numbers = #tpu.dot_dimension_numbers<[1], [0], [0], [1], [0, 0, 1, 1], [], []>} : vector<8x36xf32>, vector<36x256xf32>, vector<8x256xf32> -> vector<8x256xf32>
    %161 = vector.broadcast %1 : vector<8x1xf32> to vector<8x256xf32>
    %162 = arith.addf %160, %161 : vector<8x256xf32>
    %cst_112 = arith.constant 0.000000e+00 : f32
    %163 = vector.broadcast %cst_112 : f32 to vector<8x256xf32>
    %164 = arith.maximumf %162, %163 : vector<8x256xf32>
    %165 = vector.shape_cast %164 : vector<8x256xf32> to vector<8x1x256xf32>
    %c0_113 = arith.constant 0 : index
    %c0_114 = arith.constant 0 : index
    %c0_115 = arith.constant 0 : index
    %166 = vector.load %arg4[%c0_113, %c0_114, %c0_115] : memref<8x10x256xf32, #tpu.memory_space<vmem>>, vector<8x10x256xf32>
    "tpu.trace_start"() <{level = 10 : i32, message = "kqh,kch->kqc"}> : () -> ()
    %cst_116 = arith.constant dense<0.000000e+00> : vector<8x1x10xf32>
    %167 = tpu.matmul %165, %166, %cst_116 {dimension_numbers = #tpu.dot_dimension_numbers<[2], [2], [1], [1], [0, 0, 0, 1, 1, 1], [0], [0]>} : vector<8x1x256xf32>, vector<8x10x256xf32>, vector<8x1x10xf32> -> vector<8x1x10xf32>
    "tpu.trace_stop"() : () -> ()
    %168 = vector.shape_cast %167 : vector<8x1x10xf32> to vector<8x10xf32>
    %cst_117 = arith.constant dense<0.000000e+00> : vector<10xf32>
    %169 = vector.multi_reduction <add>, %168, %cst_117 [0] : vector<8x10xf32> to vector<10xf32>
    %170 = vector.shape_cast %169 : vector<10xf32> to vector<1x10xf32>
    %171 = arith.addf %170, %2 : vector<1x10xf32>
    %c7 = arith.constant 7 : index
    %c0_118 = arith.constant 0 : index
    %c0_119 = arith.constant 0 : index
    %172 = vector.load %arg1[%c7, %c0_118, %c0_119] : memref<8x4x256xf32, #tpu.memory_space<vmem>>, vector<1x4x256xf32>
    %173 = vector.shape_cast %172 : vector<1x4x256xf32> to vector<4x256xf32>
    %c17_i32_120 = arith.constant 17 : i32
    %174 = tpu.dynamic_rotate %173 by %c17_i32_120 dim 1 : vector<4x256xf32>, i32 -> vector<4x256xf32>
    %c16_i32_121 = arith.constant 16 : i32
    %175 = tpu.dynamic_rotate %173 by %c16_i32_121 dim 1 : vector<4x256xf32>, i32 -> vector<4x256xf32>
    %c15_i32_122 = arith.constant 15 : i32
    %176 = tpu.dynamic_rotate %173 by %c15_i32_122 dim 1 : vector<4x256xf32>, i32 -> vector<4x256xf32>
    %c1_i32_123 = arith.constant 1 : i32
    %177 = tpu.dynamic_rotate %173 by %c1_i32_123 dim 1 : vector<4x256xf32>, i32 -> vector<4x256xf32>
    %c255_i32_124 = arith.constant 255 : i32
    %178 = tpu.dynamic_rotate %173 by %c255_i32_124 dim 1 : vector<4x256xf32>, i32 -> vector<4x256xf32>
    %c241_i32_125 = arith.constant 241 : i32
    %179 = tpu.dynamic_rotate %173 by %c241_i32_125 dim 1 : vector<4x256xf32>, i32 -> vector<4x256xf32>
    %c240_i32_126 = arith.constant 240 : i32
    %180 = tpu.dynamic_rotate %173 by %c240_i32_126 dim 1 : vector<4x256xf32>, i32 -> vector<4x256xf32>
    %c239_i32_127 = arith.constant 239 : i32
    %181 = tpu.dynamic_rotate %173 by %c239_i32_127 dim 1 : vector<4x256xf32>, i32 -> vector<4x256xf32>
    %182 = tpu.concatenate %174, %175, %176, %177, %173, %178, %179, %180, %181 in 0 : vector<4x256xf32>, vector<4x256xf32>, vector<4x256xf32>, vector<4x256xf32>, vector<4x256xf32>, vector<4x256xf32>, vector<4x256xf32>, vector<4x256xf32>, vector<4x256xf32> -> vector<36x256xf32>
    %183 = arith.mulf %182, %3 : vector<36x256xf32>
    %cst_128 = arith.constant dense<0.000000e+00> : vector<8x256xf32>
    %184 = tpu.matmul %0, %183, %cst_128 {dimension_numbers = #tpu.dot_dimension_numbers<[1], [0], [0], [1], [0, 0, 1, 1], [], []>} : vector<8x36xf32>, vector<36x256xf32>, vector<8x256xf32> -> vector<8x256xf32>
    %185 = vector.broadcast %1 : vector<8x1xf32> to vector<8x256xf32>
    %186 = arith.addf %184, %185 : vector<8x256xf32>
    %cst_129 = arith.constant 0.000000e+00 : f32
    %187 = vector.broadcast %cst_129 : f32 to vector<8x256xf32>
    %188 = arith.maximumf %186, %187 : vector<8x256xf32>
    %189 = vector.shape_cast %188 : vector<8x256xf32> to vector<8x1x256xf32>
    %c0_130 = arith.constant 0 : index
    %c0_131 = arith.constant 0 : index
    %c0_132 = arith.constant 0 : index
    %190 = vector.load %arg4[%c0_130, %c0_131, %c0_132] : memref<8x10x256xf32, #tpu.memory_space<vmem>>, vector<8x10x256xf32>
    "tpu.trace_start"() <{level = 10 : i32, message = "kqh,kch->kqc"}> : () -> ()
    %cst_133 = arith.constant dense<0.000000e+00> : vector<8x1x10xf32>
    %191 = tpu.matmul %189, %190, %cst_133 {dimension_numbers = #tpu.dot_dimension_numbers<[2], [2], [1], [1], [0, 0, 0, 1, 1, 1], [0], [0]>} : vector<8x1x256xf32>, vector<8x10x256xf32>, vector<8x1x10xf32> -> vector<8x1x10xf32>
    "tpu.trace_stop"() : () -> ()
    %192 = vector.shape_cast %191 : vector<8x1x10xf32> to vector<8x10xf32>
    %cst_134 = arith.constant dense<0.000000e+00> : vector<10xf32>
    %193 = vector.multi_reduction <add>, %192, %cst_134 [0] : vector<8x10xf32> to vector<10xf32>
    %194 = vector.shape_cast %193 : vector<10xf32> to vector<1x10xf32>
    %195 = arith.addf %194, %2 : vector<1x10xf32>
    %196 = tpu.concatenate %27, %51, %75, %99, %123, %147, %171, %195 in 0 : vector<1x10xf32>, vector<1x10xf32>, vector<1x10xf32>, vector<1x10xf32>, vector<1x10xf32>, vector<1x10xf32>, vector<1x10xf32>, vector<1x10xf32> -> vector<8x10xf32>
    %c0_135 = arith.constant 0 : index
    %c0_136 = arith.constant 0 : index
    %197 = vector.load %arg7[%c0_135, %c0_136] : memref<8x10xf32, #tpu.memory_space<vmem>>, vector<8x10xf32>
    tpu.vector_store %arg7[%c0_135, %c0_136], %196 {strides = array<i32>} : memref<8x10xf32, #tpu.memory_space<vmem>>, vector<8x10xf32>,
    return
  }
  func.func @transform_0(%arg0: i32) -> (i32, i32, i32) {
    %c0_i32 = arith.constant 0 : i32
    %c0_i32_0 = arith.constant 0 : i32
    %c0_i32_1 = arith.constant 0 : i32
    return %arg0, %c0_i32, %c0_i32_0 : i32, i32, i32
  }
  func.func @transform_1(%arg0: i32) -> (i32, i32) {
    %c0_i32 = arith.constant 0 : i32
    %c0_i32_0 = arith.constant 0 : i32
    %c0_i32_1 = arith.constant 0 : i32
    return %c0_i32, %c0_i32_0 : i32, i32
  }
  func.func @transform_2(%arg0: i32) -> (i32, i32) {
    %c0_i32 = arith.constant 0 : i32
    %c0_i32_0 = arith.constant 0 : i32
    %c0_i32_1 = arith.constant 0 : i32
    return %c0_i32, %c0_i32_0 : i32, i32
  }
  func.func @transform_3(%arg0: i32) -> (i32, i32, i32) {
    %c0_i32 = arith.constant 0 : i32
    %c0_i32_0 = arith.constant 0 : i32
    %c0_i32_1 = arith.constant 0 : i32
    %c0_i32_2 = arith.constant 0 : i32
    return %c0_i32, %c0_i32_0, %c0_i32_1 : i32, i32, i32
  }
  func.func @transform_4(%arg0: i32) -> (i32, i32) {
    %c0_i32 = arith.constant 0 : i32
    %c0_i32_0 = arith.constant 0 : i32
    %c0_i32_1 = arith.constant 0 : i32
    return %c0_i32, %c0_i32_0 : i32, i32
  }
  func.func @transform_5(%arg0: i32) -> (i32, i32) {
    %c0_i32 = arith.constant 0 : i32
    %c0_i32_0 = arith.constant 0 : i32
    %c0_i32_1 = arith.constant 0 : i32
    return %c0_i32, %c0_i32_0 : i32, i32
  }
  func.func @transform_6(%arg0: i32) -> (i32, i32) {
    %c0_i32 = arith.constant 0 : i32
    %c0_i32_0 = arith.constant 0 : i32
    return %arg0, %c0_i32 : i32, i32
  }
}

</mosaic_0001>

<llo_original>
// kernel: catnet_forward.1
$region0: #{catnet_forward.1}
  #allocation0 [shape = 'u32[]', space=smem, size = 0x4, offset = 0x4, fixed_abs, tag = 'smem constant byte address 0x4 - core index']
  #allocation1 [shape = 'u32[144,128]{1,0:T(1,128)}', space=vmem, size = 0x12000, scoped, tag = 'internal scratch']
  %s0 = inlined_call_operand.vmem [shape: f32[8,4,256], index: 0, kind: input, shape index: {}]
  %s1 = inlined_call_operand.vmem [shape: f32[8,36], index: 1, kind: input, shape index: {}]
  %s2 = inlined_call_operand.vmem [shape: f32[8,1], index: 2, kind: input, shape index: {}]
  %s3 = inlined_call_operand.vmem [shape: f32[8,10,256], index: 3, kind: input, shape index: {}]
  %s4 = inlined_call_operand.vmem [shape: f32[1,10], index: 4, kind: input, shape index: {}]
  %s5 = inlined_call_operand.vmem [shape: f32[36,256], index: 5, kind: input, shape index: {}]
  %s6 = inlined_call_operand.vmem [shape: f32[8,10], index: 6, kind: output, shape index: {}]
  %s7 = sld [smem:[#allocation0]]
  $region34: #{catnet_forward.1} parent=0
    _
  %s9 = ssub.s32 1, %s7
  %s10 = scalar_select 0, %s9, %s7
  // Predicated region
  $region2: #{catnet_forward.1} parent=0 // pred_check
    _
  $region3: #{catnet_forward.1} parent=0 // pred_check_branch
    %12 = sbr.rel (0) target = $region5
  $region4: #{catnet_forward.1} parent=0 // pred_region
    _
  $region5: #{catnet_forward.1} parent=0 // pred_fallthru
    _
  // Predicated region
  $region6: #{catnet_forward.1} parent=0 // pred_check
    _
  $region7: #{catnet_forward.1} parent=0 // pred_check_branch
    %14 = sbr.rel (0) target = $region9
  $region8: #{catnet_forward.1} parent=0 // pred_region
    _
  $region9: #{catnet_forward.1} parent=0 // pred_fallthru
    _
  // Predicated region
  $region10: #{catnet_forward.1} parent=0 // pred_check
    _
  $region11: #{catnet_forward.1} parent=0 // pred_check_branch
    %16 = sbr.rel (0) target = $region13
  $region12: #{catnet_forward.1} parent=0 // pred_region
    _
  $region13: #{catnet_forward.1} parent=0 // pred_fallthru
    _
  // Predicated region
  $region14: #{catnet_forward.1} parent=0 // pred_check
    _
  $region15: #{catnet_forward.1} parent=0 // pred_check_branch
    %18 = sbr.rel (0) target = $region17
  $region16: #{catnet_forward.1} parent=0 // pred_region
    _
  $region17: #{catnet_forward.1} parent=0 // pred_fallthru
    _
  // Predicated region
  $region18: #{catnet_forward.1} parent=0 // pred_check
    _
  $region19: #{catnet_forward.1} parent=0 // pred_check_branch
    %20 = sbr.rel (0) target = $region21
  $region20: #{catnet_forward.1} parent=0 // pred_region
    _
  $region21: #{catnet_forward.1} parent=0 // pred_fallthru
    _
  // Predicated region
  $region22: #{catnet_forward.1} parent=0 // pred_check
    _
  $region23: #{catnet_forward.1} parent=0 // pred_check_branch
    %22 = sbr.rel (0) target = $region25
  $region24: #{catnet_forward.1} parent=0 // pred_region
    _
  $region25: #{catnet_forward.1} parent=0 // pred_fallthru
    _
  %v23 = vld [vmem:[%s1] sm:$0xff]
  %v24 = vld [vmem:[%s2] sm:$0xff]
  %v25 = vld [vmem:[%s4] sm:$0x1]
  %v26 = vld [vmem:[%s5] sm:$0xff]
  %v27 = vld [vmem:[%s5 + $0x8] sm:$0xff]
  %v28 = vld [vmem:[%s5 + $0x10] sm:$0xff]
  %v29 = vld [vmem:[%s5 + $0x18] sm:$0xff]
  %v30 = vld [vmem:[%s5 + $0x20] sm:$0xff]
  %v31 = vld [vmem:[%s5 + $0x28] sm:$0xff]
  %v32 = vld [vmem:[%s5 + $0x30] sm:$0xff]
  %v33 = vld [vmem:[%s5 + $0x38] sm:$0xff]
  %v34 = vld [vmem:[%s5 + $0x40] sm:$0xf]
  %v35 = vld [vmem:[%s5 + $0x48] sm:$0xf]
  %v36 = vld [vmem:[%s0] sm:$0xff]
  %v38 = vcombine.high %v36, %v36
  %40 = vrot.lane.b32.xlu0 %v36, 17
  %v41 = vpop.permute.xlu0 %40
  %42 = vrot.lane.b32.xlu0 %v38, 17
  %v43 = vpop.permute.xlu0 %42
  %v44 = vlaneseq
  %v45 = vand.u32 %v44, 127
  %vm46 = vcmp.lt.s32.totalorder %v45, 17
  %v47 = vsel %vm46, %v41, %v43
  %v48 = vsel %vm46, %v43, %v41
  %49 = vrot.lane.b32.xlu0 %v36, 16
  %v50 = vpop.permute.xlu0 %49
  %51 = vrot.lane.b32.xlu0 %v38, 16
  %v52 = vpop.permute.xlu0 %51
  %vm53 = vcmp.lt.s32.totalorder %v45, 16
  %v54 = vsel %vm53, %v50, %v52
  %v55 = vsel %vm53, %v52, %v50
  %56 = vrot.lane.b32.xlu0 %v36, 15
  %v57 = vpop.permute.xlu0 %56
  %58 = vrot.lane.b32.xlu0 %v38, 15
  %v59 = vpop.permute.xlu0 %58
  %vm60 = vcmp.lt.s32.totalorder %v45, 15
  %v61 = vsel %vm60, %v57, %v59
  %v62 = vsel %vm60, %v59, %v57
  %63 = vrot.lane.b32.xlu0 %v36, 1
  %v64 = vpop.permute.xlu0 %63
  %65 = vrot.lane.b32.xlu0 %v38, 1
  %v66 = vpop.permute.xlu0 %65
  %vm67 = vcmp.lt.s32.totalorder %v45, 1
  %v68 = vsel %vm67, %v64, %v66
  %v69 = vsel %vm67, %v66, %v64
  %70 = vrot.lane.b32.xlu0 %v36, 127
  %v71 = vpop.permute.xlu0 %70
  %72 = vrot.lane.b32.xlu0 %v38, 127
  %v73 = vpop.permute.xlu0 %72
  %vm74 = vcmp.lt.s32.totalorder %v45, 127
  %v75 = vsel %vm74, %v71, %v73
  %v76 = vsel %vm74, %v73, %v71
  %77 = vrot.lane.b32.xlu0 %v36, 113
  %v78 = vpop.permute.xlu0 %77
  %79 = vrot.lane.b32.xlu0 %v38, 113
  %v80 = vpop.permute.xlu0 %79
  %vm81 = vcmp.lt.s32.totalorder %v45, 113
  %v82 = vsel %vm81, %v78, %v80
  %v83 = vsel %vm81, %v80, %v78
  %84 = vrot.lane.b32.xlu0 %v36, 112
  %v85 = vpop.permute.xlu0 %84
  %86 = vrot.lane.b32.xlu0 %v38, 112
  %v87 = vpop.permute.xlu0 %86
  %vm88 = vcmp.lt.s32.totalorder %v45, 112
  %v89 = vsel %vm88, %v85, %v87
  %v90 = vsel %vm88, %v87, %v85
  %91 = vrot.lane.b32.xlu0 %v36, 111
  %v92 = vpop.permute.xlu0 %91
  %93 = vrot.lane.b32.xlu0 %v38, 111
  %v94 = vpop.permute.xlu0 %93
  %vm95 = vcmp.lt.s32.totalorder %v45, 111
  %v96 = vsel %vm95, %v92, %v94
  %v97 = vsel %vm95, %v94, %v92
  %v100 = vrot.slane %v55, 4
  %v101 = vrot.slane %v54, 4
  %v106 = vrot.slane %v69, 4
  %v107 = vrot.slane %v68, 4
  %v112 = vrot.slane %v75, 4
  %v113 = vrot.slane %v76, 4
  %v118 = vrot.slane %v89, 4
  %v119 = vrot.slane %v90, 4
  %vm122 = vcmask 1043456
  %v123 = vsel %vm122, %v48, %v100
  %v124 = vsel %vm122, %v47, %v101
  %v125 = vsel %vm122, %v62, %v106
  %v126 = vsel %vm122, %v61, %v107
  %v127 = vsel %vm122, %v36, %v112
  %v128 = vsel %vm122, %v38, %v113
  %v129 = vsel %vm122, %v82, %v118
  %v130 = vsel %vm122, %v83, %v119
  %v131 = vmul.f32 %v123, %v26
  %v132 = vmul.f32 %v124, %v27
  %v133 = vmul.f32 %v125, %v28
  %v134 = vmul.f32 %v126, %v29
  %v135 = vmul.f32 %v127, %v30
  %v136 = vmul.f32 %v128, %v31
  %v137 = vmul.f32 %v129, %v32
  %v138 = vmul.f32 %v130, %v33
  %v139 = vmul.f32 %v96, %v34
  %v140 = vmul.f32 %v97, %v35
  %142 = vset.pattern.permute.xlu0 0
  %143 = vperm.xlu0 %142, %v24
  %v144 = vpop.permute.xlu0 %143
  %vm146 = vcmask 293888
  %v148 = vsel %vm146, %v23, 0
  %v151 = vsel %vm122, %v139, 0
  %v154 = vsel %vm122, %v140, 0
  %156 = vmatprep.subr.mxu0 %v132
  %157 = vmatpush1.msra.mxu0 %v131
  %158 = vmatprep.subr.mxu0 %v134
  %159 = vmatpush1.msra.mxu0 %v133
  %160 = vmatprep.subr.mxu0 %v136
  %161 = vmatpush1.msra.mxu0 %v135
  %162 = vmatprep.subr.mxu0 %v138
  %163 = vmatpush1.msra.mxu0 %v137
  %164 = vmatprep.subr.mxu0 %v154
  %165 = vmatpush1.msra.mxu0 %v151
  %166 = vmatprep.subr.mxu0 0.0
  %167 = vmatpush1.msra.mxu0 0.0
  %168 = vmatprep.subr.mxu0 0.0
  %169 = vmatpush1.msra.mxu0 0.0
  %170 = vmatprep.subr.mxu0 0.0
  %171 = vmatpush1.msra.mxu0 0.0
  %172 = vmatprep.subr.mxu0 0.0
  %173 = vmatpush1.msra.mxu0 0.0
  %174 = vmatprep.subr.mxu0 0.0
  %175 = vmatpush1.msra.mxu0 0.0
  %176 = vmatprep.subr.mxu0 0.0
  %177 = vmatpush1.msra.mxu0 0.0
  %178 = vmatprep.subr.mxu0 0.0
  %179 = vmatpush1.msra.mxu0 0.0
  %180 = vmatprep.subr.mxu0 0.0
  %181 = vmatpush1.msra.mxu0 0.0
  %182 = vmatprep.subr.mxu0 0.0
  %183 = vmatpush1.msra.mxu0 0.0
  %184 = vmatprep.subr.mxu0 0.0
  %185 = vmatpush1.msra.mxu0 0.0
  %186 = vmatprep.subr.mxu0 0.0
  %187 = vmatpush1.msra.mxu0 0.0
  %188 = vmatprep.subr.mxu0 0.0
  %189 = vmatpush1.msra.mxu0 0.0
  %190 = vmatprep.subr.mxu0 0.0
  %191 = vmatpush1.msra.mxu0 0.0
  %192 = vmatprep.subr.mxu0 0.0
  %193 = vmatpush1.msra.mxu0 0.0
  %194 = vmatprep.subr.mxu0 0.0
  %195 = vmatpush1.msra.mxu0 0.0
  %196 = vmatprep.subr.mxu0 0.0
  %197 = vmatpush1.msra.mxu0 0.0
  %198 = vmatprep.subr.mxu0 0.0
  %199 = vmatpush1.msra.mxu0 0.0
  %200 = vmatprep.subr.mxu0 0.0
  %201 = vmatpush1.msra.mxu0 0.0
  %202 = vmatprep.subr.mxu0 0.0
  %203 = vmatpush1.msra.mxu0 0.0
  %204 = vmatprep.subr.mxu0 0.0
  %205 = vmatpush1.msra.mxu0 0.0
  %206 = vmatprep.subr.mxu0 0.0
  %207 = vmatpush1.msra.mxu0 0.0
  %208 = vmatprep.subr.mxu0 0.0
  %209 = vmatpush1.msra.mxu0 0.0
  %210 = vmatprep.subr.mxu0 0.0
  %211 = vmatpush1.msra.mxu0 0.0
  %212 = vmatprep.subr.mxu0 0.0
  %213 = vmatpush1.msra.mxu0 0.0
  %214 = vmatprep.subr.mxu0 0.0
  %215 = vmatpush1.msra.mxu0 0.0
  %216 = vmatprep.subr.mxu0 0.0
  %217 = vmatpush1.msra.mxu0 0.0
  %218 = vmatprep.subr.mxu0 0.0
  %219 = vmatpush1.msra.mxu0 0.0
  %220 = vmatprep.mubr.f32.mxu0 0.0
  %221 = vmatmul.mubr.f32.gmra.mrb[0].mxu0 %v148
  %v222 = vpop.f32.mrb[0].mxu0
  %v223 = vadd.f32 %v144, %v222
  %v224 = vpop.f32.mrb[0].mxu0
  %v225 = vadd.f32 %v144, %v224
  %226 = vdwg.mxu0
  %v227 = vmax.f32 %v223, 0.0
  %v228 = vmax.f32 %v225, 0.0
  %v231 = vcombine.low %v227, %v228
  %v232 = vcombine.high %v227, %v228
  %v234 = vunpack.c.l.s4 1966171168
  %v235 = vunpack.c.0.s8 %v234
  %v236 = vlaneseq
  %v237 = vshrl.u32 %v236, 7
  %v238 = vsub.s32 %v235, %v237
  %v239 = vrot.slane %v231, %v238
  %v241 = vunpack.c.l.s4 1966171168
  %v242 = vunpack.c.0.s8 %v241
  %v243 = vlaneseq
  %v244 = vshrl.u32 %v243, 7
  %v245 = vsub.s32 %v242, %v244
  %v246 = vrot.slane %v232, %v245
  %v247 = vcombine.high %v239, %v239
  %v248 = vcombine.high %v246, %v246
  %v250 = vunpack.c.l.s4 1966171168
  %v251 = vunpack.c.0.s8 %v250
  %v252 = vlaneseq
  %v253 = vshrl.u32 %v252, 7
  %v254 = vsub.s32 %v251, %v253
  %v255 = vrot.slane %v239, %v254
  %v257 = vunpack.c.l.s4 1966171168
  %v258 = vunpack.c.0.s8 %v257
  %v259 = vlaneseq
  %v260 = vshrl.u32 %v259, 7
  %v261 = vsub.s32 %v258, %v260
  %v262 = vrot.slane %v246, %v261
  %v264 = vunpack.c.l.s4 1966171168
  %v265 = vunpack.c.0.s8 %v264
  %v266 = vlaneseq
  %v267 = vshrl.u32 %v266, 7
  %v268 = vsub.s32 %v265, %v267
  %v269 = vrot.slane %v247, %v268
  %v271 = vunpack.c.l.s4 1966171168
  %v272 = vunpack.c.0.s8 %v271
  %v273 = vlaneseq
  %v274 = vshrl.u32 %v273, 7
  %v275 = vsub.s32 %v272, %v274
  %v276 = vrot.slane %v248, %v275
  %v277 = vcombine.high %v255, %v255
  %v278 = vcombine.high %v262, %v262
  %v279 = vcombine.high %v269, %v269
  %v280 = vcombine.high %v276, %v276
  %v281 = vld [vmem:[%s3] sm:$0xff]
  %v282 = vld [vmem:[%s3 + $0x8] sm:$0xff]
  %v283 = vld [vmem:[%s3 + $0x10] sm:$0x3]
  %v284 = vld [vmem:[%s3 + $0x18] sm:$0x3]
  %v285 = vld [vmem:[%s3 + $0x20] sm:$0xff]
  %v286 = vld [vmem:[%s3 + $0x28] sm:$0xff]
  %v287 = vld [vmem:[%s3 + $0x30] sm:$0x3]
  %v288 = vld [vmem:[%s3 + $0x38] sm:$0x3]
  %v289 = vld [vmem:[%s3 + $0x40] sm:$0xff]
  %v290 = vld [vmem:[%s3 + $0x48] sm:$0xff]
  %v291 = vld [vmem:[%s3 + $0x50] sm:$0x3]
  %v292 = vld [vmem:[%s3 + $0x58] sm:$0x3]
  %v293 = vld [vmem:[%s3 + $0x60] sm:$0xff]
  %v294 = vld [vmem:[%s3 + $0x68] sm:$0xff]
  %v295 = vld [vmem:[%s3 + $0x70] sm:$0x3]
  %v296 = vld [vmem:[%s3 + $0x78] sm:$0x3]
  %v297 = vld [vmem:[%s3 + $0x80] sm:$0xff]
  %v298 = vld [vmem:[%s3 + $0x88] sm:$0xff]
  %v299 = vld [vmem:[%s3 + $0x90] sm:$0x3]
  %v300 = vld [vmem:[%s3 + $0x98] sm:$0x3]
  %v301 = vld [vmem:[%s3 + $0xa0] sm:$0xff]
  %v302 = vld [vmem:[%s3 + $0xa8] sm:$0xff]
  %v303 = vld [vmem:[%s3 + $0xb0] sm:$0x3]
  %v304 = vld [vmem:[%s3 + $0xb8] sm:$0x3]
  %v305 = vld [vmem:[%s3 + $0xc0] sm:$0xff]
  %v306 = vld [vmem:[%s3 + $0xc8] sm:$0xff]
  %v307 = vld [vmem:[%s3 + $0xd0] sm:$0x3]
  %v308 = vld [vmem:[%s3 + $0xd8] sm:$0x3]
  %v309 = vld [vmem:[%s3 + $0xe0] sm:$0xff]
  %v310 = vld [vmem:[%s3 + $0xe8] sm:$0xff]
  %v311 = vld [vmem:[%s3 + $0xf0] sm:$0x3]
  %v312 = vld [vmem:[%s3 + $0xf8] sm:$0x3]
  %v313 = vlaneseq
  %v314 = vshrl.u32 %v313, 7
  %v315 = vsub.s32 0, %v314
  %v316 = vrot.slane %v255, %v315
  %v317 = vlaneseq
  %v318 = vshrl.u32 %v317, 7
  %v319 = vsub.s32 1, %v318
  %v320 = vrot.slane %v255, %v319
  %323 = vmatprep.subr.mxu0 %v282
  %324 = vmatpush1.xpose.msra.mxu0 %v281
  %325 = vmatprep.subr.mxu0 %v284
  %326 = vmatpush1.xpose.msra.mxu0 %v283
  %327 = vmatprep.subr.mxu0 0.0
  %328 = vmatpush1.xpose.msra.mxu0 0.0
  %329 = vmatprep.subr.mxu0 0.0
  %330 = vmatpush1.xpose.msra.mxu0 0.0
  %331 = vmatprep.subr.mxu0 0.0
  %332 = vmatpush1.xpose.msra.mxu0 0.0
  %333 = vmatprep.subr.mxu0 0.0
  %334 = vmatpush1.xpose.msra.mxu0 0.0
  %335 = vmatprep.subr.mxu0 0.0
  %336 = vmatpush1.xpose.msra.mxu0 0.0
  %337 = vmatprep.subr.mxu0 0.0
  %338 = vmatpush1.xpose.msra.mxu0 0.0
  %339 = vmatprep.subr.mxu0 0.0
  %340 = vmatpush1.xpose.msra.mxu0 0.0
  %341 = vmatprep.subr.mxu0 0.0
  %342 = vmatpush1.xpose.msra.mxu0 0.0
  %343 = vmatprep.subr.mxu0 0.0
  %344 = vmatpush1.xpose.msra.mxu0 0.0
  %345 = vmatprep.subr.mxu0 0.0
  %346 = vmatpush1.xpose.msra.mxu0 0.0
  %347 = vmatprep.subr.mxu0 0.0
  %348 = vmatpush1.xpose.msra.mxu0 0.0
  %349 = vmatprep.subr.mxu0 0.0
  %350 = vmatpush1.xpose.msra.mxu0 0.0
  %351 = vmatprep.subr.mxu0 0.0
  %352 = vmatpush1.xpose.msra.mxu0 0.0
  %353 = vmatprep.subr.mxu0 0.0
  %354 = vmatpush1.xpose.msra.mxu0 0.0
  %355 = vmatprep.subr.mxu0 0.0
  %356 = vmatpush1.xpose.msra.mxu0 0.0
  %357 = vmatprep.subr.mxu0 0.0
  %358 = vmatpush1.xpose.msra.mxu0 0.0
  %359 = vmatprep.subr.mxu0 0.0
  %360 = vmatpush1.xpose.msra.mxu0 0.0
  %361 = vmatprep.subr.mxu0 0.0
  %362 = vmatpush1.xpose.msra.mxu0 0.0
  %363 = vmatprep.subr.mxu0 0.0
  %364 = vmatpush1.xpose.msra.mxu0 0.0
  %365 = vmatprep.subr.mxu0 0.0
  %366 = vmatpush1.xpose.msra.mxu0 0.0
  %367 = vmatprep.subr.mxu0 0.0
  %368 = vmatpush1.xpose.msra.mxu0 0.0
  %369 = vmatprep.subr.mxu0 0.0
  %370 = vmatpush1.xpose.msra.mxu0 0.0
  %371 = vmatprep.subr.mxu0 0.0
  %372 = vmatpush1.xpose.msra.mxu0 0.0
  %373 = vmatprep.subr.mxu0 0.0
  %374 = vmatpush1.xpose.msra.mxu0 0.0
  %375 = vmatprep.subr.mxu0 0.0
  %376 = vmatpush1.xpose.msra.mxu0 0.0
  %377 = vmatprep.subr.mxu0 0.0
  %378 = vmatpush1.xpose.msra.mxu0 0.0
  %379 = vmatprep.subr.mxu0 0.0
  %380 = vmatpush1.xpose.msra.mxu0 0.0
  %381 = vmatprep.subr.mxu0 0.0
  %382 = vmatpush1.xpose.msra.mxu0 0.0
  %383 = vmatprep.subr.mxu0 0.0
  %384 = vmatpush1.xpose.msra.mxu0 0.0
  %385 = vmatprep.subr.mxu0 0.0
  %386 = vmatpush1.xpose.msra.mxu0 0.0
  %387 = vmatprep.mubr.f32.mxu0 %v320
  %388 = vmatmul.mubr.f32.gmra.mrb[0].mxu0 %v316
  %v389 = vpop.f32.mrb[0].mxu0
  %v390 = vadd.f32 0.0, %v389
  %v391 = vpop.f32.mrb[0].mxu0
  %392 = vdwg.mxu0
  %v393 = vlaneseq
  %v394 = vshrl.u32 %v393, 7
  %v395 = vsub.s32 0, %v394
  %v396 = vrot.slane %v269, %v395
  %v397 = vlaneseq
  %v398 = vshrl.u32 %v397, 7
  %v399 = vsub.s32 1, %v398
  %v400 = vrot.slane %v269, %v399
  %403 = vmatprep.subr.mxu0 %v286
  %404 = vmatpush1.xpose.msra.mxu0 %v285
  %405 = vmatprep.subr.mxu0 %v288
  %406 = vmatpush1.xpose.msra.mxu0 %v287
  %407 = vmatprep.subr.mxu0 0.0
  %408 = vmatpush1.xpose.msra.mxu0 0.0
  %409 = vmatprep.subr.mxu0 0.0
  %410 = vmatpush1.xpose.msra.mxu0 0.0
  %411 = vmatprep.subr.mxu0 0.0
  %412 = vmatpush1.xpose.msra.mxu0 0.0
  %413 = vmatprep.subr.mxu0 0.0
  %414 = vmatpush1.xpose.msra.mxu0 0.0
  %415 = vmatprep.subr.mxu0 0.0
  %416 = vmatpush1.xpose.msra.mxu0 0.0
  %417 = vmatprep.subr.mxu0 0.0
  %418 = vmatpush1.xpose.msra.mxu0 0.0
  %419 = vmatprep.subr.mxu0 0.0
  %420 = vmatpush1.xpose.msra.mxu0 0.0
  %421 = vmatprep.subr.mxu0 0.0
  %422 = vmatpush1.xpose.msra.mxu0 0.0
  %423 = vmatprep.subr.mxu0 0.0
  %424 = vmatpush1.xpose.msra.mxu0 0.0
  %425 = vmatprep.subr.mxu0 0.0
  %426 = vmatpush1.xpose.msra.mxu0 0.0
  %427 = vmatprep.subr.mxu0 0.0
  %428 = vmatpush1.xpose.msra.mxu0 0.0
  %429 = vmatprep.subr.mxu0 0.0
  %430 = vmatpush1.xpose.msra.mxu0 0.0
  %431 = vmatprep.subr.mxu0 0.0
  %432 = vmatpush1.xpose.msra.mxu0 0.0
  %433 = vmatprep.subr.mxu0 0.0
  %434 = vmatpush1.xpose.msra.mxu0 0.0
  %435 = vmatprep.subr.mxu0 0.0
  %436 = vmatpush1.xpose.msra.mxu0 0.0
  %437 = vmatprep.subr.mxu0 0.0
  %438 = vmatpush1.xpose.msra.mxu0 0.0
  %439 = vmatprep.subr.mxu0 0.0
  %440 = vmatpush1.xpose.msra.mxu0 0.0
  %441 = vmatprep.subr.mxu0 0.0
  %442 = vmatpush1.xpose.msra.mxu0 0.0
  %443 = vmatprep.subr.mxu0 0.0
  %444 = vmatpush1.xpose.msra.mxu0 0.0
  %445 = vmatprep.subr.mxu0 0.0
  %446 = vmatpush1.xpose.msra.mxu0 0.0
  %447 = vmatprep.subr.mxu0 0.0
  %448 = vmatpush1.xpose.msra.mxu0 0.0
  %449 = vmatprep.subr.mxu0 0.0
  %450 = vmatpush1.xpose.msra.mxu0 0.0
  %451 = vmatprep.subr.mxu0 0.0
  %452 = vmatpush1.xpose.msra.mxu0 0.0
  %453 = vmatprep.subr.mxu0 0.0
  %454 = vmatpush1.xpose.msra.mxu0 0.0
  %455 = vmatprep.subr.mxu0 0.0
  %456 = vmatpush1.xpose.msra.mxu0 0.0
  %457 = vmatprep.subr.mxu0 0.0
  %458 = vmatpush1.xpose.msra.mxu0 0.0
  %459 = vmatprep.subr.mxu0 0.0
  %460 = vmatpush1.xpose.msra.mxu0 0.0
  %461 = vmatprep.subr.mxu0 0.0
  %462 = vmatpush1.xpose.msra.mxu0 0.0
  %463 = vmatprep.subr.mxu0 0.0
  %464 = vmatpush1.xpose.msra.mxu0 0.0
  %465 = vmatprep.subr.mxu0 0.0
  %466 = vmatpush1.xpose.msra.mxu0 0.0
  %467 = vmatprep.mubr.f32.mxu0 %v400
  %468 = vmatmul.mubr.f32.gmra.mrb[0].mxu0 %v396
  %v469 = vpop.f32.mrb[0].mxu0
  %v470 = vadd.f32 0.0, %v469
  %v471 = vpop.f32.mrb[0].mxu0
  %472 = vdwg.mxu0
  %v473 = vlaneseq
  %v474 = vshrl.u32 %v473, 7
  %v475 = vsub.s32 0, %v474
  %v476 = vrot.slane %v277, %v475
  %v477 = vlaneseq
  %v478 = vshrl.u32 %v477, 7
  %v479 = vsub.s32 1, %v478
  %v480 = vrot.slane %v277, %v479
  %483 = vmatprep.subr.mxu0 %v290
  %484 = vmatpush1.xpose.msra.mxu0 %v289
  %485 = vmatprep.subr.mxu0 %v292
  %486 = vmatpush1.xpose.msra.mxu0 %v291
  %487 = vmatprep.subr.mxu0 0.0
  %488 = vmatpush1.xpose.msra.mxu0 0.0
  %489 = vmatprep.subr.mxu0 0.0
  %490 = vmatpush1.xpose.msra.mxu0 0.0
  %491 = vmatprep.subr.mxu0 0.0
  %492 = vmatpush1.xpose.msra.mxu0 0.0
  %493 = vmatprep.subr.mxu0 0.0
  %494 = vmatpush1.xpose.msra.mxu0 0.0
  %495 = vmatprep.subr.mxu0 0.0
  %496 = vmatpush1.xpose.msra.mxu0 0.0
  %497 = vmatprep.subr.mxu0 0.0
  %498 = vmatpush1.xpose.msra.mxu0 0.0
  %499 = vmatprep.subr.mxu0 0.0
  %500 = vmatpush1.xpose.msra.mxu0 0.0
  %501 = vmatprep.subr.mxu0 0.0
  %502 = vmatpush1.xpose.msra.mxu0 0.0
  %503 = vmatprep.subr.mxu0 0.0
  %504 = vmatpush1.xpose.msra.mxu0 0.0
  %505 = vmatprep.subr.mxu0 0.0
  %506 = vmatpush1.xpose.msra.mxu0 0.0
  %507 = vmatprep.subr.mxu0 0.0
  %508 = vmatpush1.xpose.msra.mxu0 0.0
  %509 = vmatprep.subr.mxu0 0.0
  %510 = vmatpush1.xpose.msra.mxu0 0.0
  %511 = vmatprep.subr.mxu0 0.0
  %512 = vmatpush1.xpose.msra.mxu0 0.0
  %513 = vmatprep.subr.mxu0 0.0
  %514 = vmatpush1.xpose.msra.mxu0 0.0
  %515 = vmatprep.subr.mxu0 0.0
  %516 = vmatpush1.xpose.msra.mxu0 0.0
  %517 = vmatprep.subr.mxu0 0.0
  %518 = vmatpush1.xpose.msra.mxu0 0.0
  %519 = vmatprep.subr.mxu0 0.0
  %520 = vmatpush1.xpose.msra.mxu0 0.0
  %521 = vmatprep.subr.mxu0 0.0
  %522 = vmatpush1.xpose.msra.mxu0 0.0
  %523 = vmatprep.subr.mxu0 0.0
  %524 = vmatpush1.xpose.msra.mxu0 0.0
  %525 = vmatprep.subr.mxu0 0.0
  %526 = vmatpush1.xpose.msra.mxu0 0.0
  %527 = vmatprep.subr.mxu0 0.0
  %528 = vmatpush1.xpose.msra.mxu0 0.0
  %529 = vmatprep.subr.mxu0 0.0
  %530 = vmatpush1.xpose.msra.mxu0 0.0
  %531 = vmatprep.subr.mxu0 0.0
  %532 = vmatpush1.xpose.msra.mxu0 0.0
  %533 = vmatprep.subr.mxu0 0.0
  %534 = vmatpush1.xpose.msra.mxu0 0.0
  %535 = vmatprep.subr.mxu0 0.0
  %536 = vmatpush1.xpose.msra.mxu0 0.0
  %537 = vmatprep.subr.mxu0 0.0
  %538 = vmatpush1.xpose.msra.mxu0 0.0
  %539 = vmatprep.subr.mxu0 0.0
  %540 = vmatpush1.xpose.msra.mxu0 0.0
  %541 = vmatprep.subr.mxu0 0.0
  %542 = vmatpush1.xpose.msra.mxu0 0.0
  %543 = vmatprep.subr.mxu0 0.0
  %544 = vmatpush1.xpose.msra.mxu0 0.0
  %545 = vmatprep.subr.mxu0 0.0
  %546 = vmatpush1.xpose.msra.mxu0 0.0
  %547 = vmatprep.mubr.f32.mxu0 %v480
  %548 = vmatmul.mubr.f32.gmra.mrb[0].mxu0 %v476
  %v549 = vpop.f32.mrb[0].mxu0
  %v550 = vadd.f32 0.0, %v549
  %v551 = vpop.f32.mrb[0].mxu0
  %552 = vdwg.mxu0
  %v553 = vlaneseq
  %v554 = vshrl.u32 %v553, 7
  %v555 = vsub.s32 0, %v554
  %v556 = vrot.slane %v279, %v555
  %v557 = vlaneseq
  %v558 = vshrl.u32 %v557, 7
  %v559 = vsub.s32 1, %v558
  %v560 = vrot.slane %v279, %v559
  %563 = vmatprep.subr.mxu0 %v294
  %564 = vmatpush1.xpose.msra.mxu0 %v293
  %565 = vmatprep.subr.mxu0 %v296
  %566 = vmatpush1.xpose.msra.mxu0 %v295
  %567 = vmatprep.subr.mxu0 0.0
  %568 = vmatpush1.xpose.msra.mxu0 0.0
  %569 = vmatprep.subr.mxu0 0.0
  %570 = vmatpush1.xpose.msra.mxu0 0.0
  %571 = vmatprep.subr.mxu0 0.0
  %572 = vmatpush1.xpose.msra.mxu0 0.0
  %573 = vmatprep.subr.mxu0 0.0
  %574 = vmatpush1.xpose.msra.mxu0 0.0
  %575 = vmatprep.subr.mxu0 0.0
  %576 = vmatpush1.xpose.msra.mxu0 0.0
  %577 = vmatprep.subr.mxu0 0.0
  %578 = vmatpush1.xpose.msra.mxu0 0.0
  %579 = vmatprep.subr.mxu0 0.0
  %580 = vmatpush1.xpose.msra.mxu0 0.0
  %581 = vmatprep.subr.mxu0 0.0
  %582 = vmatpush1.xpose.msra.mxu0 0.0
  %583 = vmatprep.subr.mxu0 0.0
  %584 = vmatpush1.xpose.msra.mxu0 0.0
  %585 = vmatprep.subr.mxu0 0.0
  %586 = vmatpush1.xpose.msra.mxu0 0.0
  %587 = vmatprep.subr.mxu0 0.0
  %588 = vmatpush1.xpose.msra.mxu0 0.0
  %589 = vmatprep.subr.mxu0 0.0
  %590 = vmatpush1.xpose.msra.mxu0 0.0
  %591 = vmatprep.subr.mxu0 0.0
  %592 = vmatpush1.xpose.msra.mxu0 0.0
  %593 = vmatprep.subr.mxu0 0.0
  %594 = vmatpush1.xpose.msra.mxu0 0.0
  %595 = vmatprep.subr.mxu0 0.0
  %596 = vmatpush1.xpose.msra.mxu0 0.0
  %597 = vmatprep.subr.mxu0 0.0
  %598 = vmatpush1.xpose.msra.mxu0 0.0
  %599 = vmatprep.subr.mxu0 0.0
  %600 = vmatpush1.xpose.msra.mxu0 0.0
  %601 = vmatprep.subr.mxu0 0.0
  %602 = vmatpush1.xpose.msra.mxu0 0.0
  %603 = vmatprep.subr.mxu0 0.0
  %604 = vmatpush1.xpose.msra.mxu0 0.0
  %605 = vmatprep.subr.mxu0 0.0
  %606 = vmatpush1.xpose.msra.mxu0 0.0
  %607 = vmatprep.subr.mxu0 0.0
  %608 = vmatpush1.xpose.msra.mxu0 0.0
  %609 = vmatprep.subr.mxu0 0.0
  %610 = vmatpush1.xpose.msra.mxu0 0.0
  %611 = vmatprep.subr.mxu0 0.0
  %612 = vmatpush1.xpose.msra.mxu0 0.0
  %613 = vmatprep.subr.mxu0 0.0
  %614 = vmatpush1.xpose.msra.mxu0 0.0
  %615 = vmatprep.subr.mxu0 0.0
  %616 = vmatpush1.xpose.msra.mxu0 0.0
  %617 = vmatprep.subr.mxu0 0.0
  %618 = vmatpush1.xpose.msra.mxu0 0.0
  %619 = vmatprep.subr.mxu0 0.0
  %620 = vmatpush1.xpose.msra.mxu0 0.0
  %621 = vmatprep.subr.mxu0 0.0
  %622 = vmatpush1.xpose.msra.mxu0 0.0
  %623 = vmatprep.subr.mxu0 0.0
  %624 = vmatpush1.xpose.msra.mxu0 0.0
  %625 = vmatprep.subr.mxu0 0.0
  %626 = vmatpush1.xpose.msra.mxu0 0.0
  %627 = vmatprep.mubr.f32.mxu0 %v560
  %628 = vmatmul.mubr.f32.gmra.mrb[0].mxu0 %v556
  %v629 = vpop.f32.mrb[0].mxu0
  %v630 = vadd.f32 0.0, %v629
  %v631 = vpop.f32.mrb[0].mxu0
  %632 = vdwg.mxu0
  %v633 = vlaneseq
  %v634 = vshrl.u32 %v633, 7
  %v635 = vsub.s32 0, %v634
  %v636 = vrot.slane %v262, %v635
  %v637 = vlaneseq
  %v638 = vshrl.u32 %v637, 7
  %v639 = vsub.s32 1, %v638
  %v640 = vrot.slane %v262, %v639
  %643 = vmatprep.subr.mxu0 %v298
  %644 = vmatpush1.xpose.msra.mxu0 %v297
  %645 = vmatprep.subr.mxu0 %v300
  %646 = vmatpush1.xpose.msra.mxu0 %v299
  %647 = vmatprep.subr.mxu0 0.0
  %648 = vmatpush1.xpose.msra.mxu0 0.0
  %649 = vmatprep.subr.mxu0 0.0
  %650 = vmatpush1.xpose.msra.mxu0 0.0
  %651 = vmatprep.subr.mxu0 0.0
  %652 = vmatpush1.xpose.msra.mxu0 0.0
  %653 = vmatprep.subr.mxu0 0.0
  %654 = vmatpush1.xpose.msra.mxu0 0.0
  %655 = vmatprep.subr.mxu0 0.0
  %656 = vmatpush1.xpose.msra.mxu0 0.0
  %657 = vmatprep.subr.mxu0 0.0
  %658 = vmatpush1.xpose.msra.mxu0 0.0
  %659 = vmatprep.subr.mxu0 0.0
  %660 = vmatpush1.xpose.msra.mxu0 0.0
  %661 = vmatprep.subr.mxu0 0.0
  %662 = vmatpush1.xpose.msra.mxu0 0.0
  %663 = vmatprep.subr.mxu0 0.0
  %664 = vmatpush1.xpose.msra.mxu0 0.0
  %665 = vmatprep.subr.mxu0 0.0
  %666 = vmatpush1.xpose.msra.mxu0 0.0
  %667 = vmatprep.subr.mxu0 0.0
  %668 = vmatpush1.xpose.msra.mxu0 0.0
  %669 = vmatprep.subr.mxu0 0.0
  %670 = vmatpush1.xpose.msra.mxu0 0.0
  %671 = vmatprep.subr.mxu0 0.0
  %672 = vmatpush1.xpose.msra.mxu0 0.0
  %673 = vmatprep.subr.mxu0 0.0
  %674 = vmatpush1.xpose.msra.mxu0 0.0
  %675 = vmatprep.subr.mxu0 0.0
  %676 = vmatpush1.xpose.msra.mxu0 0.0
  %677 = vmatprep.subr.mxu0 0.0
  %678 = vmatpush1.xpose.msra.mxu0 0.0
  %679 = vmatprep.subr.mxu0 0.0
  %680 = vmatpush1.xpose.msra.mxu0 0.0
  %681 = vmatprep.subr.mxu0 0.0
  %682 = vmatpush1.xpose.msra.mxu0 0.0
  %683 = vmatprep.subr.mxu0 0.0
  %684 = vmatpush1.xpose.msra.mxu0 0.0
  %685 = vmatprep.subr.mxu0 0.0
  %686 = vmatpush1.xpose.msra.mxu0 0.0
  %687 = vmatprep.subr.mxu0 0.0
  %688 = vmatpush1.xpose.msra.mxu0 0.0
  %689 = vmatprep.subr.mxu0 0.0
  %690 = vmatpush1.xpose.msra.mxu0 0.0
  %691 = vmatprep.subr.mxu0 0.0
  %692 = vmatpush1.xpose.msra.mxu0 0.0
  %693 = vmatprep.subr.mxu0 0.0
  %694 = vmatpush1.xpose.msra.mxu0 0.0
  %695 = vmatprep.subr.mxu0 0.0
  %696 = vmatpush1.xpose.msra.mxu0 0.0
  %697 = vmatprep.subr.mxu0 0.0
  %698 = vmatpush1.xpose.msra.mxu0 0.0
  %699 = vmatprep.subr.mxu0 0.0
  %700 = vmatpush1.xpose.msra.mxu0 0.0
  %701 = vmatprep.subr.mxu0 0.0
  %702 = vmatpush1.xpose.msra.mxu0 0.0
  %703 = vmatprep.subr.mxu0 0.0
  %704 = vmatpush1.xpose.msra.mxu0 0.0
  %705 = vmatprep.subr.mxu0 0.0
  %706 = vmatpush1.xpose.msra.mxu0 0.0
  %707 = vmatprep.mubr.f32.mxu0 %v640
  %708 = vmatmul.mubr.f32.gmra.mrb[0].mxu0 %v636
  %v709 = vpop.f32.mrb[0].mxu0
  %v710 = vadd.f32 0.0, %v709
  %v711 = vpop.f32.mrb[0].mxu0
  %712 = vdwg.mxu0
  %v713 = vlaneseq
  %v714 = vshrl.u32 %v713, 7
  %v715 = vsub.s32 0, %v714
  %v716 = vrot.slane %v276, %v715
  %v717 = vlaneseq
  %v718 = vshrl.u32 %v717, 7
  %v719 = vsub.s32 1, %v718
  %v720 = vrot.slane %v276, %v719
  %723 = vmatprep.subr.mxu0 %v302
  %724 = vmatpush1.xpose.msra.mxu0 %v301
  %725 = vmatprep.subr.mxu0 %v304
  %726 = vmatpush1.xpose.msra.mxu0 %v303
  %727 = vmatprep.subr.mxu0 0.0
  %728 = vmatpush1.xpose.msra.mxu0 0.0
  %729 = vmatprep.subr.mxu0 0.0
  %730 = vmatpush1.xpose.msra.mxu0 0.0
  %731 = vmatprep.subr.mxu0 0.0
  %732 = vmatpush1.xpose.msra.mxu0 0.0
  %733 = vmatprep.subr.mxu0 0.0
  %734 = vmatpush1.xpose.msra.mxu0 0.0
  %735 = vmatprep.subr.mxu0 0.0
  %736 = vmatpush1.xpose.msra.mxu0 0.0
  %737 = vmatprep.subr.mxu0 0.0
  %738 = vmatpush1.xpose.msra.mxu0 0.0
  %739 = vmatprep.subr.mxu0 0.0
  %740 = vmatpush1.xpose.msra.mxu0 0.0
  %741 = vmatprep.subr.mxu0 0.0
  %742 = vmatpush1.xpose.msra.mxu0 0.0
  %743 = vmatprep.subr.mxu0 0.0
  %744 = vmatpush1.xpose.msra.mxu0 0.0
  %745 = vmatprep.subr.mxu0 0.0
  %746 = vmatpush1.xpose.msra.mxu0 0.0
  %747 = vmatprep.subr.mxu0 0.0
  %748 = vmatpush1.xpose.msra.mxu0 0.0
  %749 = vmatprep.subr.mxu0 0.0
  %750 = vmatpush1.xpose.msra.mxu0 0.0
  %751 = vmatprep.subr.mxu0 0.0
  %752 = vmatpush1.xpose.msra.mxu0 0.0
  %753 = vmatprep.subr.mxu0 0.0
  %754 = vmatpush1.xpose.msra.mxu0 0.0
  %755 = vmatprep.subr.mxu0 0.0
  %756 = vmatpush1.xpose.msra.mxu0 0.0
  %757 = vmatprep.subr.mxu0 0.0
  %758 = vmatpush1.xpose.msra.mxu0 0.0
  %759 = vmatprep.subr.mxu0 0.0
  %760 = vmatpush1.xpose.msra.mxu0 0.0
  %761 = vmatprep.subr.mxu0 0.0
  %762 = vmatpush1.xpose.msra.mxu0 0.0
  %763 = vmatprep.subr.mxu0 0.0
  %764 = vmatpush1.xpose.msra.mxu0 0.0
  %765 = vmatprep.subr.mxu0 0.0
  %766 = vmatpush1.xpose.msra.mxu0 0.0
  %767 = vmatprep.subr.mxu0 0.0
  %768 = vmatpush1.xpose.msra.mxu0 0.0
  %769 = vmatprep.subr.mxu0 0.0
  %770 = vmatpush1.xpose.msra.mxu0 0.0
  %771 = vmatprep.subr.mxu0 0.0
  %772 = vmatpush1.xpose.msra.mxu0 0.0
  %773 = vmatprep.subr.mxu0 0.0
  %774 = vmatpush1.xpose.msra.mxu0 0.0
  %775 = vmatprep.subr.mxu0 0.0
  %776 = vmatpush1.xpose.msra.mxu0 0.0
  %777 = vmatprep.subr.mxu0 0.0
  %778 = vmatpush1.xpose.msra.mxu0 0.0
  %779 = vmatprep.subr.mxu0 0.0
  %780 = vmatpush1.xpose.msra.mxu0 0.0
  %781 = vmatprep.subr.mxu0 0.0
  %782 = vmatpush1.xpose.msra.mxu0 0.0
  %783 = vmatprep.subr.mxu0 0.0
  %784 = vmatpush1.xpose.msra.mxu0 0.0
  %785 = vmatprep.subr.mxu0 0.0
  %786 = vmatpush1.xpose.msra.mxu0 0.0
  %787 = vmatprep.mubr.f32.mxu0 %v720
  %788 = vmatmul.mubr.f32.gmra.mrb[0].mxu0 %v716
  %v789 = vpop.f32.mrb[0].mxu0
  %v790 = vadd.f32 0.0, %v789
  %v791 = vpop.f32.mrb[0].mxu0
  %792 = vdwg.mxu0
  %v793 = vlaneseq
  %v794 = vshrl.u32 %v793, 7
  %v795 = vsub.s32 0, %v794
  %v796 = vrot.slane %v278, %v795
  %v797 = vlaneseq
  %v798 = vshrl.u32 %v797, 7
  %v799 = vsub.s32 1, %v798
  %v800 = vrot.slane %v278, %v799
  %803 = vmatprep.subr.mxu0 %v306
  %804 = vmatpush1.xpose.msra.mxu0 %v305
  %805 = vmatprep.subr.mxu0 %v308
  %806 = vmatpush1.xpose.msra.mxu0 %v307
  %807 = vmatprep.subr.mxu0 0.0
  %808 = vmatpush1.xpose.msra.mxu0 0.0
  %809 = vmatprep.subr.mxu0 0.0
  %810 = vmatpush1.xpose.msra.mxu0 0.0
  %811 = vmatprep.subr.mxu0 0.0
  %812 = vmatpush1.xpose.msra.mxu0 0.0
  %813 = vmatprep.subr.mxu0 0.0
  %814 = vmatpush1.xpose.msra.mxu0 0.0
  %815 = vmatprep.subr.mxu0 0.0
  %816 = vmatpush1.xpose.msra.mxu0 0.0
  %817 = vmatprep.subr.mxu0 0.0
  %818 = vmatpush1.xpose.msra.mxu0 0.0
  %819 = vmatprep.subr.mxu0 0.0
  %820 = vmatpush1.xpose.msra.mxu0 0.0
  %821 = vmatprep.subr.mxu0 0.0
  %822 = vmatpush1.xpose.msra.mxu0 0.0
  %823 = vmatprep.subr.mxu0 0.0
  %824 = vmatpush1.xpose.msra.mxu0 0.0
  %825 = vmatprep.subr.mxu0 0.0
  %826 = vmatpush1.xpose.msra.mxu0 0.0
  %827 = vmatprep.subr.mxu0 0.0
  %828 = vmatpush1.xpose.msra.mxu0 0.0
  %829 = vmatprep.subr.mxu0 0.0
  %830 = vmatpush1.xpose.msra.mxu0 0.0
  %831 = vmatprep.subr.mxu0 0.0
  %832 = vmatpush1.xpose.msra.mxu0 0.0
  %833 = vmatprep.subr.mxu0 0.0
  %834 = vmatpush1.xpose.msra.mxu0 0.0
  %835 = vmatprep.subr.mxu0 0.0
  %836 = vmatpush1.xpose.msra.mxu0 0.0
  %837 = vmatprep.subr.mxu0 0.0
  %838 = vmatpush1.xpose.msra.mxu0 0.0
  %839 = vmatprep.subr.mxu0 0.0
  %840 = vmatpush1.xpose.msra.mxu0 0.0
  %841 = vmatprep.subr.mxu0 0.0
  %842 = vmatpush1.xpose.msra.mxu0 0.0
  %843 = vmatprep.subr.mxu0 0.0
  %844 = vmatpush1.xpose.msra.mxu0 0.0
  %845 = vmatprep.subr.mxu0 0.0
  %846 = vmatpush1.xpose.msra.mxu0 0.0
  %847 = vmatprep.subr.mxu0 0.0
  %848 = vmatpush1.xpose.msra.mxu0 0.0
  %849 = vmatprep.subr.mxu0 0.0
  %850 = vmatpush1.xpose.msra.mxu0 0.0
  %851 = vmatprep.subr.mxu0 0.0
  %852 = vmatpush1.xpose.msra.mxu0 0.0
  %853 = vmatprep.subr.mxu0 0.0
  %854 = vmatpush1.xpose.msra.mxu0 0.0
  %855 = vmatprep.subr.mxu0 0.0
  %856 = vmatpush1.xpose.msra.mxu0 0.0
  %857 = vmatprep.subr.mxu0 0.0
  %858 = vmatpush1.xpose.msra.mxu0 0.0
  %859 = vmatprep.subr.mxu0 0.0
  %860 = vmatpush1.xpose.msra.mxu0 0.0
  %861 = vmatprep.subr.mxu0 0.0
  %862 = vmatpush1.xpose.msra.mxu0 0.0
  %863 = vmatprep.subr.mxu0 0.0
  %864 = vmatpush1.xpose.msra.mxu0 0.0
  %865 = vmatprep.subr.mxu0 0.0
  %866 = vmatpush1.xpose.msra.mxu0 0.0
  %867 = vmatprep.mubr.f32.mxu0 %v800
  %868 = vmatmul.mubr.f32.gmra.mrb[0].mxu0 %v796
  %v869 = vpop.f32.mrb[0].mxu0
  %v870 = vadd.f32 0.0, %v869
  %v871 = vpop.f32.mrb[0].mxu0
  %872 = vdwg.mxu0
  %v873 = vlaneseq
  %v874 = vshrl.u32 %v873, 7
  %v875 = vsub.s32 0, %v874
  %v876 = vrot.slane %v280, %v875
  %v877 = vlaneseq
  %v878 = vshrl.u32 %v877, 7
  %v879 = vsub.s32 1, %v878
  %v880 = vrot.slane %v280, %v879
  %883 = vmatprep.subr.mxu0 %v310
  %884 = vmatpush1.xpose.msra.mxu0 %v309
  %885 = vmatprep.subr.mxu0 %v312
  %886 = vmatpush1.xpose.msra.mxu0 %v311
  %887 = vmatprep.subr.mxu0 0.0
  %888 = vmatpush1.xpose.msra.mxu0 0.0
  %889 = vmatprep.subr.mxu0 0.0
  %890 = vmatpush1.xpose.msra.mxu0 0.0
  %891 = vmatprep.subr.mxu0 0.0
  %892 = vmatpush1.xpose.msra.mxu0 0.0
  %893 = vmatprep.subr.mxu0 0.0
  %894 = vmatpush1.xpose.msra.mxu0 0.0
  %895 = vmatprep.subr.mxu0 0.0
  %896 = vmatpush1.xpose.msra.mxu0 0.0
  %897 = vmatprep.subr.mxu0 0.0
  %898 = vmatpush1.xpose.msra.mxu0 0.0
  %899 = vmatprep.subr.mxu0 0.0
  %900 = vmatpush1.xpose.msra.mxu0 0.0
  %901 = vmatprep.subr.mxu0 0.0
  %902 = vmatpush1.xpose.msra.mxu0 0.0
  %903 = vmatprep.subr.mxu0 0.0
  %904 = vmatpush1.xpose.msra.mxu0 0.0
  %905 = vmatprep.subr.mxu0 0.0
  %906 = vmatpush1.xpose.msra.mxu0 0.0
  %907 = vmatprep.subr.mxu0 0.0
  %908 = vmatpush1.xpose.msra.mxu0 0.0
  %909 = vmatprep.subr.mxu0 0.0
  %910 = vmatpush1.xpose.msra.mxu0 0.0
  %911 = vmatprep.subr.mxu0 0.0
  %912 = vmatpush1.xpose.msra.mxu0 0.0
  %913 = vmatprep.subr.mxu0 0.0
  %914 = vmatpush1.xpose.msra.mxu0 0.0
  %915 = vmatprep.subr.mxu0 0.0
  %916 = vmatpush1.xpose.msra.mxu0 0.0
  %917 = vmatprep.subr.mxu0 0.0
  %918 = vmatpush1.xpose.msra.mxu0 0.0
  %919 = vmatprep.subr.mxu0 0.0
  %920 = vmatpush1.xpose.msra.mxu0 0.0
  %921 = vmatprep.subr.mxu0 0.0
  %922 = vmatpush1.xpose.msra.mxu0 0.0
  %923 = vmatprep.subr.mxu0 0.0
  %924 = vmatpush1.xpose.msra.mxu0 0.0
  %925 = vmatprep.subr.mxu0 0.0
  %926 = vmatpush1.xpose.msra.mxu0 0.0
  %927 = vmatprep.subr.mxu0 0.0
  %928 = vmatpush1.xpose.msra.mxu0 0.0
  %929 = vmatprep.subr.mxu0 0.0
  %930 = vmatpush1.xpose.msra.mxu0 0.0
  %931 = vmatprep.subr.mxu0 0.0
  %932 = vmatpush1.xpose.msra.mxu0 0.0
  %933 = vmatprep.subr.mxu0 0.0
  %934 = vmatpush1.xpose.msra.mxu0 0.0
  %935 = vmatprep.subr.mxu0 0.0
  %936 = vmatpush1.xpose.msra.mxu0 0.0
  %937 = vmatprep.subr.mxu0 0.0
  %938 = vmatpush1.xpose.msra.mxu0 0.0
  %939 = vmatprep.subr.mxu0 0.0
  %940 = vmatpush1.xpose.msra.mxu0 0.0
  %941 = vmatprep.subr.mxu0 0.0
  %942 = vmatpush1.xpose.msra.mxu0 0.0
  %943 = vmatprep.subr.mxu0 0.0
  %944 = vmatpush1.xpose.msra.mxu0 0.0
  %945 = vmatprep.subr.mxu0 0.0
  %946 = vmatpush1.xpose.msra.mxu0 0.0
  %947 = vmatprep.mubr.f32.mxu0 %v880
  %948 = vmatmul.mubr.f32.gmra.mrb[0].mxu0 %v876
  %v949 = vpop.f32.mrb[0].mxu0
  %v950 = vadd.f32 0.0, %v949
  %v951 = vpop.f32.mrb[0].mxu0
  %952 = vdwg.mxu0
  %v961 = vrot.slane %v470, 7
  %vm962 = vcmask 1041409
  %v963 = vsel %vm962, %v961, %v390
  %v964 = vrot.slane %v550, 6
  %vm965 = vcmask 1042434
  %v966 = vsel %vm965, %v964, %v963
  %v967 = vrot.slane %v630, 5
  %vm968 = vcmask 1043459
  %v969 = vsel %vm968, %v967, %v966
  %v970 = vrot.slane %v710, 4
  %vm971 = vcmask 1044484
  %v972 = vsel %vm971, %v970, %v969
  %v973 = vrot.slane %v790, 3
  %vm974 = vcmask 1045509
  %v975 = vsel %vm974, %v973, %v972
  %v976 = vrot.slane %v870, 2
  %vm977 = vcmask 1046534
  %v978 = vsel %vm977, %v976, %v975
  %v979 = vrot.slane %v950, 1
  %vm980 = vcmask 1047559
  %v981 = vsel %vm980, %v979, %v978
  %vm983 = vcmask 80896
  %v984 = vsel %vm983, %v981, 0.0
  %v985 = vrot.slane %v984, 4
  %v986 = vadd.f32 %v984, %v985
  %v987 = vrot.slane %v986, 2
  %v988 = vadd.f32 %v986, %v987
  %v989 = vrot.slane %v988, 1
  %v990 = vadd.f32 %v988, %v989
  %v991 = vadd.f32 %v990, %v25
  %s992 = scalar_lea.vmem %s0, 8
  %v993 = vld [vmem:[%s992] sm:$0xff]
  %v995 = vcombine.high %v993, %v993
  %997 = vrot.lane.b32.xlu0 %v993, 17
  %v998 = vpop.permute.xlu0 %997
  %999 = vrot.lane.b32.xlu0 %v995, 17
  %v1000 = vpop.permute.xlu0 %999
  %v1001 = vsel %vm46, %v998, %v1000
  %v1002 = vsel %vm46, %v1000, %v998
  %1003 = vrot.lane.b32.xlu0 %v993, 16
  %v1004 = vpop.permute.xlu0 %1003
  %1005 = vrot.lane.b32.xlu0 %v995, 16
  %v1006 = vpop.permute.xlu0 %1005
  %v1007 = vsel %vm53, %v1004, %v1006
  %v1008 = vsel %vm53, %v1006, %v1004
  %1009 = vrot.lane.b32.xlu0 %v993, 15
  %v1010 = vpop.permute.xlu0 %1009
  %1011 = vrot.lane.b32.xlu0 %v995, 15
  %v1012 = vpop.permute.xlu0 %1011
  %v1013 = vsel %vm60, %v1010, %v1012
  %v1014 = vsel %vm60, %v1012, %v1010
  %1015 = vrot.lane.b32.xlu0 %v993, 1
  %v1016 = vpop.permute.xlu0 %1015
  %1017 = vrot.lane.b32.xlu0 %v995, 1
  %v1018 = vpop.permute.xlu0 %1017
  %v1019 = vsel %vm67, %v1016, %v1018
  %v1020 = vsel %vm67, %v1018, %v1016
  %1021 = vrot.lane.b32.xlu0 %v993, 127
  %v1022 = vpop.permute.xlu0 %1021
  %1023 = vrot.lane.b32.xlu0 %v995, 127
  %v1024 = vpop.permute.xlu0 %1023
  %v1025 = vsel %vm74, %v1022, %v1024
  %v1026 = vsel %vm74, %v1024, %v1022
  %1027 = vrot.lane.b32.xlu0 %v993, 113
  %v1028 = vpop.permute.xlu0 %1027
  %1029 = vrot.lane.b32.xlu0 %v995, 113
  %v1030 = vpop.permute.xlu0 %1029
  %v1031 = vsel %vm81, %v1028, %v1030
  %v1032 = vsel %vm81, %v1030, %v1028
  %1033 = vrot.lane.b32.xlu0 %v993, 112
  %v1034 = vpop.permute.xlu0 %1033
  %1035 = vrot.lane.b32.xlu0 %v995, 112
  %v1036 = vpop.permute.xlu0 %1035
  %v1037 = vsel %vm88, %v1034, %v1036
  %v1038 = vsel %vm88, %v1036, %v1034
  %1039 = vrot.lane.b32.xlu0 %v993, 111
  %v1040 = vpop.permute.xlu0 %1039
  %1041 = vrot.lane.b32.xlu0 %v995, 111
  %v1042 = vpop.permute.xlu0 %1041
  %v1043 = vsel %vm95, %v1040, %v1042
  %v1044 = vsel %vm95, %v1042, %v1040
  %v1047 = vrot.slane %v1008, 4
  %v1048 = vrot.slane %v1007, 4
  %v1053 = vrot.slane %v1020, 4
  %v1054 = vrot.slane %v1019, 4
  %v1059 = vrot.slane %v1025, 4
  %v1060 = vrot.slane %v1026, 4
  %v1065 = vrot.slane %v1037, 4
  %v1066 = vrot.slane %v1038, 4
  %v1069 = vsel %vm122, %v1002, %v1047
  %v1070 = vsel %vm122, %v1001, %v1048
  %v1071 = vsel %vm122, %v1014, %v1053
  %v1072 = vsel %vm122, %v1013, %v1054
  %v1073 = vsel %vm122, %v993, %v1059
  %v1074 = vsel %vm122, %v995, %v1060
  %v1075 = vsel %vm122, %v1031, %v1065
  %v1076 = vsel %vm122, %v1032, %v1066
  %v1077 = vmul.f32 %v1069, %v26
  %v1078 = vmul.f32 %v1070, %v27
  %v1079 = vmul.f32 %v1071, %v28
  %v1080 = vmul.f32 %v1072, %v29
  %v1081 = vmul.f32 %v1073, %v30
  %v1082 = vmul.f32 %v1074, %v31
  %v1083 = vmul.f32 %v1075, %v32
  %v1084 = vmul.f32 %v1076, %v33
  %v1085 = vmul.f32 %v1043, %v34
  %v1086 = vmul.f32 %v1044, %v35
  %v1088 = vsel %vm122, %v1085, 0
  %v1091 = vsel %vm122, %v1086, 0
  %1093 = vmatprep.subr.mxu0 %v1078
  %1094 = vmatpush1.msra.mxu0 %v1077
  %1095 = vmatprep.subr.mxu0 %v1080
  %1096 = vmatpush1.msra.mxu0 %v1079
  %1097 = vmatprep.subr.mxu0 %v1082
  %1098 = vmatpush1.msra.mxu0 %v1081
  %1099 = vmatprep.subr.mxu0 %v1084
  %1100 = vmatpush1.msra.mxu0 %v1083
  %1101 = vmatprep.subr.mxu0 %v1091
  %1102 = vmatpush1.msra.mxu0 %v1088
  %1103 = vmatprep.subr.mxu0 0.0
  %1104 = vmatpush1.msra.mxu0 0.0
  %1105 = vmatprep.subr.mxu0 0.0
  %1106 = vmatpush1.msra.mxu0 0.0
  %1107 = vmatprep.subr.mxu0 0.0
  %1108 = vmatpush1.msra.mxu0 0.0
  %1109 = vmatprep.subr.mxu0 0.0
  %1110 = vmatpush1.msra.mxu0 0.0
  %1111 = vmatprep.subr.mxu0 0.0
  %1112 = vmatpush1.msra.mxu0 0.0
  %1113 = vmatprep.subr.mxu0 0.0
  %1114 = vmatpush1.msra.mxu0 0.0
  %1115 = vmatprep.subr.mxu0 0.0
  %1116 = vmatpush1.msra.mxu0 0.0
  %1117 = vmatprep.subr.mxu0 0.0
  %1118 = vmatpush1.msra.mxu0 0.0
  %1119 = vmatprep.subr.mxu0 0.0
  %1120 = vmatpush1.msra.mxu0 0.0
  %1121 = vmatprep.subr.mxu0 0.0
  %1122 = vmatpush1.msra.mxu0 0.0
  %1123 = vmatprep.subr.mxu0 0.0
  %1124 = vmatpush1.msra.mxu0 0.0
  %1125 = vmatprep.subr.mxu0 0.0
  %1126 = vmatpush1.msra.mxu0 0.0
  %1127 = vmatprep.subr.mxu0 0.0
  %1128 = vmatpush1.msra.mxu0 0.0
  %1129 = vmatprep.subr.mxu0 0.0
  %1130 = vmatpush1.msra.mxu0 0.0
  %1131 = vmatprep.subr.mxu0 0.0
  %1132 = vmatpush1.msra.mxu0 0.0
  %1133 = vmatprep.subr.mxu0 0.0
  %1134 = vmatpush1.msra.mxu0 0.0
  %1135 = vmatprep.subr.mxu0 0.0
  %1136 = vmatpush1.msra.mxu0 0.0
  %1137 = vmatprep.subr.mxu0 0.0
  %1138 = vmatpush1.msra.mxu0 0.0
  %1139 = vmatprep.subr.mxu0 0.0
  %1140 = vmatpush1.msra.mxu0 0.0
  %1141 = vmatprep.subr.mxu0 0.0
  %1142 = vmatpush1.msra.mxu0 0.0
  %1143 = vmatprep.subr.mxu0 0.0
  %1144 = vmatpush1.msra.mxu0 0.0
  %1145 = vmatprep.subr.mxu0 0.0
  %1146 = vmatpush1.msra.mxu0 0.0
  %1147 = vmatprep.subr.mxu0 0.0
  %1148 = vmatpush1.msra.mxu0 0.0
  %1149 = vmatprep.subr.mxu0 0.0
  %1150 = vmatpush1.msra.mxu0 0.0
  %1151 = vmatprep.subr.mxu0 0.0
  %1152 = vmatpush1.msra.mxu0 0.0
  %1153 = vmatprep.subr.mxu0 0.0
  %1154 = vmatpush1.msra.mxu0 0.0
  %1155 = vmatprep.subr.mxu0 0.0
  %1156 = vmatpush1.msra.mxu0 0.0
  %1157 = vmatprep.mubr.f32.mxu0 0.0
  %1158 = vmatmul.mubr.f32.gmra.mrb[0].mxu0 %v148
  %v1159 = vpop.f32.mrb[0].mxu0
  %v1160 = vadd.f32 %v144, %v1159
  %v1161 = vpop.f32.mrb[0].mxu0
  %v1162 = vadd.f32 %v144, %v1161
  %1163 = vdwg.mxu0
  %v1164 = vmax.f32 %v1160, 0.0
  %v1165 = vmax.f32 %v1162, 0.0
  %v1168 = vcombine.low %v1164, %v1165
  %v1169 = vcombine.high %v1164, %v1165
  %v1171 = vunpack.c.l.s4 1966171168
  %v1172 = vunpack.c.0.s8 %v1171
  %v1173 = vlaneseq
  %v1174 = vshrl.u32 %v1173, 7
  %v1175 = vsub.s32 %v1172, %v1174
  %v1176 = vrot.slane %v1168, %v1175
  %v1178 = vunpack.c.l.s4 1966171168
  %v1179 = vunpack.c.0.s8 %v1178
  %v1180 = vlaneseq
  %v1181 = vshrl.u32 %v1180, 7
  %v1182 = vsub.s32 %v1179, %v1181
  %v1183 = vrot.slane %v1169, %v1182
  %v1184 = vcombine.high %v1176, %v1176
  %v1185 = vcombine.high %v1183, %v1183
  %v1187 = vunpack.c.l.s4 1966171168
  %v1188 = vunpack.c.0.s8 %v1187
  %v1189 = vlaneseq
  %v1190 = vshrl.u32 %v1189, 7
  %v1191 = vsub.s32 %v1188, %v1190
  %v1192 = vrot.slane %v1176, %v1191
  %v1194 = vunpack.c.l.s4 1966171168
  %v1195 = vunpack.c.0.s8 %v1194
  %v1196 = vlaneseq
  %v1197 = vshrl.u32 %v1196, 7
  %v1198 = vsub.s32 %v1195, %v1197
  %v1199 = vrot.slane %v1183, %v1198
  %v1201 = vunpack.c.l.s4 1966171168
  %v1202 = vunpack.c.0.s8 %v1201
  %v1203 = vlaneseq
  %v1204 = vshrl.u32 %v1203, 7
  %v1205 = vsub.s32 %v1202, %v1204
  %v1206 = vrot.slane %v1184, %v1205
  %v1208 = vunpack.c.l.s4 1966171168
  %v1209 = vunpack.c.0.s8 %v1208
  %v1210 = vlaneseq
  %v1211 = vshrl.u32 %v1210, 7
  %v1212 = vsub.s32 %v1209, %v1211
  %v1213 = vrot.slane %v1185, %v1212
  %v1214 = vcombine.high %v1192, %v1192
  %v1215 = vcombine.high %v1199, %v1199
  %v1216 = vcombine.high %v1206, %v1206
  %v1217 = vcombine.high %v1213, %v1213
  %v1218 = vld [vmem:[%s3] sm:$0xff]
  %v1219 = vld [vmem:[%s3 + $0x8] sm:$0xff]
  %v1220 = vld [vmem:[%s3 + $0x10] sm:$0x3]
  %v1221 = vld [vmem:[%s3 + $0x18] sm:$0x3]
  %v1222 = vld [vmem:[%s3 + $0x20] sm:$0xff]
  %v1223 = vld [vmem:[%s3 + $0x28] sm:$0xff]
  %v1224 = vld [vmem:[%s3 + $0x30] sm:$0x3]
  %v1225 = vld [vmem:[%s3 + $0x38] sm:$0x3]
  %v1226 = vld [vmem:[%s3 + $0x40] sm:$0xff]
  %v1227 = vld [vmem:[%s3 + $0x48] sm:$0xff]
  %v1228 = vld [vmem:[%s3 + $0x50] sm:$0x3]
  %v1229 = vld [vmem:[%s3 + $0x58] sm:$0x3]
  %v1230 = vld [vmem:[%s3 + $0x60] sm:$0xff]
  %v1231 = vld [vmem:[%s3 + $0x68] sm:$0xff]
  %v1232 = vld [vmem:[%s3 + $0x70] sm:$0x3]
  %v1233 = vld [vmem:[%s3 + $0x78] sm:$0x3]
  %v1234 = vld [vmem:[%s3 + $0x80] sm:$0xff]
  %v1235 = vld [vmem:[%s3 + $0x88] sm:$0xff]
  %v1236 = vld [vmem:[%s3 + $0x90] sm:$0x3]
  %v1237 = vld [vmem:[%s3 + $0x98] sm:$0x3]
  %v1238 = vld [vmem:[%s3 + $0xa0] sm:$0xff]
  %v1239 = vld [vmem:[%s3 + $0xa8] sm:$0xff]
  %v1240 = vld [vmem:[%s3 + $0xb0] sm:$0x3]
  %v1241 = vld [vmem:[%s3 + $0xb8] sm:$0x3]
  %v1242 = vld [vmem:[%s3 + $0xc0] sm:$0xff]
  %v1243 = vld [vmem:[%s3 + $0xc8] sm:$0xff]
  %v1244 = vld [vmem:[%s3 + $0xd0] sm:$0x3]
  %v1245 = vld [vmem:[%s3 + $0xd8] sm:$0x3]
  %v1246 = vld [vmem:[%s3 + $0xe0] sm:$0xff]
  %v1247 = vld [vmem:[%s3 + $0xe8] sm:$0xff]
  %v1248 = vld [vmem:[%s3 + $0xf0] sm:$0x3]
  %v1249 = vld [vmem:[%s3 + $0xf8] sm:$0x3]
  %v1250 = vlaneseq
  %v1251 = vshrl.u32 %v1250, 7
  %v1252 = vsub.s32 0, %v1251
  %v1253 = vrot.slane %v1192, %v1252
  %v1254 = vlaneseq
  %v1255 = vshrl.u32 %v1254, 7
  %v1256 = vsub.s32 1, %v1255
  %v1257 = vrot.slane %v1192, %v1256
  %1260 = vmatprep.subr.mxu0 %v1219
  %1261 = vmatpush1.xpose.msra.mxu0 %v1218
  %1262 = vmatprep.subr.mxu0 %v1221
  %1263 = vmatpush1.xpose.msra.mxu0 %v1220
  %1264 = vmatprep.subr.mxu0 0.0
  %1265 = vmatpush1.xpose.msra.mxu0 0.0
  %1266 = vmatprep.subr.mxu0 0.0
  %1267 = vmatpush1.xpose.msra.mxu0 0.0
  %1268 = vmatprep.subr.mxu0 0.0
  %1269 = vmatpush1.xpose.msra.mxu0 0.0
  %1270 = vmatprep.subr.mxu0 0.0
  %1271 = vmatpush1.xpose.msra.mxu0 0.0
  %1272 = vmatprep.subr.mxu0 0.0
  %1273 = vmatpush1.xpose.msra.mxu0 0.0
  %1274 = vmatprep.subr.mxu0 0.0
  %1275 = vmatpush1.xpose.msra.mxu0 0.0
  %1276 = vmatprep.subr.mxu0 0.0
  %1277 = vmatpush1.xpose.msra.mxu0 0.0
  %1278 = vmatprep.subr.mxu0 0.0
  %1279 = vmatpush1.xpose.msra.mxu0 0.0
  %1280 = vmatprep.subr.mxu0 0.0
  %1281 = vmatpush1.xpose.msra.mxu0 0.0
  %1282 = vmatprep.subr.mxu0 0.0
  %1283 = vmatpush1.xpose.msra.mxu0 0.0
  %1284 = vmatprep.subr.mxu0 0.0
  %1285 = vmatpush1.xpose.msra.mxu0 0.0
  %1286 = vmatprep.subr.mxu0 0.0
  %1287 = vmatpush1.xpose.msra.mxu0 0.0
  %1288 = vmatprep.subr.mxu0 0.0
  %1289 = vmatpush1.xpose.msra.mxu0 0.0
  %1290 = vmatprep.subr.mxu0 0.0
  %1291 = vmatpush1.xpose.msra.mxu0 0.0
  %1292 = vmatprep.subr.mxu0 0.0
  %1293 = vmatpush1.xpose.msra.mxu0 0.0
  %1294 = vmatprep.subr.mxu0 0.0
  %1295 = vmatpush1.xpose.msra.mxu0 0.0
  %1296 = vmatprep.subr.mxu0 0.0
  %1297 = vmatpush1.xpose.msra.mxu0 0.0
  %1298 = vmatprep.subr.mxu0 0.0
  %1299 = vmatpush1.xpose.msra.mxu0 0.0
  %1300 = vmatprep.subr.mxu0 0.0
  %1301 = vmatpush1.xpose.msra.mxu0 0.0
  %1302 = vmatprep.subr.mxu0 0.0
  %1303 = vmatpush1.xpose.msra.mxu0 0.0
  %1304 = vmatprep.subr.mxu0 0.0
  %1305 = vmatpush1.xpose.msra.mxu0 0.0
  %1306 = vmatprep.subr.mxu0 0.0
  %1307 = vmatpush1.xpose.msra.mxu0 0.0
  %1308 = vmatprep.subr.mxu0 0.0
  %1309 = vmatpush1.xpose.msra.mxu0 0.0
  %1310 = vmatprep.subr.mxu0 0.0
  %1311 = vmatpush1.xpose.msra.mxu0 0.0
  %1312 = vmatprep.subr.mxu0 0.0
  %1313 = vmatpush1.xpose.msra.mxu0 0.0
  %1314 = vmatprep.subr.mxu0 0.0
  %1315 = vmatpush1.xpose.msra.mxu0 0.0
  %1316 = vmatprep.subr.mxu0 0.0
  %1317 = vmatpush1.xpose.msra.mxu0 0.0
  %1318 = vmatprep.subr.mxu0 0.0
  %1319 = vmatpush1.xpose.msra.mxu0 0.0
  %1320 = vmatprep.subr.mxu0 0.0
  %1321 = vmatpush1.xpose.msra.mxu0 0.0
  %1322 = vmatprep.subr.mxu0 0.0
  %1323 = vmatpush1.xpose.msra.mxu0 0.0
  %1324 = vmatprep.mubr.f32.mxu0 %v1257
  %1325 = vmatmul.mubr.f32.gmra.mrb[0].mxu0 %v1253
  %v1326 = vpop.f32.mrb[0].mxu0
  %v1327 = vadd.f32 0.0, %v1326
  %v1328 = vpop.f32.mrb[0].mxu0
  %1329 = vdwg.mxu0
  %v1330 = vlaneseq
  %v1331 = vshrl.u32 %v1330, 7
  %v1332 = vsub.s32 0, %v1331
  %v1333 = vrot.slane %v1206, %v1332
  %v1334 = vlaneseq
  %v1335 = vshrl.u32 %v1334, 7
  %v1336 = vsub.s32 1, %v1335
  %v1337 = vrot.slane %v1206, %v1336
  %1340 = vmatprep.subr.mxu0 %v1223
  %1341 = vmatpush1.xpose.msra.mxu0 %v1222
  %1342 = vmatprep.subr.mxu0 %v1225
  %1343 = vmatpush1.xpose.msra.mxu0 %v1224
  %1344 = vmatprep.subr.mxu0 0.0
  %1345 = vmatpush1.xpose.msra.mxu0 0.0
  %1346 = vmatprep.subr.mxu0 0.0
  %1347 = vmatpush1.xpose.msra.mxu0 0.0
  %1348 = vmatprep.subr.mxu0 0.0
  %1349 = vmatpush1.xpose.msra.mxu0 0.0
  %1350 = vmatprep.subr.mxu0 0.0
  %1351 = vmatpush1.xpose.msra.mxu0 0.0
  %1352 = vmatprep.subr.mxu0 0.0
  %1353 = vmatpush1.xpose.msra.mxu0 0.0
  %1354 = vmatprep.subr.mxu0 0.0
  %1355 = vmatpush1.xpose.msra.mxu0 0.0
  %1356 = vmatprep.subr.mxu0 0.0
  %1357 = vmatpush1.xpose.msra.mxu0 0.0
  %1358 = vmatprep.subr.mxu0 0.0
  %1359 = vmatpush1.xpose.msra.mxu0 0.0
  %1360 = vmatprep.subr.mxu0 0.0
  %1361 = vmatpush1.xpose.msra.mxu0 0.0
  %1362 = vmatprep.subr.mxu0 0.0
  %1363 = vmatpush1.xpose.msra.mxu0 0.0
  %1364 = vmatprep.subr.mxu0 0.0
  %1365 = vmatpush1.xpose.msra.mxu0 0.0
  %1366 = vmatprep.subr.mxu0 0.0
  %1367 = vmatpush1.xpose.msra.mxu0 0.0
  %1368 = vmatprep.subr.mxu0 0.0
  %1369 = vmatpush1.xpose.msra.mxu0 0.0
  %1370 = vmatprep.subr.mxu0 0.0
  %1371 = vmatpush1.xpose.msra.mxu0 0.0
  %1372 = vmatprep.subr.mxu0 0.0
  %1373 = vmatpush1.xpose.msra.mxu0 0.0
  %1374 = vmatprep.subr.mxu0 0.0
  %1375 = vmatpush1.xpose.msra.mxu0 0.0
  %1376 = vmatprep.subr.mxu0 0.0
  %1377 = vmatpush1.xpose.msra.mxu0 0.0
  %1378 = vmatprep.subr.mxu0 0.0
  %1379 = vmatpush1.xpose.msra.mxu0 0.0
  %1380 = vmatprep.subr.mxu0 0.0
  %1381 = vmatpush1.xpose.msra.mxu0 0.0
  %1382 = vmatprep.subr.mxu0 0.0
  %1383 = vmatpush1.xpose.msra.mxu0 0.0
  %1384 = vmatprep.subr.mxu0 0.0
  %1385 = vmatpush1.xpose.msra.mxu0 0.0
  %1386 = vmatprep.subr.mxu0 0.0
  %1387 = vmatpush1.xpose.msra.mxu0 0.0
  %1388 = vmatprep.subr.mxu0 0.0
  %1389 = vmatpush1.xpose.msra.mxu0 0.0
  %1390 = vmatprep.subr.mxu0 0.0
  %1391 = vmatpush1.xpose.msra.mxu0 0.0
  %1392 = vmatprep.subr.mxu0 0.0
  %1393 = vmatpush1.xpose.msra.mxu0 0.0
  %1394 = vmatprep.subr.mxu0 0.0
  %1395 = vmatpush1.xpose.msra.mxu0 0.0
  %1396 = vmatprep.subr.mxu0 0.0
  %1397 = vmatpush1.xpose.msra.mxu0 0.0
  %1398 = vmatprep.subr.mxu0 0.0
  %1399 = vmatpush1.xpose.msra.mxu0 0.0
  %1400 = vmatprep.subr.mxu0 0.0
  %1401 = vmatpush1.xpose.msra.mxu0 0.0
  %1402 = vmatprep.subr.mxu0 0.0
  %1403 = vmatpush1.xpose.msra.mxu0 0.0
  %1404 = vmatprep.mubr.f32.mxu0 %v1337
  %1405 = vmatmul.mubr.f32.gmra.mrb[0].mxu0 %v1333
  %v1406 = vpop.f32.mrb[0].mxu0
  %v1407 = vadd.f32 0.0, %v1406
  %v1408 = vpop.f32.mrb[0].mxu0
  %1409 = vdwg.mxu0
  %v1410 = vlaneseq
  %v1411 = vshrl.u32 %v1410, 7
  %v1412 = vsub.s32 0, %v1411
  %v1413 = vrot.slane %v1214, %v1412
  %v1414 = vlaneseq
  %v1415 = vshrl.u32 %v1414, 7
  %v1416 = vsub.s32 1, %v1415
  %v1417 = vrot.slane %v1214, %v1416
  %1420 = vmatprep.subr.mxu0 %v1227
  %1421 = vmatpush1.xpose.msra.mxu0 %v1226
  %1422 = vmatprep.subr.mxu0 %v1229
  %1423 = vmatpush1.xpose.msra.mxu0 %v1228
  %1424 = vmatprep.subr.mxu0 0.0
  %1425 = vmatpush1.xpose.msra.mxu0 0.0
  %1426 = vmatprep.subr.mxu0 0.0
  %1427 = vmatpush1.xpose.msra.mxu0 0.0
  %1428 = vmatprep.subr.mxu0 0.0
  %1429 = vmatpush1.xpose.msra.mxu0 0.0
  %1430 = vmatprep.subr.mxu0 0.0
  %1431 = vmatpush1.xpose.msra.mxu0 0.0
  %1432 = vmatprep.subr.mxu0 0.0
  %1433 = vmatpush1.xpose.msra.mxu0 0.0
  %1434 = vmatprep.subr.mxu0 0.0
  %1435 = vmatpush1.xpose.msra.mxu0 0.0
  %1436 = vmatprep.subr.mxu0 0.0
  %1437 = vmatpush1.xpose.msra.mxu0 0.0
  %1438 = vmatprep.subr.mxu0 0.0
  %1439 = vmatpush1.xpose.msra.mxu0 0.0
  %1440 = vmatprep.subr.mxu0 0.0
  %1441 = vmatpush1.xpose.msra.mxu0 0.0
  %1442 = vmatprep.subr.mxu0 0.0
  %1443 = vmatpush1.xpose.msra.mxu0 0.0
  %1444 = vmatprep.subr.mxu0 0.0
  %1445 = vmatpush1.xpose.msra.mxu0 0.0
  %1446 = vmatprep.subr.mxu0 0.0
  %1447 = vmatpush1.xpose.msra.mxu0 0.0
  %1448 = vmatprep.subr.mxu0 0.0
  %1449 = vmatpush1.xpose.msra.mxu0 0.0
  %1450 = vmatprep.subr.mxu0 0.0
  %1451 = vmatpush1.xpose.msra.mxu0 0.0
  %1452 = vmatprep.subr.mxu0 0.0
  %1453 = vmatpush1.xpose.msra.mxu0 0.0
  %1454 = vmatprep.subr.mxu0 0.0
  %1455 = vmatpush1.xpose.msra.mxu0 0.0
  %1456 = vmatprep.subr.mxu0 0.0
  %1457 = vmatpush1.xpose.msra.mxu0 0.0
  %1458 = vmatprep.subr.mxu0 0.0
  %1459 = vmatpush1.xpose.msra.mxu0 0.0
  %1460 = vmatprep.subr.mxu0 0.0
  %1461 = vmatpush1.xpose.msra.mxu0 0.0
  %1462 = vmatprep.subr.mxu0 0.0
  %1463 = vmatpush1.xpose.msra.mxu0 0.0
  %1464 = vmatprep.subr.mxu0 0.0
  %1465 = vmatpush1.xpose.msra.mxu0 0.0
  %1466 = vmatprep.subr.mxu0 0.0
  %1467 = vmatpush1.xpose.msra.mxu0 0.0
  %1468 = vmatprep.subr.mxu0 0.0
  %1469 = vmatpush1.xpose.msra.mxu0 0.0
  %1470 = vmatprep.subr.mxu0 0.0
  %1471 = vmatpush1.xpose.msra.mxu0 0.0
  %1472 = vmatprep.subr.mxu0 0.0
  %1473 = vmatpush1.xpose.msra.mxu0 0.0
  %1474 = vmatprep.subr.mxu0 0.0
  %1475 = vmatpush1.xpose.msra.mxu0 0.0
  %1476 = vmatprep.subr.mxu0 0.0
  %1477 = vmatpush1.xpose.msra.mxu0 0.0
  %1478 = vmatprep.subr.mxu0 0.0
  %1479 = vmatpush1.xpose.msra.mxu0 0.0
  %1480 = vmatprep.subr.mxu0 0.0
  %1481 = vmatpush1.xpose.msra.mxu0 0.0
  %1482 = vmatprep.subr.mxu0 0.0
  %1483 = vmatpush1.xpose.msra.mxu0 0.0
  %1484 = vmatprep.mubr.f32.mxu0 %v1417
  %1485 = vmatmul.mubr.f32.gmra.mrb[0].mxu0 %v1413
  %v1486 = vpop.f32.mrb[0].mxu0
  %v1487 = vadd.f32 0.0, %v1486
  %v1488 = vpop.f32.mrb[0].mxu0
  %1489 = vdwg.mxu0
  %v1490 = vlaneseq
  %v1491 = vshrl.u32 %v1490, 7
  %v1492 = vsub.s32 0, %v1491
  %v1493 = vrot.slane %v1216, %v1492
  %v1494 = vlaneseq
  %v1495 = vshrl.u32 %v1494, 7
  %v1496 = vsub.s32 1, %v1495
  %v1497 = vrot.slane %v1216, %v1496
  %1500 = vmatprep.subr.mxu0 %v1231
  %1501 = vmatpush1.xpose.msra.mxu0 %v1230
  %1502 = vmatprep.subr.mxu0 %v1233
  %1503 = vmatpush1.xpose.msra.mxu0 %v1232
  %1504 = vmatprep.subr.mxu0 0.0
  %1505 = vmatpush1.xpose.msra.mxu0 0.0
  %1506 = vmatprep.subr.mxu0 0.0
  %1507 = vmatpush1.xpose.msra.mxu0 0.0
  %1508 = vmatprep.subr.mxu0 0.0
  %1509 = vmatpush1.xpose.msra.mxu0 0.0
  %1510 = vmatprep.subr.mxu0 0.0
  %1511 = vmatpush1.xpose.msra.mxu0 0.0
  %1512 = vmatprep.subr.mxu0 0.0
  %1513 = vmatpush1.xpose.msra.mxu0 0.0
  %1514 = vmatprep.subr.mxu0 0.0
  %1515 = vmatpush1.xpose.msra.mxu0 0.0
  %1516 = vmatprep.subr.mxu0 0.0
  %1517 = vmatpush1.xpose.msra.mxu0 0.0
  %1518 = vmatprep.subr.mxu0 0.0
  %1519 = vmatpush1.xpose.msra.mxu0 0.0
  %1520 = vmatprep.subr.mxu0 0.0
  %1521 = vmatpush1.xpose.msra.mxu0 0.0
  %1522 = vmatprep.subr.mxu0 0.0
  %1523 = vmatpush1.xpose.msra.mxu0 0.0
  %1524 = vmatprep.subr.mxu0 0.0
  %1525 = vmatpush1.xpose.msra.mxu0 0.0
  %1526 = vmatprep.subr.mxu0 0.0
  %1527 = vmatpush1.xpose.msra.mxu0 0.0
  %1528 = vmatprep.subr.mxu0 0.0
  %1529 = vmatpush1.xpose.msra.mxu0 0.0
  %1530 = vmatprep.subr.mxu0 0.0
  %1531 = vmatpush1.xpose.msra.mxu0 0.0
  %1532 = vmatprep.subr.mxu0 0.0
  %1533 = vmatpush1.xpose.msra.mxu0 0.0
  %1534 = vmatprep.subr.mxu0 0.0
  %1535 = vmatpush1.xpose.msra.mxu0 0.0
  %1536 = vmatprep.subr.mxu0 0.0
  %1537 = vmatpush1.xpose.msra.mxu0 0.0
  %1538 = vmatprep.subr.mxu0 0.0
  %1539 = vmatpush1.xpose.msra.mxu0 0.0
  %1540 = vmatprep.subr.mxu0 0.0
  %1541 = vmatpush1.xpose.msra.mxu0 0.0
  %1542 = vmatprep.subr.mxu0 0.0
  %1543 = vmatpush1.xpose.msra.mxu0 0.0
  %1544 = vmatprep.subr.mxu0 0.0
  %1545 = vmatpush1.xpose.msra.mxu0 0.0
  %1546 = vmatprep.subr.mxu0 0.0
  %1547 = vmatpush1.xpose.msra.mxu0 0.0
  %1548 = vmatprep.subr.mxu0 0.0
  %1549 = vmatpush1.xpose.msra.mxu0 0.0
  %1550 = vmatprep.subr.mxu0 0.0
  %1551 = vmatpush1.xpose.msra.mxu0 0.0
  %1552 = vmatprep.subr.mxu0 0.0
  %1553 = vmatpush1.xpose.msra.mxu0 0.0
  %1554 = vmatprep.subr.mxu0 0.0
  %1555 = vmatpush1.xpose.msra.mxu0 0.0
  %1556 = vmatprep.subr.mxu0 0.0
  %1557 = vmatpush1.xpose.msra.mxu0 0.0
  %1558 = vmatprep.subr.mxu0 0.0
  %1559 = vmatpush1.xpose.msra.mxu0 0.0
  %1560 = vmatprep.subr.mxu0 0.0
  %1561 = vmatpush1.xpose.msra.mxu0 0.0
  %1562 = vmatprep.subr.mxu0 0.0
  %1563 = vmatpush1.xpose.msra.mxu0 0.0
  %1564 = vmatprep.mubr.f32.mxu0 %v1497
  %1565 = vmatmul.mubr.f32.gmra.mrb[0].mxu0 %v1493
  %v1566 = vpop.f32.mrb[0].mxu0
  %v1567 = vadd.f32 0.0, %v1566
  %v1568 = vpop.f32.mrb[0].mxu0
  %1569 = vdwg.mxu0
  %v1570 = vlaneseq
  %v1571 = vshrl.u32 %v1570, 7
  %v1572 = vsub.s32 0, %v1571
  %v1573 = vrot.slane %v1199, %v1572
  %v1574 = vlaneseq
  %v1575 = vshrl.u32 %v1574, 7
  %v1576 = vsub.s32 1, %v1575
  %v1577 = vrot.slane %v1199, %v1576
  %1580 = vmatprep.subr.mxu0 %v1235
  %1581 = vmatpush1.xpose.msra.mxu0 %v1234
  %1582 = vmatprep.subr.mxu0 %v1237
  %1583 = vmatpush1.xpose.msra.mxu0 %v1236
  %1584 = vmatprep.subr.mxu0 0.0
  %1585 = vmatpush1.xpose.msra.mxu0 0.0
  %1586 = vmatprep.subr.mxu0 0.0
  %1587 = vmatpush1.xpose.msra.mxu0 0.0
  %1588 = vmatprep.subr.mxu0 0.0
  %1589 = vmatpush1.xpose.msra.mxu0 0.0
  %1590 = vmatprep.subr.mxu0 0.0
  %1591 = vmatpush1.xpose.msra.mxu0 0.0
  %1592 = vmatprep.subr.mxu0 0.0
  %1593 = vmatpush1.xpose.msra.mxu0 0.0
  %1594 = vmatprep.subr.mxu0 0.0
  %1595 = vmatpush1.xpose.msra.mxu0 0.0
  %1596 = vmatprep.subr.mxu0 0.0
  %1597 = vmatpush1.xpose.msra.mxu0 0.0
  %1598 = vmatprep.subr.mxu0 0.0
  %1599 = vmatpush1.xpose.msra.mxu0 0.0
  %1600 = vmatprep.subr.mxu0 0.0
  %1601 = vmatpush1.xpose.msra.mxu0 0.0
  %1602 = vmatprep.subr.mxu0 0.0
  %1603 = vmatpush1.xpose.msra.mxu0 0.0
  %1604 = vmatprep.subr.mxu0 0.0
  %1605 = vmatpush1.xpose.msra.mxu0 0.0
  %1606 = vmatprep.subr.mxu0 0.0
  %1607 = vmatpush1.xpose.msra.mxu0 0.0
  %1608 = vmatprep.subr.mxu0 0.0
  %1609 = vmatpush1.xpose.msra.mxu0 0.0
  %1610 = vmatprep.subr.mxu0 0.0
  %1611 = vmatpush1.xpose.msra.mxu0 0.0
  %1612 = vmatprep.subr.mxu0 0.0
  %1613 = vmatpush1.xpose.msra.mxu0 0.0
  %1614 = vmatprep.subr.mxu0 0.0
  %1615 = vmatpush1.xpose.msra.mxu0 0.0
  %1616 = vmatprep.subr.mxu0 0.0
  %1617 = vmatpush1.xpose.msra.mxu0 0.0
  %1618 = vmatprep.subr.mxu0 0.0
  %1619 = vmatpush1.xpose.msra.mxu0 0.0
  %1620 = vmatprep.subr.mxu0 0.0
  %1621 = vmatpush1.xpose.msra.mxu0 0.0
  %1622 = vmatprep.subr.mxu0 0.0
  %1623 = vmatpush1.xpose.msra.mxu0 0.0
  %1624 = vmatprep.subr.mxu0 0.0
  %1625 = vmatpush1.xpose.msra.mxu0 0.0
  %1626 = vmatprep.subr.mxu0 0.0
  %1627 = vmatpush1.xpose.msra.mxu0 0.0
  %1628 = vmatprep.subr.mxu0 0.0
  %1629 = vmatpush1.xpose.msra.mxu0 0.0
  %1630 = vmatprep.subr.mxu0 0.0
  %1631 = vmatpush1.xpose.msra.mxu0 0.0
  %1632 = vmatprep.subr.mxu0 0.0
  %1633 = vmatpush1.xpose.msra.mxu0 0.0
  %1634 = vmatprep.subr.mxu0 0.0
  %1635 = vmatpush1.xpose.msra.mxu0 0.0
  %1636 = vmatprep.subr.mxu0 0.0
  %1637 = vmatpush1.xpose.msra.mxu0 0.0
  %1638 = vmatprep.subr.mxu0 0.0
  %1639 = vmatpush1.xpose.msra.mxu0 0.0
  %1640 = vmatprep.subr.mxu0 0.0
  %1641 = vmatpush1.xpose.msra.mxu0 0.0
  %1642 = vmatprep.subr.mxu0 0.0
  %1643 = vmatpush1.xpose.msra.mxu0 0.0
  %1644 = vmatprep.mubr.f32.mxu0 %v1577
  %1645 = vmatmul.mubr.f32.gmra.mrb[0].mxu0 %v1573
  %v1646 = vpop.f32.mrb[0].mxu0
  %v1647 = vadd.f32 0.0, %v1646
  %v1648 = vpop.f32.mrb[0].mxu0
  %1649 = vdwg.mxu0
  %v1650 = vlaneseq
  %v1651 = vshrl.u32 %v1650, 7
  %v1652 = vsub.s32 0, %v1651
  %v1653 = vrot.slane %v1213, %v1652
  %v1654 = vlaneseq
  %v1655 = vshrl.u32 %v1654, 7
  %v1656 = vsub.s32 1, %v1655
  %v1657 = vrot.slane %v1213, %v1656
  %1660 = vmatprep.subr.mxu0 %v1239
  %1661 = vmatpush1.xpose.msra.mxu0 %v1238
  %1662 = vmatprep.subr.mxu0 %v1241
  %1663 = vmatpush1.xpose.msra.mxu0 %v1240
  %1664 = vmatprep.subr.mxu0 0.0
  %1665 = vmatpush1.xpose.msra.mxu0 0.0
  %1666 = vmatprep.subr.mxu0 0.0
  %1667 = vmatpush1.xpose.msra.mxu0 0.0
  %1668 = vmatprep.subr.mxu0 0.0
  %1669 = vmatpush1.xpose.msra.mxu0 0.0
  %1670 = vmatprep.subr.mxu0 0.0
  %1671 = vmatpush1.xpose.msra.mxu0 0.0
  %1672 = vmatprep.subr.mxu0 0.0
  %1673 = vmatpush1.xpose.msra.mxu0 0.0
  %1674 = vmatprep.subr.mxu0 0.0
  %1675 = vmatpush1.xpose.msra.mxu0 0.0
  %1676 = vmatprep.subr.mxu0 0.0
  %1677 = vmatpush1.xpose.msra.mxu0 0.0
  %1678 = vmatprep.subr.mxu0 0.0
  %1679 = vmatpush1.xpose.msra.mxu0 0.0
  %1680 = vmatprep.subr.mxu0 0.0
  %1681 = vmatpush1.xpose.msra.mxu0 0.0
  %1682 = vmatprep.subr.mxu0 0.0
  %1683 = vmatpush1.xpose.msra.mxu0 0.0
  %1684 = vmatprep.subr.mxu0 0.0
  %1685 = vmatpush1.xpose.msra.mxu0 0.0
  %1686 = vmatprep.subr.mxu0 0.0
  %1687 = vmatpush1.xpose.msra.mxu0 0.0
  %1688 = vmatprep.subr.mxu0 0.0
  %1689 = vmatpush1.xpose.msra.mxu0 0.0
  %1690 = vmatprep.subr.mxu0 0.0
  %1691 = vmatpush1.xpose.msra.mxu0 0.0
  %1692 = vmatprep.subr.mxu0 0.0
  %1693 = vmatpush1.xpose.msra.mxu0 0.0
  %1694 = vmatprep.subr.mxu0 0.0
  %1695 = vmatpush1.xpose.msra.mxu0 0.0
  %1696 = vmatprep.subr.mxu0 0.0
  %1697 = vmatpush1.xpose.msra.mxu0 0.0
  %1698 = vmatprep.subr.mxu0 0.0
  %1699 = vmatpush1.xpose.msra.mxu0 0.0
  %1700 = vmatprep.subr.mxu0 0.0
  %1701 = vmatpush1.xpose.msra.mxu0 0.0
  %1702 = vmatprep.subr.mxu0 0.0
  %1703 = vmatpush1.xpose.msra.mxu0 0.0
  %1704 = vmatprep.subr.mxu0 0.0
  %1705 = vmatpush1.xpose.msra.mxu0 0.0
  %1706 = vmatprep.subr.mxu0 0.0
  %1707 = vmatpush1.xpose.msra.mxu0 0.0
  %1708 = vmatprep.subr.mxu0 0.0
  %1709 = vmatpush1.xpose.msra.mxu0 0.0
  %1710 = vmatprep.subr.mxu0 0.0
  %1711 = vmatpush1.xpose.msra.mxu0 0.0
  %1712 = vmatprep.subr.mxu0 0.0
  %1713 = vmatpush1.xpose.msra.mxu0 0.0
  %1714 = vmatprep.subr.mxu0 0.0
  %1715 = vmatpush1.xpose.msra.mxu0 0.0
  %1716 = vmatprep.subr.mxu0 0.0
  %1717 = vmatpush1.xpose.msra.mxu0 0.0
  %1718 = vmatprep.subr.mxu0 0.0
  %1719 = vmatpush1.xpose.msra.mxu0 0.0
  %1720 = vmatprep.subr.mxu0 0.0
  %1721 = vmatpush1.xpose.msra.mxu0 0.0
  %1722 = vmatprep.subr.mxu0 0.0
  %1723 = vmatpush1.xpose.msra.mxu0 0.0
  %1724 = vmatprep.mubr.f32.mxu0 %v1657
  %1725 = vmatmul.mubr.f32.gmra.mrb[0].mxu0 %v1653
  %v1726 = vpop.f32.mrb[0].mxu0
  %v1727 = vadd.f32 0.0, %v1726
  %v1728 = vpop.f32.mrb[0].mxu0
  %1729 = vdwg.mxu0
  %v1730 = vlaneseq
  %v1731 = vshrl.u32 %v1730, 7
  %v1732 = vsub.s32 0, %v1731
  %v1733 = vrot.slane %v1215, %v1732
  %v1734 = vlaneseq
  %v1735 = vshrl.u32 %v1734, 7
  %v1736 = vsub.s32 1, %v1735
  %v1737 = vrot.slane %v1215, %v1736
  %1740 = vmatprep.subr.mxu0 %v1243
  %1741 = vmatpush1.xpose.msra.mxu0 %v1242
  %1742 = vmatprep.subr.mxu0 %v1245
  %1743 = vmatpush1.xpose.msra.mxu0 %v1244
  %1744 = vmatprep.subr.mxu0 0.0
  %1745 = vmatpush1.xpose.msra.mxu0 0.0
  %1746 = vmatprep.subr.mxu0 0.0
  %1747 = vmatpush1.xpose.msra.mxu0 0.0
  %1748 = vmatprep.subr.mxu0 0.0
  %1749 = vmatpush1.xpose.msra.mxu0 0.0
  %1750 = vmatprep.subr.mxu0 0.0
  %1751 = vmatpush1.xpose.msra.mxu0 0.0
  %1752 = vmatprep.subr.mxu0 0.0
  %1753 = vmatpush1.xpose.msra.mxu0 0.0
  %1754 = vmatprep.subr.mxu0 0.0
  %1755 = vmatpush1.xpose.msra.mxu0 0.0
  %1756 = vmatprep.subr.mxu0 0.0
  %1757 = vmatpush1.xpose.msra.mxu0 0.0
  %1758 = vmatprep.subr.mxu0 0.0
  %1759 = vmatpush1.xpose.msra.mxu0 0.0
  %1760 = vmatprep.subr.mxu0 0.0
  %1761 = vmatpush1.xpose.msra.mxu0 0.0
  %1762 = vmatprep.subr.mxu0 0.0
  %1763 = vmatpush1.xpose.msra.mxu0 0.0
  %1764 = vmatprep.subr.mxu0 0.0
  %1765 = vmatpush1.xpose.msra.mxu0 0.0
  %1766 = vmatprep.subr.mxu0 0.0
  %1767 = vmatpush1.xpose.msra.mxu0 0.0
  %1768 = vmatprep.subr.mxu0 0.0
  %1769 = vmatpush1.xpose.msra.mxu0 0.0
  %1770 = vmatprep.subr.mxu0 0.0
  %1771 = vmatpush1.xpose.msra.mxu0 0.0
  %1772 = vmatprep.subr.mxu0 0.0
  %1773 = vmatpush1.xpose.msra.mxu0 0.0
  %1774 = vmatprep.subr.mxu0 0.0
  %1775 = vmatpush1.xpose.msra.mxu0 0.0
  %1776 = vmatprep.subr.mxu0 0.0
  %1777 = vmatpush1.xpose.msra.mxu0 0.0
  %1778 = vmatprep.subr.mxu0 0.0
  %1779 = vmatpush1.xpose.msra.mxu0 0.0
  %1780 = vmatprep.subr.mxu0 0.0
  %1781 = vmatpush1.xpose.msra.mxu0 0.0
  %1782 = vmatprep.subr.mxu0 0.0
  %1783 = vmatpush1.xpose.msra.mxu0 0.0
  %1784 = vmatprep.subr.mxu0 0.0
  %1785 = vmatpush1.xpose.msra.mxu0 0.0
  %1786 = vmatprep.subr.mxu0 0.0
  %1787 = vmatpush1.xpose.msra.mxu0 0.0
  %1788 = vmatprep.subr.mxu0 0.0
  %1789 = vmatpush1.xpose.msra.mxu0 0.0
  %1790 = vmatprep.subr.mxu0 0.0
  %1791 = vmatpush1.xpose.msra.mxu0 0.0
  %1792 = vmatprep.subr.mxu0 0.0
  %1793 = vmatpush1.xpose.msra.mxu0 0.0
  %1794 = vmatprep.subr.mxu0 0.0
  %1795 = vmatpush1.xpose.msra.mxu0 0.0
  %1796 = vmatprep.subr.mxu0 0.0
  %1797 = vmatpush1.xpose.msra.mxu0 0.0
  %1798 = vmatprep.subr.mxu0 0.0
  %1799 = vmatpush1.xpose.msra.mxu0 0.0
  %1800 = vmatprep.subr.mxu0 0.0
  %1801 = vmatpush1.xpose.msra.mxu0 0.0
  %1802 = vmatprep.subr.mxu0 0.0
  %1803 = vmatpush1.xpose.msra.mxu0 0.0
  %1804 = vmatprep.mubr.f32.mxu0 %v1737
  %1805 = vmatmul.mubr.f32.gmra.mrb[0].mxu0 %v1733
  %v1806 = vpop.f32.mrb[0].mxu0
  %v1807 = vadd.f32 0.0, %v1806
  %v1808 = vpop.f32.mrb[0].mxu0
  %1809 = vdwg.mxu0
  %v1810 = vlaneseq
  %v1811 = vshrl.u32 %v1810, 7
  %v1812 = vsub.s32 0, %v1811
  %v1813 = vrot.slane %v1217, %v1812
  %v1814 = vlaneseq
  %v1815 = vshrl.u32 %v1814, 7
  %v1816 = vsub.s32 1, %v1815
  %v1817 = vrot.slane %v1217, %v1816
  %1820 = vmatprep.subr.mxu0 %v1247
  %1821 = vmatpush1.xpose.msra.mxu0 %v1246
  %1822 = vmatprep.subr.mxu0 %v1249
  %1823 = vmatpush1.xpose.msra.mxu0 %v1248
  %1824 = vmatprep.subr.mxu0 0.0
  %1825 = vmatpush1.xpose.msra.mxu0 0.0
  %1826 = vmatprep.subr.mxu0 0.0
  %1827 = vmatpush1.xpose.msra.mxu0 0.0
  %1828 = vmatprep.subr.mxu0 0.0
  %1829 = vmatpush1.xpose.msra.mxu0 0.0
  %1830 = vmatprep.subr.mxu0 0.0
  %1831 = vmatpush1.xpose.msra.mxu0 0.0
  %1832 = vmatprep.subr.mxu0 0.0
  %1833 = vmatpush1.xpose.msra.mxu0 0.0
  %1834 = vmatprep.subr.mxu0 0.0
  %1835 = vmatpush1.xpose.msra.mxu0 0.0
  %1836 = vmatprep.subr.mxu0 0.0
  %1837 = vmatpush1.xpose.msra.mxu0 0.0
  %1838 = vmatprep.subr.mxu0 0.0
  %1839 = vmatpush1.xpose.msra.mxu0 0.0
  %1840 = vmatprep.subr.mxu0 0.0
  %1841 = vmatpush1.xpose.msra.mxu0 0.0
  %1842 = vmatprep.subr.mxu0 0.0
  %1843 = vmatpush1.xpose.msra.mxu0 0.0
  %1844 = vmatprep.subr.mxu0 0.0
  %1845 = vmatpush1.xpose.msra.mxu0 0.0
  %1846 = vmatprep.subr.mxu0 0.0
  %1847 = vmatpush1.xpose.msra.mxu0 0.0
  %1848 = vmatprep.subr.mxu0 0.0
  %1849 = vmatpush1.xpose.msra.mxu0 0.0
  %1850 = vmatprep.subr.mxu0 0.0
  %1851 = vmatpush1.xpose.msra.mxu0 0.0
  %1852 = vmatprep.subr.mxu0 0.0
  %1853 = vmatpush1.xpose.msra.mxu0 0.0
  %1854 = vmatprep.subr.mxu0 0.0
  %1855 = vmatpush1.xpose.msra.mxu0 0.0
  %1856 = vmatprep.subr.mxu0 0.0
  %1857 = vmatpush1.xpose.msra.mxu0 0.0
  %1858 = vmatprep.subr.mxu0 0.0
  %1859 = vmatpush1.xpose.msra.mxu0 0.0
  %1860 = vmatprep.subr.mxu0 0.0
  %1861 = vmatpush1.xpose.msra.mxu0 0.0
  %1862 = vmatprep.subr.mxu0 0.0
  %1863 = vmatpush1.xpose.msra.mxu0 0.0
  %1864 = vmatprep.subr.mxu0 0.0
  %1865 = vmatpush1.xpose.msra.mxu0 0.0
  %1866 = vmatprep.subr.mxu0 0.0
  %1867 = vmatpush1.xpose.msra.mxu0 0.0
  %1868 = vmatprep.subr.mxu0 0.0
  %1869 = vmatpush1.xpose.msra.mxu0 0.0
  %1870 = vmatprep.subr.mxu0 0.0
  %1871 = vmatpush1.xpose.msra.mxu0 0.0
  %1872 = vmatprep.subr.mxu0 0.0
  %1873 = vmatpush1.xpose.msra.mxu0 0.0
  %1874 = vmatprep.subr.mxu0 0.0
  %1875 = vmatpush1.xpose.msra.mxu0 0.0
  %1876 = vmatprep.subr.mxu0 0.0
  %1877 = vmatpush1.xpose.msra.mxu0 0.0
  %1878 = vmatprep.subr.mxu0 0.0
  %1879 = vmatpush1.xpose.msra.mxu0 0.0
  %1880 = vmatprep.subr.mxu0 0.0
  %1881 = vmatpush1.xpose.msra.mxu0 0.0
  %1882 = vmatprep.subr.mxu0 0.0
  %1883 = vmatpush1.xpose.msra.mxu0 0.0
  %1884 = vmatprep.mubr.f32.mxu0 %v1817
  %1885 = vmatmul.mubr.f32.gmra.mrb[0].mxu0 %v1813
  %v1886 = vpop.f32.mrb[0].mxu0
  %v1887 = vadd.f32 0.0, %v1886
  %v1888 = vpop.f32.mrb[0].mxu0
  %1889 = vdwg.mxu0
  %v1898 = vrot.slane %v1407, 7
  %v1899 = vsel %vm962, %v1898, %v1327
  %v1900 = vrot.slane %v1487, 6
  %v1901 = vsel %vm965, %v1900, %v1899
  %v1902 = vrot.slane %v1567, 5
  %v1903 = vsel %vm968, %v1902, %v1901
  %v1904 = vrot.slane %v1647, 4
  %v1905 = vsel %vm971, %v1904, %v1903
  %v1906 = vrot.slane %v1727, 3
  %v1907 = vsel %vm974, %v1906, %v1905
  %v1908 = vrot.slane %v1807, 2
  %v1909 = vsel %vm977, %v1908, %v1907
  %v1910 = vrot.slane %v1887, 1
  %v1911 = vsel %vm980, %v1910, %v1909
  %v1913 = vsel %vm983, %v1911, 0.0
  %v1914 = vrot.slane %v1913, 4
  %v1915 = vadd.f32 %v1913, %v1914
  %v1916 = vrot.slane %v1915, 2
  %v1917 = vadd.f32 %v1915, %v1916
  %v1918 = vrot.slane %v1917, 1
  %v1919 = vadd.f32 %v1917, %v1918
  %v1920 = vadd.f32 %v1919, %v25
  %s1921 = scalar_lea.vmem %s0, 16
  %v1922 = vld [vmem:[%s1921] sm:$0xff]
  %v1924 = vcombine.high %v1922, %v1922
  %1926 = vrot.lane.b32.xlu0 %v1922, 17
  %v1927 = vpop.permute.xlu0 %1926
  %1928 = vrot.lane.b32.xlu0 %v1924, 17
  %v1929 = vpop.permute.xlu0 %1928
  %v1930 = vsel %vm46, %v1927, %v1929
  %v1931 = vsel %vm46, %v1929, %v1927
  %1932 = vrot.lane.b32.xlu0 %v1922, 16
  %v1933 = vpop.permute.xlu0 %1932
  %1934 = vrot.lane.b32.xlu0 %v1924, 16
  %v1935 = vpop.permute.xlu0 %1934
  %v1936 = vsel %vm53, %v1933, %v1935
  %v1937 = vsel %vm53, %v1935, %v1933
  %1938 = vrot.lane.b32.xlu0 %v1922, 15
  %v1939 = vpop.permute.xlu0 %1938
  %1940 = vrot.lane.b32.xlu0 %v1924, 15
  %v1941 = vpop.permute.xlu0 %1940
  %v1942 = vsel %vm60, %v1939, %v1941
  %v1943 = vsel %vm60, %v1941, %v1939
  %1944 = vrot.lane.b32.xlu0 %v1922, 1
  %v1945 = vpop.permute.xlu0 %1944
  %1946 = vrot.lane.b32.xlu0 %v1924, 1
  %v1947 = vpop.permute.xlu0 %1946
  %v1948 = vsel %vm67, %v1945, %v1947
  %v1949 = vsel %vm67, %v1947, %v1945
  %1950 = vrot.lane.b32.xlu0 %v1922, 127
  %v1951 = vpop.permute.xlu0 %1950
  %1952 = vrot.lane.b32.xlu0 %v1924, 127
  %v1953 = vpop.permute.xlu0 %1952
  %v1954 = vsel %vm74, %v1951, %v1953
  %v1955 = vsel %vm74, %v1953, %v1951
  %1956 = vrot.lane.b32.xlu0 %v1922, 113
  %v1957 = vpop.permute.xlu0 %1956
  %1958 = vrot.lane.b32.xlu0 %v1924, 113
  %v1959 = vpop.permute.xlu0 %1958
  %v1960 = vsel %vm81, %v1957, %v1959
  %v1961 = vsel %vm81, %v1959, %v1957
  %1962 = vrot.lane.b32.xlu0 %v1922, 112
  %v1963 = vpop.permute.xlu0 %1962
  %1964 = vrot.lane.b32.xlu0 %v1924, 112
  %v1965 = vpop.permute.xlu0 %1964
  %v1966 = vsel %vm88, %v1963, %v1965
  %v1967 = vsel %vm88, %v1965, %v1963
  %1968 = vrot.lane.b32.xlu0 %v1922, 111
  %v1969 = vpop.permute.xlu0 %1968
  %1970 = vrot.lane.b32.xlu0 %v1924, 111
  %v1971 = vpop.permute.xlu0 %1970
  %v1972 = vsel %vm95, %v1969, %v1971
  %v1973 = vsel %vm95, %v1971, %v1969
  %v1976 = vrot.slane %v1937, 4
  %v1977 = vrot.slane %v1936, 4
  %v1982 = vrot.slane %v1949, 4
  %v1983 = vrot.slane %v1948, 4
  %v1988 = vrot.slane %v1954, 4
  %v1989 = vrot.slane %v1955, 4
  %v1994 = vrot.slane %v1966, 4
  %v1995 = vrot.slane %v1967, 4
  %v1998 = vsel %vm122, %v1931, %v1976
  %v1999 = vsel %vm122, %v1930, %v1977
  %v2000 = vsel %vm122, %v1943, %v1982
  %v2001 = vsel %vm122, %v1942, %v1983
  %v2002 = vsel %vm122, %v1922, %v1988
  %v2003 = vsel %vm122, %v1924, %v1989
  %v2004 = vsel %vm122, %v1960, %v1994
  %v2005 = vsel %vm122, %v1961, %v1995
  %v2006 = vmul.f32 %v1998, %v26
  %v2007 = vmul.f32 %v1999, %v27
  %v2008 = vmul.f32 %v2000, %v28
  %v2009 = vmul.f32 %v2001, %v29
  %v2010 = vmul.f32 %v2002, %v30
  %v2011 = vmul.f32 %v2003, %v31
  %v2012 = vmul.f32 %v2004, %v32
  %v2013 = vmul.f32 %v2005, %v33
  %v2014 = vmul.f32 %v1972, %v34
  %v2015 = vmul.f32 %v1973, %v35
  %v2017 = vsel %vm122, %v2014, 0
  %v2020 = vsel %vm122, %v2015, 0
  %2022 = vmatprep.subr.mxu0 %v2007
  %2023 = vmatpush1.msra.mxu0 %v2006
  %2024 = vmatprep.subr.mxu0 %v2009
  %2025 = vmatpush1.msra.mxu0 %v2008
  %2026 = vmatprep.subr.mxu0 %v2011
  %2027 = vmatpush1.msra.mxu0 %v2010
  %2028 = vmatprep.subr.mxu0 %v2013
  %2029 = vmatpush1.msra.mxu0 %v2012
  %2030 = vmatprep.subr.mxu0 %v2020
  %2031 = vmatpush1.msra.mxu0 %v2017
  %2032 = vmatprep.subr.mxu0 0.0
  %2033 = vmatpush1.msra.mxu0 0.0
  %2034 = vmatprep.subr.mxu0 0.0
  %2035 = vmatpush1.msra.mxu0 0.0
  %2036 = vmatprep.subr.mxu0 0.0
  %2037 = vmatpush1.msra.mxu0 0.0
  %2038 = vmatprep.subr.mxu0 0.0
  %2039 = vmatpush1.msra.mxu0 0.0
  %2040 = vmatprep.subr.mxu0 0.0
  %2041 = vmatpush1.msra.mxu0 0.0
  %2042 = vmatprep.subr.mxu0 0.0
  %2043 = vmatpush1.msra.mxu0 0.0
  %2044 = vmatprep.subr.mxu0 0.0
  %2045 = vmatpush1.msra.mxu0 0.0
  %2046 = vmatprep.subr.mxu0 0.0
  %2047 = vmatpush1.msra.mxu0 0.0
  %2048 = vmatprep.subr.mxu0 0.0
  %2049 = vmatpush1.msra.mxu0 0.0
  %2050 = vmatprep.subr.mxu0 0.0
  %2051 = vmatpush1.msra.mxu0 0.0
  %2052 = vmatprep.subr.mxu0 0.0
  %2053 = vmatpush1.msra.mxu0 0.0
  %2054 = vmatprep.subr.mxu0 0.0
  %2055 = vmatpush1.msra.mxu0 0.0
  %2056 = vmatprep.subr.mxu0 0.0
  %2057 = vmatpush1.msra.mxu0 0.0
  %2058 = vmatprep.subr.mxu0 0.0
  %2059 = vmatpush1.msra.mxu0 0.0
  %2060 = vmatprep.subr.mxu0 0.0
  %2061 = vmatpush1.msra.mxu0 0.0
  %2062 = vmatprep.subr.mxu0 0.0
  %2063 = vmatpush1.msra.mxu0 0.0
  %2064 = vmatprep.subr.mxu0 0.0
  %2065 = vmatpush1.msra.mxu0 0.0
  %2066 = vmatprep.subr.mxu0 0.0
  %2067 = vmatpush1.msra.mxu0 0.0
  %2068 = vmatprep.subr.mxu0 0.0
  %2069 = vmatpush1.msra.mxu0 0.0
  %2070 = vmatprep.subr.mxu0 0.0
  %2071 = vmatpush1.msra.mxu0 0.0
  %2072 = vmatprep.subr.mxu0 0.0
  %2073 = vmatpush1.msra.mxu0 0.0
  %2074 = vmatprep.subr.mxu0 0.0
  %2075 = vmatpush1.msra.mxu0 0.0
  %2076 = vmatprep.subr.mxu0 0.0
  %2077 = vmatpush1.msra.mxu0 0.0
  %2078 = vmatprep.subr.mxu0 0.0
  %2079 = vmatpush1.msra.mxu0 0.0
  %2080 = vmatprep.subr.mxu0 0.0
  %2081 = vmatpush1.msra.mxu0 0.0
  %2082 = vmatprep.subr.mxu0 0.0
  %2083 = vmatpush1.msra.mxu0 0.0
  %2084 = vmatprep.subr.mxu0 0.0
  %2085 = vmatpush1.msra.mxu0 0.0
  %2086 = vmatprep.mubr.f32.mxu0 0.0
  %2087 = vmatmul.mubr.f32.gmra.mrb[0].mxu0 %v148
  %v2088 = vpop.f32.mrb[0].mxu0
  %v2089 = vadd.f32 %v144, %v2088
  %v2090 = vpop.f32.mrb[0].mxu0
  %v2091 = vadd.f32 %v144, %v2090
  %2092 = vdwg.mxu0
  %v2093 = vmax.f32 %v2089, 0.0
  %v2094 = vmax.f32 %v2091, 0.0
  %v2097 = vcombine.low %v2093, %v2094
  %v2098 = vcombine.high %v2093, %v2094
  %v2100 = vunpack.c.l.s4 1966171168
  %v2101 = vunpack.c.0.s8 %v2100
  %v2102 = vlaneseq
  %v2103 = vshrl.u32 %v2102, 7
  %v2104 = vsub.s32 %v2101, %v2103
  %v2105 = vrot.slane %v2097, %v2104
  %v2107 = vunpack.c.l.s4 1966171168
  %v2108 = vunpack.c.0.s8 %v2107
  %v2109 = vlaneseq
  %v2110 = vshrl.u32 %v2109, 7
  %v2111 = vsub.s32 %v2108, %v2110
  %v2112 = vrot.slane %v2098, %v2111
  %v2113 = vcombine.high %v2105, %v2105
  %v2114 = vcombine.high %v2112, %v2112
  %v2116 = vunpack.c.l.s4 1966171168
  %v2117 = vunpack.c.0.s8 %v2116
  %v2118 = vlaneseq
  %v2119 = vshrl.u32 %v2118, 7
  %v2120 = vsub.s32 %v2117, %v2119
  %v2121 = vrot.slane %v2105, %v2120
  %v2123 = vunpack.c.l.s4 1966171168
  %v2124 = vunpack.c.0.s8 %v2123
  %v2125 = vlaneseq
  %v2126 = vshrl.u32 %v2125, 7
  %v2127 = vsub.s32 %v2124, %v2126
  %v2128 = vrot.slane %v2112, %v2127
  %v2130 = vunpack.c.l.s4 1966171168
  %v2131 = vunpack.c.0.s8 %v2130
  %v2132 = vlaneseq
  %v2133 = vshrl.u32 %v2132, 7
  %v2134 = vsub.s32 %v2131, %v2133
  %v2135 = vrot.slane %v2113, %v2134
  %v2137 = vunpack.c.l.s4 1966171168
  %v2138 = vunpack.c.0.s8 %v2137
  %v2139 = vlaneseq
  %v2140 = vshrl.u32 %v2139, 7
  %v2141 = vsub.s32 %v2138, %v2140
  %v2142 = vrot.slane %v2114, %v2141
  %v2143 = vcombine.high %v2121, %v2121
  %v2144 = vcombine.high %v2128, %v2128
  %v2145 = vcombine.high %v2135, %v2135
  %v2146 = vcombine.high %v2142, %v2142
  %v2147 = vld [vmem:[%s3] sm:$0xff]
  %v2148 = vld [vmem:[%s3 + $0x8] sm:$0xff]
  %v2149 = vld [vmem:[%s3 + $0x10] sm:$0x3]
  %v2150 = vld [vmem:[%s3 + $0x18] sm:$0x3]
  %v2151 = vld [vmem:[%s3 + $0x20] sm:$0xff]
  %v2152 = vld [vmem:[%s3 + $0x28] sm:$0xff]
  %v2153 = vld [vmem:[%s3 + $0x30] sm:$0x3]
  %v2154 = vld [vmem:[%s3 + $0x38] sm:$0x3]
  %v2155 = vld [vmem:[%s3 + $0x40] sm:$0xff]
  %v2156 = vld [vmem:[%s3 + $0x48] sm:$0xff]
  %v2157 = vld [vmem:[%s3 + $0x50] sm:$0x3]
  %v2158 = vld [vmem:[%s3 + $0x58] sm:$0x3]
  %v2159 = vld [vmem:[%s3 + $0x60] sm:$0xff]
  %v2160 = vld [vmem:[%s3 + $0x68] sm:$0xff]
  %v2161 = vld [vmem:[%s3 + $0x70] sm:$0x3]
  %v2162 = vld [vmem:[%s3 + $0x78] sm:$0x3]
  %v2163 = vld [vmem:[%s3 + $0x80] sm:$0xff]
  %v2164 = vld [vmem:[%s3 + $0x88] sm:$0xff]
  %v2165 = vld [vmem:[%s3 + $0x90] sm:$0x3]
  %v2166 = vld [vmem:[%s3 + $0x98] sm:$0x3]
  %v2167 = vld [vmem:[%s3 + $0xa0] sm:$0xff]
  %v2168 = vld [vmem:[%s3 + $0xa8] sm:$0xff]
  %v2169 = vld [vmem:[%s3 + $0xb0] sm:$0x3]
  %v2170 = vld [vmem:[%s3 + $0xb8] sm:$0x3]
  %v2171 = vld [vmem:[%s3 + $0xc0] sm:$0xff]
  %v2172 = vld [vmem:[%s3 + $0xc8] sm:$0xff]
  %v2173 = vld [vmem:[%s3 + $0xd0] sm:$0x3]
  %v2174 = vld [vmem:[%s3 + $0xd8] sm:$0x3]
  %v2175 = vld [vmem:[%s3 + $0xe0] sm:$0xff]
  %v2176 = vld [vmem:[%s3 + $0xe8] sm:$0xff]
  %v2177 = vld [vmem:[%s3 + $0xf0] sm:$0x3]
  %v2178 = vld [vmem:[%s3 + $0xf8] sm:$0x3]
  %v2179 = vlaneseq
  %v2180 = vshrl.u32 %v2179, 7
  %v2181 = vsub.s32 0, %v2180
  %v2182 = vrot.slane %v2121, %v2181
  %v2183 = vlaneseq
  %v2184 = vshrl.u32 %v2183, 7
  %v2185 = vsub.s32 1, %v2184
  %v2186 = vrot.slane %v2121, %v2185
  %2189 = vmatprep.subr.mxu0 %v2148
  %2190 = vmatpush1.xpose.msra.mxu0 %v2147
  %2191 = vmatprep.subr.mxu0 %v2150
  %2192 = vmatpush1.xpose.msra.mxu0 %v2149
  %2193 = vmatprep.subr.mxu0 0.0
  %2194 = vmatpush1.xpose.msra.mxu0 0.0
  %2195 = vmatprep.subr.mxu0 0.0
  %2196 = vmatpush1.xpose.msra.mxu0 0.0
  %2197 = vmatprep.subr.mxu0 0.0
  %2198 = vmatpush1.xpose.msra.mxu0 0.0
  %2199 = vmatprep.subr.mxu0 0.0
  %2200 = vmatpush1.xpose.msra.mxu0 0.0
  %2201 = vmatprep.subr.mxu0 0.0
  %2202 = vmatpush1.xpose.msra.mxu0 0.0
  %2203 = vmatprep.subr.mxu0 0.0
  %2204 = vmatpush1.xpose.msra.mxu0 0.0
  %2205 = vmatprep.subr.mxu0 0.0
  %2206 = vmatpush1.xpose.msra.mxu0 0.0
  %2207 = vmatprep.subr.mxu0 0.0
  %2208 = vmatpush1.xpose.msra.mxu0 0.0
  %2209 = vmatprep.subr.mxu0 0.0
  %2210 = vmatpush1.xpose.msra.mxu0 0.0
  %2211 = vmatprep.subr.mxu0 0.0
  %2212 = vmatpush1.xpose.msra.mxu0 0.0
  %2213 = vmatprep.subr.mxu0 0.0
  %2214 = vmatpush1.xpose.msra.mxu0 0.0
  %2215 = vmatprep.subr.mxu0 0.0
  %2216 = vmatpush1.xpose.msra.mxu0 0.0
  %2217 = vmatprep.subr.mxu0 0.0
  %2218 = vmatpush1.xpose.msra.mxu0 0.0
  %2219 = vmatprep.subr.mxu0 0.0
  %2220 = vmatpush1.xpose.msra.mxu0 0.0
  %2221 = vmatprep.subr.mxu0 0.0
  %2222 = vmatpush1.xpose.msra.mxu0 0.0
  %2223 = vmatprep.subr.mxu0 0.0
  %2224 = vmatpush1.xpose.msra.mxu0 0.0
  %2225 = vmatprep.subr.mxu0 0.0
  %2226 = vmatpush1.xpose.msra.mxu0 0.0
  %2227 = vmatprep.subr.mxu0 0.0
  %2228 = vmatpush1.xpose.msra.mxu0 0.0
  %2229 = vmatprep.subr.mxu0 0.0
  %2230 = vmatpush1.xpose.msra.mxu0 0.0
  %2231 = vmatprep.subr.mxu0 0.0
  %2232 = vmatpush1.xpose.msra.mxu0 0.0
  %2233 = vmatprep.subr.mxu0 0.0
  %2234 = vmatpush1.xpose.msra.mxu0 0.0
  %2235 = vmatprep.subr.mxu0 0.0
  %2236 = vmatpush1.xpose.msra.mxu0 0.0
  %2237 = vmatprep.subr.mxu0 0.0
  %2238 = vmatpush1.xpose.msra.mxu0 0.0
  %2239 = vmatprep.subr.mxu0 0.0
  %2240 = vmatpush1.xpose.msra.mxu0 0.0
  %2241 = vmatprep.subr.mxu0 0.0
  %2242 = vmatpush1.xpose.msra.mxu0 0.0
  %2243 = vmatprep.subr.mxu0 0.0
  %2244 = vmatpush1.xpose.msra.mxu0 0.0
  %2245 = vmatprep.subr.mxu0 0.0
  %2246 = vmatpush1.xpose.msra.mxu0 0.0
  %2247 = vmatprep.subr.mxu0 0.0
  %2248 = vmatpush1.xpose.msra.mxu0 0.0
  %2249 = vmatprep.subr.mxu0 0.0
  %2250 = vmatpush1.xpose.msra.mxu0 0.0
  %2251 = vmatprep.subr.mxu0 0.0
  %2252 = vmatpush1.xpose.msra.mxu0 0.0
  %2253 = vmatprep.mubr.f32.mxu0 %v2186
  %2254 = vmatmul.mubr.f32.gmra.mrb[0].mxu0 %v2182
  %v2255 = vpop.f32.mrb[0].mxu0
  %v2256 = vadd.f32 0.0, %v2255
  %v2257 = vpop.f32.mrb[0].mxu0
  %2258 = vdwg.mxu0
  %v2259 = vlaneseq
  %v2260 = vshrl.u32 %v2259, 7
  %v2261 = vsub.s32 0, %v2260
  %v2262 = vrot.slane %v2135, %v2261
  %v2263 = vlaneseq
  %v2264 = vshrl.u32 %v2263, 7
  %v2265 = vsub.s32 1, %v2264
  %v2266 = vrot.slane %v2135, %v2265
  %2269 = vmatprep.subr.mxu0 %v2152
  %2270 = vmatpush1.xpose.msra.mxu0 %v2151
  %2271 = vmatprep.subr.mxu0 %v2154
  %2272 = vmatpush1.xpose.msra.mxu0 %v2153
  %2273 = vmatprep.subr.mxu0 0.0
  %2274 = vmatpush1.xpose.msra.mxu0 0.0
  %2275 = vmatprep.subr.mxu0 0.0
  %2276 = vmatpush1.xpose.msra.mxu0 0.0
  %2277 = vmatprep.subr.mxu0 0.0
  %2278 = vmatpush1.xpose.msra.mxu0 0.0
  %2279 = vmatprep.subr.mxu0 0.0
  %2280 = vmatpush1.xpose.msra.mxu0 0.0
  %2281 = vmatprep.subr.mxu0 0.0
  %2282 = vmatpush1.xpose.msra.mxu0 0.0
  %2283 = vmatprep.subr.mxu0 0.0
  %2284 = vmatpush1.xpose.msra.mxu0 0.0
  %2285 = vmatprep.subr.mxu0 0.0
  %2286 = vmatpush1.xpose.msra.mxu0 0.0
  %2287 = vmatprep.subr.mxu0 0.0
  %2288 = vmatpush1.xpose.msra.mxu0 0.0
  %2289 = vmatprep.subr.mxu0 0.0
  %2290 = vmatpush1.xpose.msra.mxu0 0.0
  %2291 = vmatprep.subr.mxu0 0.0
  %2292 = vmatpush1.xpose.msra.mxu0 0.0
  %2293 = vmatprep.subr.mxu0 0.0
  %2294 = vmatpush1.xpose.msra.mxu0 0.0
  %2295 = vmatprep.subr.mxu0 0.0
  %2296 = vmatpush1.xpose.msra.mxu0 0.0
  %2297 = vmatprep.subr.mxu0 0.0
  %2298 = vmatpush1.xpose.msra.mxu0 0.0
  %2299 = vmatprep.subr.mxu0 0.0
  %2300 = vmatpush1.xpose.msra.mxu0 0.0
  %2301 = vmatprep.subr.mxu0 0.0
  %2302 = vmatpush1.xpose.msra.mxu0 0.0
  %2303 = vmatprep.subr.mxu0 0.0
  %2304 = vmatpush1.xpose.msra.mxu0 0.0
  %2305 = vmatprep.subr.mxu0 0.0
  %2306 = vmatpush1.xpose.msra.mxu0 0.0
  %2307 = vmatprep.subr.mxu0 0.0
  %2308 = vmatpush1.xpose.msra.mxu0 0.0
  %2309 = vmatprep.subr.mxu0 0.0
  %2310 = vmatpush1.xpose.msra.mxu0 0.0
  %2311 = vmatprep.subr.mxu0 0.0
  %2312 = vmatpush1.xpose.msra.mxu0 0.0
  %2313 = vmatprep.subr.mxu0 0.0
  %2314 = vmatpush1.xpose.msra.mxu0 0.0
  %2315 = vmatprep.subr.mxu0 0.0
  %2316 = vmatpush1.xpose.msra.mxu0 0.0
  %2317 = vmatprep.subr.mxu0 0.0
  %2318 = vmatpush1.xpose.msra.mxu0 0.0
  %2319 = vmatprep.subr.mxu0 0.0
  %2320 = vmatpush1.xpose.msra.mxu0 0.0
  %2321 = vmatprep.subr.mxu0 0.0
  %2322 = vmatpush1.xpose.msra.mxu0 0.0
  %2323 = vmatprep.subr.mxu0 0.0
  %2324 = vmatpush1.xpose.msra.mxu0 0.0
  %2325 = vmatprep.subr.mxu0 0.0
  %2326 = vmatpush1.xpose.msra.mxu0 0.0
  %2327 = vmatprep.subr.mxu0 0.0
  %2328 = vmatpush1.xpose.msra.mxu0 0.0
  %2329 = vmatprep.subr.mxu0 0.0
  %2330 = vmatpush1.xpose.msra.mxu0 0.0
  %2331 = vmatprep.subr.mxu0 0.0
  %2332 = vmatpush1.xpose.msra.mxu0 0.0
  %2333 = vmatprep.mubr.f32.mxu0 %v2266
  %2334 = vmatmul.mubr.f32.gmra.mrb[0].mxu0 %v2262
  %v2335 = vpop.f32.mrb[0].mxu0
  %v2336 = vadd.f32 0.0, %v2335
  %v2337 = vpop.f32.mrb[0].mxu0
  %2338 = vdwg.mxu0
  %v2339 = vlaneseq
  %v2340 = vshrl.u32 %v2339, 7
  %v2341 = vsub.s32 0, %v2340
  %v2342 = vrot.slane %v2143, %v2341
  %v2343 = vlaneseq
  %v2344 = vshrl.u32 %v2343, 7
  %v2345 = vsub.s32 1, %v2344
  %v2346 = vrot.slane %v2143, %v2345
  %2349 = vmatprep.subr.mxu0 %v2156
  %2350 = vmatpush1.xpose.msra.mxu0 %v2155
  %2351 = vmatprep.subr.mxu0 %v2158
  %2352 = vmatpush1.xpose.msra.mxu0 %v2157
  %2353 = vmatprep.subr.mxu0 0.0
  %2354 = vmatpush1.xpose.msra.mxu0 0.0
  %2355 = vmatprep.subr.mxu0 0.0
  %2356 = vmatpush1.xpose.msra.mxu0 0.0
  %2357 = vmatprep.subr.mxu0 0.0
  %2358 = vmatpush1.xpose.msra.mxu0 0.0
  %2359 = vmatprep.subr.mxu0 0.0
  %2360 = vmatpush1.xpose.msra.mxu0 0.0
  %2361 = vmatprep.subr.mxu0 0.0
  %2362 = vmatpush1.xpose.msra.mxu0 0.0
  %2363 = vmatprep.subr.mxu0 0.0
  %2364 = vmatpush1.xpose.msra.mxu0 0.0
  %2365 = vmatprep.subr.mxu0 0.0
  %2366 = vmatpush1.xpose.msra.mxu0 0.0
  %2367 = vmatprep.subr.mxu0 0.0
  %2368 = vmatpush1.xpose.msra.mxu0 0.0
  %2369 = vmatprep.subr.mxu0 0.0
  %2370 = vmatpush1.xpose.msra.mxu0 0.0
  %2371 = vmatprep.subr.mxu0 0.0
  %2372 = vmatpush1.xpose.msra.mxu0 0.0
  %2373 = vmatprep.subr.mxu0 0.0
  %2374 = vmatpush1.xpose.msra.mxu0 0.0
  %2375 = vmatprep.subr.mxu0 0.0
  %2376 = vmatpush1.xpose.msra.mxu0 0.0
  %2377 = vmatprep.subr.mxu0 0.0
  %2378 = vmatpush1.xpose.msra.mxu0 0.0
  %2379 = vmatprep.subr.mxu0 0.0
  %2380 = vmatpush1.xpose.msra.mxu0 0.0
  %2381 = vmatprep.subr.mxu0 0.0
  %2382 = vmatpush1.xpose.msra.mxu0 0.0
  %2383 = vmatprep.subr.mxu0 0.0
  %2384 = vmatpush1.xpose.msra.mxu0 0.0
  %2385 = vmatprep.subr.mxu0 0.0
  %2386 = vmatpush1.xpose.msra.mxu0 0.0
  %2387 = vmatprep.subr.mxu0 0.0
  %2388 = vmatpush1.xpose.msra.mxu0 0.0
  %2389 = vmatprep.subr.mxu0 0.0
  %2390 = vmatpush1.xpose.msra.mxu0 0.0
  %2391 = vmatprep.subr.mxu0 0.0
  %2392 = vmatpush1.xpose.msra.mxu0 0.0
  %2393 = vmatprep.subr.mxu0 0.0
  %2394 = vmatpush1.xpose.msra.mxu0 0.0
  %2395 = vmatprep.subr.mxu0 0.0
  %2396 = vmatpush1.xpose.msra.mxu0 0.0
  %2397 = vmatprep.subr.mxu0 0.0
  %2398 = vmatpush1.xpose.msra.mxu0 0.0
  %2399 = vmatprep.subr.mxu0 0.0
  %2400 = vmatpush1.xpose.msra.mxu0 0.0
  %2401 = vmatprep.subr.mxu0 0.0
  %2402 = vmatpush1.xpose.msra.mxu0 0.0
  %2403 = vmatprep.subr.mxu0 0.0
  %2404 = vmatpush1.xpose.msra.mxu0 0.0
  %2405 = vmatprep.subr.mxu0 0.0
  %2406 = vmatpush1.xpose.msra.mxu0 0.0
  %2407 = vmatprep.subr.mxu0 0.0
  %2408 = vmatpush1.xpose.msra.mxu0 0.0
  %2409 = vmatprep.subr.mxu0 0.0
  %2410 = vmatpush1.xpose.msra.mxu0 0.0
  %2411 = vmatprep.subr.mxu0 0.0
  %2412 = vmatpush1.xpose.msra.mxu0 0.0
  %2413 = vmatprep.mubr.f32.mxu0 %v2346
  %2414 = vmatmul.mubr.f32.gmra.mrb[0].mxu0 %v2342
  %v2415 = vpop.f32.mrb[0].mxu0
  %v2416 = vadd.f32 0.0, %v2415
  %v2417 = vpop.f32.mrb[0].mxu0
  %2418 = vdwg.mxu0
  %v2419 = vlaneseq
  %v2420 = vshrl.u32 %v2419, 7
  %v2421 = vsub.s32 0, %v2420
  %v2422 = vrot.slane %v2145, %v2421
  %v2423 = vlaneseq
  %v2424 = vshrl.u32 %v2423, 7
  %v2425 = vsub.s32 1, %v2424
  %v2426 = vrot.slane %v2145, %v2425
  %2429 = vmatprep.subr.mxu0 %v2160
  %2430 = vmatpush1.xpose.msra.mxu0 %v2159
  %2431 = vmatprep.subr.mxu0 %v2162
  %2432 = vmatpush1.xpose.msra.mxu0 %v2161
  %2433 = vmatprep.subr.mxu0 0.0
  %2434 = vmatpush1.xpose.msra.mxu0 0.0
  %2435 = vmatprep.subr.mxu0 0.0
  %2436 = vmatpush1.xpose.msra.mxu0 0.0
  %2437 = vmatprep.subr.mxu0 0.0
  %2438 = vmatpush1.xpose.msra.mxu0 0.0
  %2439 = vmatprep.subr.mxu0 0.0
  %2440 = vmatpush1.xpose.msra.mxu0 0.0
  %2441 = vmatprep.subr.mxu0 0.0
  %2442 = vmatpush1.xpose.msra.mxu0 0.0
  %2443 = vmatprep.subr.mxu0 0.0
  %2444 = vmatpush1.xpose.msra.mxu0 0.0
  %2445 = vmatprep.subr.mxu0 0.0
  %2446 = vmatpush1.xpose.msra.mxu0 0.0
  %2447 = vmatprep.subr.mxu0 0.0
  %2448 = vmatpush1.xpose.msra.mxu0 0.0
  %2449 = vmatprep.subr.mxu0 0.0
  %2450 = vmatpush1.xpose.msra.mxu0 0.0
  %2451 = vmatprep.subr.mxu0 0.0
  %2452 = vmatpush1.xpose.msra.mxu0 0.0
  %2453 = vmatprep.subr.mxu0 0.0
  %2454 = vmatpush1.xpose.msra.mxu0 0.0
  %2455 = vmatprep.subr.mxu0 0.0
  %2456 = vmatpush1.xpose.msra.mxu0 0.0
  %2457 = vmatprep.subr.mxu0 0.0
  %2458 = vmatpush1.xpose.msra.mxu0 0.0
  %2459 = vmatprep.subr.mxu0 0.0
  %2460 = vmatpush1.xpose.msra.mxu0 0.0
  %2461 = vmatprep.subr.mxu0 0.0
  %2462 = vmatpush1.xpose.msra.mxu0 0.0
  %2463 = vmatprep.subr.mxu0 0.0
  %2464 = vmatpush1.xpose.msra.mxu0 0.0
  %2465 = vmatprep.subr.mxu0 0.0
  %2466 = vmatpush1.xpose.msra.mxu0 0.0
  %2467 = vmatprep.subr.mxu0 0.0
  %2468 = vmatpush1.xpose.msra.mxu0 0.0
  %2469 = vmatprep.subr.mxu0 0.0
  %2470 = vmatpush1.xpose.msra.mxu0 0.0
  %2471 = vmatprep.subr.mxu0 0.0
  %2472 = vmatpush1.xpose.msra.mxu0 0.0
  %2473 = vmatprep.subr.mxu0 0.0
  %2474 = vmatpush1.xpose.msra.mxu0 0.0
  %2475 = vmatprep.subr.mxu0 0.0
  %2476 = vmatpush1.xpose.msra.mxu0 0.0
  %2477 = vmatprep.subr.mxu0 0.0
  %2478 = vmatpush1.xpose.msra.mxu0 0.0
  %2479 = vmatprep.subr.mxu0 0.0
  %2480 = vmatpush1.xpose.msra.mxu0 0.0
  %2481 = vmatprep.subr.mxu0 0.0
  %2482 = vmatpush1.xpose.msra.mxu0 0.0
  %2483 = vmatprep.subr.mxu0 0.0
  %2484 = vmatpush1.xpose.msra.mxu0 0.0
  %2485 = vmatprep.subr.mxu0 0.0
  %2486 = vmatpush1.xpose.msra.mxu0 0.0
  %2487 = vmatprep.subr.mxu0 0.0
  %2488 = vmatpush1.xpose.msra.mxu0 0.0
  %2489 = vmatprep.subr.mxu0 0.0
  %2490 = vmatpush1.xpose.msra.mxu0 0.0
  %2491 = vmatprep.subr.mxu0 0.0
  %2492 = vmatpush1.xpose.msra.mxu0 0.0
  %2493 = vmatprep.mubr.f32.mxu0 %v2426
  %2494 = vmatmul.mubr.f32.gmra.mrb[0].mxu0 %v2422
  %v2495 = vpop.f32.mrb[0].mxu0
  %v2496 = vadd.f32 0.0, %v2495
  %v2497 = vpop.f32.mrb[0].mxu0
  %2498 = vdwg.mxu0
  %v2499 = vlaneseq
  %v2500 = vshrl.u32 %v2499, 7
  %v2501 = vsub.s32 0, %v2500
  %v2502 = vrot.slane %v2128, %v2501
  %v2503 = vlaneseq
  %v2504 = vshrl.u32 %v2503, 7
  %v2505 = vsub.s32 1, %v2504
  %v2506 = vrot.slane %v2128, %v2505
  %2509 = vmatprep.subr.mxu0 %v2164
  %2510 = vmatpush1.xpose.msra.mxu0 %v2163
  %2511 = vmatprep.subr.mxu0 %v2166
  %2512 = vmatpush1.xpose.msra.mxu0 %v2165
  %2513 = vmatprep.subr.mxu0 0.0
  %2514 = vmatpush1.xpose.msra.mxu0 0.0
  %2515 = vmatprep.subr.mxu0 0.0
  %2516 = vmatpush1.xpose.msra.mxu0 0.0
  %2517 = vmatprep.subr.mxu0 0.0
  %2518 = vmatpush1.xpose.msra.mxu0 0.0
  %2519 = vmatprep.subr.mxu0 0.0
  %2520 = vmatpush1.xpose.msra.mxu0 0.0
  %2521 = vmatprep.subr.mxu0 0.0
  %2522 = vmatpush1.xpose.msra.mxu0 0.0
  %2523 = vmatprep.subr.mxu0 0.0
  %2524 = vmatpush1.xpose.msra.mxu0 0.0
  %2525 = vmatprep.subr.mxu0 0.0
  %2526 = vmatpush1.xpose.msra.mxu0 0.0
  %2527 = vmatprep.subr.mxu0 0.0
  %2528 = vmatpush1.xpose.msra.mxu0 0.0
  %2529 = vmatprep.subr.mxu0 0.0
  %2530 = vmatpush1.xpose.msra.mxu0 0.0
  %2531 = vmatprep.subr.mxu0 0.0
  %2532 = vmatpush1.xpose.msra.mxu0 0.0
  %2533 = vmatprep.subr.mxu0 0.0
  %2534 = vmatpush1.xpose.msra.mxu0 0.0
  %2535 = vmatprep.subr.mxu0 0.0
  %2536 = vmatpush1.xpose.msra.mxu0 0.0
  %2537 = vmatprep.subr.mxu0 0.0
  %2538 = vmatpush1.xpose.msra.mxu0 0.0
  %2539 = vmatprep.subr.mxu0 0.0
  %2540 = vmatpush1.xpose.msra.mxu0 0.0
  %2541 = vmatprep.subr.mxu0 0.0
  %2542 = vmatpush1.xpose.msra.mxu0 0.0
  %2543 = vmatprep.subr.mxu0 0.0
  %2544 = vmatpush1.xpose.msra.mxu0 0.0
  %2545 = vmatprep.subr.mxu0 0.0
  %2546 = vmatpush1.xpose.msra.mxu0 0.0
  %2547 = vmatprep.subr.mxu0 0.0
  %2548 = vmatpush1.xpose.msra.mxu0 0.0
  %2549 = vmatprep.subr.mxu0 0.0
  %2550 = vmatpush1.xpose.msra.mxu0 0.0
  %2551 = vmatprep.subr.mxu0 0.0
  %2552 = vmatpush1.xpose.msra.mxu0 0.0
  %2553 = vmatprep.subr.mxu0 0.0
  %2554 = vmatpush1.xpose.msra.mxu0 0.0
  %2555 = vmatprep.subr.mxu0 0.0
  %2556 = vmatpush1.xpose.msra.mxu0 0.0
  %2557 = vmatprep.subr.mxu0 0.0
  %2558 = vmatpush1.xpose.msra.mxu0 0.0
  %2559 = vmatprep.subr.mxu0 0.0
  %2560 = vmatpush1.xpose.msra.mxu0 0.0
  %2561 = vmatprep.subr.mxu0 0.0
  %2562 = vmatpush1.xpose.msra.mxu0 0.0
  %2563 = vmatprep.subr.mxu0 0.0
  %2564 = vmatpush1.xpose.msra.mxu0 0.0
  %2565 = vmatprep.subr.mxu0 0.0
  %2566 = vmatpush1.xpose.msra.mxu0 0.0
  %2567 = vmatprep.subr.mxu0 0.0
  %2568 = vmatpush1.xpose.msra.mxu0 0.0
  %2569 = vmatprep.subr.mxu0 0.0
  %2570 = vmatpush1.xpose.msra.mxu0 0.0
  %2571 = vmatprep.subr.mxu0 0.0
  %2572 = vmatpush1.xpose.msra.mxu0 0.0
  %2573 = vmatprep.mubr.f32.mxu0 %v2506
  %2574 = vmatmul.mubr.f32.gmra.mrb[0].mxu0 %v2502
  %v2575 = vpop.f32.mrb[0].mxu0
  %v2576 = vadd.f32 0.0, %v2575
  %v2577 = vpop.f32.mrb[0].mxu0
  %2578 = vdwg.mxu0
  %v2579 = vlaneseq
  %v2580 = vshrl.u32 %v2579, 7
  %v2581 = vsub.s32 0, %v2580
  %v2582 = vrot.slane %v2142, %v2581
  %v2583 = vlaneseq
  %v2584 = vshrl.u32 %v2583, 7
  %v2585 = vsub.s32 1, %v2584
  %v2586 = vrot.slane %v2142, %v2585
  %2589 = vmatprep.subr.mxu0 %v2168
  %2590 = vmatpush1.xpose.msra.mxu0 %v2167
  %2591 = vmatprep.subr.mxu0 %v2170
  %2592 = vmatpush1.xpose.msra.mxu0 %v2169
  %2593 = vmatprep.subr.mxu0 0.0
  %2594 = vmatpush1.xpose.msra.mxu0 0.0
  %2595 = vmatprep.subr.mxu0 0.0
  %2596 = vmatpush1.xpose.msra.mxu0 0.0
  %2597 = vmatprep.subr.mxu0 0.0
  %2598 = vmatpush1.xpose.msra.mxu0 0.0
  %2599 = vmatprep.subr.mxu0 0.0
  %2600 = vmatpush1.xpose.msra.mxu0 0.0
  %2601 = vmatprep.subr.mxu0 0.0
  %2602 = vmatpush1.xpose.msra.mxu0 0.0
  %2603 = vmatprep.subr.mxu0 0.0
  %2604 = vmatpush1.xpose.msra.mxu0 0.0
  %2605 = vmatprep.subr.mxu0 0.0
  %2606 = vmatpush1.xpose.msra.mxu0 0.0
  %2607 = vmatprep.subr.mxu0 0.0
  %2608 = vmatpush1.xpose.msra.mxu0 0.0
  %2609 = vmatprep.subr.mxu0 0.0
  %2610 = vmatpush1.xpose.msra.mxu0 0.0
  %2611 = vmatprep.subr.mxu0 0.0
  %2612 = vmatpush1.xpose.msra.mxu0 0.0
  %2613 = vmatprep.subr.mxu0 0.0
  %2614 = vmatpush1.xpose.msra.mxu0 0.0
  %2615 = vmatprep.subr.mxu0 0.0
  %2616 = vmatpush1.xpose.msra.mxu0 0.0
  %2617 = vmatprep.subr.mxu0 0.0
  %2618 = vmatpush1.xpose.msra.mxu0 0.0
  %2619 = vmatprep.subr.mxu0 0.0
  %2620 = vmatpush1.xpose.msra.mxu0 0.0
  %2621 = vmatprep.subr.mxu0 0.0
  %2622 = vmatpush1.xpose.msra.mxu0 0.0
  %2623 = vmatprep.subr.mxu0 0.0
  %2624 = vmatpush1.xpose.msra.mxu0 0.0
  %2625 = vmatprep.subr.mxu0 0.0
  %2626 = vmatpush1.xpose.msra.mxu0 0.0
  %2627 = vmatprep.subr.mxu0 0.0
  %2628 = vmatpush1.xpose.msra.mxu0 0.0
  %2629 = vmatprep.subr.mxu0 0.0
  %2630 = vmatpush1.xpose.msra.mxu0 0.0
  %2631 = vmatprep.subr.mxu0 0.0
  %2632 = vmatpush1.xpose.msra.mxu0 0.0
  %2633 = vmatprep.subr.mxu0 0.0
  %2634 = vmatpush1.xpose.msra.mxu0 0.0
  %2635 = vmatprep.subr.mxu0 0.0
  %2636 = vmatpush1.xpose.msra.mxu0 0.0
  %2637 = vmatprep.subr.mxu0 0.0
  %2638 = vmatpush1.xpose.msra.mxu0 0.0
  %2639 = vmatprep.subr.mxu0 0.0
  %2640 = vmatpush1.xpose.msra.mxu0 0.0
  %2641 = vmatprep.subr.mxu0 0.0
  %2642 = vmatpush1.xpose.msra.mxu0 0.0
  %2643 = vmatprep.subr.mxu0 0.0
  %2644 = vmatpush1.xpose.msra.mxu0 0.0
  %2645 = vmatprep.subr.mxu0 0.0
  %2646 = vmatpush1.xpose.msra.mxu0 0.0
  %2647 = vmatprep.subr.mxu0 0.0
  %2648 = vmatpush1.xpose.msra.mxu0 0.0
  %2649 = vmatprep.subr.mxu0 0.0
  %2650 = vmatpush1.xpose.msra.mxu0 0.0
  %2651 = vmatprep.subr.mxu0 0.0
  %2652 = vmatpush1.xpose.msra.mxu0 0.0
  %2653 = vmatprep.mubr.f32.mxu0 %v2586
  %2654 = vmatmul.mubr.f32.gmra.mrb[0].mxu0 %v2582
  %v2655 = vpop.f32.mrb[0].mxu0
  %v2656 = vadd.f32 0.0, %v2655
  %v2657 = vpop.f32.mrb[0].mxu0
  %2658 = vdwg.mxu0
  %v2659 = vlaneseq
  %v2660 = vshrl.u32 %v2659, 7
  %v2661 = vsub.s32 0, %v2660
  %v2662 = vrot.slane %v2144, %v2661
  %v2663 = vlaneseq
  %v2664 = vshrl.u32 %v2663, 7
  %v2665 = vsub.s32 1, %v2664
  %v2666 = vrot.slane %v2144, %v2665
  %2669 = vmatprep.subr.mxu0 %v2172
  %2670 = vmatpush1.xpose.msra.mxu0 %v2171
  %2671 = vmatprep.subr.mxu0 %v2174
  %2672 = vmatpush1.xpose.msra.mxu0 %v2173
  %2673 = vmatprep.subr.mxu0 0.0
  %2674 = vmatpush1.xpose.msra.mxu0 0.0
  %2675 = vmatprep.subr.mxu0 0.0
  %2676 = vmatpush1.xpose.msra.mxu0 0.0
  %2677 = vmatprep.subr.mxu0 0.0
  %2678 = vmatpush1.xpose.msra.mxu0 0.0
  %2679 = vmatprep.subr.mxu0 0.0
  %2680 = vmatpush1.xpose.msra.mxu0 0.0
  %2681 = vmatprep.subr.mxu0 0.0
  %2682 = vmatpush1.xpose.msra.mxu0 0.0
  %2683 = vmatprep.subr.mxu0 0.0
  %2684 = vmatpush1.xpose.msra.mxu0 0.0
  %2685 = vmatprep.subr.mxu0 0.0
  %2686 = vmatpush1.xpose.msra.mxu0 0.0
  %2687 = vmatprep.subr.mxu0 0.0
  %2688 = vmatpush1.xpose.msra.mxu0 0.0
  %2689 = vmatprep.subr.mxu0 0.0
  %2690 = vmatpush1.xpose.msra.mxu0 0.0
  %2691 = vmatprep.subr.mxu0 0.0
  %2692 = vmatpush1.xpose.msra.mxu0 0.0
  %2693 = vmatprep.subr.mxu0 0.0
  %2694 = vmatpush1.xpose.msra.mxu0 0.0
  %2695 = vmatprep.subr.mxu0 0.0
  %2696 = vmatpush1.xpose.msra.mxu0 0.0
  %2697 = vmatprep.subr.mxu0 0.0
  %2698 = vmatpush1.xpose.msra.mxu0 0.0
  %2699 = vmatprep.subr.mxu0 0.0
  %2700 = vmatpush1.xpose.msra.mxu0 0.0
  %2701 = vmatprep.subr.mxu0 0.0
  %2702 = vmatpush1.xpose.msra.mxu0 0.0
  %2703 = vmatprep.subr.mxu0 0.0
  %2704 = vmatpush1.xpose.msra.mxu0 0.0
  %2705 = vmatprep.subr.mxu0 0.0
  %2706 = vmatpush1.xpose.msra.mxu0 0.0
  %2707 = vmatprep.subr.mxu0 0.0
  %2708 = vmatpush1.xpose.msra.mxu0 0.0
  %2709 = vmatprep.subr.mxu0 0.0
  %2710 = vmatpush1.xpose.msra.mxu0 0.0
  %2711 = vmatprep.subr.mxu0 0.0
  %2712 = vmatpush1.xpose.msra.mxu0 0.0
  %2713 = vmatprep.subr.mxu0 0.0
  %2714 = vmatpush1.xpose.msra.mxu0 0.0
  %2715 = vmatprep.subr.mxu0 0.0
  %2716 = vmatpush1.xpose.msra.mxu0 0.0
  %2717 = vmatprep.subr.mxu0 0.0
  %2718 = vmatpush1.xpose.msra.mxu0 0.0
  %2719 = vmatprep.subr.mxu0 0.0
  %2720 = vmatpush1.xpose.msra.mxu0 0.0
  %2721 = vmatprep.subr.mxu0 0.0
  %2722 = vmatpush1.xpose.msra.mxu0 0.0
  %2723 = vmatprep.subr.mxu0 0.0
  %2724 = vmatpush1.xpose.msra.mxu0 0.0
  %2725 = vmatprep.subr.mxu0 0.0
  %2726 = vmatpush1.xpose.msra.mxu0 0.0
  %2727 = vmatprep.subr.mxu0 0.0
  %2728 = vmatpush1.xpose.msra.mxu0 0.0
  %2729 = vmatprep.subr.mxu0 0.0
  %2730 = vmatpush1.xpose.msra.mxu0 0.0
  %2731 = vmatprep.subr.mxu0 0.0
  %2732 = vmatpush1.xpose.msra.mxu0 0.0
  %2733 = vmatprep.mubr.f32.mxu0 %v2666
  %2734 = vmatmul.mubr.f32.gmra.mrb[0].mxu0 %v2662
  %v2735 = vpop.f32.mrb[0].mxu0
  %v2736 = vadd.f32 0.0, %v2735
  %v2737 = vpop.f32.mrb[0].mxu0
  %2738 = vdwg.mxu0
  %v2739 = vlaneseq
  %v2740 = vshrl.u32 %v2739, 7
  %v2741 = vsub.s32 0, %v2740
  %v2742 = vrot.slane %v2146, %v2741
  %v2743 = vlaneseq
  %v2744 = vshrl.u32 %v2743, 7
  %v2745 = vsub.s32 1, %v2744
  %v2746 = vrot.slane %v2146, %v2745
  %2749 = vmatprep.subr.mxu0 %v2176
  %2750 = vmatpush1.xpose.msra.mxu0 %v2175
  %2751 = vmatprep.subr.mxu0 %v2178
  %2752 = vmatpush1.xpose.msra.mxu0 %v2177
  %2753 = vmatprep.subr.mxu0 0.0
  %2754 = vmatpush1.xpose.msra.mxu0 0.0
  %2755 = vmatprep.subr.mxu0 0.0
  %2756 = vmatpush1.xpose.msra.mxu0 0.0
  %2757 = vmatprep.subr.mxu0 0.0
  %2758 = vmatpush1.xpose.msra.mxu0 0.0
  %2759 = vmatprep.subr.mxu0 0.0
  %2760 = vmatpush1.xpose.msra.mxu0 0.0
  %2761 = vmatprep.subr.mxu0 0.0
  %2762 = vmatpush1.xpose.msra.mxu0 0.0
  %2763 = vmatprep.subr.mxu0 0.0
  %2764 = vmatpush1.xpose.msra.mxu0 0.0
  %2765 = vmatprep.subr.mxu0 0.0
  %2766 = vmatpush1.xpose.msra.mxu0 0.0
  %2767 = vmatprep.subr.mxu0 0.0
  %2768 = vmatpush1.xpose.msra.mxu0 0.0
  %2769 = vmatprep.subr.mxu0 0.0
  %2770 = vmatpush1.xpose.msra.mxu0 0.0
  %2771 = vmatprep.subr.mxu0 0.0
  %2772 = vmatpush1.xpose.msra.mxu0 0.0
  %2773 = vmatprep.subr.mxu0 0.0
  %2774 = vmatpush1.xpose.msra.mxu0 0.0
  %2775 = vmatprep.subr.mxu0 0.0
  %2776 = vmatpush1.xpose.msra.mxu0 0.0
  %2777 = vmatprep.subr.mxu0 0.0
  %2778 = vmatpush1.xpose.msra.mxu0 0.0
  %2779 = vmatprep.subr.mxu0 0.0
  %2780 = vmatpush1.xpose.msra.mxu0 0.0
  %2781 = vmatprep.subr.mxu0 0.0
  %2782 = vmatpush1.xpose.msra.mxu0 0.0
  %2783 = vmatprep.subr.mxu0 0.0
  %2784 = vmatpush1.xpose.msra.mxu0 0.0
  %2785 = vmatprep.subr.mxu0 0.0
  %2786 = vmatpush1.xpose.msra.mxu0 0.0
  %2787 = vmatprep.subr.mxu0 0.0
  %2788 = vmatpush1.xpose.msra.mxu0 0.0
  %2789 = vmatprep.subr.mxu0 0.0
  %2790 = vmatpush1.xpose.msra.mxu0 0.0
  %2791 = vmatprep.subr.mxu0 0.0
  %2792 = vmatpush1.xpose.msra.mxu0 0.0
  %2793 = vmatprep.subr.mxu0 0.0
  %2794 = vmatpush1.xpose.msra.mxu0 0.0
  %2795 = vmatprep.subr.mxu0 0.0
  %2796 = vmatpush1.xpose.msra.mxu0 0.0
  %2797 = vmatprep.subr.mxu0 0.0
  %2798 = vmatpush1.xpose.msra.mxu0 0.0
  %2799 = vmatprep.subr.mxu0 0.0
  %2800 = vmatpush1.xpose.msra.mxu0 0.0
  %2801 = vmatprep.subr.mxu0 0.0
  %2802 = vmatpush1.xpose.msra.mxu0 0.0
  %2803 = vmatprep.subr.mxu0 0.0
  %2804 = vmatpush1.xpose.msra.mxu0 0.0
  %2805 = vmatprep.subr.mxu0 0.0
  %2806 = vmatpush1.xpose.msra.mxu0 0.0
  %2807 = vmatprep.subr.mxu0 0.0
  %2808 = vmatpush1.xpose.msra.mxu0 0.0
  %2809 = vmatprep.subr.mxu0 0.0
  %2810 = vmatpush1.xpose.msra.mxu0 0.0
  %2811 = vmatprep.subr.mxu0 0.0
  %2812 = vmatpush1.xpose.msra.mxu0 0.0
  %2813 = vmatprep.mubr.f32.mxu0 %v2746
  %2814 = vmatmul.mubr.f32.gmra.mrb[0].mxu0 %v2742
  %v2815 = vpop.f32.mrb[0].mxu0
  %v2816 = vadd.f32 0.0, %v2815
  %v2817 = vpop.f32.mrb[0].mxu0
  %2818 = vdwg.mxu0
  %v2827 = vrot.slane %v2336, 7
  %v2828 = vsel %vm962, %v2827, %v2256
  %v2829 = vrot.slane %v2416, 6
  %v2830 = vsel %vm965, %v2829, %v2828
  %v2831 = vrot.slane %v2496, 5
  %v2832 = vsel %vm968, %v2831, %v2830
  %v2833 = vrot.slane %v2576, 4
  %v2834 = vsel %vm971, %v2833, %v2832
  %v2835 = vrot.slane %v2656, 3
  %v2836 = vsel %vm974, %v2835, %v2834
  %v2837 = vrot.slane %v2736, 2
  %v2838 = vsel %vm977, %v2837, %v2836
  %v2839 = vrot.slane %v2816, 1
  %v2840 = vsel %vm980, %v2839, %v2838
  %v2842 = vsel %vm983, %v2840, 0.0
  %v2843 = vrot.slane %v2842, 4
  %v2844 = vadd.f32 %v2842, %v2843
  %v2845 = vrot.slane %v2844, 2
  %v2846 = vadd.f32 %v2844, %v2845
  %v2847 = vrot.slane %v2846, 1
  %v2848 = vadd.f32 %v2846, %v2847
  %v2849 = vadd.f32 %v2848, %v25
  %s2850 = scalar_lea.vmem %s0, 24
  %v2851 = vld [vmem:[%s2850] sm:$0xff]
  %v2853 = vcombine.high %v2851, %v2851
  %2855 = vrot.lane.b32.xlu0 %v2851, 17
  %v2856 = vpop.permute.xlu0 %2855
  %2857 = vrot.lane.b32.xlu0 %v2853, 17
  %v2858 = vpop.permute.xlu0 %2857
  %v2859 = vsel %vm46, %v2856, %v2858
  %v2860 = vsel %vm46, %v2858, %v2856
  %2861 = vrot.lane.b32.xlu0 %v2851, 16
  %v2862 = vpop.permute.xlu0 %2861
  %2863 = vrot.lane.b32.xlu0 %v2853, 16
  %v2864 = vpop.permute.xlu0 %2863
  %v2865 = vsel %vm53, %v2862, %v2864
  %v2866 = vsel %vm53, %v2864, %v2862
  %2867 = vrot.lane.b32.xlu0 %v2851, 15
  %v2868 = vpop.permute.xlu0 %2867
  %2869 = vrot.lane.b32.xlu0 %v2853, 15
  %v2870 = vpop.permute.xlu0 %2869
  %v2871 = vsel %vm60, %v2868, %v2870
  %v2872 = vsel %vm60, %v2870, %v2868
  %2873 = vrot.lane.b32.xlu0 %v2851, 1
  %v2874 = vpop.permute.xlu0 %2873
  %2875 = vrot.lane.b32.xlu0 %v2853, 1
  %v2876 = vpop.permute.xlu0 %2875
  %v2877 = vsel %vm67, %v2874, %v2876
  %v2878 = vsel %vm67, %v2876, %v2874
  %2879 = vrot.lane.b32.xlu0 %v2851, 127
  %v2880 = vpop.permute.xlu0 %2879
  %2881 = vrot.lane.b32.xlu0 %v2853, 127
  %v2882 = vpop.permute.xlu0 %2881
  %v2883 = vsel %vm74, %v2880, %v2882
  %v2884 = vsel %vm74, %v2882, %v2880
  %2885 = vrot.lane.b32.xlu0 %v2851, 113
  %v2886 = vpop.permute.xlu0 %2885
  %2887 = vrot.lane.b32.xlu0 %v2853, 113
  %v2888 = vpop.permute.xlu0 %2887
  %v2889 = vsel %vm81, %v2886, %v2888
  %v2890 = vsel %vm81, %v2888, %v2886
  %2891 = vrot.lane.b32.xlu0 %v2851, 112
  %v2892 = vpop.permute.xlu0 %2891
  %2893 = vrot.lane.b32.xlu0 %v2853, 112
  %v2894 = vpop.permute.xlu0 %2893
  %v2895 = vsel %vm88, %v2892, %v2894
  %v2896 = vsel %vm88, %v2894, %v2892
  %2897 = vrot.lane.b32.xlu0 %v2851, 111
  %v2898 = vpop.permute.xlu0 %2897
  %2899 = vrot.lane.b32.xlu0 %v2853, 111
  %v2900 = vpop.permute.xlu0 %2899
  %v2901 = vsel %vm95, %v2898, %v2900
  %v2902 = vsel %vm95, %v2900, %v2898
  %v2905 = vrot.slane %v2866, 4
  %v2906 = vrot.slane %v2865, 4
  %v2911 = vrot.slane %v2878, 4
  %v2912 = vrot.slane %v2877, 4
  %v2917 = vrot.slane %v2883, 4
  %v2918 = vrot.slane %v2884, 4
  %v2923 = vrot.slane %v2895, 4
  %v2924 = vrot.slane %v2896, 4
  %v2927 = vsel %vm122, %v2860, %v2905
  %v2928 = vsel %vm122, %v2859, %v2906
  %v2929 = vsel %vm122, %v2872, %v2911
  %v2930 = vsel %vm122, %v2871, %v2912
  %v2931 = vsel %vm122, %v2851, %v2917
  %v2932 = vsel %vm122, %v2853, %v2918
  %v2933 = vsel %vm122, %v2889, %v2923
  %v2934 = vsel %vm122, %v2890, %v2924
  %v2935 = vmul.f32 %v2927, %v26
  %v2936 = vmul.f32 %v2928, %v27
  %v2937 = vmul.f32 %v2929, %v28
  %v2938 = vmul.f32 %v2930, %v29
  %v2939 = vmul.f32 %v2931, %v30
  %v2940 = vmul.f32 %v2932, %v31
  %v2941 = vmul.f32 %v2933, %v32
  %v2942 = vmul.f32 %v2934, %v33
  %v2943 = vmul.f32 %v2901, %v34
  %v2944 = vmul.f32 %v2902, %v35
  %v2946 = vsel %vm122, %v2943, 0
  %v2949 = vsel %vm122, %v2944, 0
  %2951 = vmatprep.subr.mxu0 %v2936
  %2952 = vmatpush1.msra.mxu0 %v2935
  %2953 = vmatprep.subr.mxu0 %v2938
  %2954 = vmatpush1.msra.mxu0 %v2937
  %2955 = vmatprep.subr.mxu0 %v2940
  %2956 = vmatpush1.msra.mxu0 %v2939
  %2957 = vmatprep.subr.mxu0 %v2942
  %2958 = vmatpush1.msra.mxu0 %v2941
  %2959 = vmatprep.subr.mxu0 %v2949
  %2960 = vmatpush1.msra.mxu0 %v2946
  %2961 = vmatprep.subr.mxu0 0.0
  %2962 = vmatpush1.msra.mxu0 0.0
  %2963 = vmatprep.subr.mxu0 0.0
  %2964 = vmatpush1.msra.mxu0 0.0
  %2965 = vmatprep.subr.mxu0 0.0
  %2966 = vmatpush1.msra.mxu0 0.0
  %2967 = vmatprep.subr.mxu0 0.0
  %2968 = vmatpush1.msra.mxu0 0.0
  %2969 = vmatprep.subr.mxu0 0.0
  %2970 = vmatpush1.msra.mxu0 0.0
  %2971 = vmatprep.subr.mxu0 0.0
  %2972 = vmatpush1.msra.mxu0 0.0
  %2973 = vmatprep.subr.mxu0 0.0
  %2974 = vmatpush1.msra.mxu0 0.0
  %2975 = vmatprep.subr.mxu0 0.0
  %2976 = vmatpush1.msra.mxu0 0.0
  %2977 = vmatprep.subr.mxu0 0.0
  %2978 = vmatpush1.msra.mxu0 0.0
  %2979 = vmatprep.subr.mxu0 0.0
  %2980 = vmatpush1.msra.mxu0 0.0
  %2981 = vmatprep.subr.mxu0 0.0
  %2982 = vmatpush1.msra.mxu0 0.0
  %2983 = vmatprep.subr.mxu0 0.0
  %2984 = vmatpush1.msra.mxu0 0.0
  %2985 = vmatprep.subr.mxu0 0.0
  %2986 = vmatpush1.msra.mxu0 0.0
  %2987 = vmatprep.subr.mxu0 0.0
  %2988 = vmatpush1.msra.mxu0 0.0
  %2989 = vmatprep.subr.mxu0 0.0
  %2990 = vmatpush1.msra.mxu0 0.0
  %2991 = vmatprep.subr.mxu0 0.0
  %2992 = vmatpush1.msra.mxu0 0.0
  %2993 = vmatprep.subr.mxu0 0.0
  %2994 = vmatpush1.msra.mxu0 0.0
  %2995 = vmatprep.subr.mxu0 0.0
  %2996 = vmatpush1.msra.mxu0 0.0
  %2997 = vmatprep.subr.mxu0 0.0
  %2998 = vmatpush1.msra.mxu0 0.0
  %2999 = vmatprep.subr.mxu0 0.0
  %3000 = vmatpush1.msra.mxu0 0.0
  %3001 = vmatprep.subr.mxu0 0.0
  %3002 = vmatpush1.msra.mxu0 0.0
  %3003 = vmatprep.subr.mxu0 0.0
  %3004 = vmatpush1.msra.mxu0 0.0
  %3005 = vmatprep.subr.mxu0 0.0
  %3006 = vmatpush1.msra.mxu0 0.0
  %3007 = vmatprep.subr.mxu0 0.0
  %3008 = vmatpush1.msra.mxu0 0.0
  %3009 = vmatprep.subr.mxu0 0.0
  %3010 = vmatpush1.msra.mxu0 0.0
  %3011 = vmatprep.subr.mxu0 0.0
  %3012 = vmatpush1.msra.mxu0 0.0
  %3013 = vmatprep.subr.mxu0 0.0
  %3014 = vmatpush1.msra.mxu0 0.0
  %3015 = vmatprep.mubr.f32.mxu0 0.0
  %3016 = vmatmul.mubr.f32.gmra.mrb[0].mxu0 %v148
  %v3017 = vpop.f32.mrb[0].mxu0
  %v3018 = vadd.f32 %v144, %v3017
  %v3019 = vpop.f32.mrb[0].mxu0
  %v3020 = vadd.f32 %v144, %v3019
  %3021 = vdwg.mxu0
  %v3022 = vmax.f32 %v3018, 0.0
  %v3023 = vmax.f32 %v3020, 0.0
  %v3026 = vcombine.low %v3022, %v3023
  %v3027 = vcombine.high %v3022, %v3023
  %v3029 = vunpack.c.l.s4 1966171168
  %v3030 = vunpack.c.0.s8 %v3029
  %v3031 = vlaneseq
  %v3032 = vshrl.u32 %v3031, 7
  %v3033 = vsub.s32 %v3030, %v3032
  %v3034 = vrot.slane %v3026, %v3033
  %v3036 = vunpack.c.l.s4 1966171168
  %v3037 = vunpack.c.0.s8 %v3036
  %v3038 = vlaneseq
  %v3039 = vshrl.u32 %v3038, 7
  %v3040 = vsub.s32 %v3037, %v3039
  %v3041 = vrot.slane %v3027, %v3040
  %v3042 = vcombine.high %v3034, %v3034
  %v3043 = vcombine.high %v3041, %v3041
  %v3045 = vunpack.c.l.s4 1966171168
  %v3046 = vunpack.c.0.s8 %v3045
  %v3047 = vlaneseq
  %v3048 = vshrl.u32 %v3047, 7
  %v3049 = vsub.s32 %v3046, %v3048
  %v3050 = vrot.slane %v3034, %v3049
  %v3052 = vunpack.c.l.s4 1966171168
  %v3053 = vunpack.c.0.s8 %v3052
  %v3054 = vlaneseq
  %v3055 = vshrl.u32 %v3054, 7
  %v3056 = vsub.s32 %v3053, %v3055
  %v3057 = vrot.slane %v3041, %v3056
  %v3059 = vunpack.c.l.s4 1966171168
  %v3060 = vunpack.c.0.s8 %v3059
  %v3061 = vlaneseq
  %v3062 = vshrl.u32 %v3061, 7
  %v3063 = vsub.s32 %v3060, %v3062
  %v3064 = vrot.slane %v3042, %v3063
  %v3066 = vunpack.c.l.s4 1966171168
  %v3067 = vunpack.c.0.s8 %v3066
  %v3068 = vlaneseq
  %v3069 = vshrl.u32 %v3068, 7
  %v3070 = vsub.s32 %v3067, %v3069
  %v3071 = vrot.slane %v3043, %v3070
  %v3072 = vcombine.high %v3050, %v3050
  %v3073 = vcombine.high %v3057, %v3057
  %v3074 = vcombine.high %v3064, %v3064
  %v3075 = vcombine.high %v3071, %v3071
  %v3076 = vld [vmem:[%s3] sm:$0xff]
  %v3077 = vld [vmem:[%s3 + $0x8] sm:$0xff]
  %v3078 = vld [vmem:[%s3 + $0x10] sm:$0x3]
  %v3079 = vld [vmem:[%s3 + $0x18] sm:$0x3]
  %v3080 = vld [vmem:[%s3 + $0x20] sm:$0xff]
  %v3081 = vld [vmem:[%s3 + $0x28] sm:$0xff]
  %v3082 = vld [vmem:[%s3 + $0x30] sm:$0x3]
  %v3083 = vld [vmem:[%s3 + $0x38] sm:$0x3]
  %v3084 = vld [vmem:[%s3 + $0x40] sm:$0xff]
  %v3085 = vld [vmem:[%s3 + $0x48] sm:$0xff]
  %v3086 = vld [vmem:[%s3 + $0x50] sm:$0x3]
  %v3087 = vld [vmem:[%s3 + $0x58] sm:$0x3]
  %v3088 = vld [vmem:[%s3 + $0x60] sm:$0xff]
  %v3089 = vld [vmem:[%s3 + $0x68] sm:$0xff]
  %v3090 = vld [vmem:[%s3 + $0x70] sm:$0x3]
  %v3091 = vld [vmem:[%s3 + $0x78] sm:$0x3]
  %v3092 = vld [vmem:[%s3 + $0x80] sm:$0xff]
  %v3093 = vld [vmem:[%s3 + $0x88] sm:$0xff]
  %v3094 = vld [vmem:[%s3 + $0x90] sm:$0x3]
  %v3095 = vld [vmem:[%s3 + $0x98] sm:$0x3]
  %v3096 = vld [vmem:[%s3 + $0xa0] sm:$0xff]
  %v3097 = vld [vmem:[%s3 + $0xa8] sm:$0xff]
  %v3098 = vld [vmem:[%s3 + $0xb0] sm:$0x3]
  %v3099 = vld [vmem:[%s3 + $0xb8] sm:$0x3]
  %v3100 = vld [vmem:[%s3 + $0xc0] sm:$0xff]
  %v3101 = vld [vmem:[%s3 + $0xc8] sm:$0xff]
  %v3102 = vld [vmem:[%s3 + $0xd0] sm:$0x3]
  %v3103 = vld [vmem:[%s3 + $0xd8] sm:$0x3]
  %v3104 = vld [vmem:[%s3 + $0xe0] sm:$0xff]
  %v3105 = vld [vmem:[%s3 + $0xe8] sm:$0xff]
  %v3106 = vld [vmem:[%s3 + $0xf0] sm:$0x3]
  %v3107 = vld [vmem:[%s3 + $0xf8] sm:$0x3]
  %v3108 = vlaneseq
  %v3109 = vshrl.u32 %v3108, 7
  %v3110 = vsub.s32 0, %v3109
  %v3111 = vrot.slane %v3050, %v3110
  %v3112 = vlaneseq
  %v3113 = vshrl.u32 %v3112, 7
  %v3114 = vsub.s32 1, %v3113
  %v3115 = vrot.slane %v3050, %v3114
  %3118 = vmatprep.subr.mxu0 %v3077
  %3119 = vmatpush1.xpose.msra.mxu0 %v3076
  %3120 = vmatprep.subr.mxu0 %v3079
  %3121 = vmatpush1.xpose.msra.mxu0 %v3078
  %3122 = vmatprep.subr.mxu0 0.0
  %3123 = vmatpush1.xpose.msra.mxu0 0.0
  %3124 = vmatprep.subr.mxu0 0.0
  %3125 = vmatpush1.xpose.msra.mxu0 0.0
  %3126 = vmatprep.subr.mxu0 0.0
  %3127 = vmatpush1.xpose.msra.mxu0 0.0
  %3128 = vmatprep.subr.mxu0 0.0
  %3129 = vmatpush1.xpose.msra.mxu0 0.0
  %3130 = vmatprep.subr.mxu0 0.0
  %3131 = vmatpush1.xpose.msra.mxu0 0.0
  %3132 = vmatprep.subr.mxu0 0.0
  %3133 = vmatpush1.xpose.msra.mxu0 0.0
  %3134 = vmatprep.subr.mxu0 0.0
  %3135 = vmatpush1.xpose.msra.mxu0 0.0
  %3136 = vmatprep.subr.mxu0 0.0
  %3137 = vmatpush1.xpose.msra.mxu0 0.0
  %3138 = vmatprep.subr.mxu0 0.0
  %3139 = vmatpush1.xpose.msra.mxu0 0.0
  %3140 = vmatprep.subr.mxu0 0.0
  %3141 = vmatpush1.xpose.msra.mxu0 0.0
  %3142 = vmatprep.subr.mxu0 0.0
  %3143 = vmatpush1.xpose.msra.mxu0 0.0
  %3144 = vmatprep.subr.mxu0 0.0
  %3145 = vmatpush1.xpose.msra.mxu0 0.0
  %3146 = vmatprep.subr.mxu0 0.0
  %3147 = vmatpush1.xpose.msra.mxu0 0.0
  %3148 = vmatprep.subr.mxu0 0.0
  %3149 = vmatpush1.xpose.msra.mxu0 0.0
  %3150 = vmatprep.subr.mxu0 0.0
  %3151 = vmatpush1.xpose.msra.mxu0 0.0
  %3152 = vmatprep.subr.mxu0 0.0
  %3153 = vmatpush1.xpose.msra.mxu0 0.0
  %3154 = vmatprep.subr.mxu0 0.0
  %3155 = vmatpush1.xpose.msra.mxu0 0.0
  %3156 = vmatprep.subr.mxu0 0.0
  %3157 = vmatpush1.xpose.msra.mxu0 0.0
  %3158 = vmatprep.subr.mxu0 0.0
  %3159 = vmatpush1.xpose.msra.mxu0 0.0
  %3160 = vmatprep.subr.mxu0 0.0
  %3161 = vmatpush1.xpose.msra.mxu0 0.0
  %3162 = vmatprep.subr.mxu0 0.0
  %3163 = vmatpush1.xpose.msra.mxu0 0.0
  %3164 = vmatprep.subr.mxu0 0.0
  %3165 = vmatpush1.xpose.msra.mxu0 0.0
  %3166 = vmatprep.subr.mxu0 0.0
  %3167 = vmatpush1.xpose.msra.mxu0 0.0
  %3168 = vmatprep.subr.mxu0 0.0
  %3169 = vmatpush1.xpose.msra.mxu0 0.0
  %3170 = vmatprep.subr.mxu0 0.0
  %3171 = vmatpush1.xpose.msra.mxu0 0.0
  %3172 = vmatprep.subr.mxu0 0.0
  %3173 = vmatpush1.xpose.msra.mxu0 0.0
  %3174 = vmatprep.subr.mxu0 0.0
  %3175 = vmatpush1.xpose.msra.mxu0 0.0
  %3176 = vmatprep.subr.mxu0 0.0
  %3177 = vmatpush1.xpose.msra.mxu0 0.0
  %3178 = vmatprep.subr.mxu0 0.0
  %3179 = vmatpush1.xpose.msra.mxu0 0.0
  %3180 = vmatprep.subr.mxu0 0.0
  %3181 = vmatpush1.xpose.msra.mxu0 0.0
  %3182 = vmatprep.mubr.f32.mxu0 %v3115
  %3183 = vmatmul.mubr.f32.gmra.mrb[0].mxu0 %v3111
  %v3184 = vpop.f32.mrb[0].mxu0
  %v3185 = vadd.f32 0.0, %v3184
  %v3186 = vpop.f32.mrb[0].mxu0
  %3187 = vdwg.mxu0
  %v3188 = vlaneseq
  %v3189 = vshrl.u32 %v3188, 7
  %v3190 = vsub.s32 0, %v3189
  %v3191 = vrot.slane %v3064, %v3190
  %v3192 = vlaneseq
  %v3193 = vshrl.u32 %v3192, 7
  %v3194 = vsub.s32 1, %v3193
  %v3195 = vrot.slane %v3064, %v3194
  %3198 = vmatprep.subr.mxu0 %v3081
  %3199 = vmatpush1.xpose.msra.mxu0 %v3080
  %3200 = vmatprep.subr.mxu0 %v3083
  %3201 = vmatpush1.xpose.msra.mxu0 %v3082
  %3202 = vmatprep.subr.mxu0 0.0
  %3203 = vmatpush1.xpose.msra.mxu0 0.0
  %3204 = vmatprep.subr.mxu0 0.0
  %3205 = vmatpush1.xpose.msra.mxu0 0.0
  %3206 = vmatprep.subr.mxu0 0.0
  %3207 = vmatpush1.xpose.msra.mxu0 0.0
  %3208 = vmatprep.subr.mxu0 0.0
  %3209 = vmatpush1.xpose.msra.mxu0 0.0
  %3210 = vmatprep.subr.mxu0 0.0
  %3211 = vmatpush1.xpose.msra.mxu0 0.0
  %3212 = vmatprep.subr.mxu0 0.0
  %3213 = vmatpush1.xpose.msra.mxu0 0.0
  %3214 = vmatprep.subr.mxu0 0.0
  %3215 = vmatpush1.xpose.msra.mxu0 0.0
  %3216 = vmatprep.subr.mxu0 0.0
  %3217 = vmatpush1.xpose.msra.mxu0 0.0
  %3218 = vmatprep.subr.mxu0 0.0
  %3219 = vmatpush1.xpose.msra.mxu0 0.0
  %3220 = vmatprep.subr.mxu0 0.0
  %3221 = vmatpush1.xpose.msra.mxu0 0.0
  %3222 = vmatprep.subr.mxu0 0.0
  %3223 = vmatpush1.xpose.msra.mxu0 0.0
  %3224 = vmatprep.subr.mxu0 0.0
  %3225 = vmatpush1.xpose.msra.mxu0 0.0
  %3226 = vmatprep.subr.mxu0 0.0
  %3227 = vmatpush1.xpose.msra.mxu0 0.0
  %3228 = vmatprep.subr.mxu0 0.0
  %3229 = vmatpush1.xpose.msra.mxu0 0.0
  %3230 = vmatprep.subr.mxu0 0.0
  %3231 = vmatpush1.xpose.msra.mxu0 0.0
  %3232 = vmatprep.subr.mxu0 0.0
  %3233 = vmatpush1.xpose.msra.mxu0 0.0
  %3234 = vmatprep.subr.mxu0 0.0
  %3235 = vmatpush1.xpose.msra.mxu0 0.0
  %3236 = vmatprep.subr.mxu0 0.0
  %3237 = vmatpush1.xpose.msra.mxu0 0.0
  %3238 = vmatprep.subr.mxu0 0.0
  %3239 = vmatpush1.xpose.msra.mxu0 0.0
  %3240 = vmatprep.subr.mxu0 0.0
  %3241 = vmatpush1.xpose.msra.mxu0 0.0
  %3242 = vmatprep.subr.mxu0 0.0
  %3243 = vmatpush1.xpose.msra.mxu0 0.0
  %3244 = vmatprep.subr.mxu0 0.0
  %3245 = vmatpush1.xpose.msra.mxu0 0.0
  %3246 = vmatprep.subr.mxu0 0.0
  %3247 = vmatpush1.xpose.msra.mxu0 0.0
  %3248 = vmatprep.subr.mxu0 0.0
  %3249 = vmatpush1.xpose.msra.mxu0 0.0
  %3250 = vmatprep.subr.mxu0 0.0
  %3251 = vmatpush1.xpose.msra.mxu0 0.0
  %3252 = vmatprep.subr.mxu0 0.0
  %3253 = vmatpush1.xpose.msra.mxu0 0.0
  %3254 = vmatprep.subr.mxu0 0.0
  %3255 = vmatpush1.xpose.msra.mxu0 0.0
  %3256 = vmatprep.subr.mxu0 0.0
  %3257 = vmatpush1.xpose.msra.mxu0 0.0
  %3258 = vmatprep.subr.mxu0 0.0
  %3259 = vmatpush1.xpose.msra.mxu0 0.0
  %3260 = vmatprep.subr.mxu0 0.0
  %3261 = vmatpush1.xpose.msra.mxu0 0.0
  %3262 = vmatprep.mubr.f32.mxu0 %v3195
  %3263 = vmatmul.mubr.f32.gmra.mrb[0].mxu0 %v3191
  %v3264 = vpop.f32.mrb[0].mxu0
  %v3265 = vadd.f32 0.0, %v3264
  %v3266 = vpop.f32.mrb[0].mxu0
  %3267 = vdwg.mxu0
  %v3268 = vlaneseq
  %v3269 = vshrl.u32 %v3268, 7
  %v3270 = vsub.s32 0, %v3269
  %v3271 = vrot.slane %v3072, %v3270
  %v3272 = vlaneseq
  %v3273 = vshrl.u32 %v3272, 7
  %v3274 = vsub.s32 1, %v3273
  %v3275 = vrot.slane %v3072, %v3274
  %3278 = vmatprep.subr.mxu0 %v3085
  %3279 = vmatpush1.xpose.msra.mxu0 %v3084
  %3280 = vmatprep.subr.mxu0 %v3087
  %3281 = vmatpush1.xpose.msra.mxu0 %v3086
  %3282 = vmatprep.subr.mxu0 0.0
  %3283 = vmatpush1.xpose.msra.mxu0 0.0
  %3284 = vmatprep.subr.mxu0 0.0
  %3285 = vmatpush1.xpose.msra.mxu0 0.0
  %3286 = vmatprep.subr.mxu0 0.0
  %3287 = vmatpush1.xpose.msra.mxu0 0.0
  %3288 = vmatprep.subr.mxu0 0.0
  %3289 = vmatpush1.xpose.msra.mxu0 0.0
  %3290 = vmatprep.subr.mxu0 0.0
  %3291 = vmatpush1.xpose.msra.mxu0 0.0
  %3292 = vmatprep.subr.mxu0 0.0
  %3293 = vmatpush1.xpose.msra.mxu0 0.0
  %3294 = vmatprep.subr.mxu0 0.0
  %3295 = vmatpush1.xpose.msra.mxu0 0.0
  %3296 = vmatprep.subr.mxu0 0.0
  %3297 = vmatpush1.xpose.msra.mxu0 0.0
  %3298 = vmatprep.subr.mxu0 0.0
  %3299 = vmatpush1.xpose.msra.mxu0 0.0
  %3300 = vmatprep.subr.mxu0 0.0
  %3301 = vmatpush1.xpose.msra.mxu0 0.0
  %3302 = vmatprep.subr.mxu0 0.0
  %3303 = vmatpush1.xpose.msra.mxu0 0.0
  %3304 = vmatprep.subr.mxu0 0.0
  %3305 = vmatpush1.xpose.msra.mxu0 0.0
  %3306 = vmatprep.subr.mxu0 0.0
  %3307 = vmatpush1.xpose.msra.mxu0 0.0
  %3308 = vmatprep.subr.mxu0 0.0
  %3309 = vmatpush1.xpose.msra.mxu0 0.0
  %3310 = vmatprep.subr.mxu0 0.0
  %3311 = vmatpush1.xpose.msra.mxu0 0.0
  %3312 = vmatprep.subr.mxu0 0.0
  %3313 = vmatpush1.xpose.msra.mxu0 0.0
  %3314 = vmatprep.subr.mxu0 0.0
  %3315 = vmatpush1.xpose.msra.mxu0 0.0
  %3316 = vmatprep.subr.mxu0 0.0
  %3317 = vmatpush1.xpose.msra.mxu0 0.0
  %3318 = vmatprep.subr.mxu0 0.0
  %3319 = vmatpush1.xpose.msra.mxu0 0.0
  %3320 = vmatprep.subr.mxu0 0.0
  %3321 = vmatpush1.xpose.msra.mxu0 0.0
  %3322 = vmatprep.subr.mxu0 0.0
  %3323 = vmatpush1.xpose.msra.mxu0 0.0
  %3324 = vmatprep.subr.mxu0 0.0
  %3325 = vmatpush1.xpose.msra.mxu0 0.0
  %3326 = vmatprep.subr.mxu0 0.0
  %3327 = vmatpush1.xpose.msra.mxu0 0.0
  %3328 = vmatprep.subr.mxu0 0.0
  %3329 = vmatpush1.xpose.msra.mxu0 0.0
  %3330 = vmatprep.subr.mxu0 0.0
  %3331 = vmatpush1.xpose.msra.mxu0 0.0
  %3332 = vmatprep.subr.mxu0 0.0
  %3333 = vmatpush1.xpose.msra.mxu0 0.0
  %3334 = vmatprep.subr.mxu0 0.0
  %3335 = vmatpush1.xpose.msra.mxu0 0.0
  %3336 = vmatprep.subr.mxu0 0.0
  %3337 = vmatpush1.xpose.msra.mxu0 0.0
  %3338 = vmatprep.subr.mxu0 0.0
  %3339 = vmatpush1.xpose.msra.mxu0 0.0
  %3340 = vmatprep.subr.mxu0 0.0
  %3341 = vmatpush1.xpose.msra.mxu0 0.0
  %3342 = vmatprep.mubr.f32.mxu0 %v3275
  %3343 = vmatmul.mubr.f32.gmra.mrb[0].mxu0 %v3271
  %v3344 = vpop.f32.mrb[0].mxu0
  %v3345 = vadd.f32 0.0, %v3344
  %v3346 = vpop.f32.mrb[0].mxu0
  %3347 = vdwg.mxu0
  %v3348 = vlaneseq
  %v3349 = vshrl.u32 %v3348, 7
  %v3350 = vsub.s32 0, %v3349
  %v3351 = vrot.slane %v3074, %v3350
  %v3352 = vlaneseq
  %v3353 = vshrl.u32 %v3352, 7
  %v3354 = vsub.s32 1, %v3353
  %v3355 = vrot.slane %v3074, %v3354
  %3358 = vmatprep.subr.mxu0 %v3089
  %3359 = vmatpush1.xpose.msra.mxu0 %v3088
  %3360 = vmatprep.subr.mxu0 %v3091
  %3361 = vmatpush1.xpose.msra.mxu0 %v3090
  %3362 = vmatprep.subr.mxu0 0.0
  %3363 = vmatpush1.xpose.msra.mxu0 0.0
  %3364 = vmatprep.subr.mxu0 0.0
  %3365 = vmatpush1.xpose.msra.mxu0 0.0
  %3366 = vmatprep.subr.mxu0 0.0
  %3367 = vmatpush1.xpose.msra.mxu0 0.0
  %3368 = vmatprep.subr.mxu0 0.0
  %3369 = vmatpush1.xpose.msra.mxu0 0.0
  %3370 = vmatprep.subr.mxu0 0.0
  %3371 = vmatpush1.xpose.msra.mxu0 0.0
  %3372 = vmatprep.subr.mxu0 0.0
  %3373 = vmatpush1.xpose.msra.mxu0 0.0
  %3374 = vmatprep.subr.mxu0 0.0
  %3375 = vmatpush1.xpose.msra.mxu0 0.0
  %3376 = vmatprep.subr.mxu0 0.0
  %3377 = vmatpush1.xpose.msra.mxu0 0.0
  %3378 = vmatprep.subr.mxu0 0.0
  %3379 = vmatpush1.xpose.msra.mxu0 0.0
  %3380 = vmatprep.subr.mxu0 0.0
  %3381 = vmatpush1.xpose.msra.mxu0 0.0
  %3382 = vmatprep.subr.mxu0 0.0
  %3383 = vmatpush1.xpose.msra.mxu0 0.0
  %3384 = vmatprep.subr.mxu0 0.0
  %3385 = vmatpush1.xpose.msra.mxu0 0.0
  %3386 = vmatprep.subr.mxu0 0.0
  %3387 = vmatpush1.xpose.msra.mxu0 0.0
  %3388 = vmatprep.subr.mxu0 0.0
  %3389 = vmatpush1.xpose.msra.mxu0 0.0
  %3390 = vmatprep.subr.mxu0 0.0
  %3391 = vmatpush1.xpose.msra.mxu0 0.0
  %3392 = vmatprep.subr.mxu0 0.0
  %3393 = vmatpush1.xpose.msra.mxu0 0.0
  %3394 = vmatprep.subr.mxu0 0.0
  %3395 = vmatpush1.xpose.msra.mxu0 0.0
  %3396 = vmatprep.subr.mxu0 0.0
  %3397 = vmatpush1.xpose.msra.mxu0 0.0
  %3398 = vmatprep.subr.mxu0 0.0
  %3399 = vmatpush1.xpose.msra.mxu0 0.0
  %3400 = vmatprep.subr.mxu0 0.0
  %3401 = vmatpush1.xpose.msra.mxu0 0.0
  %3402 = vmatprep.subr.mxu0 0.0
  %3403 = vmatpush1.xpose.msra.mxu0 0.0
  %3404 = vmatprep.subr.mxu0 0.0
  %3405 = vmatpush1.xpose.msra.mxu0 0.0
  %3406 = vmatprep.subr.mxu0 0.0
  %3407 = vmatpush1.xpose.msra.mxu0 0.0
  %3408 = vmatprep.subr.mxu0 0.0
  %3409 = vmatpush1.xpose.msra.mxu0 0.0
  %3410 = vmatprep.subr.mxu0 0.0
  %3411 = vmatpush1.xpose.msra.mxu0 0.0
  %3412 = vmatprep.subr.mxu0 0.0
  %3413 = vmatpush1.xpose.msra.mxu0 0.0
  %3414 = vmatprep.subr.mxu0 0.0
  %3415 = vmatpush1.xpose.msra.mxu0 0.0
  %3416 = vmatprep.subr.mxu0 0.0
  %3417 = vmatpush1.xpose.msra.mxu0 0.0
  %3418 = vmatprep.subr.mxu0 0.0
  %3419 = vmatpush1.xpose.msra.mxu0 0.0
  %3420 = vmatprep.subr.mxu0 0.0
  %3421 = vmatpush1.xpose.msra.mxu0 0.0
  %3422 = vmatprep.mubr.f32.mxu0 %v3355
  %3423 = vmatmul.mubr.f32.gmra.mrb[0].mxu0 %v3351
  %v3424 = vpop.f32.mrb[0].mxu0
  %v3425 = vadd.f32 0.0, %v3424
  %v3426 = vpop.f32.mrb[0].mxu0
  %3427 = vdwg.mxu0
  %v3428 = vlaneseq
  %v3429 = vshrl.u32 %v3428, 7
  %v3430 = vsub.s32 0, %v3429
  %v3431 = vrot.slane %v3057, %v3430
  %v3432 = vlaneseq
  %v3433 = vshrl.u32 %v3432, 7
  %v3434 = vsub.s32 1, %v3433
  %v3435 = vrot.slane %v3057, %v3434
  %3438 = vmatprep.subr.mxu0 %v3093
  %3439 = vmatpush1.xpose.msra.mxu0 %v3092
  %3440 = vmatprep.subr.mxu0 %v3095
  %3441 = vmatpush1.xpose.msra.mxu0 %v3094
  %3442 = vmatprep.subr.mxu0 0.0
  %3443 = vmatpush1.xpose.msra.mxu0 0.0
  %3444 = vmatprep.subr.mxu0 0.0
  %3445 = vmatpush1.xpose.msra.mxu0 0.0
  %3446 = vmatprep.subr.mxu0 0.0
  %3447 = vmatpush1.xpose.msra.mxu0 0.0
  %3448 = vmatprep.subr.mxu0 0.0
  %3449 = vmatpush1.xpose.msra.mxu0 0.0
  %3450 = vmatprep.subr.mxu0 0.0
  %3451 = vmatpush1.xpose.msra.mxu0 0.0
  %3452 = vmatprep.subr.mxu0 0.0
  %3453 = vmatpush1.xpose.msra.mxu0 0.0
  %3454 = vmatprep.subr.mxu0 0.0
  %3455 = vmatpush1.xpose.msra.mxu0 0.0
  %3456 = vmatprep.subr.mxu0 0.0
  %3457 = vmatpush1.xpose.msra.mxu0 0.0
  %3458 = vmatprep.subr.mxu0 0.0
  %3459 = vmatpush1.xpose.msra.mxu0 0.0
  %3460 = vmatprep.subr.mxu0 0.0
  %3461 = vmatpush1.xpose.msra.mxu0 0.0
  %3462 = vmatprep.subr.mxu0 0.0
  %3463 = vmatpush1.xpose.msra.mxu0 0.0
  %3464 = vmatprep.subr.mxu0 0.0
  %3465 = vmatpush1.xpose.msra.mxu0 0.0
  %3466 = vmatprep.subr.mxu0 0.0
  %3467 = vmatpush1.xpose.msra.mxu0 0.0
  %3468 = vmatprep.subr.mxu0 0.0
  %3469 = vmatpush1.xpose.msra.mxu0 0.0
  %3470 = vmatprep.subr.mxu0 0.0
  %3471 = vmatpush1.xpose.msra.mxu0 0.0
  %3472 = vmatprep.subr.mxu0 0.0
  %3473 = vmatpush1.xpose.msra.mxu0 0.0
  %3474 = vmatprep.subr.mxu0 0.0
  %3475 = vmatpush1.xpose.msra.mxu0 0.0
  %3476 = vmatprep.subr.mxu0 0.0
  %3477 = vmatpush1.xpose.msra.mxu0 0.0
  %3478 = vmatprep.subr.mxu0 0.0
  %3479 = vmatpush1.xpose.msra.mxu0 0.0
  %3480 = vmatprep.subr.mxu0 0.0
  %3481 = vmatpush1.xpose.msra.mxu0 0.0
  %3482 = vmatprep.subr.mxu0 0.0
  %3483 = vmatpush1.xpose.msra.mxu0 0.0
  %3484 = vmatprep.subr.mxu0 0.0
  %3485 = vmatpush1.xpose.msra.mxu0 0.0
  %3486 = vmatprep.subr.mxu0 0.0
  %3487 = vmatpush1.xpose.msra.mxu0 0.0
  %3488 = vmatprep.subr.mxu0 0.0
  %3489 = vmatpush1.xpose.msra.mxu0 0.0
  %3490 = vmatprep.subr.mxu0 0.0
  %3491 = vmatpush1.xpose.msra.mxu0 0.0
  %3492 = vmatprep.subr.mxu0 0.0
  %3493 = vmatpush1.xpose.msra.mxu0 0.0
  %3494 = vmatprep.subr.mxu0 0.0
  %3495 = vmatpush1.xpose.msra.mxu0 0.0
  %3496 = vmatprep.subr.mxu0 0.0
  %3497 = vmatpush1.xpose.msra.mxu0 0.0
  %3498 = vmatprep.subr.mxu0 0.0
  %3499 = vmatpush1.xpose.msra.mxu0 0.0
  %3500 = vmatprep.subr.mxu0 0.0
  %3501 = vmatpush1.xpose.msra.mxu0 0.0
  %3502 = vmatprep.mubr.f32.mxu0 %v3435
  %3503 = vmatmul.mubr.f32.gmra.mrb[0].mxu0 %v3431
  %v3504 = vpop.f32.mrb[0].mxu0
  %v3505 = vadd.f32 0.0, %v3504
  %v3506 = vpop.f32.mrb[0].mxu0
  %3507 = vdwg.mxu0
  %v3508 = vlaneseq
  %v3509 = vshrl.u32 %v3508, 7
  %v3510 = vsub.s32 0, %v3509
  %v3511 = vrot.slane %v3071, %v3510
  %v3512 = vlaneseq
  %v3513 = vshrl.u32 %v3512, 7
  %v3514 = vsub.s32 1, %v3513
  %v3515 = vrot.slane %v3071, %v3514
  %3518 = vmatprep.subr.mxu0 %v3097
  %3519 = vmatpush1.xpose.msra.mxu0 %v3096
  %3520 = vmatprep.subr.mxu0 %v3099
  %3521 = vmatpush1.xpose.msra.mxu0 %v3098
  %3522 = vmatprep.subr.mxu0 0.0
  %3523 = vmatpush1.xpose.msra.mxu0 0.0
  %3524 = vmatprep.subr.mxu0 0.0
  %3525 = vmatpush1.xpose.msra.mxu0 0.0
  %3526 = vmatprep.subr.mxu0 0.0
  %3527 = vmatpush1.xpose.msra.mxu0 0.0
  %3528 = vmatprep.subr.mxu0 0.0
  %3529 = vmatpush1.xpose.msra.mxu0 0.0
  %3530 = vmatprep.subr.mxu0 0.0
  %3531 = vmatpush1.xpose.msra.mxu0 0.0
  %3532 = vmatprep.subr.mxu0 0.0
  %3533 = vmatpush1.xpose.msra.mxu0 0.0
  %3534 = vmatprep.subr.mxu0 0.0
  %3535 = vmatpush1.xpose.msra.mxu0 0.0
  %3536 = vmatprep.subr.mxu0 0.0
  %3537 = vmatpush1.xpose.msra.mxu0 0.0
  %3538 = vmatprep.subr.mxu0 0.0
  %3539 = vmatpush1.xpose.msra.mxu0 0.0
  %3540 = vmatprep.subr.mxu0 0.0
  %3541 = vmatpush1.xpose.msra.mxu0 0.0
  %3542 = vmatprep.subr.mxu0 0.0
  %3543 = vmatpush1.xpose.msra.mxu0 0.0
  %3544 = vmatprep.subr.mxu0 0.0
  %3545 = vmatpush1.xpose.msra.mxu0 0.0
  %3546 = vmatprep.subr.mxu0 0.0
  %3547 = vmatpush1.xpose.msra.mxu0 0.0
  %3548 = vmatprep.subr.mxu0 0.0
  %3549 = vmatpush1.xpose.msra.mxu0 0.0
  %3550 = vmatprep.subr.mxu0 0.0
  %3551 = vmatpush1.xpose.msra.mxu0 0.0
  %3552 = vmatprep.subr.mxu0 0.0
  %3553 = vmatpush1.xpose.msra.mxu0 0.0
  %3554 = vmatprep.subr.mxu0 0.0
  %3555 = vmatpush1.xpose.msra.mxu0 0.0
  %3556 = vmatprep.subr.mxu0 0.0
  %3557 = vmatpush1.xpose.msra.mxu0 0.0
  %3558 = vmatprep.subr.mxu0 0.0
  %3559 = vmatpush1.xpose.msra.mxu0 0.0
  %3560 = vmatprep.subr.mxu0 0.0
  %3561 = vmatpush1.xpose.msra.mxu0 0.0
  %3562 = vmatprep.subr.mxu0 0.0
  %3563 = vmatpush1.xpose.msra.mxu0 0.0
  %3564 = vmatprep.subr.mxu0 0.0
  %3565 = vmatpush1.xpose.msra.mxu0 0.0
  %3566 = vmatprep.subr.mxu0 0.0
  %3567 = vmatpush1.xpose.msra.mxu0 0.0
  %3568 = vmatprep.subr.mxu0 0.0
  %3569 = vmatpush1.xpose.msra.mxu0 0.0
  %3570 = vmatprep.subr.mxu0 0.0
  %3571 = vmatpush1.xpose.msra.mxu0 0.0
  %3572 = vmatprep.subr.mxu0 0.0
  %3573 = vmatpush1.xpose.msra.mxu0 0.0
  %3574 = vmatprep.subr.mxu0 0.0
  %3575 = vmatpush1.xpose.msra.mxu0 0.0
  %3576 = vmatprep.subr.mxu0 0.0
  %3577 = vmatpush1.xpose.msra.mxu0 0.0
  %3578 = vmatprep.subr.mxu0 0.0
  %3579 = vmatpush1.xpose.msra.mxu0 0.0
  %3580 = vmatprep.subr.mxu0 0.0
  %3581 = vmatpush1.xpose.msra.mxu0 0.0
  %3582 = vmatprep.mubr.f32.mxu0 %v3515
  %3583 = vmatmul.mubr.f32.gmra.mrb[0].mxu0 %v3511
  %v3584 = vpop.f32.mrb[0].mxu0
  %v3585 = vadd.f32 0.0, %v3584
  %v3586 = vpop.f32.mrb[0].mxu0
  %3587 = vdwg.mxu0
  %v3588 = vlaneseq
  %v3589 = vshrl.u32 %v3588, 7
  %v3590 = vsub.s32 0, %v3589
  %v3591 = vrot.slane %v3073, %v3590
  %v3592 = vlaneseq
  %v3593 = vshrl.u32 %v3592, 7
  %v3594 = vsub.s32 1, %v3593
  %v3595 = vrot.slane %v3073, %v3594
  %3598 = vmatprep.subr.mxu0 %v3101
  %3599 = vmatpush1.xpose.msra.mxu0 %v3100
  %3600 = vmatprep.subr.mxu0 %v3103
  %3601 = vmatpush1.xpose.msra.mxu0 %v3102
  %3602 = vmatprep.subr.mxu0 0.0
  %3603 = vmatpush1.xpose.msra.mxu0 0.0
  %3604 = vmatprep.subr.mxu0 0.0
  %3605 = vmatpush1.xpose.msra.mxu0 0.0
  %3606 = vmatprep.subr.mxu0 0.0
  %3607 = vmatpush1.xpose.msra.mxu0 0.0
  %3608 = vmatprep.subr.mxu0 0.0
  %3609 = vmatpush1.xpose.msra.mxu0 0.0
  %3610 = vmatprep.subr.mxu0 0.0
  %3611 = vmatpush1.xpose.msra.mxu0 0.0
  %3612 = vmatprep.subr.mxu0 0.0
  %3613 = vmatpush1.xpose.msra.mxu0 0.0
  %3614 = vmatprep.subr.mxu0 0.0
  %3615 = vmatpush1.xpose.msra.mxu0 0.0
  %3616 = vmatprep.subr.mxu0 0.0
  %3617 = vmatpush1.xpose.msra.mxu0 0.0
  %3618 = vmatprep.subr.mxu0 0.0
  %3619 = vmatpush1.xpose.msra.mxu0 0.0
  %3620 = vmatprep.subr.mxu0 0.0
  %3621 = vmatpush1.xpose.msra.mxu0 0.0
  %3622 = vmatprep.subr.mxu0 0.0
  %3623 = vmatpush1.xpose.msra.mxu0 0.0
  %3624 = vmatprep.subr.mxu0 0.0
  %3625 = vmatpush1.xpose.msra.mxu0 0.0
  %3626 = vmatprep.subr.mxu0 0.0
  %3627 = vmatpush1.xpose.msra.mxu0 0.0
  %3628 = vmatprep.subr.mxu0 0.0
  %3629 = vmatpush1.xpose.msra.mxu0 0.0
  %3630 = vmatprep.subr.mxu0 0.0
  %3631 = vmatpush1.xpose.msra.mxu0 0.0
  %3632 = vmatprep.subr.mxu0 0.0
  %3633 = vmatpush1.xpose.msra.mxu0 0.0
  %3634 = vmatprep.subr.mxu0 0.0
  %3635 = vmatpush1.xpose.msra.mxu0 0.0
  %3636 = vmatprep.subr.mxu0 0.0
  %3637 = vmatpush1.xpose.msra.mxu0 0.0
  %3638 = vmatprep.subr.mxu0 0.0
  %3639 = vmatpush1.xpose.msra.mxu0 0.0
  %3640 = vmatprep.subr.mxu0 0.0
  %3641 = vmatpush1.xpose.msra.mxu0 0.0
  %3642 = vmatprep.subr.mxu0 0.0
  %3643 = vmatpush1.xpose.msra.mxu0 0.0
  %3644 = vmatprep.subr.mxu0 0.0
  %3645 = vmatpush1.xpose.msra.mxu0 0.0
  %3646 = vmatprep.subr.mxu0 0.0
  %3647 = vmatpush1.xpose.msra.mxu0 0.0
  %3648 = vmatprep.subr.mxu0 0.0
  %3649 = vmatpush1.xpose.msra.mxu0 0.0
  %3650 = vmatprep.subr.mxu0 0.0
  %3651 = vmatpush1.xpose.msra.mxu0 0.0
  %3652 = vmatprep.subr.mxu0 0.0
  %3653 = vmatpush1.xpose.msra.mxu0 0.0
  %3654 = vmatprep.subr.mxu0 0.0
  %3655 = vmatpush1.xpose.msra.mxu0 0.0
  %3656 = vmatprep.subr.mxu0 0.0
  %3657 = vmatpush1.xpose.msra.mxu0 0.0
  %3658 = vmatprep.subr.mxu0 0.0
  %3659 = vmatpush1.xpose.msra.mxu0 0.0
  %3660 = vmatprep.subr.mxu0 0.0
  %3661 = vmatpush1.xpose.msra.mxu0 0.0
  %3662 = vmatprep.mubr.f32.mxu0 %v3595
  %3663 = vmatmul.mubr.f32.gmra.mrb[0].mxu0 %v3591
  %v3664 = vpop.f32.mrb[0].mxu0
  %v3665 = vadd.f32 0.0, %v3664
  %v3666 = vpop.f32.mrb[0].mxu0
  %3667 = vdwg.mxu0
  %v3668 = vlaneseq
  %v3669 = vshrl.u32 %v3668, 7
  %v3670 = vsub.s32 0, %v3669
  %v3671 = vrot.slane %v3075, %v3670
  %v3672 = vlaneseq
  %v3673 = vshrl.u32 %v3672, 7
  %v3674 = vsub.s32 1, %v3673
  %v3675 = vrot.slane %v3075, %v3674
  %3678 = vmatprep.subr.mxu0 %v3105
  %3679 = vmatpush1.xpose.msra.mxu0 %v3104
  %3680 = vmatprep.subr.mxu0 %v3107
  %3681 = vmatpush1.xpose.msra.mxu0 %v3106
  %3682 = vmatprep.subr.mxu0 0.0
  %3683 = vmatpush1.xpose.msra.mxu0 0.0
  %3684 = vmatprep.subr.mxu0 0.0
  %3685 = vmatpush1.xpose.msra.mxu0 0.0
  %3686 = vmatprep.subr.mxu0 0.0
  %3687 = vmatpush1.xpose.msra.mxu0 0.0
  %3688 = vmatprep.subr.mxu0 0.0
  %3689 = vmatpush1.xpose.msra.mxu0 0.0
  %3690 = vmatprep.subr.mxu0 0.0
  %3691 = vmatpush1.xpose.msra.mxu0 0.0
  %3692 = vmatprep.subr.mxu0 0.0
  %3693 = vmatpush1.xpose.msra.mxu0 0.0
  %3694 = vmatprep.subr.mxu0 0.0
  %3695 = vmatpush1.xpose.msra.mxu0 0.0
  %3696 = vmatprep.subr.mxu0 0.0
  %3697 = vmatpush1.xpose.msra.mxu0 0.0
  %3698 = vmatprep.subr.mxu0 0.0
  %3699 = vmatpush1.xpose.msra.mxu0 0.0
  %3700 = vmatprep.subr.mxu0 0.0
  %3701 = vmatpush1.xpose.msra.mxu0 0.0
  %3702 = vmatprep.subr.mxu0 0.0
  %3703 = vmatpush1.xpose.msra.mxu0 0.0
  %3704 = vmatprep.subr.mxu0 0.0
  %3705 = vmatpush1.xpose.msra.mxu0 0.0
  %3706 = vmatprep.subr.mxu0 0.0
  %3707 = vmatpush1.xpose.msra.mxu0 0.0
  %3708 = vmatprep.subr.mxu0 0.0
  %3709 = vmatpush1.xpose.msra.mxu0 0.0
  %3710 = vmatprep.subr.mxu0 0.0
  %3711 = vmatpush1.xpose.msra.mxu0 0.0
  %3712 = vmatprep.subr.mxu0 0.0
  %3713 = vmatpush1.xpose.msra.mxu0 0.0
  %3714 = vmatprep.subr.mxu0 0.0
  %3715 = vmatpush1.xpose.msra.mxu0 0.0
  %3716 = vmatprep.subr.mxu0 0.0
  %3717 = vmatpush1.xpose.msra.mxu0 0.0
  %3718 = vmatprep.subr.mxu0 0.0
  %3719 = vmatpush1.xpose.msra.mxu0 0.0
  %3720 = vmatprep.subr.mxu0 0.0
  %3721 = vmatpush1.xpose.msra.mxu0 0.0
  %3722 = vmatprep.subr.mxu0 0.0
  %3723 = vmatpush1.xpose.msra.mxu0 0.0
  %3724 = vmatprep.subr.mxu0 0.0
  %3725 = vmatpush1.xpose.msra.mxu0 0.0
  %3726 = vmatprep.subr.mxu0 0.0
  %3727 = vmatpush1.xpose.msra.mxu0 0.0
  %3728 = vmatprep.subr.mxu0 0.0
  %3729 = vmatpush1.xpose.msra.mxu0 0.0
  %3730 = vmatprep.subr.mxu0 0.0
  %3731 = vmatpush1.xpose.msra.mxu0 0.0
  %3732 = vmatprep.subr.mxu0 0.0
  %3733 = vmatpush1.xpose.msra.mxu0 0.0
  %3734 = vmatprep.subr.mxu0 0.0
  %3735 = vmatpush1.xpose.msra.mxu0 0.0
  %3736 = vmatprep.subr.mxu0 0.0
  %3737 = vmatpush1.xpose.msra.mxu0 0.0
  %3738 = vmatprep.subr.mxu0 0.0
  %3739 = vmatpush1.xpose.msra.mxu0 0.0
  %3740 = vmatprep.subr.mxu0 0.0
  %3741 = vmatpush1.xpose.msra.mxu0 0.0
  %3742 = vmatprep.mubr.f32.mxu0 %v3675
  %3743 = vmatmul.mubr.f32.gmra.mrb[0].mxu0 %v3671
  %v3744 = vpop.f32.mrb[0].mxu0
  %v3745 = vadd.f32 0.0, %v3744
  %v3746 = vpop.f32.mrb[0].mxu0
  %3747 = vdwg.mxu0
  %v3756 = vrot.slane %v3265, 7
  %v3757 = vsel %vm962, %v3756, %v3185
  %v3758 = vrot.slane %v3345, 6
  %v3759 = vsel %vm965, %v3758, %v3757
  %v3760 = vrot.slane %v3425, 5
  %v3761 = vsel %vm968, %v3760, %v3759
  %v3762 = vrot.slane %v3505, 4
  %v3763 = vsel %vm971, %v3762, %v3761
  %v3764 = vrot.slane %v3585, 3
  %v3765 = vsel %vm974, %v3764, %v3763
  %v3766 = vrot.slane %v3665, 2
  %v3767 = vsel %vm977, %v3766, %v3765
  %v3768 = vrot.slane %v3745, 1
  %v3769 = vsel %vm980, %v3768, %v3767
  %v3771 = vsel %vm983, %v3769, 0.0
  %v3772 = vrot.slane %v3771, 4
  %v3773 = vadd.f32 %v3771, %v3772
  %v3774 = vrot.slane %v3773, 2
  %v3775 = vadd.f32 %v3773, %v3774
  %v3776 = vrot.slane %v3775, 1
  %v3777 = vadd.f32 %v3775, %v3776
  %v3778 = vadd.f32 %v3777, %v25
  %s3779 = scalar_lea.vmem %s0, 32
  %v3780 = vld [vmem:[%s3779] sm:$0xff]
  %v3782 = vcombine.high %v3780, %v3780
  %3784 = vrot.lane.b32.xlu0 %v3780, 17
  %v3785 = vpop.permute.xlu0 %3784
  %3786 = vrot.lane.b32.xlu0 %v3782, 17
  %v3787 = vpop.permute.xlu0 %3786
  %v3788 = vsel %vm46, %v3785, %v3787
  %v3789 = vsel %vm46, %v3787, %v3785
  %3790 = vrot.lane.b32.xlu0 %v3780, 16
  %v3791 = vpop.permute.xlu0 %3790
  %3792 = vrot.lane.b32.xlu0 %v3782, 16
  %v3793 = vpop.permute.xlu0 %3792
  %v3794 = vsel %vm53, %v3791, %v3793
  %v3795 = vsel %vm53, %v3793, %v3791
  %3796 = vrot.lane.b32.xlu0 %v3780, 15
  %v3797 = vpop.permute.xlu0 %3796
  %3798 = vrot.lane.b32.xlu0 %v3782, 15
  %v3799 = vpop.permute.xlu0 %3798
  %v3800 = vsel %vm60, %v3797, %v3799
  %v3801 = vsel %vm60, %v3799, %v3797
  %3802 = vrot.lane.b32.xlu0 %v3780, 1
  %v3803 = vpop.permute.xlu0 %3802
  %3804 = vrot.lane.b32.xlu0 %v3782, 1
  %v3805 = vpop.permute.xlu0 %3804
  %v3806 = vsel %vm67, %v3803, %v3805
  %v3807 = vsel %vm67, %v3805, %v3803
  %3808 = vrot.lane.b32.xlu0 %v3780, 127
  %v3809 = vpop.permute.xlu0 %3808
  %3810 = vrot.lane.b32.xlu0 %v3782, 127
  %v3811 = vpop.permute.xlu0 %3810
  %v3812 = vsel %vm74, %v3809, %v3811
  %v3813 = vsel %vm74, %v3811, %v3809
  %3814 = vrot.lane.b32.xlu0 %v3780, 113
  %v3815 = vpop.permute.xlu0 %3814
  %3816 = vrot.lane.b32.xlu0 %v3782, 113
  %v3817 = vpop.permute.xlu0 %3816
  %v3818 = vsel %vm81, %v3815, %v3817
  %v3819 = vsel %vm81, %v3817, %v3815
  %3820 = vrot.lane.b32.xlu0 %v3780, 112
  %v3821 = vpop.permute.xlu0 %3820
  %3822 = vrot.lane.b32.xlu0 %v3782, 112
  %v3823 = vpop.permute.xlu0 %3822
  %v3824 = vsel %vm88, %v3821, %v3823
  %v3825 = vsel %vm88, %v3823, %v3821
  %3826 = vrot.lane.b32.xlu0 %v3780, 111
  %v3827 = vpop.permute.xlu0 %3826
  %3828 = vrot.lane.b32.xlu0 %v3782, 111
  %v3829 = vpop.permute.xlu0 %3828
  %v3830 = vsel %vm95, %v3827, %v3829
  %v3831 = vsel %vm95, %v3829, %v3827
  %v3834 = vrot.slane %v3795, 4
  %v3835 = vrot.slane %v3794, 4
  %v3840 = vrot.slane %v3807, 4
  %v3841 = vrot.slane %v3806, 4
  %v3846 = vrot.slane %v3812, 4
  %v3847 = vrot.slane %v3813, 4
  %v3852 = vrot.slane %v3824, 4
  %v3853 = vrot.slane %v3825, 4
  %v3856 = vsel %vm122, %v3789, %v3834
  %v3857 = vsel %vm122, %v3788, %v3835
  %v3858 = vsel %vm122, %v3801, %v3840
  %v3859 = vsel %vm122, %v3800, %v3841
  %v3860 = vsel %vm122, %v3780, %v3846
  %v3861 = vsel %vm122, %v3782, %v3847
  %v3862 = vsel %vm122, %v3818, %v3852
  %v3863 = vsel %vm122, %v3819, %v3853
  %v3864 = vmul.f32 %v3856, %v26
  %v3865 = vmul.f32 %v3857, %v27
  %v3866 = vmul.f32 %v3858, %v28
  %v3867 = vmul.f32 %v3859, %v29
  %v3868 = vmul.f32 %v3860, %v30
  %v3869 = vmul.f32 %v3861, %v31
  %v3870 = vmul.f32 %v3862, %v32
  %v3871 = vmul.f32 %v3863, %v33
  %v3872 = vmul.f32 %v3830, %v34
  %v3873 = vmul.f32 %v3831, %v35
  %v3875 = vsel %vm122, %v3872, 0
  %v3878 = vsel %vm122, %v3873, 0
  %3880 = vmatprep.subr.mxu0 %v3865
  %3881 = vmatpush1.msra.mxu0 %v3864
  %3882 = vmatprep.subr.mxu0 %v3867
  %3883 = vmatpush1.msra.mxu0 %v3866
  %3884 = vmatprep.subr.mxu0 %v3869
  %3885 = vmatpush1.msra.mxu0 %v3868
  %3886 = vmatprep.subr.mxu0 %v3871
  %3887 = vmatpush1.msra.mxu0 %v3870
  %3888 = vmatprep.subr.mxu0 %v3878
  %3889 = vmatpush1.msra.mxu0 %v3875
  %3890 = vmatprep.subr.mxu0 0.0
  %3891 = vmatpush1.msra.mxu0 0.0
  %3892 = vmatprep.subr.mxu0 0.0
  %3893 = vmatpush1.msra.mxu0 0.0
  %3894 = vmatprep.subr.mxu0 0.0
  %3895 = vmatpush1.msra.mxu0 0.0
  %3896 = vmatprep.subr.mxu0 0.0
  %3897 = vmatpush1.msra.mxu0 0.0
  %3898 = vmatprep.subr.mxu0 0.0
  %3899 = vmatpush1.msra.mxu0 0.0
  %3900 = vmatprep.subr.mxu0 0.0
  %3901 = vmatpush1.msra.mxu0 0.0
  %3902 = vmatprep.subr.mxu0 0.0
  %3903 = vmatpush1.msra.mxu0 0.0
  %3904 = vmatprep.subr.mxu0 0.0
  %3905 = vmatpush1.msra.mxu0 0.0
  %3906 = vmatprep.subr.mxu0 0.0
  %3907 = vmatpush1.msra.mxu0 0.0
  %3908 = vmatprep.subr.mxu0 0.0
  %3909 = vmatpush1.msra.mxu0 0.0
  %3910 = vmatprep.subr.mxu0 0.0
  %3911 = vmatpush1.msra.mxu0 0.0
  %3912 = vmatprep.subr.mxu0 0.0
  %3913 = vmatpush1.msra.mxu0 0.0
  %3914 = vmatprep.subr.mxu0 0.0
  %3915 = vmatpush1.msra.mxu0 0.0
  %3916 = vmatprep.subr.mxu0 0.0
  %3917 = vmatpush1.msra.mxu0 0.0
  %3918 = vmatprep.subr.mxu0 0.0
  %3919 = vmatpush1.msra.mxu0 0.0
  %3920 = vmatprep.subr.mxu0 0.0
  %3921 = vmatpush1.msra.mxu0 0.0
  %3922 = vmatprep.subr.mxu0 0.0
  %3923 = vmatpush1.msra.mxu0 0.0
  %3924 = vmatprep.subr.mxu0 0.0
  %3925 = vmatpush1.msra.mxu0 0.0
  %3926 = vmatprep.subr.mxu0 0.0
  %3927 = vmatpush1.msra.mxu0 0.0
  %3928 = vmatprep.subr.mxu0 0.0
  %3929 = vmatpush1.msra.mxu0 0.0
  %3930 = vmatprep.subr.mxu0 0.0
  %3931 = vmatpush1.msra.mxu0 0.0
  %3932 = vmatprep.subr.mxu0 0.0
  %3933 = vmatpush1.msra.mxu0 0.0
  %3934 = vmatprep.subr.mxu0 0.0
  %3935 = vmatpush1.msra.mxu0 0.0
  %3936 = vmatprep.subr.mxu0 0.0
  %3937 = vmatpush1.msra.mxu0 0.0
  %3938 = vmatprep.subr.mxu0 0.0
  %3939 = vmatpush1.msra.mxu0 0.0
  %3940 = vmatprep.subr.mxu0 0.0
  %3941 = vmatpush1.msra.mxu0 0.0
  %3942 = vmatprep.subr.mxu0 0.0
  %3943 = vmatpush1.msra.mxu0 0.0
  %3944 = vmatprep.mubr.f32.mxu0 0.0
  %3945 = vmatmul.mubr.f32.gmra.mrb[0].mxu0 %v148
  %v3946 = vpop.f32.mrb[0].mxu0
  %v3947 = vadd.f32 %v144, %v3946
  %v3948 = vpop.f32.mrb[0].mxu0
  %v3949 = vadd.f32 %v144, %v3948
  %3950 = vdwg.mxu0
  %v3951 = vmax.f32 %v3947, 0.0
  %v3952 = vmax.f32 %v3949, 0.0
  %v3955 = vcombine.low %v3951, %v3952
  %v3956 = vcombine.high %v3951, %v3952
  %v3958 = vunpack.c.l.s4 1966171168
  %v3959 = vunpack.c.0.s8 %v3958
  %v3960 = vlaneseq
  %v3961 = vshrl.u32 %v3960, 7
  %v3962 = vsub.s32 %v3959, %v3961
  %v3963 = vrot.slane %v3955, %v3962
  %v3965 = vunpack.c.l.s4 1966171168
  %v3966 = vunpack.c.0.s8 %v3965
  %v3967 = vlaneseq
  %v3968 = vshrl.u32 %v3967, 7
  %v3969 = vsub.s32 %v3966, %v3968
  %v3970 = vrot.slane %v3956, %v3969
  %v3971 = vcombine.high %v3963, %v3963
  %v3972 = vcombine.high %v3970, %v3970
  %v3974 = vunpack.c.l.s4 1966171168
  %v3975 = vunpack.c.0.s8 %v3974
  %v3976 = vlaneseq
  %v3977 = vshrl.u32 %v3976, 7
  %v3978 = vsub.s32 %v3975, %v3977
  %v3979 = vrot.slane %v3963, %v3978
  %v3981 = vunpack.c.l.s4 1966171168
  %v3982 = vunpack.c.0.s8 %v3981
  %v3983 = vlaneseq
  %v3984 = vshrl.u32 %v3983, 7
  %v3985 = vsub.s32 %v3982, %v3984
  %v3986 = vrot.slane %v3970, %v3985
  %v3988 = vunpack.c.l.s4 1966171168
  %v3989 = vunpack.c.0.s8 %v3988
  %v3990 = vlaneseq
  %v3991 = vshrl.u32 %v3990, 7
  %v3992 = vsub.s32 %v3989, %v3991
  %v3993 = vrot.slane %v3971, %v3992
  %v3995 = vunpack.c.l.s4 1966171168
  %v3996 = vunpack.c.0.s8 %v3995
  %v3997 = vlaneseq
  %v3998 = vshrl.u32 %v3997, 7
  %v3999 = vsub.s32 %v3996, %v3998
  %v4000 = vrot.slane %v3972, %v3999
  %v4001 = vcombine.high %v3979, %v3979
  %v4002 = vcombine.high %v3986, %v3986
  %v4003 = vcombine.high %v3993, %v3993
  %v4004 = vcombine.high %v4000, %v4000
  %v4005 = vld [vmem:[%s3] sm:$0xff]
  %v4006 = vld [vmem:[%s3 + $0x8] sm:$0xff]
  %v4007 = vld [vmem:[%s3 + $0x10] sm:$0x3]
  %v4008 = vld [vmem:[%s3 + $0x18] sm:$0x3]
  %v4009 = vld [vmem:[%s3 + $0x20] sm:$0xff]
  %v4010 = vld [vmem:[%s3 + $0x28] sm:$0xff]
  %v4011 = vld [vmem:[%s3 + $0x30] sm:$0x3]
  %v4012 = vld [vmem:[%s3 + $0x38] sm:$0x3]
  %v4013 = vld [vmem:[%s3 + $0x40] sm:$0xff]
  %v4014 = vld [vmem:[%s3 + $0x48] sm:$0xff]
  %v4015 = vld [vmem:[%s3 + $0x50] sm:$0x3]
  %v4016 = vld [vmem:[%s3 + $0x58] sm:$0x3]
  %v4017 = vld [vmem:[%s3 + $0x60] sm:$0xff]
  %v4018 = vld [vmem:[%s3 + $0x68] sm:$0xff]
  %v4019 = vld [vmem:[%s3 + $0x70] sm:$0x3]
  %v4020 = vld [vmem:[%s3 + $0x78] sm:$0x3]
  %v4021 = vld [vmem:[%s3 + $0x80] sm:$0xff]
  %v4022 = vld [vmem:[%s3 + $0x88] sm:$0xff]
  %v4023 = vld [vmem:[%s3 + $0x90] sm:$0x3]
  %v4024 = vld [vmem:[%s3 + $0x98] sm:$0x3]
  %v4025 = vld [vmem:[%s3 + $0xa0] sm:$0xff]
  %v4026 = vld [vmem:[%s3 + $0xa8] sm:$0xff]
  %v4027 = vld [vmem:[%s3 + $0xb0] sm:$0x3]
  %v4028 = vld [vmem:[%s3 + $0xb8] sm:$0x3]
  %v4029 = vld [vmem:[%s3 + $0xc0] sm:$0xff]
  %v4030 = vld [vmem:[%s3 + $0xc8] sm:$0xff]
  %v4031 = vld [vmem:[%s3 + $0xd0] sm:$0x3]
  %v4032 = vld [vmem:[%s3 + $0xd8] sm:$0x3]
  %v4033 = vld [vmem:[%s3 + $0xe0] sm:$0xff]
  %v4034 = vld [vmem:[%s3 + $0xe8] sm:$0xff]
  %v4035 = vld [vmem:[%s3 + $0xf0] sm:$0x3]
  %v4036 = vld [vmem:[%s3 + $0xf8] sm:$0x3]
  %v4037 = vlaneseq
  %v4038 = vshrl.u32 %v4037, 7
  %v4039 = vsub.s32 0, %v4038
  %v4040 = vrot.slane %v3979, %v4039
  %v4041 = vlaneseq
  %v4042 = vshrl.u32 %v4041, 7
  %v4043 = vsub.s32 1, %v4042
  %v4044 = vrot.slane %v3979, %v4043
  %4047 = vmatprep.subr.mxu0 %v4006
  %4048 = vmatpush1.xpose.msra.mxu0 %v4005
  %4049 = vmatprep.subr.mxu0 %v4008
  %4050 = vmatpush1.xpose.msra.mxu0 %v4007
  %4051 = vmatprep.subr.mxu0 0.0
  %4052 = vmatpush1.xpose.msra.mxu0 0.0
  %4053 = vmatprep.subr.mxu0 0.0
  %4054 = vmatpush1.xpose.msra.mxu0 0.0
  %4055 = vmatprep.subr.mxu0 0.0
  %4056 = vmatpush1.xpose.msra.mxu0 0.0
  %4057 = vmatprep.subr.mxu0 0.0
  %4058 = vmatpush1.xpose.msra.mxu0 0.0
  %4059 = vmatprep.subr.mxu0 0.0
  %4060 = vmatpush1.xpose.msra.mxu0 0.0
  %4061 = vmatprep.subr.mxu0 0.0
  %4062 = vmatpush1.xpose.msra.mxu0 0.0
  %4063 = vmatprep.subr.mxu0 0.0
  %4064 = vmatpush1.xpose.msra.mxu0 0.0
  %4065 = vmatprep.subr.mxu0 0.0
  %4066 = vmatpush1.xpose.msra.mxu0 0.0
  %4067 = vmatprep.subr.mxu0 0.0
  %4068 = vmatpush1.xpose.msra.mxu0 0.0
  %4069 = vmatprep.subr.mxu0 0.0
  %4070 = vmatpush1.xpose.msra.mxu0 0.0
  %4071 = vmatprep.subr.mxu0 0.0
  %4072 = vmatpush1.xpose.msra.mxu0 0.0
  %4073 = vmatprep.subr.mxu0 0.0
  %4074 = vmatpush1.xpose.msra.mxu0 0.0
  %4075 = vmatprep.subr.mxu0 0.0
  %4076 = vmatpush1.xpose.msra.mxu0 0.0
  %4077 = vmatprep.subr.mxu0 0.0
  %4078 = vmatpush1.xpose.msra.mxu0 0.0
  %4079 = vmatprep.subr.mxu0 0.0
  %4080 = vmatpush1.xpose.msra.mxu0 0.0
  %4081 = vmatprep.subr.mxu0 0.0
  %4082 = vmatpush1.xpose.msra.mxu0 0.0
  %4083 = vmatprep.subr.mxu0 0.0
  %4084 = vmatpush1.xpose.msra.mxu0 0.0
  %4085 = vmatprep.subr.mxu0 0.0
  %4086 = vmatpush1.xpose.msra.mxu0 0.0
  %4087 = vmatprep.subr.mxu0 0.0
  %4088 = vmatpush1.xpose.msra.mxu0 0.0
  %4089 = vmatprep.subr.mxu0 0.0
  %4090 = vmatpush1.xpose.msra.mxu0 0.0
  %4091 = vmatprep.subr.mxu0 0.0
  %4092 = vmatpush1.xpose.msra.mxu0 0.0
  %4093 = vmatprep.subr.mxu0 0.0
  %4094 = vmatpush1.xpose.msra.mxu0 0.0
  %4095 = vmatprep.subr.mxu0 0.0
  %4096 = vmatpush1.xpose.msra.mxu0 0.0
  %4097 = vmatprep.subr.mxu0 0.0
  %4098 = vmatpush1.xpose.msra.mxu0 0.0
  %4099 = vmatprep.subr.mxu0 0.0
  %4100 = vmatpush1.xpose.msra.mxu0 0.0
  %4101 = vmatprep.subr.mxu0 0.0
  %4102 = vmatpush1.xpose.msra.mxu0 0.0
  %4103 = vmatprep.subr.mxu0 0.0
  %4104 = vmatpush1.xpose.msra.mxu0 0.0
  %4105 = vmatprep.subr.mxu0 0.0
  %4106 = vmatpush1.xpose.msra.mxu0 0.0
  %4107 = vmatprep.subr.mxu0 0.0
  %4108 = vmatpush1.xpose.msra.mxu0 0.0
  %4109 = vmatprep.subr.mxu0 0.0
  %4110 = vmatpush1.xpose.msra.mxu0 0.0
  %4111 = vmatprep.mubr.f32.mxu0 %v4044
  %4112 = vmatmul.mubr.f32.gmra.mrb[0].mxu0 %v4040
  %v4113 = vpop.f32.mrb[0].mxu0
  %v4114 = vadd.f32 0.0, %v4113
  %v4115 = vpop.f32.mrb[0].mxu0
  %4116 = vdwg.mxu0
  %v4117 = vlaneseq
  %v4118 = vshrl.u32 %v4117, 7
  %v4119 = vsub.s32 0, %v4118
  %v4120 = vrot.slane %v3993, %v4119
  %v4121 = vlaneseq
  %v4122 = vshrl.u32 %v4121, 7
  %v4123 = vsub.s32 1, %v4122
  %v4124 = vrot.slane %v3993, %v4123
  %4127 = vmatprep.subr.mxu0 %v4010
  %4128 = vmatpush1.xpose.msra.mxu0 %v4009
  %4129 = vmatprep.subr.mxu0 %v4012
  %4130 = vmatpush1.xpose.msra.mxu0 %v4011
  %4131 = vmatprep.subr.mxu0 0.0
  %4132 = vmatpush1.xpose.msra.mxu0 0.0
  %4133 = vmatprep.subr.mxu0 0.0
  %4134 = vmatpush1.xpose.msra.mxu0 0.0
  %4135 = vmatprep.subr.mxu0 0.0
  %4136 = vmatpush1.xpose.msra.mxu0 0.0
  %4137 = vmatprep.subr.mxu0 0.0
  %4138 = vmatpush1.xpose.msra.mxu0 0.0
  %4139 = vmatprep.subr.mxu0 0.0
  %4140 = vmatpush1.xpose.msra.mxu0 0.0
  %4141 = vmatprep.subr.mxu0 0.0
  %4142 = vmatpush1.xpose.msra.mxu0 0.0
  %4143 = vmatprep.subr.mxu0 0.0
  %4144 = vmatpush1.xpose.msra.mxu0 0.0
  %4145 = vmatprep.subr.mxu0 0.0
  %4146 = vmatpush1.xpose.msra.mxu0 0.0
  %4147 = vmatprep.subr.mxu0 0.0
  %4148 = vmatpush1.xpose.msra.mxu0 0.0
  %4149 = vmatprep.subr.mxu0 0.0
  %4150 = vmatpush1.xpose.msra.mxu0 0.0
  %4151 = vmatprep.subr.mxu0 0.0
  %4152 = vmatpush1.xpose.msra.mxu0 0.0
  %4153 = vmatprep.subr.mxu0 0.0
  %4154 = vmatpush1.xpose.msra.mxu0 0.0
  %4155 = vmatprep.subr.mxu0 0.0
  %4156 = vmatpush1.xpose.msra.mxu0 0.0
  %4157 = vmatprep.subr.mxu0 0.0
  %4158 = vmatpush1.xpose.msra.mxu0 0.0
  %4159 = vmatprep.subr.mxu0 0.0
  %4160 = vmatpush1.xpose.msra.mxu0 0.0
  %4161 = vmatprep.subr.mxu0 0.0
  %4162 = vmatpush1.xpose.msra.mxu0 0.0
  %4163 = vmatprep.subr.mxu0 0.0
  %4164 = vmatpush1.xpose.msra.mxu0 0.0
  %4165 = vmatprep.subr.mxu0 0.0
  %4166 = vmatpush1.xpose.msra.mxu0 0.0
  %4167 = vmatprep.subr.mxu0 0.0
  %4168 = vmatpush1.xpose.msra.mxu0 0.0
  %4169 = vmatprep.subr.mxu0 0.0
  %4170 = vmatpush1.xpose.msra.mxu0 0.0
  %4171 = vmatprep.subr.mxu0 0.0
  %4172 = vmatpush1.xpose.msra.mxu0 0.0
  %4173 = vmatprep.subr.mxu0 0.0
  %4174 = vmatpush1.xpose.msra.mxu0 0.0
  %4175 = vmatprep.subr.mxu0 0.0
  %4176 = vmatpush1.xpose.msra.mxu0 0.0
  %4177 = vmatprep.subr.mxu0 0.0
  %4178 = vmatpush1.xpose.msra.mxu0 0.0
  %4179 = vmatprep.subr.mxu0 0.0
  %4180 = vmatpush1.xpose.msra.mxu0 0.0
  %4181 = vmatprep.subr.mxu0 0.0
  %4182 = vmatpush1.xpose.msra.mxu0 0.0
  %4183 = vmatprep.subr.mxu0 0.0
  %4184 = vmatpush1.xpose.msra.mxu0 0.0
  %4185 = vmatprep.subr.mxu0 0.0
  %4186 = vmatpush1.xpose.msra.mxu0 0.0
  %4187 = vmatprep.subr.mxu0 0.0
  %4188 = vmatpush1.xpose.msra.mxu0 0.0
  %4189 = vmatprep.subr.mxu0 0.0
  %4190 = vmatpush1.xpose.msra.mxu0 0.0
  %4191 = vmatprep.mubr.f32.mxu0 %v4124
  %4192 = vmatmul.mubr.f32.gmra.mrb[0].mxu0 %v4120
  %v4193 = vpop.f32.mrb[0].mxu0
  %v4194 = vadd.f32 0.0, %v4193
  %v4195 = vpop.f32.mrb[0].mxu0
  %4196 = vdwg.mxu0
  %v4197 = vlaneseq
  %v4198 = vshrl.u32 %v4197, 7
  %v4199 = vsub.s32 0, %v4198
  %v4200 = vrot.slane %v4001, %v4199
  %v4201 = vlaneseq
  %v4202 = vshrl.u32 %v4201, 7
  %v4203 = vsub.s32 1, %v4202
  %v4204 = vrot.slane %v4001, %v4203
  %4207 = vmatprep.subr.mxu0 %v4014
  %4208 = vmatpush1.xpose.msra.mxu0 %v4013
  %4209 = vmatprep.subr.mxu0 %v4016
  %4210 = vmatpush1.xpose.msra.mxu0 %v4015
  %4211 = vmatprep.subr.mxu0 0.0
  %4212 = vmatpush1.xpose.msra.mxu0 0.0
  %4213 = vmatprep.subr.mxu0 0.0
  %4214 = vmatpush1.xpose.msra.mxu0 0.0
  %4215 = vmatprep.subr.mxu0 0.0
  %4216 = vmatpush1.xpose.msra.mxu0 0.0
  %4217 = vmatprep.subr.mxu0 0.0
  %4218 = vmatpush1.xpose.msra.mxu0 0.0
  %4219 = vmatprep.subr.mxu0 0.0
  %4220 = vmatpush1.xpose.msra.mxu0 0.0
  %4221 = vmatprep.subr.mxu0 0.0
  %4222 = vmatpush1.xpose.msra.mxu0 0.0
  %4223 = vmatprep.subr.mxu0 0.0
  %4224 = vmatpush1.xpose.msra.mxu0 0.0
  %4225 = vmatprep.subr.mxu0 0.0
  %4226 = vmatpush1.xpose.msra.mxu0 0.0
  %4227 = vmatprep.subr.mxu0 0.0
  %4228 = vmatpush1.xpose.msra.mxu0 0.0
  %4229 = vmatprep.subr.mxu0 0.0
  %4230 = vmatpush1.xpose.msra.mxu0 0.0
  %4231 = vmatprep.subr.mxu0 0.0
  %4232 = vmatpush1.xpose.msra.mxu0 0.0
  %4233 = vmatprep.subr.mxu0 0.0
  %4234 = vmatpush1.xpose.msra.mxu0 0.0
  %4235 = vmatprep.subr.mxu0 0.0
  %4236 = vmatpush1.xpose.msra.mxu0 0.0
  %4237 = vmatprep.subr.mxu0 0.0
  %4238 = vmatpush1.xpose.msra.mxu0 0.0
  %4239 = vmatprep.subr.mxu0 0.0
  %4240 = vmatpush1.xpose.msra.mxu0 0.0
  %4241 = vmatprep.subr.mxu0 0.0
  %4242 = vmatpush1.xpose.msra.mxu0 0.0
  %4243 = vmatprep.subr.mxu0 0.0
  %4244 = vmatpush1.xpose.msra.mxu0 0.0
  %4245 = vmatprep.subr.mxu0 0.0
  %4246 = vmatpush1.xpose.msra.mxu0 0.0
  %4247 = vmatprep.subr.mxu0 0.0
  %4248 = vmatpush1.xpose.msra.mxu0 0.0
  %4249 = vmatprep.subr.mxu0 0.0
  %4250 = vmatpush1.xpose.msra.mxu0 0.0
  %4251 = vmatprep.subr.mxu0 0.0
  %4252 = vmatpush1.xpose.msra.mxu0 0.0
  %4253 = vmatprep.subr.mxu0 0.0
  %4254 = vmatpush1.xpose.msra.mxu0 0.0
  %4255 = vmatprep.subr.mxu0 0.0
  %4256 = vmatpush1.xpose.msra.mxu0 0.0
  %4257 = vmatprep.subr.mxu0 0.0
  %4258 = vmatpush1.xpose.msra.mxu0 0.0
  %4259 = vmatprep.subr.mxu0 0.0
  %4260 = vmatpush1.xpose.msra.mxu0 0.0
  %4261 = vmatprep.subr.mxu0 0.0
  %4262 = vmatpush1.xpose.msra.mxu0 0.0
  %4263 = vmatprep.subr.mxu0 0.0
  %4264 = vmatpush1.xpose.msra.mxu0 0.0
  %4265 = vmatprep.subr.mxu0 0.0
  %4266 = vmatpush1.xpose.msra.mxu0 0.0
  %4267 = vmatprep.subr.mxu0 0.0
  %4268 = vmatpush1.xpose.msra.mxu0 0.0
  %4269 = vmatprep.subr.mxu0 0.0
  %4270 = vmatpush1.xpose.msra.mxu0 0.0
  %4271 = vmatprep.mubr.f32.mxu0 %v4204
  %4272 = vmatmul.mubr.f32.gmra.mrb[0].mxu0 %v4200
  %v4273 = vpop.f32.mrb[0].mxu0
  %v4274 = vadd.f32 0.0, %v4273
  %v4275 = vpop.f32.mrb[0].mxu0
  %4276 = vdwg.mxu0
  %v4277 = vlaneseq
  %v4278 = vshrl.u32 %v4277, 7
  %v4279 = vsub.s32 0, %v4278
  %v4280 = vrot.slane %v4003, %v4279
  %v4281 = vlaneseq
  %v4282 = vshrl.u32 %v4281, 7
  %v4283 = vsub.s32 1, %v4282
  %v4284 = vrot.slane %v4003, %v4283
  %4287 = vmatprep.subr.mxu0 %v4018
  %4288 = vmatpush1.xpose.msra.mxu0 %v4017
  %4289 = vmatprep.subr.mxu0 %v4020
  %4290 = vmatpush1.xpose.msra.mxu0 %v4019
  %4291 = vmatprep.subr.mxu0 0.0
  %4292 = vmatpush1.xpose.msra.mxu0 0.0
  %4293 = vmatprep.subr.mxu0 0.0
  %4294 = vmatpush1.xpose.msra.mxu0 0.0
  %4295 = vmatprep.subr.mxu0 0.0
  %4296 = vmatpush1.xpose.msra.mxu0 0.0
  %4297 = vmatprep.subr.mxu0 0.0
  %4298 = vmatpush1.xpose.msra.mxu0 0.0
  %4299 = vmatprep.subr.mxu0 0.0
  %4300 = vmatpush1.xpose.msra.mxu0 0.0
  %4301 = vmatprep.subr.mxu0 0.0
  %4302 = vmatpush1.xpose.msra.mxu0 0.0
  %4303 = vmatprep.subr.mxu0 0.0
  %4304 = vmatpush1.xpose.msra.mxu0 0.0
  %4305 = vmatprep.subr.mxu0 0.0
  %4306 = vmatpush1.xpose.msra.mxu0 0.0
  %4307 = vmatprep.subr.mxu0 0.0
  %4308 = vmatpush1.xpose.msra.mxu0 0.0
  %4309 = vmatprep.subr.mxu0 0.0
  %4310 = vmatpush1.xpose.msra.mxu0 0.0
  %4311 = vmatprep.subr.mxu0 0.0
  %4312 = vmatpush1.xpose.msra.mxu0 0.0
  %4313 = vmatprep.subr.mxu0 0.0
  %4314 = vmatpush1.xpose.msra.mxu0 0.0
  %4315 = vmatprep.subr.mxu0 0.0
  %4316 = vmatpush1.xpose.msra.mxu0 0.0
  %4317 = vmatprep.subr.mxu0 0.0
  %4318 = vmatpush1.xpose.msra.mxu0 0.0
  %4319 = vmatprep.subr.mxu0 0.0
  %4320 = vmatpush1.xpose.msra.mxu0 0.0
  %4321 = vmatprep.subr.mxu0 0.0
  %4322 = vmatpush1.xpose.msra.mxu0 0.0
  %4323 = vmatprep.subr.mxu0 0.0
  %4324 = vmatpush1.xpose.msra.mxu0 0.0
  %4325 = vmatprep.subr.mxu0 0.0
  %4326 = vmatpush1.xpose.msra.mxu0 0.0
  %4327 = vmatprep.subr.mxu0 0.0
  %4328 = vmatpush1.xpose.msra.mxu0 0.0
  %4329 = vmatprep.subr.mxu0 0.0
  %4330 = vmatpush1.xpose.msra.mxu0 0.0
  %4331 = vmatprep.subr.mxu0 0.0
  %4332 = vmatpush1.xpose.msra.mxu0 0.0
  %4333 = vmatprep.subr.mxu0 0.0
  %4334 = vmatpush1.xpose.msra.mxu0 0.0
  %4335 = vmatprep.subr.mxu0 0.0
  %4336 = vmatpush1.xpose.msra.mxu0 0.0
  %4337 = vmatprep.subr.mxu0 0.0
  %4338 = vmatpush1.xpose.msra.mxu0 0.0
  %4339 = vmatprep.subr.mxu0 0.0
  %4340 = vmatpush1.xpose.msra.mxu0 0.0
  %4341 = vmatprep.subr.mxu0 0.0
  %4342 = vmatpush1.xpose.msra.mxu0 0.0
  %4343 = vmatprep.subr.mxu0 0.0
  %4344 = vmatpush1.xpose.msra.mxu0 0.0
  %4345 = vmatprep.subr.mxu0 0.0
  %4346 = vmatpush1.xpose.msra.mxu0 0.0
  %4347 = vmatprep.subr.mxu0 0.0
  %4348 = vmatpush1.xpose.msra.mxu0 0.0
  %4349 = vmatprep.subr.mxu0 0.0
  %4350 = vmatpush1.xpose.msra.mxu0 0.0
  %4351 = vmatprep.mubr.f32.mxu0 %v4284
  %4352 = vmatmul.mubr.f32.gmra.mrb[0].mxu0 %v4280
  %v4353 = vpop.f32.mrb[0].mxu0
  %v4354 = vadd.f32 0.0, %v4353
  %v4355 = vpop.f32.mrb[0].mxu0
  %4356 = vdwg.mxu0
  %v4357 = vlaneseq
  %v4358 = vshrl.u32 %v4357, 7
  %v4359 = vsub.s32 0, %v4358
  %v4360 = vrot.slane %v3986, %v4359
  %v4361 = vlaneseq
  %v4362 = vshrl.u32 %v4361, 7
  %v4363 = vsub.s32 1, %v4362
  %v4364 = vrot.slane %v3986, %v4363
  %4367 = vmatprep.subr.mxu0 %v4022
  %4368 = vmatpush1.xpose.msra.mxu0 %v4021
  %4369 = vmatprep.subr.mxu0 %v4024
  %4370 = vmatpush1.xpose.msra.mxu0 %v4023
  %4371 = vmatprep.subr.mxu0 0.0
  %4372 = vmatpush1.xpose.msra.mxu0 0.0
  %4373 = vmatprep.subr.mxu0 0.0
  %4374 = vmatpush1.xpose.msra.mxu0 0.0
  %4375 = vmatprep.subr.mxu0 0.0
  %4376 = vmatpush1.xpose.msra.mxu0 0.0
  %4377 = vmatprep.subr.mxu0 0.0
  %4378 = vmatpush1.xpose.msra.mxu0 0.0
  %4379 = vmatprep.subr.mxu0 0.0
  %4380 = vmatpush1.xpose.msra.mxu0 0.0
  %4381 = vmatprep.subr.mxu0 0.0
  %4382 = vmatpush1.xpose.msra.mxu0 0.0
  %4383 = vmatprep.subr.mxu0 0.0
  %4384 = vmatpush1.xpose.msra.mxu0 0.0
  %4385 = vmatprep.subr.mxu0 0.0
  %4386 = vmatpush1.xpose.msra.mxu0 0.0
  %4387 = vmatprep.subr.mxu0 0.0
  %4388 = vmatpush1.xpose.msra.mxu0 0.0
  %4389 = vmatprep.subr.mxu0 0.0
  %4390 = vmatpush1.xpose.msra.mxu0 0.0
  %4391 = vmatprep.subr.mxu0 0.0
  %4392 = vmatpush1.xpose.msra.mxu0 0.0
  %4393 = vmatprep.subr.mxu0 0.0
  %4394 = vmatpush1.xpose.msra.mxu0 0.0
  %4395 = vmatprep.subr.mxu0 0.0
  %4396 = vmatpush1.xpose.msra.mxu0 0.0
  %4397 = vmatprep.subr.mxu0 0.0
  %4398 = vmatpush1.xpose.msra.mxu0 0.0
  %4399 = vmatprep.subr.mxu0 0.0
  %4400 = vmatpush1.xpose.msra.mxu0 0.0
  %4401 = vmatprep.subr.mxu0 0.0
  %4402 = vmatpush1.xpose.msra.mxu0 0.0
  %4403 = vmatprep.subr.mxu0 0.0
  %4404 = vmatpush1.xpose.msra.mxu0 0.0
  %4405 = vmatprep.subr.mxu0 0.0
  %4406 = vmatpush1.xpose.msra.mxu0 0.0
  %4407 = vmatprep.subr.mxu0 0.0
  %4408 = vmatpush1.xpose.msra.mxu0 0.0
  %4409 = vmatprep.subr.mxu0 0.0
  %4410 = vmatpush1.xpose.msra.mxu0 0.0
  %4411 = vmatprep.subr.mxu0 0.0
  %4412 = vmatpush1.xpose.msra.mxu0 0.0
  %4413 = vmatprep.subr.mxu0 0.0
  %4414 = vmatpush1.xpose.msra.mxu0 0.0
  %4415 = vmatprep.subr.mxu0 0.0
  %4416 = vmatpush1.xpose.msra.mxu0 0.0
  %4417 = vmatprep.subr.mxu0 0.0
  %4418 = vmatpush1.xpose.msra.mxu0 0.0
  %4419 = vmatprep.subr.mxu0 0.0
  %4420 = vmatpush1.xpose.msra.mxu0 0.0
  %4421 = vmatprep.subr.mxu0 0.0
  %4422 = vmatpush1.xpose.msra.mxu0 0.0
  %4423 = vmatprep.subr.mxu0 0.0
  %4424 = vmatpush1.xpose.msra.mxu0 0.0
  %4425 = vmatprep.subr.mxu0 0.0
  %4426 = vmatpush1.xpose.msra.mxu0 0.0
  %4427 = vmatprep.subr.mxu0 0.0
  %4428 = vmatpush1.xpose.msra.mxu0 0.0
  %4429 = vmatprep.subr.mxu0 0.0
  %4430 = vmatpush1.xpose.msra.mxu0 0.0
  %4431 = vmatprep.mubr.f32.mxu0 %v4364
  %4432 = vmatmul.mubr.f32.gmra.mrb[0].mxu0 %v4360
  %v4433 = vpop.f32.mrb[0].mxu0
  %v4434 = vadd.f32 0.0, %v4433
  %v4435 = vpop.f32.mrb[0].mxu0
  %4436 = vdwg.mxu0
  %v4437 = vlaneseq
  %v4438 = vshrl.u32 %v4437, 7
  %v4439 = vsub.s32 0, %v4438
  %v4440 = vrot.slane %v4000, %v4439
  %v4441 = vlaneseq
  %v4442 = vshrl.u32 %v4441, 7
  %v4443 = vsub.s32 1, %v4442
  %v4444 = vrot.slane %v4000, %v4443
  %4447 = vmatprep.subr.mxu0 %v4026
  %4448 = vmatpush1.xpose.msra.mxu0 %v4025
  %4449 = vmatprep.subr.mxu0 %v4028
  %4450 = vmatpush1.xpose.msra.mxu0 %v4027
  %4451 = vmatprep.subr.mxu0 0.0
  %4452 = vmatpush1.xpose.msra.mxu0 0.0
  %4453 = vmatprep.subr.mxu0 0.0
  %4454 = vmatpush1.xpose.msra.mxu0 0.0
  %4455 = vmatprep.subr.mxu0 0.0
  %4456 = vmatpush1.xpose.msra.mxu0 0.0
  %4457 = vmatprep.subr.mxu0 0.0
  %4458 = vmatpush1.xpose.msra.mxu0 0.0
  %4459 = vmatprep.subr.mxu0 0.0
  %4460 = vmatpush1.xpose.msra.mxu0 0.0
  %4461 = vmatprep.subr.mxu0 0.0
  %4462 = vmatpush1.xpose.msra.mxu0 0.0
  %4463 = vmatprep.subr.mxu0 0.0
  %4464 = vmatpush1.xpose.msra.mxu0 0.0
  %4465 = vmatprep.subr.mxu0 0.0
  %4466 = vmatpush1.xpose.msra.mxu0 0.0
  %4467 = vmatprep.subr.mxu0 0.0
  %4468 = vmatpush1.xpose.msra.mxu0 0.0
  %4469 = vmatprep.subr.mxu0 0.0
  %4470 = vmatpush1.xpose.msra.mxu0 0.0
  %4471 = vmatprep.subr.mxu0 0.0
  %4472 = vmatpush1.xpose.msra.mxu0 0.0
  %4473 = vmatprep.subr.mxu0 0.0
  %4474 = vmatpush1.xpose.msra.mxu0 0.0
  %4475 = vmatprep.subr.mxu0 0.0
  %4476 = vmatpush1.xpose.msra.mxu0 0.0
  %4477 = vmatprep.subr.mxu0 0.0
  %4478 = vmatpush1.xpose.msra.mxu0 0.0
  %4479 = vmatprep.subr.mxu0 0.0
  %4480 = vmatpush1.xpose.msra.mxu0 0.0
  %4481 = vmatprep.subr.mxu0 0.0
  %4482 = vmatpush1.xpose.msra.mxu0 0.0
  %4483 = vmatprep.subr.mxu0 0.0
  %4484 = vmatpush1.xpose.msra.mxu0 0.0
  %4485 = vmatprep.subr.mxu0 0.0
  %4486 = vmatpush1.xpose.msra.mxu0 0.0
  %4487 = vmatprep.subr.mxu0 0.0
  %4488 = vmatpush1.xpose.msra.mxu0 0.0
  %4489 = vmatprep.subr.mxu0 0.0
  %4490 = vmatpush1.xpose.msra.mxu0 0.0
  %4491 = vmatprep.subr.mxu0 0.0
  %4492 = vmatpush1.xpose.msra.mxu0 0.0
  %4493 = vmatprep.subr.mxu0 0.0
  %4494 = vmatpush1.xpose.msra.mxu0 0.0
  %4495 = vmatprep.subr.mxu0 0.0
  %4496 = vmatpush1.xpose.msra.mxu0 0.0
  %4497 = vmatprep.subr.mxu0 0.0
  %4498 = vmatpush1.xpose.msra.mxu0 0.0
  %4499 = vmatprep.subr.mxu0 0.0
  %4500 = vmatpush1.xpose.msra.mxu0 0.0
  %4501 = vmatprep.subr.mxu0 0.0
  %4502 = vmatpush1.xpose.msra.mxu0 0.0
  %4503 = vmatprep.subr.mxu0 0.0
  %4504 = vmatpush1.xpose.msra.mxu0 0.0
  %4505 = vmatprep.subr.mxu0 0.0
  %4506 = vmatpush1.xpose.msra.mxu0 0.0
  %4507 = vmatprep.subr.mxu0 0.0
  %4508 = vmatpush1.xpose.msra.mxu0 0.0
  %4509 = vmatprep.subr.mxu0 0.0
  %4510 = vmatpush1.xpose.msra.mxu0 0.0
  %4511 = vmatprep.mubr.f32.mxu0 %v4444
  %4512 = vmatmul.mubr.f32.gmra.mrb[0].mxu0 %v4440
  %v4513 = vpop.f32.mrb[0].mxu0
  %v4514 = vadd.f32 0.0, %v4513
  %v4515 = vpop.f32.mrb[0].mxu0
  %4516 = vdwg.mxu0
  %v4517 = vlaneseq
  %v4518 = vshrl.u32 %v4517, 7
  %v4519 = vsub.s32 0, %v4518
  %v4520 = vrot.slane %v4002, %v4519
  %v4521 = vlaneseq
  %v4522 = vshrl.u32 %v4521, 7
  %v4523 = vsub.s32 1, %v4522
  %v4524 = vrot.slane %v4002, %v4523
  %4527 = vmatprep.subr.mxu0 %v4030
  %4528 = vmatpush1.xpose.msra.mxu0 %v4029
  %4529 = vmatprep.subr.mxu0 %v4032
  %4530 = vmatpush1.xpose.msra.mxu0 %v4031
  %4531 = vmatprep.subr.mxu0 0.0
  %4532 = vmatpush1.xpose.msra.mxu0 0.0
  %4533 = vmatprep.subr.mxu0 0.0
  %4534 = vmatpush1.xpose.msra.mxu0 0.0
  %4535 = vmatprep.subr.mxu0 0.0
  %4536 = vmatpush1.xpose.msra.mxu0 0.0
  %4537 = vmatprep.subr.mxu0 0.0
  %4538 = vmatpush1.xpose.msra.mxu0 0.0
  %4539 = vmatprep.subr.mxu0 0.0
  %4540 = vmatpush1.xpose.msra.mxu0 0.0
  %4541 = vmatprep.subr.mxu0 0.0
  %4542 = vmatpush1.xpose.msra.mxu0 0.0
  %4543 = vmatprep.subr.mxu0 0.0
  %4544 = vmatpush1.xpose.msra.mxu0 0.0
  %4545 = vmatprep.subr.mxu0 0.0
  %4546 = vmatpush1.xpose.msra.mxu0 0.0
  %4547 = vmatprep.subr.mxu0 0.0
  %4548 = vmatpush1.xpose.msra.mxu0 0.0
  %4549 = vmatprep.subr.mxu0 0.0
  %4550 = vmatpush1.xpose.msra.mxu0 0.0
  %4551 = vmatprep.subr.mxu0 0.0
  %4552 = vmatpush1.xpose.msra.mxu0 0.0
  %4553 = vmatprep.subr.mxu0 0.0
  %4554 = vmatpush1.xpose.msra.mxu0 0.0
  %4555 = vmatprep.subr.mxu0 0.0
  %4556 = vmatpush1.xpose.msra.mxu0 0.0
  %4557 = vmatprep.subr.mxu0 0.0
  %4558 = vmatpush1.xpose.msra.mxu0 0.0
  %4559 = vmatprep.subr.mxu0 0.0
  %4560 = vmatpush1.xpose.msra.mxu0 0.0
  %4561 = vmatprep.subr.mxu0 0.0
  %4562 = vmatpush1.xpose.msra.mxu0 0.0
  %4563 = vmatprep.subr.mxu0 0.0
  %4564 = vmatpush1.xpose.msra.mxu0 0.0
  %4565 = vmatprep.subr.mxu0 0.0
  %4566 = vmatpush1.xpose.msra.mxu0 0.0
  %4567 = vmatprep.subr.mxu0 0.0
  %4568 = vmatpush1.xpose.msra.mxu0 0.0
  %4569 = vmatprep.subr.mxu0 0.0
  %4570 = vmatpush1.xpose.msra.mxu0 0.0
  %4571 = vmatprep.subr.mxu0 0.0
  %4572 = vmatpush1.xpose.msra.mxu0 0.0
  %4573 = vmatprep.subr.mxu0 0.0
  %4574 = vmatpush1.xpose.msra.mxu0 0.0
  %4575 = vmatprep.subr.mxu0 0.0
  %4576 = vmatpush1.xpose.msra.mxu0 0.0
  %4577 = vmatprep.subr.mxu0 0.0
  %4578 = vmatpush1.xpose.msra.mxu0 0.0
  %4579 = vmatprep.subr.mxu0 0.0
  %4580 = vmatpush1.xpose.msra.mxu0 0.0
  %4581 = vmatprep.subr.mxu0 0.0
  %4582 = vmatpush1.xpose.msra.mxu0 0.0
  %4583 = vmatprep.subr.mxu0 0.0
  %4584 = vmatpush1.xpose.msra.mxu0 0.0
  %4585 = vmatprep.subr.mxu0 0.0
  %4586 = vmatpush1.xpose.msra.mxu0 0.0
  %4587 = vmatprep.subr.mxu0 0.0
  %4588 = vmatpush1.xpose.msra.mxu0 0.0
  %4589 = vmatprep.subr.mxu0 0.0
  %4590 = vmatpush1.xpose.msra.mxu0 0.0
  %4591 = vmatprep.mubr.f32.mxu0 %v4524
  %4592 = vmatmul.mubr.f32.gmra.mrb[0].mxu0 %v4520
  %v4593 = vpop.f32.mrb[0].mxu0
  %v4594 = vadd.f32 0.0, %v4593
  %v4595 = vpop.f32.mrb[0].mxu0
  %4596 = vdwg.mxu0
  %v4597 = vlaneseq
  %v4598 = vshrl.u32 %v4597, 7
  %v4599 = vsub.s32 0, %v4598
  %v4600 = vrot.slane %v4004, %v4599
  %v4601 = vlaneseq
  %v4602 = vshrl.u32 %v4601, 7
  %v4603 = vsub.s32 1, %v4602
  %v4604 = vrot.slane %v4004, %v4603
  %4607 = vmatprep.subr.mxu0 %v4034
  %4608 = vmatpush1.xpose.msra.mxu0 %v4033
  %4609 = vmatprep.subr.mxu0 %v4036
  %4610 = vmatpush1.xpose.msra.mxu0 %v4035
  %4611 = vmatprep.subr.mxu0 0.0
  %4612 = vmatpush1.xpose.msra.mxu0 0.0
  %4613 = vmatprep.subr.mxu0 0.0
  %4614 = vmatpush1.xpose.msra.mxu0 0.0
  %4615 = vmatprep.subr.mxu0 0.0
  %4616 = vmatpush1.xpose.msra.mxu0 0.0
  %4617 = vmatprep.subr.mxu0 0.0
  %4618 = vmatpush1.xpose.msra.mxu0 0.0
  %4619 = vmatprep.subr.mxu0 0.0
  %4620 = vmatpush1.xpose.msra.mxu0 0.0
  %4621 = vmatprep.subr.mxu0 0.0
  %4622 = vmatpush1.xpose.msra.mxu0 0.0
  %4623 = vmatprep.subr.mxu0 0.0
  %4624 = vmatpush1.xpose.msra.mxu0 0.0
  %4625 = vmatprep.subr.mxu0 0.0
  %4626 = vmatpush1.xpose.msra.mxu0 0.0
  %4627 = vmatprep.subr.mxu0 0.0
  %4628 = vmatpush1.xpose.msra.mxu0 0.0
  %4629 = vmatprep.subr.mxu0 0.0
  %4630 = vmatpush1.xpose.msra.mxu0 0.0
  %4631 = vmatprep.subr.mxu0 0.0
  %4632 = vmatpush1.xpose.msra.mxu0 0.0
  %4633 = vmatprep.subr.mxu0 0.0
  %4634 = vmatpush1.xpose.msra.mxu0 0.0
  %4635 = vmatprep.subr.mxu0 0.0
  %4636 = vmatpush1.xpose.msra.mxu0 0.0
  %4637 = vmatprep.subr.mxu0 0.0
  %4638 = vmatpush1.xpose.msra.mxu0 0.0
  %4639 = vmatprep.subr.mxu0 0.0
  %4640 = vmatpush1.xpose.msra.mxu0 0.0
  %4641 = vmatprep.subr.mxu0 0.0
  %4642 = vmatpush1.xpose.msra.mxu0 0.0
  %4643 = vmatprep.subr.mxu0 0.0
  %4644 = vmatpush1.xpose.msra.mxu0 0.0
  %4645 = vmatprep.subr.mxu0 0.0
  %4646 = vmatpush1.xpose.msra.mxu0 0.0
  %4647 = vmatprep.subr.mxu0 0.0
  %4648 = vmatpush1.xpose.msra.mxu0 0.0
  %4649 = vmatprep.subr.mxu0 0.0
  %4650 = vmatpush1.xpose.msra.mxu0 0.0
  %4651 = vmatprep.subr.mxu0 0.0
  %4652 = vmatpush1.xpose.msra.mxu0 0.0
  %4653 = vmatprep.subr.mxu0 0.0
  %4654 = vmatpush1.xpose.msra.mxu0 0.0
  %4655 = vmatprep.subr.mxu0 0.0
  %4656 = vmatpush1.xpose.msra.mxu0 0.0
  %4657 = vmatprep.subr.mxu0 0.0
  %4658 = vmatpush1.xpose.msra.mxu0 0.0
  %4659 = vmatprep.subr.mxu0 0.0
  %4660 = vmatpush1.xpose.msra.mxu0 0.0
  %4661 = vmatprep.subr.mxu0 0.0
  %4662 = vmatpush1.xpose.msra.mxu0 0.0
  %4663 = vmatprep.subr.mxu0 0.0
  %4664 = vmatpush1.xpose.msra.mxu0 0.0
  %4665 = vmatprep.subr.mxu0 0.0
  %4666 = vmatpush1.xpose.msra.mxu0 0.0
  %4667 = vmatprep.subr.mxu0 0.0
  %4668 = vmatpush1.xpose.msra.mxu0 0.0
  %4669 = vmatprep.subr.mxu0 0.0
  %4670 = vmatpush1.xpose.msra.mxu0 0.0
  %4671 = vmatprep.mubr.f32.mxu0 %v4604
  %4672 = vmatmul.mubr.f32.gmra.mrb[0].mxu0 %v4600
  %v4673 = vpop.f32.mrb[0].mxu0
  %v4674 = vadd.f32 0.0, %v4673
  %v4675 = vpop.f32.mrb[0].mxu0
  %4676 = vdwg.mxu0
  %v4685 = vrot.slane %v4194, 7
  %v4686 = vsel %vm962, %v4685, %v4114
  %v4687 = vrot.slane %v4274, 6
  %v4688 = vsel %vm965, %v4687, %v4686
  %v4689 = vrot.slane %v4354, 5
  %v4690 = vsel %vm968, %v4689, %v4688
  %v4691 = vrot.slane %v4434, 4
  %v4692 = vsel %vm971, %v4691, %v4690
  %v4693 = vrot.slane %v4514, 3
  %v4694 = vsel %vm974, %v4693, %v4692
  %v4695 = vrot.slane %v4594, 2
  %v4696 = vsel %vm977, %v4695, %v4694
  %v4697 = vrot.slane %v4674, 1
  %v4698 = vsel %vm980, %v4697, %v4696
  %v4700 = vsel %vm983, %v4698, 0.0
  %v4701 = vrot.slane %v4700, 4
  %v4702 = vadd.f32 %v4700, %v4701
  %v4703 = vrot.slane %v4702, 2
  %v4704 = vadd.f32 %v4702, %v4703
  %v4705 = vrot.slane %v4704, 1
  %v4706 = vadd.f32 %v4704, %v4705
  %v4707 = vadd.f32 %v4706, %v25
  %s4708 = scalar_lea.vmem %s0, 40
  %v4709 = vld [vmem:[%s4708] sm:$0xff]
  %v4711 = vcombine.high %v4709, %v4709
  %4713 = vrot.lane.b32.xlu0 %v4709, 17
  %v4714 = vpop.permute.xlu0 %4713
  %4715 = vrot.lane.b32.xlu0 %v4711, 17
  %v4716 = vpop.permute.xlu0 %4715
  %v4717 = vsel %vm46, %v4714, %v4716
  %v4718 = vsel %vm46, %v4716, %v4714
  %4719 = vrot.lane.b32.xlu0 %v4709, 16
  %v4720 = vpop.permute.xlu0 %4719
  %4721 = vrot.lane.b32.xlu0 %v4711, 16
  %v4722 = vpop.permute.xlu0 %4721
  %v4723 = vsel %vm53, %v4720, %v4722
  %v4724 = vsel %vm53, %v4722, %v4720
  %4725 = vrot.lane.b32.xlu0 %v4709, 15
  %v4726 = vpop.permute.xlu0 %4725
  %4727 = vrot.lane.b32.xlu0 %v4711, 15
  %v4728 = vpop.permute.xlu0 %4727
  %v4729 = vsel %vm60, %v4726, %v4728
  %v4730 = vsel %vm60, %v4728, %v4726
  %4731 = vrot.lane.b32.xlu0 %v4709, 1
  %v4732 = vpop.permute.xlu0 %4731
  %4733 = vrot.lane.b32.xlu0 %v4711, 1
  %v4734 = vpop.permute.xlu0 %4733
  %v4735 = vsel %vm67, %v4732, %v4734
  %v4736 = vsel %vm67, %v4734, %v4732
  %4737 = vrot.lane.b32.xlu0 %v4709, 127
  %v4738 = vpop.permute.xlu0 %4737
  %4739 = vrot.lane.b32.xlu0 %v4711, 127
  %v4740 = vpop.permute.xlu0 %4739
  %v4741 = vsel %vm74, %v4738, %v4740
  %v4742 = vsel %vm74, %v4740, %v4738
  %4743 = vrot.lane.b32.xlu0 %v4709, 113
  %v4744 = vpop.permute.xlu0 %4743
  %4745 = vrot.lane.b32.xlu0 %v4711, 113
  %v4746 = vpop.permute.xlu0 %4745
  %v4747 = vsel %vm81, %v4744, %v4746
  %v4748 = vsel %vm81, %v4746, %v4744
  %4749 = vrot.lane.b32.xlu0 %v4709, 112
  %v4750 = vpop.permute.xlu0 %4749
  %4751 = vrot.lane.b32.xlu0 %v4711, 112
  %v4752 = vpop.permute.xlu0 %4751
  %v4753 = vsel %vm88, %v4750, %v4752
  %v4754 = vsel %vm88, %v4752, %v4750
  %4755 = vrot.lane.b32.xlu0 %v4709, 111
  %v4756 = vpop.permute.xlu0 %4755
  %4757 = vrot.lane.b32.xlu0 %v4711, 111
  %v4758 = vpop.permute.xlu0 %4757
  %v4759 = vsel %vm95, %v4756, %v4758
  %v4760 = vsel %vm95, %v4758, %v4756
  %v4763 = vrot.slane %v4724, 4
  %v4764 = vrot.slane %v4723, 4
  %v4769 = vrot.slane %v4736, 4
  %v4770 = vrot.slane %v4735, 4
  %v4775 = vrot.slane %v4741, 4
  %v4776 = vrot.slane %v4742, 4
  %v4781 = vrot.slane %v4753, 4
  %v4782 = vrot.slane %v4754, 4
  %v4785 = vsel %vm122, %v4718, %v4763
  %v4786 = vsel %vm122, %v4717, %v4764
  %v4787 = vsel %vm122, %v4730, %v4769
  %v4788 = vsel %vm122, %v4729, %v4770
  %v4789 = vsel %vm122, %v4709, %v4775
  %v4790 = vsel %vm122, %v4711, %v4776
  %v4791 = vsel %vm122, %v4747, %v4781
  %v4792 = vsel %vm122, %v4748, %v4782
  %v4793 = vmul.f32 %v4785, %v26
  %v4794 = vmul.f32 %v4786, %v27
  %v4795 = vmul.f32 %v4787, %v28
  %v4796 = vmul.f32 %v4788, %v29
  %v4797 = vmul.f32 %v4789, %v30
  %v4798 = vmul.f32 %v4790, %v31
  %v4799 = vmul.f32 %v4791, %v32
  %v4800 = vmul.f32 %v4792, %v33
  %v4801 = vmul.f32 %v4759, %v34
  %v4802 = vmul.f32 %v4760, %v35
  %v4804 = vsel %vm122, %v4801, 0
  %v4807 = vsel %vm122, %v4802, 0
  %4809 = vmatprep.subr.mxu0 %v4794
  %4810 = vmatpush1.msra.mxu0 %v4793
  %4811 = vmatprep.subr.mxu0 %v4796
  %4812 = vmatpush1.msra.mxu0 %v4795
  %4813 = vmatprep.subr.mxu0 %v4798
  %4814 = vmatpush1.msra.mxu0 %v4797
  %4815 = vmatprep.subr.mxu0 %v4800
  %4816 = vmatpush1.msra.mxu0 %v4799
  %4817 = vmatprep.subr.mxu0 %v4807
  %4818 = vmatpush1.msra.mxu0 %v4804
  %4819 = vmatprep.subr.mxu0 0.0
  %4820 = vmatpush1.msra.mxu0 0.0
  %4821 = vmatprep.subr.mxu0 0.0
  %4822 = vmatpush1.msra.mxu0 0.0
  %4823 = vmatprep.subr.mxu0 0.0
  %4824 = vmatpush1.msra.mxu0 0.0
  %4825 = vmatprep.subr.mxu0 0.0
  %4826 = vmatpush1.msra.mxu0 0.0
  %4827 = vmatprep.subr.mxu0 0.0
  %4828 = vmatpush1.msra.mxu0 0.0
  %4829 = vmatprep.subr.mxu0 0.0
  %4830 = vmatpush1.msra.mxu0 0.0
  %4831 = vmatprep.subr.mxu0 0.0
  %4832 = vmatpush1.msra.mxu0 0.0
  %4833 = vmatprep.subr.mxu0 0.0
  %4834 = vmatpush1.msra.mxu0 0.0
  %4835 = vmatprep.subr.mxu0 0.0
  %4836 = vmatpush1.msra.mxu0 0.0
  %4837 = vmatprep.subr.mxu0 0.0
  %4838 = vmatpush1.msra.mxu0 0.0
  %4839 = vmatprep.subr.mxu0 0.0
  %4840 = vmatpush1.msra.mxu0 0.0
  %4841 = vmatprep.subr.mxu0 0.0
  %4842 = vmatpush1.msra.mxu0 0.0
  %4843 = vmatprep.subr.mxu0 0.0
  %4844 = vmatpush1.msra.mxu0 0.0
  %4845 = vmatprep.subr.mxu0 0.0
  %4846 = vmatpush1.msra.mxu0 0.0
  %4847 = vmatprep.subr.mxu0 0.0
  %4848 = vmatpush1.msra.mxu0 0.0
  %4849 = vmatprep.subr.mxu0 0.0
  %4850 = vmatpush1.msra.mxu0 0.0
  %4851 = vmatprep.subr.mxu0 0.0
  %4852 = vmatpush1.msra.mxu0 0.0
  %4853 = vmatprep.subr.mxu0 0.0
  %4854 = vmatpush1.msra.mxu0 0.0
  %4855 = vmatprep.subr.mxu0 0.0
  %4856 = vmatpush1.msra.mxu0 0.0
  %4857 = vmatprep.subr.mxu0 0.0
  %4858 = vmatpush1.msra.mxu0 0.0
  %4859 = vmatprep.subr.mxu0 0.0
  %4860 = vmatpush1.msra.mxu0 0.0
  %4861 = vmatprep.subr.mxu0 0.0
  %4862 = vmatpush1.msra.mxu0 0.0
  %4863 = vmatprep.subr.mxu0 0.0
  %4864 = vmatpush1.msra.mxu0 0.0
  %4865 = vmatprep.subr.mxu0 0.0
  %4866 = vmatpush1.msra.mxu0 0.0
  %4867 = vmatprep.subr.mxu0 0.0
  %4868 = vmatpush1.msra.mxu0 0.0
  %4869 = vmatprep.subr.mxu0 0.0
  %4870 = vmatpush1.msra.mxu0 0.0
  %4871 = vmatprep.subr.mxu0 0.0
  %4872 = vmatpush1.msra.mxu0 0.0
  %4873 = vmatprep.mubr.f32.mxu0 0.0
  %4874 = vmatmul.mubr.f32.gmra.mrb[0].mxu0 %v148
  %v4875 = vpop.f32.mrb[0].mxu0
  %v4876 = vadd.f32 %v144, %v4875
  %v4877 = vpop.f32.mrb[0].mxu0
  %v4878 = vadd.f32 %v144, %v4877
  %4879 = vdwg.mxu0
  %v4880 = vmax.f32 %v4876, 0.0
  %v4881 = vmax.f32 %v4878, 0.0
  %v4884 = vcombine.low %v4880, %v4881
  %v4885 = vcombine.high %v4880, %v4881
  %v4887 = vunpack.c.l.s4 1966171168
  %v4888 = vunpack.c.0.s8 %v4887
  %v4889 = vlaneseq
  %v4890 = vshrl.u32 %v4889, 7
  %v4891 = vsub.s32 %v4888, %v4890
  %v4892 = vrot.slane %v4884, %v4891
  %v4894 = vunpack.c.l.s4 1966171168
  %v4895 = vunpack.c.0.s8 %v4894
  %v4896 = vlaneseq
  %v4897 = vshrl.u32 %v4896, 7
  %v4898 = vsub.s32 %v4895, %v4897
  %v4899 = vrot.slane %v4885, %v4898
  %v4900 = vcombine.high %v4892, %v4892
  %v4901 = vcombine.high %v4899, %v4899
  %v4903 = vunpack.c.l.s4 1966171168
  %v4904 = vunpack.c.0.s8 %v4903
  %v4905 = vlaneseq
  %v4906 = vshrl.u32 %v4905, 7
  %v4907 = vsub.s32 %v4904, %v4906
  %v4908 = vrot.slane %v4892, %v4907
  %v4910 = vunpack.c.l.s4 1966171168
  %v4911 = vunpack.c.0.s8 %v4910
  %v4912 = vlaneseq
  %v4913 = vshrl.u32 %v4912, 7
  %v4914 = vsub.s32 %v4911, %v4913
  %v4915 = vrot.slane %v4899, %v4914
  %v4917 = vunpack.c.l.s4 1966171168
  %v4918 = vunpack.c.0.s8 %v4917
  %v4919 = vlaneseq
  %v4920 = vshrl.u32 %v4919, 7
  %v4921 = vsub.s32 %v4918, %v4920
  %v4922 = vrot.slane %v4900, %v4921
  %v4924 = vunpack.c.l.s4 1966171168
  %v4925 = vunpack.c.0.s8 %v4924
  %v4926 = vlaneseq
  %v4927 = vshrl.u32 %v4926, 7
  %v4928 = vsub.s32 %v4925, %v4927
  %v4929 = vrot.slane %v4901, %v4928
  %v4930 = vcombine.high %v4908, %v4908
  %v4931 = vcombine.high %v4915, %v4915
  %v4932 = vcombine.high %v4922, %v4922
  %v4933 = vcombine.high %v4929, %v4929
  %v4934 = vld [vmem:[%s3] sm:$0xff]
  %v4935 = vld [vmem:[%s3 + $0x8] sm:$0xff]
  %v4936 = vld [vmem:[%s3 + $0x10] sm:$0x3]
  %v4937 = vld [vmem:[%s3 + $0x18] sm:$0x3]
  %v4938 = vld [vmem:[%s3 + $0x20] sm:$0xff]
  %v4939 = vld [vmem:[%s3 + $0x28] sm:$0xff]
  %v4940 = vld [vmem:[%s3 + $0x30] sm:$0x3]
  %v4941 = vld [vmem:[%s3 + $0x38] sm:$0x3]
  %v4942 = vld [vmem:[%s3 + $0x40] sm:$0xff]
  %v4943 = vld [vmem:[%s3 + $0x48] sm:$0xff]
  %v4944 = vld [vmem:[%s3 + $0x50] sm:$0x3]
  %v4945 = vld [vmem:[%s3 + $0x58] sm:$0x3]
  %v4946 = vld [vmem:[%s3 + $0x60] sm:$0xff]
  %v4947 = vld [vmem:[%s3 + $0x68] sm:$0xff]
  %v4948 = vld [vmem:[%s3 + $0x70] sm:$0x3]
  %v4949 = vld [vmem:[%s3 + $0x78] sm:$0x3]
  %v4950 = vld [vmem:[%s3 + $0x80] sm:$0xff]
  %v4951 = vld [vmem:[%s3 + $0x88] sm:$0xff]
  %v4952 = vld [vmem:[%s3 + $0x90] sm:$0x3]
  %v4953 = vld [vmem:[%s3 + $0x98] sm:$0x3]
  %v4954 = vld [vmem:[%s3 + $0xa0] sm:$0xff]
  %v4955 = vld [vmem:[%s3 + $0xa8] sm:$0xff]
  %v4956 = vld [vmem:[%s3 + $0xb0] sm:$0x3]
  %v4957 = vld [vmem:[%s3 + $0xb8] sm:$0x3]
  %v4958 = vld [vmem:[%s3 + $0xc0] sm:$0xff]
  %v4959 = vld [vmem:[%s3 + $0xc8] sm:$0xff]
  %v4960 = vld [vmem:[%s3 + $0xd0] sm:$0x3]
  %v4961 = vld [vmem:[%s3 + $0xd8] sm:$0x3]
  %v4962 = vld [vmem:[%s3 + $0xe0] sm:$0xff]
  %v4963 = vld [vmem:[%s3 + $0xe8] sm:$0xff]
  %v4964 = vld [vmem:[%s3 + $0xf0] sm:$0x3]
  %v4965 = vld [vmem:[%s3 + $0xf8] sm:$0x3]
  %v4966 = vlaneseq
  %v4967 = vshrl.u32 %v4966, 7
  %v4968 = vsub.s32 0, %v4967
  %v4969 = vrot.slane %v4908, %v4968
  %v4970 = vlaneseq
  %v4971 = vshrl.u32 %v4970, 7
  %v4972 = vsub.s32 1, %v4971
  %v4973 = vrot.slane %v4908, %v4972
  %4976 = vmatprep.subr.mxu0 %v4935
  %4977 = vmatpush1.xpose.msra.mxu0 %v4934
  %4978 = vmatprep.subr.mxu0 %v4937
  %4979 = vmatpush1.xpose.msra.mxu0 %v4936
  %4980 = vmatprep.subr.mxu0 0.0
  %4981 = vmatpush1.xpose.msra.mxu0 0.0
  %4982 = vmatprep.subr.mxu0 0.0
  %4983 = vmatpush1.xpose.msra.mxu0 0.0
  %4984 = vmatprep.subr.mxu0 0.0
  %4985 = vmatpush1.xpose.msra.mxu0 0.0
  %4986 = vmatprep.subr.mxu0 0.0
  %4987 = vmatpush1.xpose.msra.mxu0 0.0
  %4988 = vmatprep.subr.mxu0 0.0
  %4989 = vmatpush1.xpose.msra.mxu0 0.0
  %4990 = vmatprep.subr.mxu0 0.0
  %4991 = vmatpush1.xpose.msra.mxu0 0.0
  %4992 = vmatprep.subr.mxu0 0.0
  %4993 = vmatpush1.xpose.msra.mxu0 0.0
  %4994 = vmatprep.subr.mxu0 0.0
  %4995 = vmatpush1.xpose.msra.mxu0 0.0
  %4996 = vmatprep.subr.mxu0 0.0
  %4997 = vmatpush1.xpose.msra.mxu0 0.0
  %4998 = vmatprep.subr.mxu0 0.0
  %4999 = vmatpush1.xpose.msra.mxu0 0.0
  %5000 = vmatprep.subr.mxu0 0.0
  %5001 = vmatpush1.xpose.msra.mxu0 0.0
  %5002 = vmatprep.subr.mxu0 0.0
  %5003 = vmatpush1.xpose.msra.mxu0 0.0
  %5004 = vmatprep.subr.mxu0 0.0
  %5005 = vmatpush1.xpose.msra.mxu0 0.0
  %5006 = vmatprep.subr.mxu0 0.0
  %5007 = vmatpush1.xpose.msra.mxu0 0.0
  %5008 = vmatprep.subr.mxu0 0.0
  %5009 = vmatpush1.xpose.msra.mxu0 0.0
  %5010 = vmatprep.subr.mxu0 0.0
  %5011 = vmatpush1.xpose.msra.mxu0 0.0
  %5012 = vmatprep.subr.mxu0 0.0
  %5013 = vmatpush1.xpose.msra.mxu0 0.0
  %5014 = vmatprep.subr.mxu0 0.0
  %5015 = vmatpush1.xpose.msra.mxu0 0.0
  %5016 = vmatprep.subr.mxu0 0.0
  %5017 = vmatpush1.xpose.msra.mxu0 0.0
  %5018 = vmatprep.subr.mxu0 0.0
  %5019 = vmatpush1.xpose.msra.mxu0 0.0
  %5020 = vmatprep.subr.mxu0 0.0
  %5021 = vmatpush1.xpose.msra.mxu0 0.0
  %5022 = vmatprep.subr.mxu0 0.0
  %5023 = vmatpush1.xpose.msra.mxu0 0.0
  %5024 = vmatprep.subr.mxu0 0.0
  %5025 = vmatpush1.xpose.msra.mxu0 0.0
  %5026 = vmatprep.subr.mxu0 0.0
  %5027 = vmatpush1.xpose.msra.mxu0 0.0
  %5028 = vmatprep.subr.mxu0 0.0
  %5029 = vmatpush1.xpose.msra.mxu0 0.0
  %5030 = vmatprep.subr.mxu0 0.0
  %5031 = vmatpush1.xpose.msra.mxu0 0.0
  %5032 = vmatprep.subr.mxu0 0.0
  %5033 = vmatpush1.xpose.msra.mxu0 0.0
  %5034 = vmatprep.subr.mxu0 0.0
  %5035 = vmatpush1.xpose.msra.mxu0 0.0
  %5036 = vmatprep.subr.mxu0 0.0
  %5037 = vmatpush1.xpose.msra.mxu0 0.0
  %5038 = vmatprep.subr.mxu0 0.0
  %5039 = vmatpush1.xpose.msra.mxu0 0.0
  %5040 = vmatprep.mubr.f32.mxu0 %v4973
  %5041 = vmatmul.mubr.f32.gmra.mrb[0].mxu0 %v4969
  %v5042 = vpop.f32.mrb[0].mxu0
  %v5043 = vadd.f32 0.0, %v5042
  %v5044 = vpop.f32.mrb[0].mxu0
  %5045 = vdwg.mxu0
  %v5046 = vlaneseq
  %v5047 = vshrl.u32 %v5046, 7
  %v5048 = vsub.s32 0, %v5047
  %v5049 = vrot.slane %v4922, %v5048
  %v5050 = vlaneseq
  %v5051 = vshrl.u32 %v5050, 7
  %v5052 = vsub.s32 1, %v5051
  %v5053 = vrot.slane %v4922, %v5052
  %5056 = vmatprep.subr.mxu0 %v4939
  %5057 = vmatpush1.xpose.msra.mxu0 %v4938
  %5058 = vmatprep.subr.mxu0 %v4941
  %5059 = vmatpush1.xpose.msra.mxu0 %v4940
  %5060 = vmatprep.subr.mxu0 0.0
  %5061 = vmatpush1.xpose.msra.mxu0 0.0
  %5062 = vmatprep.subr.mxu0 0.0
  %5063 = vmatpush1.xpose.msra.mxu0 0.0
  %5064 = vmatprep.subr.mxu0 0.0
  %5065 = vmatpush1.xpose.msra.mxu0 0.0
  %5066 = vmatprep.subr.mxu0 0.0
  %5067 = vmatpush1.xpose.msra.mxu0 0.0
  %5068 = vmatprep.subr.mxu0 0.0
  %5069 = vmatpush1.xpose.msra.mxu0 0.0
  %5070 = vmatprep.subr.mxu0 0.0
  %5071 = vmatpush1.xpose.msra.mxu0 0.0
  %5072 = vmatprep.subr.mxu0 0.0
  %5073 = vmatpush1.xpose.msra.mxu0 0.0
  %5074 = vmatprep.subr.mxu0 0.0
  %5075 = vmatpush1.xpose.msra.mxu0 0.0
  %5076 = vmatprep.subr.mxu0 0.0
  %5077 = vmatpush1.xpose.msra.mxu0 0.0
  %5078 = vmatprep.subr.mxu0 0.0
  %5079 = vmatpush1.xpose.msra.mxu0 0.0
  %5080 = vmatprep.subr.mxu0 0.0
  %5081 = vmatpush1.xpose.msra.mxu0 0.0
  %5082 = vmatprep.subr.mxu0 0.0
  %5083 = vmatpush1.xpose.msra.mxu0 0.0
  %5084 = vmatprep.subr.mxu0 0.0
  %5085 = vmatpush1.xpose.msra.mxu0 0.0
  %5086 = vmatprep.subr.mxu0 0.0
  %5087 = vmatpush1.xpose.msra.mxu0 0.0
  %5088 = vmatprep.subr.mxu0 0.0
  %5089 = vmatpush1.xpose.msra.mxu0 0.0
  %5090 = vmatprep.subr.mxu0 0.0
  %5091 = vmatpush1.xpose.msra.mxu0 0.0
  %5092 = vmatprep.subr.mxu0 0.0
  %5093 = vmatpush1.xpose.msra.mxu0 0.0
  %5094 = vmatprep.subr.mxu0 0.0
  %5095 = vmatpush1.xpose.msra.mxu0 0.0
  %5096 = vmatprep.subr.mxu0 0.0
  %5097 = vmatpush1.xpose.msra.mxu0 0.0
  %5098 = vmatprep.subr.mxu0 0.0
  %5099 = vmatpush1.xpose.msra.mxu0 0.0
  %5100 = vmatprep.subr.mxu0 0.0
  %5101 = vmatpush1.xpose.msra.mxu0 0.0
  %5102 = vmatprep.subr.mxu0 0.0
  %5103 = vmatpush1.xpose.msra.mxu0 0.0
  %5104 = vmatprep.subr.mxu0 0.0
  %5105 = vmatpush1.xpose.msra.mxu0 0.0
  %5106 = vmatprep.subr.mxu0 0.0
  %5107 = vmatpush1.xpose.msra.mxu0 0.0
  %5108 = vmatprep.subr.mxu0 0.0
  %5109 = vmatpush1.xpose.msra.mxu0 0.0
  %5110 = vmatprep.subr.mxu0 0.0
  %5111 = vmatpush1.xpose.msra.mxu0 0.0
  %5112 = vmatprep.subr.mxu0 0.0
  %5113 = vmatpush1.xpose.msra.mxu0 0.0
  %5114 = vmatprep.subr.mxu0 0.0
  %5115 = vmatpush1.xpose.msra.mxu0 0.0
  %5116 = vmatprep.subr.mxu0 0.0
  %5117 = vmatpush1.xpose.msra.mxu0 0.0
  %5118 = vmatprep.subr.mxu0 0.0
  %5119 = vmatpush1.xpose.msra.mxu0 0.0
  %5120 = vmatprep.mubr.f32.mxu0 %v5053
  %5121 = vmatmul.mubr.f32.gmra.mrb[0].mxu0 %v5049
  %v5122 = vpop.f32.mrb[0].mxu0
  %v5123 = vadd.f32 0.0, %v5122
  %v5124 = vpop.f32.mrb[0].mxu0
  %5125 = vdwg.mxu0
  %v5126 = vlaneseq
  %v5127 = vshrl.u32 %v5126, 7
  %v5128 = vsub.s32 0, %v5127
  %v5129 = vrot.slane %v4930, %v5128
  %v5130 = vlaneseq
  %v5131 = vshrl.u32 %v5130, 7
  %v5132 = vsub.s32 1, %v5131
  %v5133 = vrot.slane %v4930, %v5132
  %5136 = vmatprep.subr.mxu0 %v4943
  %5137 = vmatpush1.xpose.msra.mxu0 %v4942
  %5138 = vmatprep.subr.mxu0 %v4945
  %5139 = vmatpush1.xpose.msra.mxu0 %v4944
  %5140 = vmatprep.subr.mxu0 0.0
  %5141 = vmatpush1.xpose.msra.mxu0 0.0
  %5142 = vmatprep.subr.mxu0 0.0
  %5143 = vmatpush1.xpose.msra.mxu0 0.0
  %5144 = vmatprep.subr.mxu0 0.0
  %5145 = vmatpush1.xpose.msra.mxu0 0.0
  %5146 = vmatprep.subr.mxu0 0.0
  %5147 = vmatpush1.xpose.msra.mxu0 0.0
  %5148 = vmatprep.subr.mxu0 0.0
  %5149 = vmatpush1.xpose.msra.mxu0 0.0
  %5150 = vmatprep.subr.mxu0 0.0
  %5151 = vmatpush1.xpose.msra.mxu0 0.0
  %5152 = vmatprep.subr.mxu0 0.0
  %5153 = vmatpush1.xpose.msra.mxu0 0.0
  %5154 = vmatprep.subr.mxu0 0.0
  %5155 = vmatpush1.xpose.msra.mxu0 0.0
  %5156 = vmatprep.subr.mxu0 0.0
  %5157 = vmatpush1.xpose.msra.mxu0 0.0
  %5158 = vmatprep.subr.mxu0 0.0
  %5159 = vmatpush1.xpose.msra.mxu0 0.0
  %5160 = vmatprep.subr.mxu0 0.0
  %5161 = vmatpush1.xpose.msra.mxu0 0.0
  %5162 = vmatprep.subr.mxu0 0.0
  %5163 = vmatpush1.xpose.msra.mxu0 0.0
  %5164 = vmatprep.subr.mxu0 0.0
  %5165 = vmatpush1.xpose.msra.mxu0 0.0
  %5166 = vmatprep.subr.mxu0 0.0
  %5167 = vmatpush1.xpose.msra.mxu0 0.0
  %5168 = vmatprep.subr.mxu0 0.0
  %5169 = vmatpush1.xpose.msra.mxu0 0.0
  %5170 = vmatprep.subr.mxu0 0.0
  %5171 = vmatpush1.xpose.msra.mxu0 0.0
  %5172 = vmatprep.subr.mxu0 0.0
  %5173 = vmatpush1.xpose.msra.mxu0 0.0
  %5174 = vmatprep.subr.mxu0 0.0
  %5175 = vmatpush1.xpose.msra.mxu0 0.0
  %5176 = vmatprep.subr.mxu0 0.0
  %5177 = vmatpush1.xpose.msra.mxu0 0.0
  %5178 = vmatprep.subr.mxu0 0.0
  %5179 = vmatpush1.xpose.msra.mxu0 0.0
  %5180 = vmatprep.subr.mxu0 0.0
  %5181 = vmatpush1.xpose.msra.mxu0 0.0
  %5182 = vmatprep.subr.mxu0 0.0
  %5183 = vmatpush1.xpose.msra.mxu0 0.0
  %5184 = vmatprep.subr.mxu0 0.0
  %5185 = vmatpush1.xpose.msra.mxu0 0.0
  %5186 = vmatprep.subr.mxu0 0.0
  %5187 = vmatpush1.xpose.msra.mxu0 0.0
  %5188 = vmatprep.subr.mxu0 0.0
  %5189 = vmatpush1.xpose.msra.mxu0 0.0
  %5190 = vmatprep.subr.mxu0 0.0
  %5191 = vmatpush1.xpose.msra.mxu0 0.0
  %5192 = vmatprep.subr.mxu0 0.0
  %5193 = vmatpush1.xpose.msra.mxu0 0.0
  %5194 = vmatprep.subr.mxu0 0.0
  %5195 = vmatpush1.xpose.msra.mxu0 0.0
  %5196 = vmatprep.subr.mxu0 0.0
  %5197 = vmatpush1.xpose.msra.mxu0 0.0
  %5198 = vmatprep.subr.mxu0 0.0
  %5199 = vmatpush1.xpose.msra.mxu0 0.0
  %5200 = vmatprep.mubr.f32.mxu0 %v5133
  %5201 = vmatmul.mubr.f32.gmra.mrb[0].mxu0 %v5129
  %v5202 = vpop.f32.mrb[0].mxu0
  %v5203 = vadd.f32 0.0, %v5202
  %v5204 = vpop.f32.mrb[0].mxu0
  %5205 = vdwg.mxu0
  %v5206 = vlaneseq
  %v5207 = vshrl.u32 %v5206, 7
  %v5208 = vsub.s32 0, %v5207
  %v5209 = vrot.slane %v4932, %v5208
  %v5210 = vlaneseq
  %v5211 = vshrl.u32 %v5210, 7
  %v5212 = vsub.s32 1, %v5211
  %v5213 = vrot.slane %v4932, %v5212
  %5216 = vmatprep.subr.mxu0 %v4947
  %5217 = vmatpush1.xpose.msra.mxu0 %v4946
  %5218 = vmatprep.subr.mxu0 %v4949
  %5219 = vmatpush1.xpose.msra.mxu0 %v4948
  %5220 = vmatprep.subr.mxu0 0.0
  %5221 = vmatpush1.xpose.msra.mxu0 0.0
  %5222 = vmatprep.subr.mxu0 0.0
  %5223 = vmatpush1.xpose.msra.mxu0 0.0
  %5224 = vmatprep.subr.mxu0 0.0
  %5225 = vmatpush1.xpose.msra.mxu0 0.0
  %5226 = vmatprep.subr.mxu0 0.0
  %5227 = vmatpush1.xpose.msra.mxu0 0.0
  %5228 = vmatprep.subr.mxu0 0.0
  %5229 = vmatpush1.xpose.msra.mxu0 0.0
  %5230 = vmatprep.subr.mxu0 0.0
  %5231 = vmatpush1.xpose.msra.mxu0 0.0
  %5232 = vmatprep.subr.mxu0 0.0
  %5233 = vmatpush1.xpose.msra.mxu0 0.0
  %5234 = vmatprep.subr.mxu0 0.0
  %5235 = vmatpush1.xpose.msra.mxu0 0.0
  %5236 = vmatprep.subr.mxu0 0.0
  %5237 = vmatpush1.xpose.msra.mxu0 0.0
  %5238 = vmatprep.subr.mxu0 0.0
  %5239 = vmatpush1.xpose.msra.mxu0 0.0
  %5240 = vmatprep.subr.mxu0 0.0
  %5241 = vmatpush1.xpose.msra.mxu0 0.0
  %5242 = vmatprep.subr.mxu0 0.0
  %5243 = vmatpush1.xpose.msra.mxu0 0.0
  %5244 = vmatprep.subr.mxu0 0.0
  %5245 = vmatpush1.xpose.msra.mxu0 0.0
  %5246 = vmatprep.subr.mxu0 0.0
  %5247 = vmatpush1.xpose.msra.mxu0 0.0
  %5248 = vmatprep.subr.mxu0 0.0
  %5249 = vmatpush1.xpose.msra.mxu0 0.0
  %5250 = vmatprep.subr.mxu0 0.0
  %5251 = vmatpush1.xpose.msra.mxu0 0.0
  %5252 = vmatprep.subr.mxu0 0.0
  %5253 = vmatpush1.xpose.msra.mxu0 0.0
  %5254 = vmatprep.subr.mxu0 0.0
  %5255 = vmatpush1.xpose.msra.mxu0 0.0
  %5256 = vmatprep.subr.mxu0 0.0
  %5257 = vmatpush1.xpose.msra.mxu0 0.0
  %5258 = vmatprep.subr.mxu0 0.0
  %5259 = vmatpush1.xpose.msra.mxu0 0.0
  %5260 = vmatprep.subr.mxu0 0.0
  %5261 = vmatpush1.xpose.msra.mxu0 0.0
  %5262 = vmatprep.subr.mxu0 0.0
  %5263 = vmatpush1.xpose.msra.mxu0 0.0
  %5264 = vmatprep.subr.mxu0 0.0
  %5265 = vmatpush1.xpose.msra.mxu0 0.0
  %5266 = vmatprep.subr.mxu0 0.0
  %5267 = vmatpush1.xpose.msra.mxu0 0.0
  %5268 = vmatprep.subr.mxu0 0.0
  %5269 = vmatpush1.xpose.msra.mxu0 0.0
  %5270 = vmatprep.subr.mxu0 0.0
  %5271 = vmatpush1.xpose.msra.mxu0 0.0
  %5272 = vmatprep.subr.mxu0 0.0
  %5273 = vmatpush1.xpose.msra.mxu0 0.0
  %5274 = vmatprep.subr.mxu0 0.0
  %5275 = vmatpush1.xpose.msra.mxu0 0.0
  %5276 = vmatprep.subr.mxu0 0.0
  %5277 = vmatpush1.xpose.msra.mxu0 0.0
  %5278 = vmatprep.subr.mxu0 0.0
  %5279 = vmatpush1.xpose.msra.mxu0 0.0
  %5280 = vmatprep.mubr.f32.mxu0 %v5213
  %5281 = vmatmul.mubr.f32.gmra.mrb[0].mxu0 %v5209
  %v5282 = vpop.f32.mrb[0].mxu0
  %v5283 = vadd.f32 0.0, %v5282
  %v5284 = vpop.f32.mrb[0].mxu0
  %5285 = vdwg.mxu0
  %v5286 = vlaneseq
  %v5287 = vshrl.u32 %v5286, 7
  %v5288 = vsub.s32 0, %v5287
  %v5289 = vrot.slane %v4915, %v5288
  %v5290 = vlaneseq
  %v5291 = vshrl.u32 %v5290, 7
  %v5292 = vsub.s32 1, %v5291
  %v5293 = vrot.slane %v4915, %v5292
  %5296 = vmatprep.subr.mxu0 %v4951
  %5297 = vmatpush1.xpose.msra.mxu0 %v4950
  %5298 = vmatprep.subr.mxu0 %v4953
  %5299 = vmatpush1.xpose.msra.mxu0 %v4952
  %5300 = vmatprep.subr.mxu0 0.0
  %5301 = vmatpush1.xpose.msra.mxu0 0.0
  %5302 = vmatprep.subr.mxu0 0.0
  %5303 = vmatpush1.xpose.msra.mxu0 0.0
  %5304 = vmatprep.subr.mxu0 0.0
  %5305 = vmatpush1.xpose.msra.mxu0 0.0
  %5306 = vmatprep.subr.mxu0 0.0
  %5307 = vmatpush1.xpose.msra.mxu0 0.0
  %5308 = vmatprep.subr.mxu0 0.0
  %5309 = vmatpush1.xpose.msra.mxu0 0.0
  %5310 = vmatprep.subr.mxu0 0.0
  %5311 = vmatpush1.xpose.msra.mxu0 0.0
  %5312 = vmatprep.subr.mxu0 0.0
  %5313 = vmatpush1.xpose.msra.mxu0 0.0
  %5314 = vmatprep.subr.mxu0 0.0
  %5315 = vmatpush1.xpose.msra.mxu0 0.0
  %5316 = vmatprep.subr.mxu0 0.0
  %5317 = vmatpush1.xpose.msra.mxu0 0.0
  %5318 = vmatprep.subr.mxu0 0.0
  %5319 = vmatpush1.xpose.msra.mxu0 0.0
  %5320 = vmatprep.subr.mxu0 0.0
  %5321 = vmatpush1.xpose.msra.mxu0 0.0
  %5322 = vmatprep.subr.mxu0 0.0
  %5323 = vmatpush1.xpose.msra.mxu0 0.0
  %5324 = vmatprep.subr.mxu0 0.0
  %5325 = vmatpush1.xpose.msra.mxu0 0.0
  %5326 = vmatprep.subr.mxu0 0.0
  %5327 = vmatpush1.xpose.msra.mxu0 0.0
  %5328 = vmatprep.subr.mxu0 0.0
  %5329 = vmatpush1.xpose.msra.mxu0 0.0
  %5330 = vmatprep.subr.mxu0 0.0
  %5331 = vmatpush1.xpose.msra.mxu0 0.0
  %5332 = vmatprep.subr.mxu0 0.0
  %5333 = vmatpush1.xpose.msra.mxu0 0.0
  %5334 = vmatprep.subr.mxu0 0.0
  %5335 = vmatpush1.xpose.msra.mxu0 0.0
  %5336 = vmatprep.subr.mxu0 0.0
  %5337 = vmatpush1.xpose.msra.mxu0 0.0
  %5338 = vmatprep.subr.mxu0 0.0
  %5339 = vmatpush1.xpose.msra.mxu0 0.0
  %5340 = vmatprep.subr.mxu0 0.0
  %5341 = vmatpush1.xpose.msra.mxu0 0.0
  %5342 = vmatprep.subr.mxu0 0.0
  %5343 = vmatpush1.xpose.msra.mxu0 0.0
  %5344 = vmatprep.subr.mxu0 0.0
  %5345 = vmatpush1.xpose.msra.mxu0 0.0
  %5346 = vmatprep.subr.mxu0 0.0
  %5347 = vmatpush1.xpose.msra.mxu0 0.0
  %5348 = vmatprep.subr.mxu0 0.0
  %5349 = vmatpush1.xpose.msra.mxu0 0.0
  %5350 = vmatprep.subr.mxu0 0.0
  %5351 = vmatpush1.xpose.msra.mxu0 0.0
  %5352 = vmatprep.subr.mxu0 0.0
  %5353 = vmatpush1.xpose.msra.mxu0 0.0
  %5354 = vmatprep.subr.mxu0 0.0
  %5355 = vmatpush1.xpose.msra.mxu0 0.0
  %5356 = vmatprep.subr.mxu0 0.0
  %5357 = vmatpush1.xpose.msra.mxu0 0.0
  %5358 = vmatprep.subr.mxu0 0.0
  %5359 = vmatpush1.xpose.msra.mxu0 0.0
  %5360 = vmatprep.mubr.f32.mxu0 %v5293
  %5361 = vmatmul.mubr.f32.gmra.mrb[0].mxu0 %v5289
  %v5362 = vpop.f32.mrb[0].mxu0
  %v5363 = vadd.f32 0.0, %v5362
  %v5364 = vpop.f32.mrb[0].mxu0
  %5365 = vdwg.mxu0
  %v5366 = vlaneseq
  %v5367 = vshrl.u32 %v5366, 7
  %v5368 = vsub.s32 0, %v5367
  %v5369 = vrot.slane %v4929, %v5368
  %v5370 = vlaneseq
  %v5371 = vshrl.u32 %v5370, 7
  %v5372 = vsub.s32 1, %v5371
  %v5373 = vrot.slane %v4929, %v5372
  %5376 = vmatprep.subr.mxu0 %v4955
  %5377 = vmatpush1.xpose.msra.mxu0 %v4954
  %5378 = vmatprep.subr.mxu0 %v4957
  %5379 = vmatpush1.xpose.msra.mxu0 %v4956
  %5380 = vmatprep.subr.mxu0 0.0
  %5381 = vmatpush1.xpose.msra.mxu0 0.0
  %5382 = vmatprep.subr.mxu0 0.0
  %5383 = vmatpush1.xpose.msra.mxu0 0.0
  %5384 = vmatprep.subr.mxu0 0.0
  %5385 = vmatpush1.xpose.msra.mxu0 0.0
  %5386 = vmatprep.subr.mxu0 0.0
  %5387 = vmatpush1.xpose.msra.mxu0 0.0
  %5388 = vmatprep.subr.mxu0 0.0
  %5389 = vmatpush1.xpose.msra.mxu0 0.0
  %5390 = vmatprep.subr.mxu0 0.0
  %5391 = vmatpush1.xpose.msra.mxu0 0.0
  %5392 = vmatprep.subr.mxu0 0.0
  %5393 = vmatpush1.xpose.msra.mxu0 0.0
  %5394 = vmatprep.subr.mxu0 0.0
  %5395 = vmatpush1.xpose.msra.mxu0 0.0
  %5396 = vmatprep.subr.mxu0 0.0
  %5397 = vmatpush1.xpose.msra.mxu0 0.0
  %5398 = vmatprep.subr.mxu0 0.0
  %5399 = vmatpush1.xpose.msra.mxu0 0.0
  %5400 = vmatprep.subr.mxu0 0.0
  %5401 = vmatpush1.xpose.msra.mxu0 0.0
  %5402 = vmatprep.subr.mxu0 0.0
  %5403 = vmatpush1.xpose.msra.mxu0 0.0
  %5404 = vmatprep.subr.mxu0 0.0
  %5405 = vmatpush1.xpose.msra.mxu0 0.0
  %5406 = vmatprep.subr.mxu0 0.0
  %5407 = vmatpush1.xpose.msra.mxu0 0.0
  %5408 = vmatprep.subr.mxu0 0.0
  %5409 = vmatpush1.xpose.msra.mxu0 0.0
  %5410 = vmatprep.subr.mxu0 0.0
  %5411 = vmatpush1.xpose.msra.mxu0 0.0
  %5412 = vmatprep.subr.mxu0 0.0
  %5413 = vmatpush1.xpose.msra.mxu0 0.0
  %5414 = vmatprep.subr.mxu0 0.0
  %5415 = vmatpush1.xpose.msra.mxu0 0.0
  %5416 = vmatprep.subr.mxu0 0.0
  %5417 = vmatpush1.xpose.msra.mxu0 0.0
  %5418 = vmatprep.subr.mxu0 0.0
  %5419 = vmatpush1.xpose.msra.mxu0 0.0
  %5420 = vmatprep.subr.mxu0 0.0
  %5421 = vmatpush1.xpose.msra.mxu0 0.0
  %5422 = vmatprep.subr.mxu0 0.0
  %5423 = vmatpush1.xpose.msra.mxu0 0.0
  %5424 = vmatprep.subr.mxu0 0.0
  %5425 = vmatpush1.xpose.msra.mxu0 0.0
  %5426 = vmatprep.subr.mxu0 0.0
  %5427 = vmatpush1.xpose.msra.mxu0 0.0
  %5428 = vmatprep.subr.mxu0 0.0
  %5429 = vmatpush1.xpose.msra.mxu0 0.0
  %5430 = vmatprep.subr.mxu0 0.0
  %5431 = vmatpush1.xpose.msra.mxu0 0.0
  %5432 = vmatprep.subr.mxu0 0.0
  %5433 = vmatpush1.xpose.msra.mxu0 0.0
  %5434 = vmatprep.subr.mxu0 0.0
  %5435 = vmatpush1.xpose.msra.mxu0 0.0
  %5436 = vmatprep.subr.mxu0 0.0
  %5437 = vmatpush1.xpose.msra.mxu0 0.0
  %5438 = vmatprep.subr.mxu0 0.0
  %5439 = vmatpush1.xpose.msra.mxu0 0.0
  %5440 = vmatprep.mubr.f32.mxu0 %v5373
  %5441 = vmatmul.mubr.f32.gmra.mrb[0].mxu0 %v5369
  %v5442 = vpop.f32.mrb[0].mxu0
  %v5443 = vadd.f32 0.0, %v5442
  %v5444 = vpop.f32.mrb[0].mxu0
  %5445 = vdwg.mxu0
  %v5446 = vlaneseq
  %v5447 = vshrl.u32 %v5446, 7
  %v5448 = vsub.s32 0, %v5447
  %v5449 = vrot.slane %v4931, %v5448
  %v5450 = vlaneseq
  %v5451 = vshrl.u32 %v5450, 7
  %v5452 = vsub.s32 1, %v5451
  %v5453 = vrot.slane %v4931, %v5452
  %5456 = vmatprep.subr.mxu0 %v4959
  %5457 = vmatpush1.xpose.msra.mxu0 %v4958
  %5458 = vmatprep.subr.mxu0 %v4961
  %5459 = vmatpush1.xpose.msra.mxu0 %v4960
  %5460 = vmatprep.subr.mxu0 0.0
  %5461 = vmatpush1.xpose.msra.mxu0 0.0
  %5462 = vmatprep.subr.mxu0 0.0
  %5463 = vmatpush1.xpose.msra.mxu0 0.0
  %5464 = vmatprep.subr.mxu0 0.0
  %5465 = vmatpush1.xpose.msra.mxu0 0.0
  %5466 = vmatprep.subr.mxu0 0.0
  %5467 = vmatpush1.xpose.msra.mxu0 0.0
  %5468 = vmatprep.subr.mxu0 0.0
  %5469 = vmatpush1.xpose.msra.mxu0 0.0
  %5470 = vmatprep.subr.mxu0 0.0
  %5471 = vmatpush1.xpose.msra.mxu0 0.0
  %5472 = vmatprep.subr.mxu0 0.0
  %5473 = vmatpush1.xpose.msra.mxu0 0.0
  %5474 = vmatprep.subr.mxu0 0.0
  %5475 = vmatpush1.xpose.msra.mxu0 0.0
  %5476 = vmatprep.subr.mxu0 0.0
  %5477 = vmatpush1.xpose.msra.mxu0 0.0
  %5478 = vmatprep.subr.mxu0 0.0
  %5479 = vmatpush1.xpose.msra.mxu0 0.0
  %5480 = vmatprep.subr.mxu0 0.0
  %5481 = vmatpush1.xpose.msra.mxu0 0.0
  %5482 = vmatprep.subr.mxu0 0.0
  %5483 = vmatpush1.xpose.msra.mxu0 0.0
  %5484 = vmatprep.subr.mxu0 0.0
  %5485 = vmatpush1.xpose.msra.mxu0 0.0
  %5486 = vmatprep.subr.mxu0 0.0
  %5487 = vmatpush1.xpose.msra.mxu0 0.0
  %5488 = vmatprep.subr.mxu0 0.0
  %5489 = vmatpush1.xpose.msra.mxu0 0.0
  %5490 = vmatprep.subr.mxu0 0.0
  %5491 = vmatpush1.xpose.msra.mxu0 0.0
  %5492 = vmatprep.subr.mxu0 0.0
  %5493 = vmatpush1.xpose.msra.mxu0 0.0
  %5494 = vmatprep.subr.mxu0 0.0
  %5495 = vmatpush1.xpose.msra.mxu0 0.0
  %5496 = vmatprep.subr.mxu0 0.0
  %5497 = vmatpush1.xpose.msra.mxu0 0.0
  %5498 = vmatprep.subr.mxu0 0.0
  %5499 = vmatpush1.xpose.msra.mxu0 0.0
  %5500 = vmatprep.subr.mxu0 0.0
  %5501 = vmatpush1.xpose.msra.mxu0 0.0
  %5502 = vmatprep.subr.mxu0 0.0
  %5503 = vmatpush1.xpose.msra.mxu0 0.0
  %5504 = vmatprep.subr.mxu0 0.0
  %5505 = vmatpush1.xpose.msra.mxu0 0.0
  %5506 = vmatprep.subr.mxu0 0.0
  %5507 = vmatpush1.xpose.msra.mxu0 0.0
  %5508 = vmatprep.subr.mxu0 0.0
  %5509 = vmatpush1.xpose.msra.mxu0 0.0
  %5510 = vmatprep.subr.mxu0 0.0
  %5511 = vmatpush1.xpose.msra.mxu0 0.0
  %5512 = vmatprep.subr.mxu0 0.0
  %5513 = vmatpush1.xpose.msra.mxu0 0.0
  %5514 = vmatprep.subr.mxu0 0.0
  %5515 = vmatpush1.xpose.msra.mxu0 0.0
  %5516 = vmatprep.subr.mxu0 0.0
  %5517 = vmatpush1.xpose.msra.mxu0 0.0
  %5518 = vmatprep.subr.mxu0 0.0
  %5519 = vmatpush1.xpose.msra.mxu0 0.0
  %5520 = vmatprep.mubr.f32.mxu0 %v5453
  %5521 = vmatmul.mubr.f32.gmra.mrb[0].mxu0 %v5449
  %v5522 = vpop.f32.mrb[0].mxu0
  %v5523 = vadd.f32 0.0, %v5522
  %v5524 = vpop.f32.mrb[0].mxu0
  %5525 = vdwg.mxu0
  %v5526 = vlaneseq
  %v5527 = vshrl.u32 %v5526, 7
  %v5528 = vsub.s32 0, %v5527
  %v5529 = vrot.slane %v4933, %v5528
  %v5530 = vlaneseq
  %v5531 = vshrl.u32 %v5530, 7
  %v5532 = vsub.s32 1, %v5531
  %v5533 = vrot.slane %v4933, %v5532
  %5536 = vmatprep.subr.mxu0 %v4963
  %5537 = vmatpush1.xpose.msra.mxu0 %v4962
  %5538 = vmatprep.subr.mxu0 %v4965
  %5539 = vmatpush1.xpose.msra.mxu0 %v4964
  %5540 = vmatprep.subr.mxu0 0.0
  %5541 = vmatpush1.xpose.msra.mxu0 0.0
  %5542 = vmatprep.subr.mxu0 0.0
  %5543 = vmatpush1.xpose.msra.mxu0 0.0
  %5544 = vmatprep.subr.mxu0 0.0
  %5545 = vmatpush1.xpose.msra.mxu0 0.0
  %5546 = vmatprep.subr.mxu0 0.0
  %5547 = vmatpush1.xpose.msra.mxu0 0.0
  %5548 = vmatprep.subr.mxu0 0.0
  %5549 = vmatpush1.xpose.msra.mxu0 0.0
  %5550 = vmatprep.subr.mxu0 0.0
  %5551 = vmatpush1.xpose.msra.mxu0 0.0
  %5552 = vmatprep.subr.mxu0 0.0
  %5553 = vmatpush1.xpose.msra.mxu0 0.0
  %5554 = vmatprep.subr.mxu0 0.0
  %5555 = vmatpush1.xpose.msra.mxu0 0.0
  %5556 = vmatprep.subr.mxu0 0.0
  %5557 = vmatpush1.xpose.msra.mxu0 0.0
  %5558 = vmatprep.subr.mxu0 0.0
  %5559 = vmatpush1.xpose.msra.mxu0 0.0
  %5560 = vmatprep.subr.mxu0 0.0
  %5561 = vmatpush1.xpose.msra.mxu0 0.0
  %5562 = vmatprep.subr.mxu0 0.0
  %5563 = vmatpush1.xpose.msra.mxu0 0.0
  %5564 = vmatprep.subr.mxu0 0.0
  %5565 = vmatpush1.xpose.msra.mxu0 0.0
  %5566 = vmatprep.subr.mxu0 0.0
  %5567 = vmatpush1.xpose.msra.mxu0 0.0
  %5568 = vmatprep.subr.mxu0 0.0
  %5569 = vmatpush1.xpose.msra.mxu0 0.0
  %5570 = vmatprep.subr.mxu0 0.0
  %5571 = vmatpush1.xpose.msra.mxu0 0.0
  %5572 = vmatprep.subr.mxu0 0.0
  %5573 = vmatpush1.xpose.msra.mxu0 0.0
  %5574 = vmatprep.subr.mxu0 0.0
  %5575 = vmatpush1.xpose.msra.mxu0 0.0
  %5576 = vmatprep.subr.mxu0 0.0
  %5577 = vmatpush1.xpose.msra.mxu0 0.0
  %5578 = vmatprep.subr.mxu0 0.0
  %5579 = vmatpush1.xpose.msra.mxu0 0.0
  %5580 = vmatprep.subr.mxu0 0.0
  %5581 = vmatpush1.xpose.msra.mxu0 0.0
  %5582 = vmatprep.subr.mxu0 0.0
  %5583 = vmatpush1.xpose.msra.mxu0 0.0
  %5584 = vmatprep.subr.mxu0 0.0
  %5585 = vmatpush1.xpose.msra.mxu0 0.0
  %5586 = vmatprep.subr.mxu0 0.0
  %5587 = vmatpush1.xpose.msra.mxu0 0.0
  %5588 = vmatprep.subr.mxu0 0.0
  %5589 = vmatpush1.xpose.msra.mxu0 0.0
  %5590 = vmatprep.subr.mxu0 0.0
  %5591 = vmatpush1.xpose.msra.mxu0 0.0
  %5592 = vmatprep.subr.mxu0 0.0
  %5593 = vmatpush1.xpose.msra.mxu0 0.0
  %5594 = vmatprep.subr.mxu0 0.0
  %5595 = vmatpush1.xpose.msra.mxu0 0.0
  %5596 = vmatprep.subr.mxu0 0.0
  %5597 = vmatpush1.xpose.msra.mxu0 0.0
  %5598 = vmatprep.subr.mxu0 0.0
  %5599 = vmatpush1.xpose.msra.mxu0 0.0
  %5600 = vmatprep.mubr.f32.mxu0 %v5533
  %5601 = vmatmul.mubr.f32.gmra.mrb[0].mxu0 %v5529
  %v5602 = vpop.f32.mrb[0].mxu0
  %v5603 = vadd.f32 0.0, %v5602
  %v5604 = vpop.f32.mrb[0].mxu0
  %5605 = vdwg.mxu0
  %v5614 = vrot.slane %v5123, 7
  %v5615 = vsel %vm962, %v5614, %v5043
  %v5616 = vrot.slane %v5203, 6
  %v5617 = vsel %vm965, %v5616, %v5615
  %v5618 = vrot.slane %v5283, 5
  %v5619 = vsel %vm968, %v5618, %v5617
  %v5620 = vrot.slane %v5363, 4
  %v5621 = vsel %vm971, %v5620, %v5619
  %v5622 = vrot.slane %v5443, 3
  %v5623 = vsel %vm974, %v5622, %v5621
  %v5624 = vrot.slane %v5523, 2
  %v5625 = vsel %vm977, %v5624, %v5623
  %v5626 = vrot.slane %v5603, 1
  %v5627 = vsel %vm980, %v5626, %v5625
  %v5629 = vsel %vm983, %v5627, 0.0
  %v5630 = vrot.slane %v5629, 4
  %v5631 = vadd.f32 %v5629, %v5630
  %v5632 = vrot.slane %v5631, 2
  %v5633 = vadd.f32 %v5631, %v5632
  %v5634 = vrot.slane %v5633, 1
  %v5635 = vadd.f32 %v5633, %v5634
  %v5636 = vadd.f32 %v5635, %v25
  %s5637 = scalar_lea.vmem %s0, 48
  %v5638 = vld [vmem:[%s5637] sm:$0xff]
  %v5640 = vcombine.high %v5638, %v5638
  %5642 = vrot.lane.b32.xlu0 %v5638, 17
  %v5643 = vpop.permute.xlu0 %5642
  %5644 = vrot.lane.b32.xlu0 %v5640, 17
  %v5645 = vpop.permute.xlu0 %5644
  %v5646 = vsel %vm46, %v5643, %v5645
  %v5647 = vsel %vm46, %v5645, %v5643
  %5648 = vrot.lane.b32.xlu0 %v5638, 16
  %v5649 = vpop.permute.xlu0 %5648
  %5650 = vrot.lane.b32.xlu0 %v5640, 16
  %v5651 = vpop.permute.xlu0 %5650
  %v5652 = vsel %vm53, %v5649, %v5651
  %v5653 = vsel %vm53, %v5651, %v5649
  %5654 = vrot.lane.b32.xlu0 %v5638, 15
  %v5655 = vpop.permute.xlu0 %5654
  %5656 = vrot.lane.b32.xlu0 %v5640, 15
  %v5657 = vpop.permute.xlu0 %5656
  %v5658 = vsel %vm60, %v5655, %v5657
  %v5659 = vsel %vm60, %v5657, %v5655
  %5660 = vrot.lane.b32.xlu0 %v5638, 1
  %v5661 = vpop.permute.xlu0 %5660
  %5662 = vrot.lane.b32.xlu0 %v5640, 1
  %v5663 = vpop.permute.xlu0 %5662
  %v5664 = vsel %vm67, %v5661, %v5663
  %v5665 = vsel %vm67, %v5663, %v5661
  %5666 = vrot.lane.b32.xlu0 %v5638, 127
  %v5667 = vpop.permute.xlu0 %5666
  %5668 = vrot.lane.b32.xlu0 %v5640, 127
  %v5669 = vpop.permute.xlu0 %5668
  %v5670 = vsel %vm74, %v5667, %v5669
  %v5671 = vsel %vm74, %v5669, %v5667
  %5672 = vrot.lane.b32.xlu0 %v5638, 113
  %v5673 = vpop.permute.xlu0 %5672
  %5674 = vrot.lane.b32.xlu0 %v5640, 113
  %v5675 = vpop.permute.xlu0 %5674
  %v5676 = vsel %vm81, %v5673, %v5675
  %v5677 = vsel %vm81, %v5675, %v5673
  %5678 = vrot.lane.b32.xlu0 %v5638, 112
  %v5679 = vpop.permute.xlu0 %5678
  %5680 = vrot.lane.b32.xlu0 %v5640, 112
  %v5681 = vpop.permute.xlu0 %5680
  %v5682 = vsel %vm88, %v5679, %v5681
  %v5683 = vsel %vm88, %v5681, %v5679
  %5684 = vrot.lane.b32.xlu0 %v5638, 111
  %v5685 = vpop.permute.xlu0 %5684
  %5686 = vrot.lane.b32.xlu0 %v5640, 111
  %v5687 = vpop.permute.xlu0 %5686
  %v5688 = vsel %vm95, %v5685, %v5687
  %v5689 = vsel %vm95, %v5687, %v5685
  %v5692 = vrot.slane %v5653, 4
  %v5693 = vrot.slane %v5652, 4
  %v5698 = vrot.slane %v5665, 4
  %v5699 = vrot.slane %v5664, 4
  %v5704 = vrot.slane %v5670, 4
  %v5705 = vrot.slane %v5671, 4
  %v5710 = vrot.slane %v5682, 4
  %v5711 = vrot.slane %v5683, 4
  %v5714 = vsel %vm122, %v5647, %v5692
  %v5715 = vsel %vm122, %v5646, %v5693
  %v5716 = vsel %vm122, %v5659, %v5698
  %v5717 = vsel %vm122, %v5658, %v5699
  %v5718 = vsel %vm122, %v5638, %v5704
  %v5719 = vsel %vm122, %v5640, %v5705
  %v5720 = vsel %vm122, %v5676, %v5710
  %v5721 = vsel %vm122, %v5677, %v5711
  %v5722 = vmul.f32 %v5714, %v26
  %v5723 = vmul.f32 %v5715, %v27
  %v5724 = vmul.f32 %v5716, %v28
  %v5725 = vmul.f32 %v5717, %v29
  %v5726 = vmul.f32 %v5718, %v30
  %v5727 = vmul.f32 %v5719, %v31
  %v5728 = vmul.f32 %v5720, %v32
  %v5729 = vmul.f32 %v5721, %v33
  %v5730 = vmul.f32 %v5688, %v34
  %v5731 = vmul.f32 %v5689, %v35
  %v5733 = vsel %vm122, %v5730, 0
  %v5736 = vsel %vm122, %v5731, 0
  %5738 = vmatprep.subr.mxu0 %v5723
  %5739 = vmatpush1.msra.mxu0 %v5722
  %5740 = vmatprep.subr.mxu0 %v5725
  %5741 = vmatpush1.msra.mxu0 %v5724
  %5742 = vmatprep.subr.mxu0 %v5727
  %5743 = vmatpush1.msra.mxu0 %v5726
  %5744 = vmatprep.subr.mxu0 %v5729
  %5745 = vmatpush1.msra.mxu0 %v5728
  %5746 = vmatprep.subr.mxu0 %v5736
  %5747 = vmatpush1.msra.mxu0 %v5733
  %5748 = vmatprep.subr.mxu0 0.0
  %5749 = vmatpush1.msra.mxu0 0.0
  %5750 = vmatprep.subr.mxu0 0.0
  %5751 = vmatpush1.msra.mxu0 0.0
  %5752 = vmatprep.subr.mxu0 0.0
  %5753 = vmatpush1.msra.mxu0 0.0
  %5754 = vmatprep.subr.mxu0 0.0
  %5755 = vmatpush1.msra.mxu0 0.0
  %5756 = vmatprep.subr.mxu0 0.0
  %5757 = vmatpush1.msra.mxu0 0.0
  %5758 = vmatprep.subr.mxu0 0.0
  %5759 = vmatpush1.msra.mxu0 0.0
  %5760 = vmatprep.subr.mxu0 0.0
  %5761 = vmatpush1.msra.mxu0 0.0
  %5762 = vmatprep.subr.mxu0 0.0
  %5763 = vmatpush1.msra.mxu0 0.0
  %5764 = vmatprep.subr.mxu0 0.0
  %5765 = vmatpush1.msra.mxu0 0.0
  %5766 = vmatprep.subr.mxu0 0.0
  %5767 = vmatpush1.msra.mxu0 0.0
  %5768 = vmatprep.subr.mxu0 0.0
  %5769 = vmatpush1.msra.mxu0 0.0
  %5770 = vmatprep.subr.mxu0 0.0
  %5771 = vmatpush1.msra.mxu0 0.0
  %5772 = vmatprep.subr.mxu0 0.0
  %5773 = vmatpush1.msra.mxu0 0.0
  %5774 = vmatprep.subr.mxu0 0.0
  %5775 = vmatpush1.msra.mxu0 0.0
  %5776 = vmatprep.subr.mxu0 0.0
  %5777 = vmatpush1.msra.mxu0 0.0
  %5778 = vmatprep.subr.mxu0 0.0
  %5779 = vmatpush1.msra.mxu0 0.0
  %5780 = vmatprep.subr.mxu0 0.0
  %5781 = vmatpush1.msra.mxu0 0.0
  %5782 = vmatprep.subr.mxu0 0.0
  %5783 = vmatpush1.msra.mxu0 0.0
  %5784 = vmatprep.subr.mxu0 0.0
  %5785 = vmatpush1.msra.mxu0 0.0
  %5786 = vmatprep.subr.mxu0 0.0
  %5787 = vmatpush1.msra.mxu0 0.0
  %5788 = vmatprep.subr.mxu0 0.0
  %5789 = vmatpush1.msra.mxu0 0.0
  %5790 = vmatprep.subr.mxu0 0.0
  %5791 = vmatpush1.msra.mxu0 0.0
  %5792 = vmatprep.subr.mxu0 0.0
  %5793 = vmatpush1.msra.mxu0 0.0
  %5794 = vmatprep.subr.mxu0 0.0
  %5795 = vmatpush1.msra.mxu0 0.0
  %5796 = vmatprep.subr.mxu0 0.0
  %5797 = vmatpush1.msra.mxu0 0.0
  %5798 = vmatprep.subr.mxu0 0.0
  %5799 = vmatpush1.msra.mxu0 0.0
  %5800 = vmatprep.subr.mxu0 0.0
  %5801 = vmatpush1.msra.mxu0 0.0
  %5802 = vmatprep.mubr.f32.mxu0 0.0
  %5803 = vmatmul.mubr.f32.gmra.mrb[0].mxu0 %v148
  %v5804 = vpop.f32.mrb[0].mxu0
  %v5805 = vadd.f32 %v144, %v5804
  %v5806 = vpop.f32.mrb[0].mxu0
  %v5807 = vadd.f32 %v144, %v5806
  %5808 = vdwg.mxu0
  %v5809 = vmax.f32 %v5805, 0.0
  %v5810 = vmax.f32 %v5807, 0.0
  %v5813 = vcombine.low %v5809, %v5810
  %v5814 = vcombine.high %v5809, %v5810
  %v5816 = vunpack.c.l.s4 1966171168
  %v5817 = vunpack.c.0.s8 %v5816
  %v5818 = vlaneseq
  %v5819 = vshrl.u32 %v5818, 7
  %v5820 = vsub.s32 %v5817, %v5819
  %v5821 = vrot.slane %v5813, %v5820
  %v5823 = vunpack.c.l.s4 1966171168
  %v5824 = vunpack.c.0.s8 %v5823
  %v5825 = vlaneseq
  %v5826 = vshrl.u32 %v5825, 7
  %v5827 = vsub.s32 %v5824, %v5826
  %v5828 = vrot.slane %v5814, %v5827
  %v5829 = vcombine.high %v5821, %v5821
  %v5830 = vcombine.high %v5828, %v5828
  %v5832 = vunpack.c.l.s4 1966171168
  %v5833 = vunpack.c.0.s8 %v5832
  %v5834 = vlaneseq
  %v5835 = vshrl.u32 %v5834, 7
  %v5836 = vsub.s32 %v5833, %v5835
  %v5837 = vrot.slane %v5821, %v5836
  %v5839 = vunpack.c.l.s4 1966171168
  %v5840 = vunpack.c.0.s8 %v5839
  %v5841 = vlaneseq
  %v5842 = vshrl.u32 %v5841, 7
  %v5843 = vsub.s32 %v5840, %v5842
  %v5844 = vrot.slane %v5828, %v5843
  %v5846 = vunpack.c.l.s4 1966171168
  %v5847 = vunpack.c.0.s8 %v5846
  %v5848 = vlaneseq
  %v5849 = vshrl.u32 %v5848, 7
  %v5850 = vsub.s32 %v5847, %v5849
  %v5851 = vrot.slane %v5829, %v5850
  %v5853 = vunpack.c.l.s4 1966171168
  %v5854 = vunpack.c.0.s8 %v5853
  %v5855 = vlaneseq
  %v5856 = vshrl.u32 %v5855, 7
  %v5857 = vsub.s32 %v5854, %v5856
  %v5858 = vrot.slane %v5830, %v5857
  %v5859 = vcombine.high %v5837, %v5837
  %v5860 = vcombine.high %v5844, %v5844
  %v5861 = vcombine.high %v5851, %v5851
  %v5862 = vcombine.high %v5858, %v5858
  %v5863 = vld [vmem:[%s3] sm:$0xff]
  %v5864 = vld [vmem:[%s3 + $0x8] sm:$0xff]
  %v5865 = vld [vmem:[%s3 + $0x10] sm:$0x3]
  %v5866 = vld [vmem:[%s3 + $0x18] sm:$0x3]
  %v5867 = vld [vmem:[%s3 + $0x20] sm:$0xff]
  %v5868 = vld [vmem:[%s3 + $0x28] sm:$0xff]
  %v5869 = vld [vmem:[%s3 + $0x30] sm:$0x3]
  %v5870 = vld [vmem:[%s3 + $0x38] sm:$0x3]
  %v5871 = vld [vmem:[%s3 + $0x40] sm:$0xff]
  %v5872 = vld [vmem:[%s3 + $0x48] sm:$0xff]
  %v5873 = vld [vmem:[%s3 + $0x50] sm:$0x3]
  %v5874 = vld [vmem:[%s3 + $0x58] sm:$0x3]
  %v5875 = vld [vmem:[%s3 + $0x60] sm:$0xff]
  %v5876 = vld [vmem:[%s3 + $0x68] sm:$0xff]
  %v5877 = vld [vmem:[%s3 + $0x70] sm:$0x3]
  %v5878 = vld [vmem:[%s3 + $0x78] sm:$0x3]
  %v5879 = vld [vmem:[%s3 + $0x80] sm:$0xff]
  %v5880 = vld [vmem:[%s3 + $0x88] sm:$0xff]
  %v5881 = vld [vmem:[%s3 + $0x90] sm:$0x3]
  %v5882 = vld [vmem:[%s3 + $0x98] sm:$0x3]
  %v5883 = vld [vmem:[%s3 + $0xa0] sm:$0xff]
  %v5884 = vld [vmem:[%s3 + $0xa8] sm:$0xff]
  %v5885 = vld [vmem:[%s3 + $0xb0] sm:$0x3]
  %v5886 = vld [vmem:[%s3 + $0xb8] sm:$0x3]
  %v5887 = vld [vmem:[%s3 + $0xc0] sm:$0xff]
  %v5888 = vld [vmem:[%s3 + $0xc8] sm:$0xff]
  %v5889 = vld [vmem:[%s3 + $0xd0] sm:$0x3]
  %v5890 = vld [vmem:[%s3 + $0xd8] sm:$0x3]
  %v5891 = vld [vmem:[%s3 + $0xe0] sm:$0xff]
  %v5892 = vld [vmem:[%s3 + $0xe8] sm:$0xff]
  %v5893 = vld [vmem:[%s3 + $0xf0] sm:$0x3]
  %v5894 = vld [vmem:[%s3 + $0xf8] sm:$0x3]
  %v5895 = vlaneseq
  %v5896 = vshrl.u32 %v5895, 7
  %v5897 = vsub.s32 0, %v5896
  %v5898 = vrot.slane %v5837, %v5897
  %v5899 = vlaneseq
  %v5900 = vshrl.u32 %v5899, 7
  %v5901 = vsub.s32 1, %v5900
  %v5902 = vrot.slane %v5837, %v5901
  %5905 = vmatprep.subr.mxu0 %v5864
  %5906 = vmatpush1.xpose.msra.mxu0 %v5863
  %5907 = vmatprep.subr.mxu0 %v5866
  %5908 = vmatpush1.xpose.msra.mxu0 %v5865
  %5909 = vmatprep.subr.mxu0 0.0
  %5910 = vmatpush1.xpose.msra.mxu0 0.0
  %5911 = vmatprep.subr.mxu0 0.0
  %5912 = vmatpush1.xpose.msra.mxu0 0.0
  %5913 = vmatprep.subr.mxu0 0.0
  %5914 = vmatpush1.xpose.msra.mxu0 0.0
  %5915 = vmatprep.subr.mxu0 0.0
  %5916 = vmatpush1.xpose.msra.mxu0 0.0
  %5917 = vmatprep.subr.mxu0 0.0
  %5918 = vmatpush1.xpose.msra.mxu0 0.0
  %5919 = vmatprep.subr.mxu0 0.0
  %5920 = vmatpush1.xpose.msra.mxu0 0.0
  %5921 = vmatprep.subr.mxu0 0.0
  %5922 = vmatpush1.xpose.msra.mxu0 0.0
  %5923 = vmatprep.subr.mxu0 0.0
  %5924 = vmatpush1.xpose.msra.mxu0 0.0
  %5925 = vmatprep.subr.mxu0 0.0
  %5926 = vmatpush1.xpose.msra.mxu0 0.0
  %5927 = vmatprep.subr.mxu0 0.0
  %5928 = vmatpush1.xpose.msra.mxu0 0.0
  %5929 = vmatprep.subr.mxu0 0.0
  %5930 = vmatpush1.xpose.msra.mxu0 0.0
  %5931 = vmatprep.subr.mxu0 0.0
  %5932 = vmatpush1.xpose.msra.mxu0 0.0
  %5933 = vmatprep.subr.mxu0 0.0
  %5934 = vmatpush1.xpose.msra.mxu0 0.0
  %5935 = vmatprep.subr.mxu0 0.0
  %5936 = vmatpush1.xpose.msra.mxu0 0.0
  %5937 = vmatprep.subr.mxu0 0.0
  %5938 = vmatpush1.xpose.msra.mxu0 0.0
  %5939 = vmatprep.subr.mxu0 0.0
  %5940 = vmatpush1.xpose.msra.mxu0 0.0
  %5941 = vmatprep.subr.mxu0 0.0
  %5942 = vmatpush1.xpose.msra.mxu0 0.0
  %5943 = vmatprep.subr.mxu0 0.0
  %5944 = vmatpush1.xpose.msra.mxu0 0.0
  %5945 = vmatprep.subr.mxu0 0.0
  %5946 = vmatpush1.xpose.msra.mxu0 0.0
  %5947 = vmatprep.subr.mxu0 0.0
  %5948 = vmatpush1.xpose.msra.mxu0 0.0
  %5949 = vmatprep.subr.mxu0 0.0
  %5950 = vmatpush1.xpose.msra.mxu0 0.0
  %5951 = vmatprep.subr.mxu0 0.0
  %5952 = vmatpush1.xpose.msra.mxu0 0.0
  %5953 = vmatprep.subr.mxu0 0.0
  %5954 = vmatpush1.xpose.msra.mxu0 0.0
  %5955 = vmatprep.subr.mxu0 0.0
  %5956 = vmatpush1.xpose.msra.mxu0 0.0
  %5957 = vmatprep.subr.mxu0 0.0
  %5958 = vmatpush1.xpose.msra.mxu0 0.0
  %5959 = vmatprep.subr.mxu0 0.0
  %5960 = vmatpush1.xpose.msra.mxu0 0.0
  %5961 = vmatprep.subr.mxu0 0.0
  %5962 = vmatpush1.xpose.msra.mxu0 0.0
  %5963 = vmatprep.subr.mxu0 0.0
  %5964 = vmatpush1.xpose.msra.mxu0 0.0
  %5965 = vmatprep.subr.mxu0 0.0
  %5966 = vmatpush1.xpose.msra.mxu0 0.0
  %5967 = vmatprep.subr.mxu0 0.0
  %5968 = vmatpush1.xpose.msra.mxu0 0.0
  %5969 = vmatprep.mubr.f32.mxu0 %v5902
  %5970 = vmatmul.mubr.f32.gmra.mrb[0].mxu0 %v5898
  %v5971 = vpop.f32.mrb[0].mxu0
  %v5972 = vadd.f32 0.0, %v5971
  %v5973 = vpop.f32.mrb[0].mxu0
  %5974 = vdwg.mxu0
  %v5975 = vlaneseq
  %v5976 = vshrl.u32 %v5975, 7
  %v5977 = vsub.s32 0, %v5976
  %v5978 = vrot.slane %v5851, %v5977
  %v5979 = vlaneseq
  %v5980 = vshrl.u32 %v5979, 7
  %v5981 = vsub.s32 1, %v5980
  %v5982 = vrot.slane %v5851, %v5981
  %5985 = vmatprep.subr.mxu0 %v5868
  %5986 = vmatpush1.xpose.msra.mxu0 %v5867
  %5987 = vmatprep.subr.mxu0 %v5870
  %5988 = vmatpush1.xpose.msra.mxu0 %v5869
  %5989 = vmatprep.subr.mxu0 0.0
  %5990 = vmatpush1.xpose.msra.mxu0 0.0
  %5991 = vmatprep.subr.mxu0 0.0
  %5992 = vmatpush1.xpose.msra.mxu0 0.0
  %5993 = vmatprep.subr.mxu0 0.0
  %5994 = vmatpush1.xpose.msra.mxu0 0.0
  %5995 = vmatprep.subr.mxu0 0.0
  %5996 = vmatpush1.xpose.msra.mxu0 0.0
  %5997 = vmatprep.subr.mxu0 0.0
  %5998 = vmatpush1.xpose.msra.mxu0 0.0
  %5999 = vmatprep.subr.mxu0 0.0
  %6000 = vmatpush1.xpose.msra.mxu0 0.0
  %6001 = vmatprep.subr.mxu0 0.0
  %6002 = vmatpush1.xpose.msra.mxu0 0.0
  %6003 = vmatprep.subr.mxu0 0.0
  %6004 = vmatpush1.xpose.msra.mxu0 0.0
  %6005 = vmatprep.subr.mxu0 0.0
  %6006 = vmatpush1.xpose.msra.mxu0 0.0
  %6007 = vmatprep.subr.mxu0 0.0
  %6008 = vmatpush1.xpose.msra.mxu0 0.0
  %6009 = vmatprep.subr.mxu0 0.0
  %6010 = vmatpush1.xpose.msra.mxu0 0.0
  %6011 = vmatprep.subr.mxu0 0.0
  %6012 = vmatpush1.xpose.msra.mxu0 0.0
  %6013 = vmatprep.subr.mxu0 0.0
  %6014 = vmatpush1.xpose.msra.mxu0 0.0
  %6015 = vmatprep.subr.mxu0 0.0
  %6016 = vmatpush1.xpose.msra.mxu0 0.0
  %6017 = vmatprep.subr.mxu0 0.0
  %6018 = vmatpush1.xpose.msra.mxu0 0.0
  %6019 = vmatprep.subr.mxu0 0.0
  %6020 = vmatpush1.xpose.msra.mxu0 0.0
  %6021 = vmatprep.subr.mxu0 0.0
  %6022 = vmatpush1.xpose.msra.mxu0 0.0
  %6023 = vmatprep.subr.mxu0 0.0
  %6024 = vmatpush1.xpose.msra.mxu0 0.0
  %6025 = vmatprep.subr.mxu0 0.0
  %6026 = vmatpush1.xpose.msra.mxu0 0.0
  %6027 = vmatprep.subr.mxu0 0.0
  %6028 = vmatpush1.xpose.msra.mxu0 0.0
  %6029 = vmatprep.subr.mxu0 0.0
  %6030 = vmatpush1.xpose.msra.mxu0 0.0
  %6031 = vmatprep.subr.mxu0 0.0
  %6032 = vmatpush1.xpose.msra.mxu0 0.0
  %6033 = vmatprep.subr.mxu0 0.0
  %6034 = vmatpush1.xpose.msra.mxu0 0.0
  %6035 = vmatprep.subr.mxu0 0.0
  %6036 = vmatpush1.xpose.msra.mxu0 0.0
  %6037 = vmatprep.subr.mxu0 0.0
  %6038 = vmatpush1.xpose.msra.mxu0 0.0
  %6039 = vmatprep.subr.mxu0 0.0
  %6040 = vmatpush1.xpose.msra.mxu0 0.0
  %6041 = vmatprep.subr.mxu0 0.0
  %6042 = vmatpush1.xpose.msra.mxu0 0.0
  %6043 = vmatprep.subr.mxu0 0.0
  %6044 = vmatpush1.xpose.msra.mxu0 0.0
  %6045 = vmatprep.subr.mxu0 0.0
  %6046 = vmatpush1.xpose.msra.mxu0 0.0
  %6047 = vmatprep.subr.mxu0 0.0
  %6048 = vmatpush1.xpose.msra.mxu0 0.0
  %6049 = vmatprep.mubr.f32.mxu0 %v5982
  %6050 = vmatmul.mubr.f32.gmra.mrb[0].mxu0 %v5978
  %v6051 = vpop.f32.mrb[0].mxu0
  %v6052 = vadd.f32 0.0, %v6051
  %v6053 = vpop.f32.mrb[0].mxu0
  %6054 = vdwg.mxu0
  %v6055 = vlaneseq
  %v6056 = vshrl.u32 %v6055, 7
  %v6057 = vsub.s32 0, %v6056
  %v6058 = vrot.slane %v5859, %v6057
  %v6059 = vlaneseq
  %v6060 = vshrl.u32 %v6059, 7
  %v6061 = vsub.s32 1, %v6060
  %v6062 = vrot.slane %v5859, %v6061
  %6065 = vmatprep.subr.mxu0 %v5872
  %6066 = vmatpush1.xpose.msra.mxu0 %v5871
  %6067 = vmatprep.subr.mxu0 %v5874
  %6068 = vmatpush1.xpose.msra.mxu0 %v5873
  %6069 = vmatprep.subr.mxu0 0.0
  %6070 = vmatpush1.xpose.msra.mxu0 0.0
  %6071 = vmatprep.subr.mxu0 0.0
  %6072 = vmatpush1.xpose.msra.mxu0 0.0
  %6073 = vmatprep.subr.mxu0 0.0
  %6074 = vmatpush1.xpose.msra.mxu0 0.0
  %6075 = vmatprep.subr.mxu0 0.0
  %6076 = vmatpush1.xpose.msra.mxu0 0.0
  %6077 = vmatprep.subr.mxu0 0.0
  %6078 = vmatpush1.xpose.msra.mxu0 0.0
  %6079 = vmatprep.subr.mxu0 0.0
  %6080 = vmatpush1.xpose.msra.mxu0 0.0
  %6081 = vmatprep.subr.mxu0 0.0
  %6082 = vmatpush1.xpose.msra.mxu0 0.0
  %6083 = vmatprep.subr.mxu0 0.0
  %6084 = vmatpush1.xpose.msra.mxu0 0.0
  %6085 = vmatprep.subr.mxu0 0.0
  %6086 = vmatpush1.xpose.msra.mxu0 0.0
  %6087 = vmatprep.subr.mxu0 0.0
  %6088 = vmatpush1.xpose.msra.mxu0 0.0
  %6089 = vmatprep.subr.mxu0 0.0
  %6090 = vmatpush1.xpose.msra.mxu0 0.0
  %6091 = vmatprep.subr.mxu0 0.0
  %6092 = vmatpush1.xpose.msra.mxu0 0.0
  %6093 = vmatprep.subr.mxu0 0.0
  %6094 = vmatpush1.xpose.msra.mxu0 0.0
  %6095 = vmatprep.subr.mxu0 0.0
  %6096 = vmatpush1.xpose.msra.mxu0 0.0
  %6097 = vmatprep.subr.mxu0 0.0
  %6098 = vmatpush1.xpose.msra.mxu0 0.0
  %6099 = vmatprep.subr.mxu0 0.0
  %6100 = vmatpush1.xpose.msra.mxu0 0.0
  %6101 = vmatprep.subr.mxu0 0.0
  %6102 = vmatpush1.xpose.msra.mxu0 0.0
  %6103 = vmatprep.subr.mxu0 0.0
  %6104 = vmatpush1.xpose.msra.mxu0 0.0
  %6105 = vmatprep.subr.mxu0 0.0
  %6106 = vmatpush1.xpose.msra.mxu0 0.0
  %6107 = vmatprep.subr.mxu0 0.0
  %6108 = vmatpush1.xpose.msra.mxu0 0.0
  %6109 = vmatprep.subr.mxu0 0.0
  %6110 = vmatpush1.xpose.msra.mxu0 0.0
  %6111 = vmatprep.subr.mxu0 0.0
  %6112 = vmatpush1.xpose.msra.mxu0 0.0
  %6113 = vmatprep.subr.mxu0 0.0
  %6114 = vmatpush1.xpose.msra.mxu0 0.0
  %6115 = vmatprep.subr.mxu0 0.0
  %6116 = vmatpush1.xpose.msra.mxu0 0.0
  %6117 = vmatprep.subr.mxu0 0.0
  %6118 = vmatpush1.xpose.msra.mxu0 0.0
  %6119 = vmatprep.subr.mxu0 0.0
  %6120 = vmatpush1.xpose.msra.mxu0 0.0
  %6121 = vmatprep.subr.mxu0 0.0
  %6122 = vmatpush1.xpose.msra.mxu0 0.0
  %6123 = vmatprep.subr.mxu0 0.0
  %6124 = vmatpush1.xpose.msra.mxu0 0.0
  %6125 = vmatprep.subr.mxu0 0.0
  %6126 = vmatpush1.xpose.msra.mxu0 0.0
  %6127 = vmatprep.subr.mxu0 0.0
  %6128 = vmatpush1.xpose.msra.mxu0 0.0
  %6129 = vmatprep.mubr.f32.mxu0 %v6062
  %6130 = vmatmul.mubr.f32.gmra.mrb[0].mxu0 %v6058
  %v6131 = vpop.f32.mrb[0].mxu0
  %v6132 = vadd.f32 0.0, %v6131
  %v6133 = vpop.f32.mrb[0].mxu0
  %6134 = vdwg.mxu0
  %v6135 = vlaneseq
  %v6136 = vshrl.u32 %v6135, 7
  %v6137 = vsub.s32 0, %v6136
  %v6138 = vrot.slane %v5861, %v6137
  %v6139 = vlaneseq
  %v6140 = vshrl.u32 %v6139, 7
  %v6141 = vsub.s32 1, %v6140
  %v6142 = vrot.slane %v5861, %v6141
  %6145 = vmatprep.subr.mxu0 %v5876
  %6146 = vmatpush1.xpose.msra.mxu0 %v5875
  %6147 = vmatprep.subr.mxu0 %v5878
  %6148 = vmatpush1.xpose.msra.mxu0 %v5877
  %6149 = vmatprep.subr.mxu0 0.0
  %6150 = vmatpush1.xpose.msra.mxu0 0.0
  %6151 = vmatprep.subr.mxu0 0.0
  %6152 = vmatpush1.xpose.msra.mxu0 0.0
  %6153 = vmatprep.subr.mxu0 0.0
  %6154 = vmatpush1.xpose.msra.mxu0 0.0
  %6155 = vmatprep.subr.mxu0 0.0
  %6156 = vmatpush1.xpose.msra.mxu0 0.0
  %6157 = vmatprep.subr.mxu0 0.0
  %6158 = vmatpush1.xpose.msra.mxu0 0.0
  %6159 = vmatprep.subr.mxu0 0.0
  %6160 = vmatpush1.xpose.msra.mxu0 0.0
  %6161 = vmatprep.subr.mxu0 0.0
  %6162 = vmatpush1.xpose.msra.mxu0 0.0
  %6163 = vmatprep.subr.mxu0 0.0
  %6164 = vmatpush1.xpose.msra.mxu0 0.0
  %6165 = vmatprep.subr.mxu0 0.0
  %6166 = vmatpush1.xpose.msra.mxu0 0.0
  %6167 = vmatprep.subr.mxu0 0.0
  %6168 = vmatpush1.xpose.msra.mxu0 0.0
  %6169 = vmatprep.subr.mxu0 0.0
  %6170 = vmatpush1.xpose.msra.mxu0 0.0
  %6171 = vmatprep.subr.mxu0 0.0
  %6172 = vmatpush1.xpose.msra.mxu0 0.0
  %6173 = vmatprep.subr.mxu0 0.0
  %6174 = vmatpush1.xpose.msra.mxu0 0.0
  %6175 = vmatprep.subr.mxu0 0.0
  %6176 = vmatpush1.xpose.msra.mxu0 0.0
  %6177 = vmatprep.subr.mxu0 0.0
  %6178 = vmatpush1.xpose.msra.mxu0 0.0
  %6179 = vmatprep.subr.mxu0 0.0
  %6180 = vmatpush1.xpose.msra.mxu0 0.0
  %6181 = vmatprep.subr.mxu0 0.0
  %6182 = vmatpush1.xpose.msra.mxu0 0.0
  %6183 = vmatprep.subr.mxu0 0.0
  %6184 = vmatpush1.xpose.msra.mxu0 0.0
  %6185 = vmatprep.subr.mxu0 0.0
  %6186 = vmatpush1.xpose.msra.mxu0 0.0
  %6187 = vmatprep.subr.mxu0 0.0
  %6188 = vmatpush1.xpose.msra.mxu0 0.0
  %6189 = vmatprep.subr.mxu0 0.0
  %6190 = vmatpush1.xpose.msra.mxu0 0.0
  %6191 = vmatprep.subr.mxu0 0.0
  %6192 = vmatpush1.xpose.msra.mxu0 0.0
  %6193 = vmatprep.subr.mxu0 0.0
  %6194 = vmatpush1.xpose.msra.mxu0 0.0
  %6195 = vmatprep.subr.mxu0 0.0
  %6196 = vmatpush1.xpose.msra.mxu0 0.0
  %6197 = vmatprep.subr.mxu0 0.0
  %6198 = vmatpush1.xpose.msra.mxu0 0.0
  %6199 = vmatprep.subr.mxu0 0.0
  %6200 = vmatpush1.xpose.msra.mxu0 0.0
  %6201 = vmatprep.subr.mxu0 0.0
  %6202 = vmatpush1.xpose.msra.mxu0 0.0
  %6203 = vmatprep.subr.mxu0 0.0
  %6204 = vmatpush1.xpose.msra.mxu0 0.0
  %6205 = vmatprep.subr.mxu0 0.0
  %6206 = vmatpush1.xpose.msra.mxu0 0.0
  %6207 = vmatprep.subr.mxu0 0.0
  %6208 = vmatpush1.xpose.msra.mxu0 0.0
  %6209 = vmatprep.mubr.f32.mxu0 %v6142
  %6210 = vmatmul.mubr.f32.gmra.mrb[0].mxu0 %v6138
  %v6211 = vpop.f32.mrb[0].mxu0
  %v6212 = vadd.f32 0.0, %v6211
  %v6213 = vpop.f32.mrb[0].mxu0
  %6214 = vdwg.mxu0
  %v6215 = vlaneseq
  %v6216 = vshrl.u32 %v6215, 7
  %v6217 = vsub.s32 0, %v6216
  %v6218 = vrot.slane %v5844, %v6217
  %v6219 = vlaneseq
  %v6220 = vshrl.u32 %v6219, 7
  %v6221 = vsub.s32 1, %v6220
  %v6222 = vrot.slane %v5844, %v6221
  %6225 = vmatprep.subr.mxu0 %v5880
  %6226 = vmatpush1.xpose.msra.mxu0 %v5879
  %6227 = vmatprep.subr.mxu0 %v5882
  %6228 = vmatpush1.xpose.msra.mxu0 %v5881
  %6229 = vmatprep.subr.mxu0 0.0
  %6230 = vmatpush1.xpose.msra.mxu0 0.0
  %6231 = vmatprep.subr.mxu0 0.0
  %6232 = vmatpush1.xpose.msra.mxu0 0.0
  %6233 = vmatprep.subr.mxu0 0.0
  %6234 = vmatpush1.xpose.msra.mxu0 0.0
  %6235 = vmatprep.subr.mxu0 0.0
  %6236 = vmatpush1.xpose.msra.mxu0 0.0
  %6237 = vmatprep.subr.mxu0 0.0
  %6238 = vmatpush1.xpose.msra.mxu0 0.0
  %6239 = vmatprep.subr.mxu0 0.0
  %6240 = vmatpush1.xpose.msra.mxu0 0.0
  %6241 = vmatprep.subr.mxu0 0.0
  %6242 = vmatpush1.xpose.msra.mxu0 0.0
  %6243 = vmatprep.subr.mxu0 0.0
  %6244 = vmatpush1.xpose.msra.mxu0 0.0
  %6245 = vmatprep.subr.mxu0 0.0
  %6246 = vmatpush1.xpose.msra.mxu0 0.0
  %6247 = vmatprep.subr.mxu0 0.0
  %6248 = vmatpush1.xpose.msra.mxu0 0.0
  %6249 = vmatprep.subr.mxu0 0.0
  %6250 = vmatpush1.xpose.msra.mxu0 0.0
  %6251 = vmatprep.subr.mxu0 0.0
  %6252 = vmatpush1.xpose.msra.mxu0 0.0
  %6253 = vmatprep.subr.mxu0 0.0
  %6254 = vmatpush1.xpose.msra.mxu0 0.0
  %6255 = vmatprep.subr.mxu0 0.0
  %6256 = vmatpush1.xpose.msra.mxu0 0.0
  %6257 = vmatprep.subr.mxu0 0.0
  %6258 = vmatpush1.xpose.msra.mxu0 0.0
  %6259 = vmatprep.subr.mxu0 0.0
  %6260 = vmatpush1.xpose.msra.mxu0 0.0
  %6261 = vmatprep.subr.mxu0 0.0
  %6262 = vmatpush1.xpose.msra.mxu0 0.0
  %6263 = vmatprep.subr.mxu0 0.0
  %6264 = vmatpush1.xpose.msra.mxu0 0.0
  %6265 = vmatprep.subr.mxu0 0.0
  %6266 = vmatpush1.xpose.msra.mxu0 0.0
  %6267 = vmatprep.subr.mxu0 0.0
  %6268 = vmatpush1.xpose.msra.mxu0 0.0
  %6269 = vmatprep.subr.mxu0 0.0
  %6270 = vmatpush1.xpose.msra.mxu0 0.0
  %6271 = vmatprep.subr.mxu0 0.0
  %6272 = vmatpush1.xpose.msra.mxu0 0.0
  %6273 = vmatprep.subr.mxu0 0.0
  %6274 = vmatpush1.xpose.msra.mxu0 0.0
  %6275 = vmatprep.subr.mxu0 0.0
  %6276 = vmatpush1.xpose.msra.mxu0 0.0
  %6277 = vmatprep.subr.mxu0 0.0
  %6278 = vmatpush1.xpose.msra.mxu0 0.0
  %6279 = vmatprep.subr.mxu0 0.0
  %6280 = vmatpush1.xpose.msra.mxu0 0.0
  %6281 = vmatprep.subr.mxu0 0.0
  %6282 = vmatpush1.xpose.msra.mxu0 0.0
  %6283 = vmatprep.subr.mxu0 0.0
  %6284 = vmatpush1.xpose.msra.mxu0 0.0
  %6285 = vmatprep.subr.mxu0 0.0
  %6286 = vmatpush1.xpose.msra.mxu0 0.0
  %6287 = vmatprep.subr.mxu0 0.0
  %6288 = vmatpush1.xpose.msra.mxu0 0.0
  %6289 = vmatprep.mubr.f32.mxu0 %v6222
  %6290 = vmatmul.mubr.f32.gmra.mrb[0].mxu0 %v6218
  %v6291 = vpop.f32.mrb[0].mxu0
  %v6292 = vadd.f32 0.0, %v6291
  %v6293 = vpop.f32.mrb[0].mxu0
  %6294 = vdwg.mxu0
  %v6295 = vlaneseq
  %v6296 = vshrl.u32 %v6295, 7
  %v6297 = vsub.s32 0, %v6296
  %v6298 = vrot.slane %v5858, %v6297
  %v6299 = vlaneseq
  %v6300 = vshrl.u32 %v6299, 7
  %v6301 = vsub.s32 1, %v6300
  %v6302 = vrot.slane %v5858, %v6301
  %6305 = vmatprep.subr.mxu0 %v5884
  %6306 = vmatpush1.xpose.msra.mxu0 %v5883
  %6307 = vmatprep.subr.mxu0 %v5886
  %6308 = vmatpush1.xpose.msra.mxu0 %v5885
  %6309 = vmatprep.subr.mxu0 0.0
  %6310 = vmatpush1.xpose.msra.mxu0 0.0
  %6311 = vmatprep.subr.mxu0 0.0
  %6312 = vmatpush1.xpose.msra.mxu0 0.0
  %6313 = vmatprep.subr.mxu0 0.0
  %6314 = vmatpush1.xpose.msra.mxu0 0.0
  %6315 = vmatprep.subr.mxu0 0.0
  %6316 = vmatpush1.xpose.msra.mxu0 0.0
  %6317 = vmatprep.subr.mxu0 0.0
  %6318 = vmatpush1.xpose.msra.mxu0 0.0
  %6319 = vmatprep.subr.mxu0 0.0
  %6320 = vmatpush1.xpose.msra.mxu0 0.0
  %6321 = vmatprep.subr.mxu0 0.0
  %6322 = vmatpush1.xpose.msra.mxu0 0.0
  %6323 = vmatprep.subr.mxu0 0.0
  %6324 = vmatpush1.xpose.msra.mxu0 0.0
  %6325 = vmatprep.subr.mxu0 0.0
  %6326 = vmatpush1.xpose.msra.mxu0 0.0
  %6327 = vmatprep.subr.mxu0 0.0
  %6328 = vmatpush1.xpose.msra.mxu0 0.0
  %6329 = vmatprep.subr.mxu0 0.0
  %6330 = vmatpush1.xpose.msra.mxu0 0.0
  %6331 = vmatprep.subr.mxu0 0.0
  %6332 = vmatpush1.xpose.msra.mxu0 0.0
  %6333 = vmatprep.subr.mxu0 0.0
  %6334 = vmatpush1.xpose.msra.mxu0 0.0
  %6335 = vmatprep.subr.mxu0 0.0
  %6336 = vmatpush1.xpose.msra.mxu0 0.0
  %6337 = vmatprep.subr.mxu0 0.0
  %6338 = vmatpush1.xpose.msra.mxu0 0.0
  %6339 = vmatprep.subr.mxu0 0.0
  %6340 = vmatpush1.xpose.msra.mxu0 0.0
  %6341 = vmatprep.subr.mxu0 0.0
  %6342 = vmatpush1.xpose.msra.mxu0 0.0
  %6343 = vmatprep.subr.mxu0 0.0
  %6344 = vmatpush1.xpose.msra.mxu0 0.0
  %6345 = vmatprep.subr.mxu0 0.0
  %6346 = vmatpush1.xpose.msra.mxu0 0.0
  %6347 = vmatprep.subr.mxu0 0.0
  %6348 = vmatpush1.xpose.msra.mxu0 0.0
  %6349 = vmatprep.subr.mxu0 0.0
  %6350 = vmatpush1.xpose.msra.mxu0 0.0
  %6351 = vmatprep.subr.mxu0 0.0
  %6352 = vmatpush1.xpose.msra.mxu0 0.0
  %6353 = vmatprep.subr.mxu0 0.0
  %6354 = vmatpush1.xpose.msra.mxu0 0.0
  %6355 = vmatprep.subr.mxu0 0.0
  %6356 = vmatpush1.xpose.msra.mxu0 0.0
  %6357 = vmatprep.subr.mxu0 0.0
  %6358 = vmatpush1.xpose.msra.mxu0 0.0
  %6359 = vmatprep.subr.mxu0 0.0
  %6360 = vmatpush1.xpose.msra.mxu0 0.0
  %6361 = vmatprep.subr.mxu0 0.0
  %6362 = vmatpush1.xpose.msra.mxu0 0.0
  %6363 = vmatprep.subr.mxu0 0.0
  %6364 = vmatpush1.xpose.msra.mxu0 0.0
  %6365 = vmatprep.subr.mxu0 0.0
  %6366 = vmatpush1.xpose.msra.mxu0 0.0
  %6367 = vmatprep.subr.mxu0 0.0
  %6368 = vmatpush1.xpose.msra.mxu0 0.0
  %6369 = vmatprep.mubr.f32.mxu0 %v6302
  %6370 = vmatmul.mubr.f32.gmra.mrb[0].mxu0 %v6298
  %v6371 = vpop.f32.mrb[0].mxu0
  %v6372 = vadd.f32 0.0, %v6371
  %v6373 = vpop.f32.mrb[0].mxu0
  %6374 = vdwg.mxu0
  %v6375 = vlaneseq
  %v6376 = vshrl.u32 %v6375, 7
  %v6377 = vsub.s32 0, %v6376
  %v6378 = vrot.slane %v5860, %v6377
  %v6379 = vlaneseq
  %v6380 = vshrl.u32 %v6379, 7
  %v6381 = vsub.s32 1, %v6380
  %v6382 = vrot.slane %v5860, %v6381
  %6385 = vmatprep.subr.mxu0 %v5888
  %6386 = vmatpush1.xpose.msra.mxu0 %v5887
  %6387 = vmatprep.subr.mxu0 %v5890
  %6388 = vmatpush1.xpose.msra.mxu0 %v5889
  %6389 = vmatprep.subr.mxu0 0.0
  %6390 = vmatpush1.xpose.msra.mxu0 0.0
  %6391 = vmatprep.subr.mxu0 0.0
  %6392 = vmatpush1.xpose.msra.mxu0 0.0
  %6393 = vmatprep.subr.mxu0 0.0
  %6394 = vmatpush1.xpose.msra.mxu0 0.0
  %6395 = vmatprep.subr.mxu0 0.0
  %6396 = vmatpush1.xpose.msra.mxu0 0.0
  %6397 = vmatprep.subr.mxu0 0.0
  %6398 = vmatpush1.xpose.msra.mxu0 0.0
  %6399 = vmatprep.subr.mxu0 0.0
  %6400 = vmatpush1.xpose.msra.mxu0 0.0
  %6401 = vmatprep.subr.mxu0 0.0
  %6402 = vmatpush1.xpose.msra.mxu0 0.0
  %6403 = vmatprep.subr.mxu0 0.0
  %6404 = vmatpush1.xpose.msra.mxu0 0.0
  %6405 = vmatprep.subr.mxu0 0.0
  %6406 = vmatpush1.xpose.msra.mxu0 0.0
  %6407 = vmatprep.subr.mxu0 0.0
  %6408 = vmatpush1.xpose.msra.mxu0 0.0
  %6409 = vmatprep.subr.mxu0 0.0
  %6410 = vmatpush1.xpose.msra.mxu0 0.0
  %6411 = vmatprep.subr.mxu0 0.0
  %6412 = vmatpush1.xpose.msra.mxu0 0.0
  %6413 = vmatprep.subr.mxu0 0.0
  %6414 = vmatpush1.xpose.msra.mxu0 0.0
  %6415 = vmatprep.subr.mxu0 0.0
  %6416 = vmatpush1.xpose.msra.mxu0 0.0
  %6417 = vmatprep.subr.mxu0 0.0
  %6418 = vmatpush1.xpose.msra.mxu0 0.0
  %6419 = vmatprep.subr.mxu0 0.0
  %6420 = vmatpush1.xpose.msra.mxu0 0.0
  %6421 = vmatprep.subr.mxu0 0.0
  %6422 = vmatpush1.xpose.msra.mxu0 0.0
  %6423 = vmatprep.subr.mxu0 0.0
  %6424 = vmatpush1.xpose.msra.mxu0 0.0
  %6425 = vmatprep.subr.mxu0 0.0
  %6426 = vmatpush1.xpose.msra.mxu0 0.0
  %6427 = vmatprep.subr.mxu0 0.0
  %6428 = vmatpush1.xpose.msra.mxu0 0.0
  %6429 = vmatprep.subr.mxu0 0.0
  %6430 = vmatpush1.xpose.msra.mxu0 0.0
  %6431 = vmatprep.subr.mxu0 0.0
  %6432 = vmatpush1.xpose.msra.mxu0 0.0
  %6433 = vmatprep.subr.mxu0 0.0
  %6434 = vmatpush1.xpose.msra.mxu0 0.0
  %6435 = vmatprep.subr.mxu0 0.0
  %6436 = vmatpush1.xpose.msra.mxu0 0.0
  %6437 = vmatprep.subr.mxu0 0.0
  %6438 = vmatpush1.xpose.msra.mxu0 0.0
  %6439 = vmatprep.subr.mxu0 0.0
  %6440 = vmatpush1.xpose.msra.mxu0 0.0
  %6441 = vmatprep.subr.mxu0 0.0
  %6442 = vmatpush1.xpose.msra.mxu0 0.0
  %6443 = vmatprep.subr.mxu0 0.0
  %6444 = vmatpush1.xpose.msra.mxu0 0.0
  %6445 = vmatprep.subr.mxu0 0.0
  %6446 = vmatpush1.xpose.msra.mxu0 0.0
  %6447 = vmatprep.subr.mxu0 0.0
  %6448 = vmatpush1.xpose.msra.mxu0 0.0
  %6449 = vmatprep.mubr.f32.mxu0 %v6382
  %6450 = vmatmul.mubr.f32.gmra.mrb[0].mxu0 %v6378
  %v6451 = vpop.f32.mrb[0].mxu0
  %v6452 = vadd.f32 0.0, %v6451
  %v6453 = vpop.f32.mrb[0].mxu0
  %6454 = vdwg.mxu0
  %v6455 = vlaneseq
  %v6456 = vshrl.u32 %v6455, 7
  %v6457 = vsub.s32 0, %v6456
  %v6458 = vrot.slane %v5862, %v6457
  %v6459 = vlaneseq
  %v6460 = vshrl.u32 %v6459, 7
  %v6461 = vsub.s32 1, %v6460
  %v6462 = vrot.slane %v5862, %v6461
  %6465 = vmatprep.subr.mxu0 %v5892
  %6466 = vmatpush1.xpose.msra.mxu0 %v5891
  %6467 = vmatprep.subr.mxu0 %v5894
  %6468 = vmatpush1.xpose.msra.mxu0 %v5893
  %6469 = vmatprep.subr.mxu0 0.0
  %6470 = vmatpush1.xpose.msra.mxu0 0.0
  %6471 = vmatprep.subr.mxu0 0.0
  %6472 = vmatpush1.xpose.msra.mxu0 0.0
  %6473 = vmatprep.subr.mxu0 0.0
  %6474 = vmatpush1.xpose.msra.mxu0 0.0
  %6475 = vmatprep.subr.mxu0 0.0
  %6476 = vmatpush1.xpose.msra.mxu0 0.0
  %6477 = vmatprep.subr.mxu0 0.0
  %6478 = vmatpush1.xpose.msra.mxu0 0.0
  %6479 = vmatprep.subr.mxu0 0.0
  %6480 = vmatpush1.xpose.msra.mxu0 0.0
  %6481 = vmatprep.subr.mxu0 0.0
  %6482 = vmatpush1.xpose.msra.mxu0 0.0
  %6483 = vmatprep.subr.mxu0 0.0
  %6484 = vmatpush1.xpose.msra.mxu0 0.0
  %6485 = vmatprep.subr.mxu0 0.0
  %6486 = vmatpush1.xpose.msra.mxu0 0.0
  %6487 = vmatprep.subr.mxu0 0.0
  %6488 = vmatpush1.xpose.msra.mxu0 0.0
  %6489 = vmatprep.subr.mxu0 0.0
  %6490 = vmatpush1.xpose.msra.mxu0 0.0
  %6491 = vmatprep.subr.mxu0 0.0
  %6492 = vmatpush1.xpose.msra.mxu0 0.0
  %6493 = vmatprep.subr.mxu0 0.0
  %6494 = vmatpush1.xpose.msra.mxu0 0.0
  %6495 = vmatprep.subr.mxu0 0.0
  %6496 = vmatpush1.xpose.msra.mxu0 0.0
  %6497 = vmatprep.subr.mxu0 0.0
  %6498 = vmatpush1.xpose.msra.mxu0 0.0
  %6499 = vmatprep.subr.mxu0 0.0
  %6500 = vmatpush1.xpose.msra.mxu0 0.0
  %6501 = vmatprep.subr.mxu0 0.0
  %6502 = vmatpush1.xpose.msra.mxu0 0.0
  %6503 = vmatprep.subr.mxu0 0.0
  %6504 = vmatpush1.xpose.msra.mxu0 0.0
  %6505 = vmatprep.subr.mxu0 0.0
  %6506 = vmatpush1.xpose.msra.mxu0 0.0
  %6507 = vmatprep.subr.mxu0 0.0
  %6508 = vmatpush1.xpose.msra.mxu0 0.0
  %6509 = vmatprep.subr.mxu0 0.0
  %6510 = vmatpush1.xpose.msra.mxu0 0.0
  %6511 = vmatprep.subr.mxu0 0.0
  %6512 = vmatpush1.xpose.msra.mxu0 0.0
  %6513 = vmatprep.subr.mxu0 0.0
  %6514 = vmatpush1.xpose.msra.mxu0 0.0
  %6515 = vmatprep.subr.mxu0 0.0
  %6516 = vmatpush1.xpose.msra.mxu0 0.0
  %6517 = vmatprep.subr.mxu0 0.0
  %6518 = vmatpush1.xpose.msra.mxu0 0.0
  %6519 = vmatprep.subr.mxu0 0.0
  %6520 = vmatpush1.xpose.msra.mxu0 0.0
  %6521 = vmatprep.subr.mxu0 0.0
  %6522 = vmatpush1.xpose.msra.mxu0 0.0
  %6523 = vmatprep.subr.mxu0 0.0
  %6524 = vmatpush1.xpose.msra.mxu0 0.0
  %6525 = vmatprep.subr.mxu0 0.0
  %6526 = vmatpush1.xpose.msra.mxu0 0.0
  %6527 = vmatprep.subr.mxu0 0.0
  %6528 = vmatpush1.xpose.msra.mxu0 0.0
  %6529 = vmatprep.mubr.f32.mxu0 %v6462
  %6530 = vmatmul.mubr.f32.gmra.mrb[0].mxu0 %v6458
  %v6531 = vpop.f32.mrb[0].mxu0
  %v6532 = vadd.f32 0.0, %v6531
  %v6533 = vpop.f32.mrb[0].mxu0
  %6534 = vdwg.mxu0
  %v6543 = vrot.slane %v6052, 7
  %v6544 = vsel %vm962, %v6543, %v5972
  %v6545 = vrot.slane %v6132, 6
  %v6546 = vsel %vm965, %v6545, %v6544
  %v6547 = vrot.slane %v6212, 5
  %v6548 = vsel %vm968, %v6547, %v6546
  %v6549 = vrot.slane %v6292, 4
  %v6550 = vsel %vm971, %v6549, %v6548
  %v6551 = vrot.slane %v6372, 3
  %v6552 = vsel %vm974, %v6551, %v6550
  %v6553 = vrot.slane %v6452, 2
  %v6554 = vsel %vm977, %v6553, %v6552
  %v6555 = vrot.slane %v6532, 1
  %v6556 = vsel %vm980, %v6555, %v6554
  %v6558 = vsel %vm983, %v6556, 0.0
  %v6559 = vrot.slane %v6558, 4
  %v6560 = vadd.f32 %v6558, %v6559
  %v6561 = vrot.slane %v6560, 2
  %v6562 = vadd.f32 %v6560, %v6561
  %v6563 = vrot.slane %v6562, 1
  %v6564 = vadd.f32 %v6562, %v6563
  %v6565 = vadd.f32 %v6564, %v25
  %s6566 = scalar_lea.vmem %s0, 56
  %v6567 = vld [vmem:[%s6566] sm:$0xff]
  %v6569 = vcombine.high %v6567, %v6567
  %6571 = vrot.lane.b32.xlu0 %v6567, 17
  %v6572 = vpop.permute.xlu0 %6571
  %6573 = vrot.lane.b32.xlu0 %v6569, 17
  %v6574 = vpop.permute.xlu0 %6573
  %v6575 = vsel %vm46, %v6572, %v6574
  %v6576 = vsel %vm46, %v6574, %v6572
  %6577 = vrot.lane.b32.xlu0 %v6567, 16
  %v6578 = vpop.permute.xlu0 %6577
  %6579 = vrot.lane.b32.xlu0 %v6569, 16
  %v6580 = vpop.permute.xlu0 %6579
  %v6581 = vsel %vm53, %v6578, %v6580
  %v6582 = vsel %vm53, %v6580, %v6578
  %6583 = vrot.lane.b32.xlu0 %v6567, 15
  %v6584 = vpop.permute.xlu0 %6583
  %6585 = vrot.lane.b32.xlu0 %v6569, 15
  %v6586 = vpop.permute.xlu0 %6585
  %v6587 = vsel %vm60, %v6584, %v6586
  %v6588 = vsel %vm60, %v6586, %v6584
  %6589 = vrot.lane.b32.xlu0 %v6567, 1
  %v6590 = vpop.permute.xlu0 %6589
  %6591 = vrot.lane.b32.xlu0 %v6569, 1
  %v6592 = vpop.permute.xlu0 %6591
  %v6593 = vsel %vm67, %v6590, %v6592
  %v6594 = vsel %vm67, %v6592, %v6590
  %6595 = vrot.lane.b32.xlu0 %v6567, 127
  %v6596 = vpop.permute.xlu0 %6595
  %6597 = vrot.lane.b32.xlu0 %v6569, 127
  %v6598 = vpop.permute.xlu0 %6597
  %v6599 = vsel %vm74, %v6596, %v6598
  %v6600 = vsel %vm74, %v6598, %v6596
  %6601 = vrot.lane.b32.xlu0 %v6567, 113
  %v6602 = vpop.permute.xlu0 %6601
  %6603 = vrot.lane.b32.xlu0 %v6569, 113
  %v6604 = vpop.permute.xlu0 %6603
  %v6605 = vsel %vm81, %v6602, %v6604
  %v6606 = vsel %vm81, %v6604, %v6602
  %6607 = vrot.lane.b32.xlu0 %v6567, 112
  %v6608 = vpop.permute.xlu0 %6607
  %6609 = vrot.lane.b32.xlu0 %v6569, 112
  %v6610 = vpop.permute.xlu0 %6609
  %v6611 = vsel %vm88, %v6608, %v6610
  %v6612 = vsel %vm88, %v6610, %v6608
  %6613 = vrot.lane.b32.xlu0 %v6567, 111
  %v6614 = vpop.permute.xlu0 %6613
  %6615 = vrot.lane.b32.xlu0 %v6569, 111
  %v6616 = vpop.permute.xlu0 %6615
  %v6617 = vsel %vm95, %v6614, %v6616
  %v6618 = vsel %vm95, %v6616, %v6614
  %v6621 = vrot.slane %v6582, 4
  %v6622 = vrot.slane %v6581, 4
  %v6627 = vrot.slane %v6594, 4
  %v6628 = vrot.slane %v6593, 4
  %v6633 = vrot.slane %v6599, 4
  %v6634 = vrot.slane %v6600, 4
  %v6639 = vrot.slane %v6611, 4
  %v6640 = vrot.slane %v6612, 4
  %v6643 = vsel %vm122, %v6576, %v6621
  %v6644 = vsel %vm122, %v6575, %v6622
  %v6645 = vsel %vm122, %v6588, %v6627
  %v6646 = vsel %vm122, %v6587, %v6628
  %v6647 = vsel %vm122, %v6567, %v6633
  %v6648 = vsel %vm122, %v6569, %v6634
  %v6649 = vsel %vm122, %v6605, %v6639
  %v6650 = vsel %vm122, %v6606, %v6640
  %v6651 = vmul.f32 %v6643, %v26
  %v6652 = vmul.f32 %v6644, %v27
  %v6653 = vmul.f32 %v6645, %v28
  %v6654 = vmul.f32 %v6646, %v29
  %v6655 = vmul.f32 %v6647, %v30
  %v6656 = vmul.f32 %v6648, %v31
  %v6657 = vmul.f32 %v6649, %v32
  %v6658 = vmul.f32 %v6650, %v33
  %v6659 = vmul.f32 %v6617, %v34
  %v6660 = vmul.f32 %v6618, %v35
  %v6662 = vsel %vm122, %v6659, 0
  %v6665 = vsel %vm122, %v6660, 0
  %6667 = vmatprep.subr.mxu0 %v6652
  %6668 = vmatpush1.msra.mxu0 %v6651
  %6669 = vmatprep.subr.mxu0 %v6654
  %6670 = vmatpush1.msra.mxu0 %v6653
  %6671 = vmatprep.subr.mxu0 %v6656
  %6672 = vmatpush1.msra.mxu0 %v6655
  %6673 = vmatprep.subr.mxu0 %v6658
  %6674 = vmatpush1.msra.mxu0 %v6657
  %6675 = vmatprep.subr.mxu0 %v6665
  %6676 = vmatpush1.msra.mxu0 %v6662
  %6677 = vmatprep.subr.mxu0 0.0
  %6678 = vmatpush1.msra.mxu0 0.0
  %6679 = vmatprep.subr.mxu0 0.0
  %6680 = vmatpush1.msra.mxu0 0.0
  %6681 = vmatprep.subr.mxu0 0.0
  %6682 = vmatpush1.msra.mxu0 0.0
  %6683 = vmatprep.subr.mxu0 0.0
  %6684 = vmatpush1.msra.mxu0 0.0
  %6685 = vmatprep.subr.mxu0 0.0
  %6686 = vmatpush1.msra.mxu0 0.0
  %6687 = vmatprep.subr.mxu0 0.0
  %6688 = vmatpush1.msra.mxu0 0.0
  %6689 = vmatprep.subr.mxu0 0.0
  %6690 = vmatpush1.msra.mxu0 0.0
  %6691 = vmatprep.subr.mxu0 0.0
  %6692 = vmatpush1.msra.mxu0 0.0
  %6693 = vmatprep.subr.mxu0 0.0
  %6694 = vmatpush1.msra.mxu0 0.0
  %6695 = vmatprep.subr.mxu0 0.0
  %6696 = vmatpush1.msra.mxu0 0.0
  %6697 = vmatprep.subr.mxu0 0.0
  %6698 = vmatpush1.msra.mxu0 0.0
  %6699 = vmatprep.subr.mxu0 0.0
  %6700 = vmatpush1.msra.mxu0 0.0
  %6701 = vmatprep.subr.mxu0 0.0
  %6702 = vmatpush1.msra.mxu0 0.0
  %6703 = vmatprep.subr.mxu0 0.0
  %6704 = vmatpush1.msra.mxu0 0.0
  %6705 = vmatprep.subr.mxu0 0.0
  %6706 = vmatpush1.msra.mxu0 0.0
  %6707 = vmatprep.subr.mxu0 0.0
  %6708 = vmatpush1.msra.mxu0 0.0
  %6709 = vmatprep.subr.mxu0 0.0
  %6710 = vmatpush1.msra.mxu0 0.0
  %6711 = vmatprep.subr.mxu0 0.0
  %6712 = vmatpush1.msra.mxu0 0.0
  %6713 = vmatprep.subr.mxu0 0.0
  %6714 = vmatpush1.msra.mxu0 0.0
  %6715 = vmatprep.subr.mxu0 0.0
  %6716 = vmatpush1.msra.mxu0 0.0
  %6717 = vmatprep.subr.mxu0 0.0
  %6718 = vmatpush1.msra.mxu0 0.0
  %6719 = vmatprep.subr.mxu0 0.0
  %6720 = vmatpush1.msra.mxu0 0.0
  %6721 = vmatprep.subr.mxu0 0.0
  %6722 = vmatpush1.msra.mxu0 0.0
  %6723 = vmatprep.subr.mxu0 0.0
  %6724 = vmatpush1.msra.mxu0 0.0
  %6725 = vmatprep.subr.mxu0 0.0
  %6726 = vmatpush1.msra.mxu0 0.0
  %6727 = vmatprep.subr.mxu0 0.0
  %6728 = vmatpush1.msra.mxu0 0.0
  %6729 = vmatprep.subr.mxu0 0.0
  %6730 = vmatpush1.msra.mxu0 0.0
  %6731 = vmatprep.mubr.f32.mxu0 0.0
  %6732 = vmatmul.mubr.f32.gmra.mrb[0].mxu0 %v148
  %v6733 = vpop.f32.mrb[0].mxu0
  %v6734 = vadd.f32 %v144, %v6733
  %v6735 = vpop.f32.mrb[0].mxu0
  %v6736 = vadd.f32 %v144, %v6735
  %6737 = vdwg.mxu0
  %v6738 = vmax.f32 %v6734, 0.0
  %v6739 = vmax.f32 %v6736, 0.0
  %v6742 = vcombine.low %v6738, %v6739
  %v6743 = vcombine.high %v6738, %v6739
  %v6745 = vunpack.c.l.s4 1966171168
  %v6746 = vunpack.c.0.s8 %v6745
  %v6747 = vlaneseq
  %v6748 = vshrl.u32 %v6747, 7
  %v6749 = vsub.s32 %v6746, %v6748
  %v6750 = vrot.slane %v6742, %v6749
  %v6752 = vunpack.c.l.s4 1966171168
  %v6753 = vunpack.c.0.s8 %v6752
  %v6754 = vlaneseq
  %v6755 = vshrl.u32 %v6754, 7
  %v6756 = vsub.s32 %v6753, %v6755
  %v6757 = vrot.slane %v6743, %v6756
  %v6758 = vcombine.high %v6750, %v6750
  %v6759 = vcombine.high %v6757, %v6757
  %v6761 = vunpack.c.l.s4 1966171168
  %v6762 = vunpack.c.0.s8 %v6761
  %v6763 = vlaneseq
  %v6764 = vshrl.u32 %v6763, 7
  %v6765 = vsub.s32 %v6762, %v6764
  %v6766 = vrot.slane %v6750, %v6765
  %v6768 = vunpack.c.l.s4 1966171168
  %v6769 = vunpack.c.0.s8 %v6768
  %v6770 = vlaneseq
  %v6771 = vshrl.u32 %v6770, 7
  %v6772 = vsub.s32 %v6769, %v6771
  %v6773 = vrot.slane %v6757, %v6772
  %v6775 = vunpack.c.l.s4 1966171168
  %v6776 = vunpack.c.0.s8 %v6775
  %v6777 = vlaneseq
  %v6778 = vshrl.u32 %v6777, 7
  %v6779 = vsub.s32 %v6776, %v6778
  %v6780 = vrot.slane %v6758, %v6779
  %v6782 = vunpack.c.l.s4 1966171168
  %v6783 = vunpack.c.0.s8 %v6782
  %v6784 = vlaneseq
  %v6785 = vshrl.u32 %v6784, 7
  %v6786 = vsub.s32 %v6783, %v6785
  %v6787 = vrot.slane %v6759, %v6786
  %v6788 = vcombine.high %v6766, %v6766
  %v6789 = vcombine.high %v6773, %v6773
  %v6790 = vcombine.high %v6780, %v6780
  %v6791 = vcombine.high %v6787, %v6787
  %v6792 = vld [vmem:[%s3] sm:$0xff]
  %v6793 = vld [vmem:[%s3 + $0x8] sm:$0xff]
  %v6794 = vld [vmem:[%s3 + $0x10] sm:$0x3]
  %v6795 = vld [vmem:[%s3 + $0x18] sm:$0x3]
  %v6796 = vld [vmem:[%s3 + $0x20] sm:$0xff]
  %v6797 = vld [vmem:[%s3 + $0x28] sm:$0xff]
  %v6798 = vld [vmem:[%s3 + $0x30] sm:$0x3]
  %v6799 = vld [vmem:[%s3 + $0x38] sm:$0x3]
  %v6800 = vld [vmem:[%s3 + $0x40] sm:$0xff]
  %v6801 = vld [vmem:[%s3 + $0x48] sm:$0xff]
  %v6802 = vld [vmem:[%s3 + $0x50] sm:$0x3]
  %v6803 = vld [vmem:[%s3 + $0x58] sm:$0x3]
  %v6804 = vld [vmem:[%s3 + $0x60] sm:$0xff]
  %v6805 = vld [vmem:[%s3 + $0x68] sm:$0xff]
  %v6806 = vld [vmem:[%s3 + $0x70] sm:$0x3]
  %v6807 = vld [vmem:[%s3 + $0x78] sm:$0x3]
  %v6808 = vld [vmem:[%s3 + $0x80] sm:$0xff]
  %v6809 = vld [vmem:[%s3 + $0x88] sm:$0xff]
  %v6810 = vld [vmem:[%s3 + $0x90] sm:$0x3]
  %v6811 = vld [vmem:[%s3 + $0x98] sm:$0x3]
  %v6812 = vld [vmem:[%s3 + $0xa0] sm:$0xff]
  %v6813 = vld [vmem:[%s3 + $0xa8] sm:$0xff]
  %v6814 = vld [vmem:[%s3 + $0xb0] sm:$0x3]
  %v6815 = vld [vmem:[%s3 + $0xb8] sm:$0x3]
  %v6816 = vld [vmem:[%s3 + $0xc0] sm:$0xff]
  %v6817 = vld [vmem:[%s3 + $0xc8] sm:$0xff]
  %v6818 = vld [vmem:[%s3 + $0xd0] sm:$0x3]
  %v6819 = vld [vmem:[%s3 + $0xd8] sm:$0x3]
  %v6820 = vld [vmem:[%s3 + $0xe0] sm:$0xff]
  %v6821 = vld [vmem:[%s3 + $0xe8] sm:$0xff]
  %v6822 = vld [vmem:[%s3 + $0xf0] sm:$0x3]
  %v6823 = vld [vmem:[%s3 + $0xf8] sm:$0x3]
  %v6824 = vlaneseq
  %v6825 = vshrl.u32 %v6824, 7
  %v6826 = vsub.s32 0, %v6825
  %v6827 = vrot.slane %v6766, %v6826
  %v6828 = vlaneseq
  %v6829 = vshrl.u32 %v6828, 7
  %v6830 = vsub.s32 1, %v6829
  %v6831 = vrot.slane %v6766, %v6830
  %6834 = vmatprep.subr.mxu0 %v6793
  %6835 = vmatpush1.xpose.msra.mxu0 %v6792
  %6836 = vmatprep.subr.mxu0 %v6795
  %6837 = vmatpush1.xpose.msra.mxu0 %v6794
  %6838 = vmatprep.subr.mxu0 0.0
  %6839 = vmatpush1.xpose.msra.mxu0 0.0
  %6840 = vmatprep.subr.mxu0 0.0
  %6841 = vmatpush1.xpose.msra.mxu0 0.0
  %6842 = vmatprep.subr.mxu0 0.0
  %6843 = vmatpush1.xpose.msra.mxu0 0.0
  %6844 = vmatprep.subr.mxu0 0.0
  %6845 = vmatpush1.xpose.msra.mxu0 0.0
  %6846 = vmatprep.subr.mxu0 0.0
  %6847 = vmatpush1.xpose.msra.mxu0 0.0
  %6848 = vmatprep.subr.mxu0 0.0
  %6849 = vmatpush1.xpose.msra.mxu0 0.0
  %6850 = vmatprep.subr.mxu0 0.0
  %6851 = vmatpush1.xpose.msra.mxu0 0.0
  %6852 = vmatprep.subr.mxu0 0.0
  %6853 = vmatpush1.xpose.msra.mxu0 0.0
  %6854 = vmatprep.subr.mxu0 0.0
  %6855 = vmatpush1.xpose.msra.mxu0 0.0
  %6856 = vmatprep.subr.mxu0 0.0
  %6857 = vmatpush1.xpose.msra.mxu0 0.0
  %6858 = vmatprep.subr.mxu0 0.0
  %6859 = vmatpush1.xpose.msra.mxu0 0.0
  %6860 = vmatprep.subr.mxu0 0.0
  %6861 = vmatpush1.xpose.msra.mxu0 0.0
  %6862 = vmatprep.subr.mxu0 0.0
  %6863 = vmatpush1.xpose.msra.mxu0 0.0
  %6864 = vmatprep.subr.mxu0 0.0
  %6865 = vmatpush1.xpose.msra.mxu0 0.0
  %6866 = vmatprep.subr.mxu0 0.0
  %6867 = vmatpush1.xpose.msra.mxu0 0.0
  %6868 = vmatprep.subr.mxu0 0.0
  %6869 = vmatpush1.xpose.msra.mxu0 0.0
  %6870 = vmatprep.subr.mxu0 0.0
  %6871 = vmatpush1.xpose.msra.mxu0 0.0
  %6872 = vmatprep.subr.mxu0 0.0
  %6873 = vmatpush1.xpose.msra.mxu0 0.0
  %6874 = vmatprep.subr.mxu0 0.0
  %6875 = vmatpush1.xpose.msra.mxu0 0.0
  %6876 = vmatprep.subr.mxu0 0.0
  %6877 = vmatpush1.xpose.msra.mxu0 0.0
  %6878 = vmatprep.subr.mxu0 0.0
  %6879 = vmatpush1.xpose.msra.mxu0 0.0
  %6880 = vmatprep.subr.mxu0 0.0
  %6881 = vmatpush1.xpose.msra.mxu0 0.0
  %6882 = vmatprep.subr.mxu0 0.0
  %6883 = vmatpush1.xpose.msra.mxu0 0.0
  %6884 = vmatprep.subr.mxu0 0.0
  %6885 = vmatpush1.xpose.msra.mxu0 0.0
  %6886 = vmatprep.subr.mxu0 0.0
  %6887 = vmatpush1.xpose.msra.mxu0 0.0
  %6888 = vmatprep.subr.mxu0 0.0
  %6889 = vmatpush1.xpose.msra.mxu0 0.0
  %6890 = vmatprep.subr.mxu0 0.0
  %6891 = vmatpush1.xpose.msra.mxu0 0.0
  %6892 = vmatprep.subr.mxu0 0.0
  %6893 = vmatpush1.xpose.msra.mxu0 0.0
  %6894 = vmatprep.subr.mxu0 0.0
  %6895 = vmatpush1.xpose.msra.mxu0 0.0
  %6896 = vmatprep.subr.mxu0 0.0
  %6897 = vmatpush1.xpose.msra.mxu0 0.0
  %6898 = vmatprep.mubr.f32.mxu0 %v6831
  %6899 = vmatmul.mubr.f32.gmra.mrb[0].mxu0 %v6827
  %v6900 = vpop.f32.mrb[0].mxu0
  %v6901 = vadd.f32 0.0, %v6900
  %v6902 = vpop.f32.mrb[0].mxu0
  %6903 = vdwg.mxu0
  %v6904 = vlaneseq
  %v6905 = vshrl.u32 %v6904, 7
  %v6906 = vsub.s32 0, %v6905
  %v6907 = vrot.slane %v6780, %v6906
  %v6908 = vlaneseq
  %v6909 = vshrl.u32 %v6908, 7
  %v6910 = vsub.s32 1, %v6909
  %v6911 = vrot.slane %v6780, %v6910
  %6914 = vmatprep.subr.mxu0 %v6797
  %6915 = vmatpush1.xpose.msra.mxu0 %v6796
  %6916 = vmatprep.subr.mxu0 %v6799
  %6917 = vmatpush1.xpose.msra.mxu0 %v6798
  %6918 = vmatprep.subr.mxu0 0.0
  %6919 = vmatpush1.xpose.msra.mxu0 0.0
  %6920 = vmatprep.subr.mxu0 0.0
  %6921 = vmatpush1.xpose.msra.mxu0 0.0
  %6922 = vmatprep.subr.mxu0 0.0
  %6923 = vmatpush1.xpose.msra.mxu0 0.0
  %6924 = vmatprep.subr.mxu0 0.0
  %6925 = vmatpush1.xpose.msra.mxu0 0.0
  %6926 = vmatprep.subr.mxu0 0.0
  %6927 = vmatpush1.xpose.msra.mxu0 0.0
  %6928 = vmatprep.subr.mxu0 0.0
  %6929 = vmatpush1.xpose.msra.mxu0 0.0
  %6930 = vmatprep.subr.mxu0 0.0
  %6931 = vmatpush1.xpose.msra.mxu0 0.0
  %6932 = vmatprep.subr.mxu0 0.0
  %6933 = vmatpush1.xpose.msra.mxu0 0.0
  %6934 = vmatprep.subr.mxu0 0.0
  %6935 = vmatpush1.xpose.msra.mxu0 0.0
  %6936 = vmatprep.subr.mxu0 0.0
  %6937 = vmatpush1.xpose.msra.mxu0 0.0
  %6938 = vmatprep.subr.mxu0 0.0
  %6939 = vmatpush1.xpose.msra.mxu0 0.0
  %6940 = vmatprep.subr.mxu0 0.0
  %6941 = vmatpush1.xpose.msra.mxu0 0.0
  %6942 = vmatprep.subr.mxu0 0.0
  %6943 = vmatpush1.xpose.msra.mxu0 0.0
  %6944 = vmatprep.subr.mxu0 0.0
  %6945 = vmatpush1.xpose.msra.mxu0 0.0
  %6946 = vmatprep.subr.mxu0 0.0
  %6947 = vmatpush1.xpose.msra.mxu0 0.0
  %6948 = vmatprep.subr.mxu0 0.0
  %6949 = vmatpush1.xpose.msra.mxu0 0.0
  %6950 = vmatprep.subr.mxu0 0.0
  %6951 = vmatpush1.xpose.msra.mxu0 0.0
  %6952 = vmatprep.subr.mxu0 0.0
  %6953 = vmatpush1.xpose.msra.mxu0 0.0
  %6954 = vmatprep.subr.mxu0 0.0
  %6955 = vmatpush1.xpose.msra.mxu0 0.0
  %6956 = vmatprep.subr.mxu0 0.0
  %6957 = vmatpush1.xpose.msra.mxu0 0.0
  %6958 = vmatprep.subr.mxu0 0.0
  %6959 = vmatpush1.xpose.msra.mxu0 0.0
  %6960 = vmatprep.subr.mxu0 0.0
  %6961 = vmatpush1.xpose.msra.mxu0 0.0
  %6962 = vmatprep.subr.mxu0 0.0
  %6963 = vmatpush1.xpose.msra.mxu0 0.0
  %6964 = vmatprep.subr.mxu0 0.0
  %6965 = vmatpush1.xpose.msra.mxu0 0.0
  %6966 = vmatprep.subr.mxu0 0.0
  %6967 = vmatpush1.xpose.msra.mxu0 0.0
  %6968 = vmatprep.subr.mxu0 0.0
  %6969 = vmatpush1.xpose.msra.mxu0 0.0
  %6970 = vmatprep.subr.mxu0 0.0
  %6971 = vmatpush1.xpose.msra.mxu0 0.0
  %6972 = vmatprep.subr.mxu0 0.0
  %6973 = vmatpush1.xpose.msra.mxu0 0.0
  %6974 = vmatprep.subr.mxu0 0.0
  %6975 = vmatpush1.xpose.msra.mxu0 0.0
  %6976 = vmatprep.subr.mxu0 0.0
  %6977 = vmatpush1.xpose.msra.mxu0 0.0
  %6978 = vmatprep.mubr.f32.mxu0 %v6911
  %6979 = vmatmul.mubr.f32.gmra.mrb[0].mxu0 %v6907
  %v6980 = vpop.f32.mrb[0].mxu0
  %v6981 = vadd.f32 0.0, %v6980
  %v6982 = vpop.f32.mrb[0].mxu0
  %6983 = vdwg.mxu0
  %v6984 = vlaneseq
  %v6985 = vshrl.u32 %v6984, 7
  %v6986 = vsub.s32 0, %v6985
  %v6987 = vrot.slane %v6788, %v6986
  %v6988 = vlaneseq
  %v6989 = vshrl.u32 %v6988, 7
  %v6990 = vsub.s32 1, %v6989
  %v6991 = vrot.slane %v6788, %v6990
  %6994 = vmatprep.subr.mxu0 %v6801
  %6995 = vmatpush1.xpose.msra.mxu0 %v6800
  %6996 = vmatprep.subr.mxu0 %v6803
  %6997 = vmatpush1.xpose.msra.mxu0 %v6802
  %6998 = vmatprep.subr.mxu0 0.0
  %6999 = vmatpush1.xpose.msra.mxu0 0.0
  %7000 = vmatprep.subr.mxu0 0.0
  %7001 = vmatpush1.xpose.msra.mxu0 0.0
  %7002 = vmatprep.subr.mxu0 0.0
  %7003 = vmatpush1.xpose.msra.mxu0 0.0
  %7004 = vmatprep.subr.mxu0 0.0
  %7005 = vmatpush1.xpose.msra.mxu0 0.0
  %7006 = vmatprep.subr.mxu0 0.0
  %7007 = vmatpush1.xpose.msra.mxu0 0.0
  %7008 = vmatprep.subr.mxu0 0.0
  %7009 = vmatpush1.xpose.msra.mxu0 0.0
  %7010 = vmatprep.subr.mxu0 0.0
  %7011 = vmatpush1.xpose.msra.mxu0 0.0
  %7012 = vmatprep.subr.mxu0 0.0
  %7013 = vmatpush1.xpose.msra.mxu0 0.0
  %7014 = vmatprep.subr.mxu0 0.0
  %7015 = vmatpush1.xpose.msra.mxu0 0.0
  %7016 = vmatprep.subr.mxu0 0.0
  %7017 = vmatpush1.xpose.msra.mxu0 0.0
  %7018 = vmatprep.subr.mxu0 0.0
  %7019 = vmatpush1.xpose.msra.mxu0 0.0
  %7020 = vmatprep.subr.mxu0 0.0
  %7021 = vmatpush1.xpose.msra.mxu0 0.0
  %7022 = vmatprep.subr.mxu0 0.0
  %7023 = vmatpush1.xpose.msra.mxu0 0.0
  %7024 = vmatprep.subr.mxu0 0.0
  %7025 = vmatpush1.xpose.msra.mxu0 0.0
  %7026 = vmatprep.subr.mxu0 0.0
  %7027 = vmatpush1.xpose.msra.mxu0 0.0
  %7028 = vmatprep.subr.mxu0 0.0
  %7029 = vmatpush1.xpose.msra.mxu0 0.0
  %7030 = vmatprep.subr.mxu0 0.0
  %7031 = vmatpush1.xpose.msra.mxu0 0.0
  %7032 = vmatprep.subr.mxu0 0.0
  %7033 = vmatpush1.xpose.msra.mxu0 0.0
  %7034 = vmatprep.subr.mxu0 0.0
  %7035 = vmatpush1.xpose.msra.mxu0 0.0
  %7036 = vmatprep.subr.mxu0 0.0
  %7037 = vmatpush1.xpose.msra.mxu0 0.0
  %7038 = vmatprep.subr.mxu0 0.0
  %7039 = vmatpush1.xpose.msra.mxu0 0.0
  %7040 = vmatprep.subr.mxu0 0.0
  %7041 = vmatpush1.xpose.msra.mxu0 0.0
  %7042 = vmatprep.subr.mxu0 0.0
  %7043 = vmatpush1.xpose.msra.mxu0 0.0
  %7044 = vmatprep.subr.mxu0 0.0
  %7045 = vmatpush1.xpose.msra.mxu0 0.0
  %7046 = vmatprep.subr.mxu0 0.0
  %7047 = vmatpush1.xpose.msra.mxu0 0.0
  %7048 = vmatprep.subr.mxu0 0.0
  %7049 = vmatpush1.xpose.msra.mxu0 0.0
  %7050 = vmatprep.subr.mxu0 0.0
  %7051 = vmatpush1.xpose.msra.mxu0 0.0
  %7052 = vmatprep.subr.mxu0 0.0
  %7053 = vmatpush1.xpose.msra.mxu0 0.0
  %7054 = vmatprep.subr.mxu0 0.0
  %7055 = vmatpush1.xpose.msra.mxu0 0.0
  %7056 = vmatprep.subr.mxu0 0.0
  %7057 = vmatpush1.xpose.msra.mxu0 0.0
  %7058 = vmatprep.mubr.f32.mxu0 %v6991
  %7059 = vmatmul.mubr.f32.gmra.mrb[0].mxu0 %v6987
  %v7060 = vpop.f32.mrb[0].mxu0
  %v7061 = vadd.f32 0.0, %v7060
  %v7062 = vpop.f32.mrb[0].mxu0
  %7063 = vdwg.mxu0
  %v7064 = vlaneseq
  %v7065 = vshrl.u32 %v7064, 7
  %v7066 = vsub.s32 0, %v7065
  %v7067 = vrot.slane %v6790, %v7066
  %v7068 = vlaneseq
  %v7069 = vshrl.u32 %v7068, 7
  %v7070 = vsub.s32 1, %v7069
  %v7071 = vrot.slane %v6790, %v7070
  %7074 = vmatprep.subr.mxu0 %v6805
  %7075 = vmatpush1.xpose.msra.mxu0 %v6804
  %7076 = vmatprep.subr.mxu0 %v6807
  %7077 = vmatpush1.xpose.msra.mxu0 %v6806
  %7078 = vmatprep.subr.mxu0 0.0
  %7079 = vmatpush1.xpose.msra.mxu0 0.0
  %7080 = vmatprep.subr.mxu0 0.0
  %7081 = vmatpush1.xpose.msra.mxu0 0.0
  %7082 = vmatprep.subr.mxu0 0.0
  %7083 = vmatpush1.xpose.msra.mxu0 0.0
  %7084 = vmatprep.subr.mxu0 0.0
  %7085 = vmatpush1.xpose.msra.mxu0 0.0
  %7086 = vmatprep.subr.mxu0 0.0
  %7087 = vmatpush1.xpose.msra.mxu0 0.0
  %7088 = vmatprep.subr.mxu0 0.0
  %7089 = vmatpush1.xpose.msra.mxu0 0.0
  %7090 = vmatprep.subr.mxu0 0.0
  %7091 = vmatpush1.xpose.msra.mxu0 0.0
  %7092 = vmatprep.subr.mxu0 0.0
  %7093 = vmatpush1.xpose.msra.mxu0 0.0
  %7094 = vmatprep.subr.mxu0 0.0
  %7095 = vmatpush1.xpose.msra.mxu0 0.0
  %7096 = vmatprep.subr.mxu0 0.0
  %7097 = vmatpush1.xpose.msra.mxu0 0.0
  %7098 = vmatprep.subr.mxu0 0.0
  %7099 = vmatpush1.xpose.msra.mxu0 0.0
  %7100 = vmatprep.subr.mxu0 0.0
  %7101 = vmatpush1.xpose.msra.mxu0 0.0
  %7102 = vmatprep.subr.mxu0 0.0
  %7103 = vmatpush1.xpose.msra.mxu0 0.0
  %7104 = vmatprep.subr.mxu0 0.0
  %7105 = vmatpush1.xpose.msra.mxu0 0.0
  %7106 = vmatprep.subr.mxu0 0.0
  %7107 = vmatpush1.xpose.msra.mxu0 0.0
  %7108 = vmatprep.subr.mxu0 0.0
  %7109 = vmatpush1.xpose.msra.mxu0 0.0
  %7110 = vmatprep.subr.mxu0 0.0
  %7111 = vmatpush1.xpose.msra.mxu0 0.0
  %7112 = vmatprep.subr.mxu0 0.0
  %7113 = vmatpush1.xpose.msra.mxu0 0.0
  %7114 = vmatprep.subr.mxu0 0.0
  %7115 = vmatpush1.xpose.msra.mxu0 0.0
  %7116 = vmatprep.subr.mxu0 0.0
  %7117 = vmatpush1.xpose.msra.mxu0 0.0
  %7118 = vmatprep.subr.mxu0 0.0
  %7119 = vmatpush1.xpose.msra.mxu0 0.0
  %7120 = vmatprep.subr.mxu0 0.0
  %7121 = vmatpush1.xpose.msra.mxu0 0.0
  %7122 = vmatprep.subr.mxu0 0.0
  %7123 = vmatpush1.xpose.msra.mxu0 0.0
  %7124 = vmatprep.subr.mxu0 0.0
  %7125 = vmatpush1.xpose.msra.mxu0 0.0
  %7126 = vmatprep.subr.mxu0 0.0
  %7127 = vmatpush1.xpose.msra.mxu0 0.0
  %7128 = vmatprep.subr.mxu0 0.0
  %7129 = vmatpush1.xpose.msra.mxu0 0.0
  %7130 = vmatprep.subr.mxu0 0.0
  %7131 = vmatpush1.xpose.msra.mxu0 0.0
  %7132 = vmatprep.subr.mxu0 0.0
  %7133 = vmatpush1.xpose.msra.mxu0 0.0
  %7134 = vmatprep.subr.mxu0 0.0
  %7135 = vmatpush1.xpose.msra.mxu0 0.0
  %7136 = vmatprep.subr.mxu0 0.0
  %7137 = vmatpush1.xpose.msra.mxu0 0.0
  %7138 = vmatprep.mubr.f32.mxu0 %v7071
  %7139 = vmatmul.mubr.f32.gmra.mrb[0].mxu0 %v7067
  %v7140 = vpop.f32.mrb[0].mxu0
  %v7141 = vadd.f32 0.0, %v7140
  %v7142 = vpop.f32.mrb[0].mxu0
  %7143 = vdwg.mxu0
  %v7144 = vlaneseq
  %v7145 = vshrl.u32 %v7144, 7
  %v7146 = vsub.s32 0, %v7145
  %v7147 = vrot.slane %v6773, %v7146
  %v7148 = vlaneseq
  %v7149 = vshrl.u32 %v7148, 7
  %v7150 = vsub.s32 1, %v7149
  %v7151 = vrot.slane %v6773, %v7150
  %7154 = vmatprep.subr.mxu0 %v6809
  %7155 = vmatpush1.xpose.msra.mxu0 %v6808
  %7156 = vmatprep.subr.mxu0 %v6811
  %7157 = vmatpush1.xpose.msra.mxu0 %v6810
  %7158 = vmatprep.subr.mxu0 0.0
  %7159 = vmatpush1.xpose.msra.mxu0 0.0
  %7160 = vmatprep.subr.mxu0 0.0
  %7161 = vmatpush1.xpose.msra.mxu0 0.0
  %7162 = vmatprep.subr.mxu0 0.0
  %7163 = vmatpush1.xpose.msra.mxu0 0.0
  %7164 = vmatprep.subr.mxu0 0.0
  %7165 = vmatpush1.xpose.msra.mxu0 0.0
  %7166 = vmatprep.subr.mxu0 0.0
  %7167 = vmatpush1.xpose.msra.mxu0 0.0
  %7168 = vmatprep.subr.mxu0 0.0
  %7169 = vmatpush1.xpose.msra.mxu0 0.0
  %7170 = vmatprep.subr.mxu0 0.0
  %7171 = vmatpush1.xpose.msra.mxu0 0.0
  %7172 = vmatprep.subr.mxu0 0.0
  %7173 = vmatpush1.xpose.msra.mxu0 0.0
  %7174 = vmatprep.subr.mxu0 0.0
  %7175 = vmatpush1.xpose.msra.mxu0 0.0
  %7176 = vmatprep.subr.mxu0 0.0
  %7177 = vmatpush1.xpose.msra.mxu0 0.0
  %7178 = vmatprep.subr.mxu0 0.0
  %7179 = vmatpush1.xpose.msra.mxu0 0.0
  %7180 = vmatprep.subr.mxu0 0.0
  %7181 = vmatpush1.xpose.msra.mxu0 0.0
  %7182 = vmatprep.subr.mxu0 0.0
  %7183 = vmatpush1.xpose.msra.mxu0 0.0
  %7184 = vmatprep.subr.mxu0 0.0
  %7185 = vmatpush1.xpose.msra.mxu0 0.0
  %7186 = vmatprep.subr.mxu0 0.0
  %7187 = vmatpush1.xpose.msra.mxu0 0.0
  %7188 = vmatprep.subr.mxu0 0.0
  %7189 = vmatpush1.xpose.msra.mxu0 0.0
  %7190 = vmatprep.subr.mxu0 0.0
  %7191 = vmatpush1.xpose.msra.mxu0 0.0
  %7192 = vmatprep.subr.mxu0 0.0
  %7193 = vmatpush1.xpose.msra.mxu0 0.0
  %7194 = vmatprep.subr.mxu0 0.0
  %7195 = vmatpush1.xpose.msra.mxu0 0.0
  %7196 = vmatprep.subr.mxu0 0.0
  %7197 = vmatpush1.xpose.msra.mxu0 0.0
  %7198 = vmatprep.subr.mxu0 0.0
  %7199 = vmatpush1.xpose.msra.mxu0 0.0
  %7200 = vmatprep.subr.mxu0 0.0
  %7201 = vmatpush1.xpose.msra.mxu0 0.0
  %7202 = vmatprep.subr.mxu0 0.0
  %7203 = vmatpush1.xpose.msra.mxu0 0.0
  %7204 = vmatprep.subr.mxu0 0.0
  %7205 = vmatpush1.xpose.msra.mxu0 0.0
  %7206 = vmatprep.subr.mxu0 0.0
  %7207 = vmatpush1.xpose.msra.mxu0 0.0
  %7208 = vmatprep.subr.mxu0 0.0
  %7209 = vmatpush1.xpose.msra.mxu0 0.0
  %7210 = vmatprep.subr.mxu0 0.0
  %7211 = vmatpush1.xpose.msra.mxu0 0.0
  %7212 = vmatprep.subr.mxu0 0.0
  %7213 = vmatpush1.xpose.msra.mxu0 0.0
  %7214 = vmatprep.subr.mxu0 0.0
  %7215 = vmatpush1.xpose.msra.mxu0 0.0
  %7216 = vmatprep.subr.mxu0 0.0
  %7217 = vmatpush1.xpose.msra.mxu0 0.0
  %7218 = vmatprep.mubr.f32.mxu0 %v7151
  %7219 = vmatmul.mubr.f32.gmra.mrb[0].mxu0 %v7147
  %v7220 = vpop.f32.mrb[0].mxu0
  %v7221 = vadd.f32 0.0, %v7220
  %v7222 = vpop.f32.mrb[0].mxu0
  %7223 = vdwg.mxu0
  %v7224 = vlaneseq
  %v7225 = vshrl.u32 %v7224, 7
  %v7226 = vsub.s32 0, %v7225
  %v7227 = vrot.slane %v6787, %v7226
  %v7228 = vlaneseq
  %v7229 = vshrl.u32 %v7228, 7
  %v7230 = vsub.s32 1, %v7229
  %v7231 = vrot.slane %v6787, %v7230
  %7234 = vmatprep.subr.mxu0 %v6813
  %7235 = vmatpush1.xpose.msra.mxu0 %v6812
  %7236 = vmatprep.subr.mxu0 %v6815
  %7237 = vmatpush1.xpose.msra.mxu0 %v6814
  %7238 = vmatprep.subr.mxu0 0.0
  %7239 = vmatpush1.xpose.msra.mxu0 0.0
  %7240 = vmatprep.subr.mxu0 0.0
  %7241 = vmatpush1.xpose.msra.mxu0 0.0
  %7242 = vmatprep.subr.mxu0 0.0
  %7243 = vmatpush1.xpose.msra.mxu0 0.0
  %7244 = vmatprep.subr.mxu0 0.0
  %7245 = vmatpush1.xpose.msra.mxu0 0.0
  %7246 = vmatprep.subr.mxu0 0.0
  %7247 = vmatpush1.xpose.msra.mxu0 0.0
  %7248 = vmatprep.subr.mxu0 0.0
  %7249 = vmatpush1.xpose.msra.mxu0 0.0
  %7250 = vmatprep.subr.mxu0 0.0
  %7251 = vmatpush1.xpose.msra.mxu0 0.0
  %7252 = vmatprep.subr.mxu0 0.0
  %7253 = vmatpush1.xpose.msra.mxu0 0.0
  %7254 = vmatprep.subr.mxu0 0.0
  %7255 = vmatpush1.xpose.msra.mxu0 0.0
  %7256 = vmatprep.subr.mxu0 0.0
  %7257 = vmatpush1.xpose.msra.mxu0 0.0
  %7258 = vmatprep.subr.mxu0 0.0
  %7259 = vmatpush1.xpose.msra.mxu0 0.0
  %7260 = vmatprep.subr.mxu0 0.0
  %7261 = vmatpush1.xpose.msra.mxu0 0.0
  %7262 = vmatprep.subr.mxu0 0.0
  %7263 = vmatpush1.xpose.msra.mxu0 0.0
  %7264 = vmatprep.subr.mxu0 0.0
  %7265 = vmatpush1.xpose.msra.mxu0 0.0
  %7266 = vmatprep.subr.mxu0 0.0
  %7267 = vmatpush1.xpose.msra.mxu0 0.0
  %7268 = vmatprep.subr.mxu0 0.0
  %7269 = vmatpush1.xpose.msra.mxu0 0.0
  %7270 = vmatprep.subr.mxu0 0.0
  %7271 = vmatpush1.xpose.msra.mxu0 0.0
  %7272 = vmatprep.subr.mxu0 0.0
  %7273 = vmatpush1.xpose.msra.mxu0 0.0
  %7274 = vmatprep.subr.mxu0 0.0
  %7275 = vmatpush1.xpose.msra.mxu0 0.0
  %7276 = vmatprep.subr.mxu0 0.0
  %7277 = vmatpush1.xpose.msra.mxu0 0.0
  %7278 = vmatprep.subr.mxu0 0.0
  %7279 = vmatpush1.xpose.msra.mxu0 0.0
  %7280 = vmatprep.subr.mxu0 0.0
  %7281 = vmatpush1.xpose.msra.mxu0 0.0
  %7282 = vmatprep.subr.mxu0 0.0
  %7283 = vmatpush1.xpose.msra.mxu0 0.0
  %7284 = vmatprep.subr.mxu0 0.0
  %7285 = vmatpush1.xpose.msra.mxu0 0.0
  %7286 = vmatprep.subr.mxu0 0.0
  %7287 = vmatpush1.xpose.msra.mxu0 0.0
  %7288 = vmatprep.subr.mxu0 0.0
  %7289 = vmatpush1.xpose.msra.mxu0 0.0
  %7290 = vmatprep.subr.mxu0 0.0
  %7291 = vmatpush1.xpose.msra.mxu0 0.0
  %7292 = vmatprep.subr.mxu0 0.0
  %7293 = vmatpush1.xpose.msra.mxu0 0.0
  %7294 = vmatprep.subr.mxu0 0.0
  %7295 = vmatpush1.xpose.msra.mxu0 0.0
  %7296 = vmatprep.subr.mxu0 0.0
  %7297 = vmatpush1.xpose.msra.mxu0 0.0
  %7298 = vmatprep.mubr.f32.mxu0 %v7231
  %7299 = vmatmul.mubr.f32.gmra.mrb[0].mxu0 %v7227
  %v7300 = vpop.f32.mrb[0].mxu0
  %v7301 = vadd.f32 0.0, %v7300
  %v7302 = vpop.f32.mrb[0].mxu0
  %7303 = vdwg.mxu0
  %v7304 = vlaneseq
  %v7305 = vshrl.u32 %v7304, 7
  %v7306 = vsub.s32 0, %v7305
  %v7307 = vrot.slane %v6789, %v7306
  %v7308 = vlaneseq
  %v7309 = vshrl.u32 %v7308, 7
  %v7310 = vsub.s32 1, %v7309
  %v7311 = vrot.slane %v6789, %v7310
  %7314 = vmatprep.subr.mxu0 %v6817
  %7315 = vmatpush1.xpose.msra.mxu0 %v6816
  %7316 = vmatprep.subr.mxu0 %v6819
  %7317 = vmatpush1.xpose.msra.mxu0 %v6818
  %7318 = vmatprep.subr.mxu0 0.0
  %7319 = vmatpush1.xpose.msra.mxu0 0.0
  %7320 = vmatprep.subr.mxu0 0.0
  %7321 = vmatpush1.xpose.msra.mxu0 0.0
  %7322 = vmatprep.subr.mxu0 0.0
  %7323 = vmatpush1.xpose.msra.mxu0 0.0
  %7324 = vmatprep.subr.mxu0 0.0
  %7325 = vmatpush1.xpose.msra.mxu0 0.0
  %7326 = vmatprep.subr.mxu0 0.0
  %7327 = vmatpush1.xpose.msra.mxu0 0.0
  %7328 = vmatprep.subr.mxu0 0.0
  %7329 = vmatpush1.xpose.msra.mxu0 0.0
  %7330 = vmatprep.subr.mxu0 0.0
  %7331 = vmatpush1.xpose.msra.mxu0 0.0
  %7332 = vmatprep.subr.mxu0 0.0
  %7333 = vmatpush1.xpose.msra.mxu0 0.0
  %7334 = vmatprep.subr.mxu0 0.0
  %7335 = vmatpush1.xpose.msra.mxu0 0.0
  %7336 = vmatprep.subr.mxu0 0.0
  %7337 = vmatpush1.xpose.msra.mxu0 0.0
  %7338 = vmatprep.subr.mxu0 0.0
  %7339 = vmatpush1.xpose.msra.mxu0 0.0
  %7340 = vmatprep.subr.mxu0 0.0
  %7341 = vmatpush1.xpose.msra.mxu0 0.0
  %7342 = vmatprep.subr.mxu0 0.0
  %7343 = vmatpush1.xpose.msra.mxu0 0.0
  %7344 = vmatprep.subr.mxu0 0.0
  %7345 = vmatpush1.xpose.msra.mxu0 0.0
  %7346 = vmatprep.subr.mxu0 0.0
  %7347 = vmatpush1.xpose.msra.mxu0 0.0
  %7348 = vmatprep.subr.mxu0 0.0
  %7349 = vmatpush1.xpose.msra.mxu0 0.0
  %7350 = vmatprep.subr.mxu0 0.0
  %7351 = vmatpush1.xpose.msra.mxu0 0.0
  %7352 = vmatprep.subr.mxu0 0.0
  %7353 = vmatpush1.xpose.msra.mxu0 0.0
  %7354 = vmatprep.subr.mxu0 0.0
  %7355 = vmatpush1.xpose.msra.mxu0 0.0
  %7356 = vmatprep.subr.mxu0 0.0
  %7357 = vmatpush1.xpose.msra.mxu0 0.0
  %7358 = vmatprep.subr.mxu0 0.0
  %7359 = vmatpush1.xpose.msra.mxu0 0.0
  %7360 = vmatprep.subr.mxu0 0.0
  %7361 = vmatpush1.xpose.msra.mxu0 0.0
  %7362 = vmatprep.subr.mxu0 0.0
  %7363 = vmatpush1.xpose.msra.mxu0 0.0
  %7364 = vmatprep.subr.mxu0 0.0
  %7365 = vmatpush1.xpose.msra.mxu0 0.0
  %7366 = vmatprep.subr.mxu0 0.0
  %7367 = vmatpush1.xpose.msra.mxu0 0.0
  %7368 = vmatprep.subr.mxu0 0.0
  %7369 = vmatpush1.xpose.msra.mxu0 0.0
  %7370 = vmatprep.subr.mxu0 0.0
  %7371 = vmatpush1.xpose.msra.mxu0 0.0
  %7372 = vmatprep.subr.mxu0 0.0
  %7373 = vmatpush1.xpose.msra.mxu0 0.0
  %7374 = vmatprep.subr.mxu0 0.0
  %7375 = vmatpush1.xpose.msra.mxu0 0.0
  %7376 = vmatprep.subr.mxu0 0.0
  %7377 = vmatpush1.xpose.msra.mxu0 0.0
  %7378 = vmatprep.mubr.f32.mxu0 %v7311
  %7379 = vmatmul.mubr.f32.gmra.mrb[0].mxu0 %v7307
  %v7380 = vpop.f32.mrb[0].mxu0
  %v7381 = vadd.f32 0.0, %v7380
  %v7382 = vpop.f32.mrb[0].mxu0
  %7383 = vdwg.mxu0
  %v7384 = vlaneseq
  %v7385 = vshrl.u32 %v7384, 7
  %v7386 = vsub.s32 0, %v7385
  %v7387 = vrot.slane %v6791, %v7386
  %v7388 = vlaneseq
  %v7389 = vshrl.u32 %v7388, 7
  %v7390 = vsub.s32 1, %v7389
  %v7391 = vrot.slane %v6791, %v7390
  %7394 = vmatprep.subr.mxu0 %v6821
  %7395 = vmatpush1.xpose.msra.mxu0 %v6820
  %7396 = vmatprep.subr.mxu0 %v6823
  %7397 = vmatpush1.xpose.msra.mxu0 %v6822
  %7398 = vmatprep.subr.mxu0 0.0
  %7399 = vmatpush1.xpose.msra.mxu0 0.0
  %7400 = vmatprep.subr.mxu0 0.0
  %7401 = vmatpush1.xpose.msra.mxu0 0.0
  %7402 = vmatprep.subr.mxu0 0.0
  %7403 = vmatpush1.xpose.msra.mxu0 0.0
  %7404 = vmatprep.subr.mxu0 0.0
  %7405 = vmatpush1.xpose.msra.mxu0 0.0
  %7406 = vmatprep.subr.mxu0 0.0
  %7407 = vmatpush1.xpose.msra.mxu0 0.0
  %7408 = vmatprep.subr.mxu0 0.0
  %7409 = vmatpush1.xpose.msra.mxu0 0.0
  %7410 = vmatprep.subr.mxu0 0.0
  %7411 = vmatpush1.xpose.msra.mxu0 0.0
  %7412 = vmatprep.subr.mxu0 0.0
  %7413 = vmatpush1.xpose.msra.mxu0 0.0
  %7414 = vmatprep.subr.mxu0 0.0
  %7415 = vmatpush1.xpose.msra.mxu0 0.0
  %7416 = vmatprep.subr.mxu0 0.0
  %7417 = vmatpush1.xpose.msra.mxu0 0.0
  %7418 = vmatprep.subr.mxu0 0.0
  %7419 = vmatpush1.xpose.msra.mxu0 0.0
  %7420 = vmatprep.subr.mxu0 0.0
  %7421 = vmatpush1.xpose.msra.mxu0 0.0
  %7422 = vmatprep.subr.mxu0 0.0
  %7423 = vmatpush1.xpose.msra.mxu0 0.0
  %7424 = vmatprep.subr.mxu0 0.0
  %7425 = vmatpush1.xpose.msra.mxu0 0.0
  %7426 = vmatprep.subr.mxu0 0.0
  %7427 = vmatpush1.xpose.msra.mxu0 0.0
  %7428 = vmatprep.subr.mxu0 0.0
  %7429 = vmatpush1.xpose.msra.mxu0 0.0
  %7430 = vmatprep.subr.mxu0 0.0
  %7431 = vmatpush1.xpose.msra.mxu0 0.0
  %7432 = vmatprep.subr.mxu0 0.0
  %7433 = vmatpush1.xpose.msra.mxu0 0.0
  %7434 = vmatprep.subr.mxu0 0.0
  %7435 = vmatpush1.xpose.msra.mxu0 0.0
  %7436 = vmatprep.subr.mxu0 0.0
  %7437 = vmatpush1.xpose.msra.mxu0 0.0
  %7438 = vmatprep.subr.mxu0 0.0
  %7439 = vmatpush1.xpose.msra.mxu0 0.0
  %7440 = vmatprep.subr.mxu0 0.0
  %7441 = vmatpush1.xpose.msra.mxu0 0.0
  %7442 = vmatprep.subr.mxu0 0.0
  %7443 = vmatpush1.xpose.msra.mxu0 0.0
  %7444 = vmatprep.subr.mxu0 0.0
  %7445 = vmatpush1.xpose.msra.mxu0 0.0
  %7446 = vmatprep.subr.mxu0 0.0
  %7447 = vmatpush1.xpose.msra.mxu0 0.0
  %7448 = vmatprep.subr.mxu0 0.0
  %7449 = vmatpush1.xpose.msra.mxu0 0.0
  %7450 = vmatprep.subr.mxu0 0.0
  %7451 = vmatpush1.xpose.msra.mxu0 0.0
  %7452 = vmatprep.subr.mxu0 0.0
  %7453 = vmatpush1.xpose.msra.mxu0 0.0
  %7454 = vmatprep.subr.mxu0 0.0
  %7455 = vmatpush1.xpose.msra.mxu0 0.0
  %7456 = vmatprep.subr.mxu0 0.0
  %7457 = vmatpush1.xpose.msra.mxu0 0.0
  %7458 = vmatprep.mubr.f32.mxu0 %v7391
  %7459 = vmatmul.mubr.f32.gmra.mrb[0].mxu0 %v7387
  %v7460 = vpop.f32.mrb[0].mxu0
  %v7461 = vadd.f32 0.0, %v7460
  %v7462 = vpop.f32.mrb[0].mxu0
  %7463 = vdwg.mxu0
  %v7472 = vrot.slane %v6981, 7
  %v7473 = vsel %vm962, %v7472, %v6901
  %v7474 = vrot.slane %v7061, 6
  %v7475 = vsel %vm965, %v7474, %v7473
  %v7476 = vrot.slane %v7141, 5
  %v7477 = vsel %vm968, %v7476, %v7475
  %v7478 = vrot.slane %v7221, 4
  %v7479 = vsel %vm971, %v7478, %v7477
  %v7480 = vrot.slane %v7301, 3
  %v7481 = vsel %vm974, %v7480, %v7479
  %v7482 = vrot.slane %v7381, 2
  %v7483 = vsel %vm977, %v7482, %v7481
  %v7484 = vrot.slane %v7461, 1
  %v7485 = vsel %vm980, %v7484, %v7483
  %v7487 = vsel %vm983, %v7485, 0.0
  %v7488 = vrot.slane %v7487, 4
  %v7489 = vadd.f32 %v7487, %v7488
  %v7490 = vrot.slane %v7489, 2
  %v7491 = vadd.f32 %v7489, %v7490
  %v7492 = vrot.slane %v7491, 1
  %v7493 = vadd.f32 %v7491, %v7492
  %v7494 = vadd.f32 %v7493, %v25
  %v7496 = vrot.slane %v1920, 7
  %v7499 = vrot.slane %v2849, 6
  %v7502 = vrot.slane %v3778, 5
  %v7505 = vrot.slane %v4707, 4
  %v7508 = vrot.slane %v5636, 3
  %v7511 = vrot.slane %v6565, 2
  %v7514 = vrot.slane %v7494, 1
  %vm7516 = vcmask 1040384
  %v7517 = vsel %vm7516, %v991, %v7496
  %vm7518 = vcmask 1041408
  %v7519 = vsel %vm7518, %v7517, %v7499
  %vm7520 = vcmask 1042432
  %v7521 = vsel %vm7520, %v7519, %v7502
  %v7522 = vsel %vm122, %v7521, %v7505
  %vm7523 = vcmask 1044480
  %v7524 = vsel %vm7523, %v7522, %v7508
  %vm7525 = vcmask 1045504
  %v7526 = vsel %vm7525, %v7524, %v7511
  %vm7527 = vcmask 1046528
  %v7528 = vsel %vm7527, %v7526, %v7514
  %7529 = vst.msk [vmem:[%s6] sm:$0xff] %vm983, %v7528
  // Predicated region
  $region26: #{catnet_forward.1} parent=0 // pred_check
    _
  $region27: #{catnet_forward.1} parent=0 // pred_check_branch
    %7531 = sbr.rel (0) target = $region29
  $region28: #{catnet_forward.1} parent=0 // pred_region
    _
  $region29: #{catnet_forward.1} parent=0 // pred_fallthru
    _
  // Predicated region
  $region30: #{catnet_forward.1} parent=0 // pred_check
    _
  $region31: #{catnet_forward.1} parent=0 // pred_check_branch
    %7533 = sbr.rel (0) target = $region33
  $region32: #{catnet_forward.1} parent=0 // pred_region
    _
  $region33: #{catnet_forward.1} parent=0 // pred_fallthru
    _

</llo_original>
